<compile_context>
chip_gen: v7x
topology: tpu7x:2x2x1
jax: 0.10.0
libtpu: 0.0.40
codegen_flags: <defaults>
</compile_context>

<pallas_src>
import numpy as np
import jax
import jax.numpy as jnp
from jax.experimental import pallas as pl
from jax.experimental.pallas import tpu as pltpu

# ----------------------------- hyper-parameters ------------------------------
d_model = 32
d_ff = 64
d_k = 8
d_v = 8
n_heads = 4
n_layers = 2
src_len = 5
tgt_len = 5
src_vocab_size = 6
tgt_vocab_size = 7
LN_EPS = 1e-5
NEG_INF = -1e9
VOCAB_PAD = 128          # lane-dense padded width for the projection output
ATTN_PAD = 128           # lane-dense padded width for the attention maps


# ------------------------------ helpers (XLA glue) ----------------------------
def get_sinusoid_encoding_table(n_position, dm):
    def cal_angle(position, hid_idx):
        return position / np.power(10000, 2 * (hid_idx // 2) / dm)

    table = np.array(
        [[cal_angle(pos, j) for j in range(dm)] for pos in range(n_position)],
        dtype=np.float64,
    )
    table[:, 0::2] = np.sin(table[:, 0::2])
    table[:, 1::2] = np.cos(table[:, 1::2])
    return jnp.asarray(table, dtype=jnp.float32)


def get_attn_pad_mask(seq_q, seq_k):
    B, Lq = seq_q.shape
    _, Lk = seq_k.shape
    pad = (seq_k == 0)[:, None, :]
    return jnp.broadcast_to(pad, (B, Lq, Lk))                 # bool


def get_attn_subsequent_mask(seq):
    B, L = seq.shape
    sub = jnp.triu(jnp.ones((L, L), dtype=jnp.int32), k=1)
    return jnp.broadcast_to(sub[None], (B, L, L))             # int32


# ------------------------------ weight packing --------------------------------
def pack_weights(params):
    """Pack all model weights into one lane-dense [rows, 128] f32 buffer.

    Every item is placed at an 8-row-aligned offset; `layout[name]` records
    (row_offset, n_rows, n_cols) for static slicing inside the kernel.
    The 1/sqrt(d_k) score scale is folded into the Q columns of W_qkv / b_qkv.
    """
    rows = []
    layout = {}
    offset = 0

    def add(name, arr):
        nonlocal offset
        arr = np.asarray(arr, np.float32)
        if arr.ndim == 1:
            arr = arr.reshape(1, -1)
        r, c = arr.shape
        r_pad = ((r + 7) // 8) * 8
        buf = np.zeros((r_pad, 128), np.float32)
        buf[:r, :c] = arr
        layout[name] = (offset, r, c)
        rows.append(buf)
        offset += r_pad

    scale = 1.0 / np.sqrt(d_k)

    def add_mha(prefix, p):
        wq = np.asarray(p["wq"], np.float32) * scale
        bq = np.asarray(p["bq"], np.float32).reshape(-1) * scale
        wk = np.asarray(p["wk"], np.float32)
        bk = np.asarray(p["bk"], np.float32).reshape(-1)
        wv = np.asarray(p["wv"], np.float32)
        bv = np.asarray(p["bv"], np.float32).reshape(-1)
        add(prefix + "wqkv", np.concatenate([wq, wk, wv], axis=1))      # [32, 96]
        add(prefix + "bqkv", np.concatenate([bq, bk, bv])[None, :])     # [1, 96]
        add(prefix + "wo", np.asarray(p["wo"], np.float32))             # [32, 32]
        add(prefix + "bo", np.asarray(p["bo"], np.float32).reshape(1, -1))
        add(prefix + "ln_g", np.asarray(p["gamma"], np.float32).reshape(1, -1))
        add(prefix + "ln_b", np.asarray(p["beta"], np.float32).reshape(1, -1))

    def add_ffn(prefix, p):
        add(prefix + "w1", np.asarray(p["w1"], np.float32))             # [32, 64]
        add(prefix + "b1", np.asarray(p["b1"], np.float32).reshape(1, -1))
        add(prefix + "w2", np.asarray(p["w2"], np.float32))             # [64, 32]
        add(prefix + "b2", np.asarray(p["b2"], np.float32).reshape(1, -1))
        add(prefix + "ln_g", np.asarray(p["gamma"], np.float32).reshape(1, -1))
        add(prefix + "ln_b", np.asarray(p["beta"], np.float32).reshape(1, -1))

    for l, lp in enumerate(params["enc_layers"]):
        add_mha(f"enc{l}_sa_", lp["self_attn"])
        add_ffn(f"enc{l}_ff_", lp["ffn"])
    for l, lp in enumerate(params["dec_layers"]):
        add_mha(f"dec{l}_sa_", lp["self_attn"])
        add_mha(f"dec{l}_ea_", lp["enc_attn"])
        add_ffn(f"dec{l}_ff_", lp["ffn"])

    proj_pad = np.zeros((d_model, VOCAB_PAD), np.float32)
    proj_pad[:, :tgt_vocab_size] = np.asarray(params["proj_w"], np.float32)
    add("proj_w", proj_pad)                                             # [32, 128]

    packed = jnp.asarray(np.concatenate(rows, axis=0))                  # [R, 128]
    return packed, layout


# ------------------------------ fused Pallas kernel ---------------------------
def fused_transformer_call(enc_emb, dec_emb, enc_bias, dec_self_bias, dec_enc_bias,
                           packed_w, layout):
    B, Ss, D = enc_emb.shape
    _, St, _ = dec_emb.shape
    L, H = n_layers, n_heads
    WR = packed_w.shape[0]
    SEQ = max(Ss, St)

    def kernel(enc_x_ref, dec_x_ref, eb_ref, dsb_ref, deb_ref, w_ref,
               logits_ref, enc_attn_ref, dec_sa_ref, dec_ea_ref, ctx_scr):

        def W(name):
            off, r, c = layout[name]          # static python ints
            return w_ref[off:off + r, :c]

        def layer_norm(x, g, b):
            mean = jnp.mean(x, axis=-1, keepdims=True)
            var = jnp.mean((x - mean) ** 2, axis=-1, keepdims=True)
            return (x - mean) * jax.lax.rsqrt(var + LN_EPS) * g + b

        def mha(xq, xkv, bias, prefix, attn_ref, l, self_attention):
            Sq = xq.shape[0]
            Sk = xkv.shape[0]
            wqkv = W(prefix + "wqkv")                         # [D, 3*H*dk]
            bqkv = W(prefix + "bqkv")                         # [1, 3*H*dk]
            wo = W(prefix + "wo")                             # [H*dv, D]
            bo = W(prefix + "bo")                             # [1, D]
            g = W(prefix + "ln_g")
            bt = W(prefix + "ln_b")

            # One lane-dense projection for all heads and all of Q/K/V
            # (Q columns pre-scaled by 1/sqrt(d_k) at pack time).
            qkv_q = jnp.dot(xq, wqkv, preferred_element_type=jnp.float32) + bqkv
            if self_attention:
                qkv_kv = qkv_q
            else:
                qkv_kv = jnp.dot(xkv, wqkv,
                                 preferred_element_type=jnp.float32) + bqkv

            q_off = 0
            k_off = H * d_k
            v_off = 2 * H * d_k
            for h in range(H):
                qh = qkv_q[:, q_off + h * d_k:q_off + (h + 1) * d_k]   # [Sq, dk]
                kh = qkv_kv[:, k_off + h * d_k:k_off + (h + 1) * d_k]  # [Sk, dk]
                vh = qkv_kv[:, v_off + h * d_v:v_off + (h + 1) * d_v]  # [Sk, dv]
                sc = jnp.einsum('qd,kd->qk', qh, kh,
                                preferred_element_type=jnp.float32) + bias
                m = jnp.max(sc, axis=-1, keepdims=True)
                e = jnp.exp(sc - m)
                a = e * pl.reciprocal(jnp.sum(e, axis=-1, keepdims=True),
                                      approx=True)
                # Attention map -> lane-dense (128 wide) output block; only the
                # first Sk lanes carry data, pad lanes were zero-filled once.
                attn_ref[0, l, h, :, 0:Sk] = a
                ctx_h = jnp.dot(a, vh, preferred_element_type=jnp.float32)
                # Per-head context goes to its lane slot of the scratch so the
                # output projection is a single depth-(H*dv) matmul.
                ctx_scr[0:Sq, h * d_v:(h + 1) * d_v] = ctx_h

            ctx = ctx_scr[0:Sq, :]                             # [Sq, H*dv]
            out = jnp.dot(ctx, wo, preferred_element_type=jnp.float32) + bo + xq
            return layer_norm(out, g, bt)

        def ffn(x, prefix):
            w1 = W(prefix + "w1"); b1 = W(prefix + "b1")
            w2 = W(prefix + "w2"); b2 = W(prefix + "b2")
            g = W(prefix + "ln_g"); bt = W(prefix + "ln_b")
            h = jnp.maximum(jnp.dot(x, w1, preferred_element_type=jnp.float32) + b1,
                            0.0)
            y = jnp.dot(h, w2, preferred_element_type=jnp.float32) + b2 + x
            return layer_norm(y, g, bt)

        # Zero-fill the padded attention outputs once (dense VMEM stores) so the
        # lane-padding written back to HBM is deterministic.
        enc_attn_ref[...] = jnp.zeros(enc_attn_ref.shape, jnp.float32)
        dec_sa_ref[...] = jnp.zeros(dec_sa_ref.shape, jnp.float32)
        dec_ea_ref[...] = jnp.zeros(dec_ea_ref.shape, jnp.float32)

        enc_x = enc_x_ref[0]
        dec_x = dec_x_ref[0]
        eb = eb_ref[0]
        dsb = dsb_ref[0]
        deb = deb_ref[0]

        for l in range(n_layers):                  # static unrolled layer loop
            enc_x = mha(enc_x, enc_x, eb, f"enc{l}_sa_", enc_attn_ref, l, True)
            enc_x = ffn(enc_x, f"enc{l}_ff_")

        for l in range(n_layers):
            dec_x = mha(dec_x, dec_x, dsb, f"dec{l}_sa_", dec_sa_ref, l, True)
            dec_x = mha(dec_x, enc_x, deb, f"dec{l}_ea_", dec_ea_ref, l, False)
            dec_x = ffn(dec_x, f"dec{l}_ff_")

        # Final projection, lane-dense (padded to 128 columns, pad cols are 0).
        logits_ref[0] = jnp.dot(dec_x, W("proj_w"),
                                preferred_element_type=jnp.float32)

    in_specs = [
        pl.BlockSpec((1, Ss, D), lambda b: (b, 0, 0)),
        pl.BlockSpec((1, St, D), lambda b: (b, 0, 0)),
        pl.BlockSpec((1, Ss, Ss), lambda b: (b, 0, 0)),
        pl.BlockSpec((1, St, St), lambda b: (b, 0, 0)),
        pl.BlockSpec((1, St, Ss), lambda b: (b, 0, 0)),
        pl.BlockSpec((WR, 128), lambda b: (0, 0)),         # single packed weight DMA
    ]
    out_shapes = (
        jax.ShapeDtypeStruct((B, St, VOCAB_PAD), jnp.float32),
        jax.ShapeDtypeStruct((B, L, H, Ss, ATTN_PAD), jnp.float32),
        jax.ShapeDtypeStruct((B, L, H, St, ATTN_PAD), jnp.float32),
        jax.ShapeDtypeStruct((B, L, H, St, ATTN_PAD), jnp.float32),
    )
    out_specs = (
        pl.BlockSpec((1, St, VOCAB_PAD), lambda b: (b, 0, 0)),
        pl.BlockSpec((1, L, H, Ss, ATTN_PAD), lambda b: (b, 0, 0, 0, 0)),
        pl.BlockSpec((1, L, H, St, ATTN_PAD), lambda b: (b, 0, 0, 0, 0)),
        pl.BlockSpec((1, L, H, St, ATTN_PAD), lambda b: (b, 0, 0, 0, 0)),
    )

    attn_out_bytes = 4 * B * L * H * (Ss + 2 * St) * ATTN_PAD
    cost = pl.CostEstimate(
        flops=600_000 * B,                 # ~0.53 MFLOP per sequence (rounded up)
        transcendentals=1_000 * B,         # exp/rsqrt count
        bytes_accessed=int(packed_w.size * 4
                           + 4 * (enc_emb.size + dec_emb.size)
                           + 4 * B * St * VOCAB_PAD
                           + attn_out_bytes),
    )

    return pl.pallas_call(
        kernel,
        out_shape=out_shapes,
        grid=(B,),
        in_specs=in_specs,
        out_specs=out_specs,
        scratch_shapes=[pltpu.VMEM((SEQ, n_heads * d_v), jnp.float32)],
        compiler_params=pltpu.CompilerParams(dimension_semantics=("parallel",)),
        cost_estimate=cost,
    )(enc_emb, dec_emb, enc_bias, dec_self_bias, dec_enc_bias, packed_w)


# ------------------------------ full forward ----------------------------------
def transformer_forward(params, enc_inputs, dec_inputs):
    B, Ss = enc_inputs.shape
    _, St = dec_inputs.shape

    # Embedding gather + positional add in plain XLA (integer gather is not a
    # good fit for a Pallas TPU kernel at this size).  The reference PyTorch
    # module hard-codes the positional index tensors; replicate that.
    enc_pos = jnp.broadcast_to(jnp.array([[1, 2, 3, 4, 0]], jnp.int32), (B, Ss))
    dec_pos = jnp.broadcast_to(jnp.array([[5, 1, 2, 3, 4]], jnp.int32), (B, St))
    enc_emb = params["src_emb"][enc_inputs] + params["src_pos"][enc_pos]
    dec_emb = params["tgt_emb"][dec_inputs] + params["tgt_pos"][dec_pos]

    # Additive mask biases (0 keep / -1e9 masked), computed once in XLA.
    enc_self_bias = get_attn_pad_mask(enc_inputs, enc_inputs).astype(jnp.float32) * NEG_INF
    dec_pad = get_attn_pad_mask(dec_inputs, dec_inputs).astype(jnp.int32)
    dec_sub = get_attn_subsequent_mask(dec_inputs)
    dec_self_bias = ((dec_pad + dec_sub) > 0).astype(jnp.float32) * NEG_INF
    dec_enc_bias = get_attn_pad_mask(dec_inputs, enc_inputs).astype(jnp.float32) * NEG_INF

    packed_w, layout = pack_weights(params)

    logits_pad, enc_attn, dec_sa, dec_ea = fused_transformer_call(
        enc_emb, dec_emb, enc_self_bias, dec_self_bias, dec_enc_bias,
        packed_w, layout)

    dec_logits = logits_pad[:, :, :tgt_vocab_size]
    flatten_logit = dec_logits.reshape(-1, tgt_vocab_size)
    enc_self_attns = [enc_attn[:, l, :, :, :Ss] for l in range(n_layers)]
    dec_self_attns = [dec_sa[:, l, :, :, :St] for l in range(n_layers)]
    dec_enc_attns = [dec_ea[:, l, :, :, :Ss] for l in range(n_layers)]
    return flatten_logit, enc_self_attns, dec_self_attns, dec_enc_attns


# ------------------------------ plain-JAX reference ----------------------------
def _ref_layer_norm(x, g, b):
    mean = jnp.mean(x, axis=-1, keepdims=True)
    var = jnp.mean((x - mean) ** 2, axis=-1, keepdims=True)
    return (x - mean) * jax.lax.rsqrt(var + LN_EPS) * g + b


def _ref_mha(xq, xkv, mask_bool, p):
    B, Sq, _ = xq.shape
    Sk = xkv.shape[1]
    q = xq @ p["wq"] + p["bq"]
    k = xkv @ p["wk"] + p["bk"]
    v = xkv @ p["wv"] + p["bv"]
    qh = q.reshape(B, Sq, n_heads, d_k).transpose(0, 2, 1, 3)
    kh = k.reshape(B, Sk, n_heads, d_k).transpose(0, 2, 1, 3)
    vh = v.reshape(B, Sk, n_heads, d_v).transpose(0, 2, 1, 3)
    scores = (qh @ kh.transpose(0, 1, 3, 2)) / np.sqrt(d_k)
    scores = jnp.where(mask_bool[:, None], NEG_INF, scores)
    attn = jax.nn.softmax(scores, axis=-1)
    ctx = (attn @ vh).transpose(0, 2, 1, 3).reshape(B, Sq, n_heads * d_v)
    out = ctx @ p["wo"] + p["bo"]
    return _ref_layer_norm(out + xq, p["gamma"], p["beta"]), attn


def _ref_ffn(x, p):
    h = jnp.maximum(x @ p["w1"] + p["b1"], 0.0)
    y = h @ p["w2"] + p["b2"]
    return _ref_layer_norm(y + x, p["gamma"], p["beta"])


def reference_forward(params, enc_inputs, dec_inputs):
    B, Ss = enc_inputs.shape
    _, St = dec_inputs.shape
    enc_pos = jnp.broadcast_to(jnp.array([[1, 2, 3, 4, 0]], jnp.int32), (B, Ss))
    dec_pos = jnp.broadcast_to(jnp.array([[5, 1, 2, 3, 4]], jnp.int32), (B, St))
    enc_out = params["src_emb"][enc_inputs] + params["src_pos"][enc_pos]
    dec_out = params["tgt_emb"][dec_inputs] + params["tgt_pos"][dec_pos]

    enc_mask = get_attn_pad_mask(enc_inputs, enc_inputs)
    dec_self_mask = (get_attn_pad_mask(dec_inputs, dec_inputs).astype(jnp.int32)
                     + get_attn_subsequent_mask(dec_inputs)) > 0
    dec_enc_mask = get_attn_pad_mask(dec_inputs, enc_inputs)

    enc_attns = []
    for lp in params["enc_layers"]:
        enc_out, a = _ref_mha(enc_out, enc_out, enc_mask, lp["self_attn"])
        enc_out = _ref_ffn(enc_out, lp["ffn"])
        enc_attns.append(a)
    dec_sas, dec_eas = [], []
    for lp in params["dec_layers"]:
        dec_out, sa = _ref_mha(dec_out, dec_out, dec_self_mask, lp["self_attn"])
        dec_out, ea = _ref_mha(dec_out, enc_out, dec_enc_mask, lp["enc_attn"])
        dec_out = _ref_ffn(dec_out, lp["ffn"])
        dec_sas.append(sa)
        dec_eas.append(ea)
    logits = dec_out @ params["proj_w"]
    return logits.reshape(-1, tgt_vocab_size), enc_attns, dec_sas, dec_eas


# ------------------------------ parameter init --------------------------------
def init_mha_params(key):
    ks = jax.random.split(key, 8)
    return {
        "wq": jax.random.normal(ks[0], (d_model, n_heads * d_k), jnp.float32) * 0.1,
        "bq": jax.random.normal(ks[1], (1, n_heads * d_k), jnp.float32) * 0.01,
        "wk": jax.random.normal(ks[2], (d_model, n_heads * d_k), jnp.float32) * 0.1,
        "bk": jax.random.normal(ks[3], (1, n_heads * d_k), jnp.float32) * 0.01,
        "wv": jax.random.normal(ks[4], (d_model, n_heads * d_v), jnp.float32) * 0.1,
        "bv": jax.random.normal(ks[5], (1, n_heads * d_v), jnp.float32) * 0.01,
        "wo": jax.random.normal(ks[6], (n_heads * d_v, d_model), jnp.float32) * 0.1,
        "bo": jax.random.normal(ks[7], (1, d_model), jnp.float32) * 0.01,
        "gamma": jnp.ones((1, d_model), jnp.float32),
        "beta": jnp.zeros((1, d_model), jnp.float32),
    }


def init_ffn_params(key):
    ks = jax.random.split(key, 4)
    return {
        "w1": jax.random.normal(ks[0], (d_model, d_ff), jnp.float32) * 0.1,
        "b1": jax.random.normal(ks[1], (1, d_ff), jnp.float32) * 0.01,
        "w2": jax.random.normal(ks[2], (d_ff, d_model), jnp.float32) * 0.1,
        "b2": jax.random.normal(ks[3], (1, d_model), jnp.float32) * 0.01,
        "gamma": jnp.ones((1, d_model), jnp.float32),
        "beta": jnp.zeros((1, d_model), jnp.float32),
    }


def init_transformer_params(key):
    keys = jax.random.split(key, 4 + 5 * n_layers)
    params = {
        "src_emb": jax.random.normal(keys[0], (src_vocab_size, d_model), jnp.float32) * 0.1,
        "tgt_emb": jax.random.normal(keys[1], (tgt_vocab_size, d_model), jnp.float32) * 0.1,
        "src_pos": get_sinusoid_encoding_table(src_len + 1, d_model),
        "tgt_pos": get_sinusoid_encoding_table(tgt_len + 1, d_model),
        "proj_w": jax.random.normal(keys[2], (d_model, tgt_vocab_size), jnp.float32) * 0.1,
        "enc_layers": [],
        "dec_layers": [],
    }
    ki = 4
    for _ in range(n_layers):
        params["enc_layers"].append({
            "self_attn": init_mha_params(keys[ki]),
            "ffn": init_ffn_params(keys[ki + 1]),
        })
        ki += 2
    for _ in range(n_layers):
        params["dec_layers"].append({
            "self_attn": init_mha_params(keys[ki]),
            "enc_attn": init_mha_params(keys[ki + 1]),
            "ffn": init_ffn_params(keys[ki + 2]),
        })
        ki += 3
    return params


# ------------------------------------ main -------------------------------------
if __name__ == "__main__":
    key = jax.random.PRNGKey(0)
    params = init_transformer_params(key)

    # Batch of two sentences (B=2) so the batch grid can span both TensorCores
    # on v7x; batch 0 is the original tutorial example.
    enc_inputs = jnp.array([[1, 2, 3, 4, 0],
                            [2, 3, 4, 1, 0]], dtype=jnp.int32)   # [2, 5]
    dec_inputs = jnp.array([[5, 1, 2, 3, 4],
                            [5, 2, 3, 4, 1]], dtype=jnp.int32)   # [2, 5]
    B = enc_inputs.shape[0]

    flat_logits, enc_attns, dec_self_attns, dec_enc_attns = transformer_forward(
        params, enc_inputs, dec_inputs)
    jax.block_until_ready(flat_logits)
    jax.block_until_ready(enc_attns[-1])
    jax.block_until_ready(dec_self_attns[-1])
    jax.block_until_ready(dec_enc_attns[-1])

    assert flat_logits.shape == (B * tgt_len, tgt_vocab_size)
    assert enc_attns[0].shape == (B, n_heads, src_len, src_len)
    assert dec_self_attns[0].shape == (B, n_heads, tgt_len, tgt_len)
    assert dec_enc_attns[0].shape == (B, n_heads, tgt_len, src_len)
    assert bool(jnp.all(jnp.isfinite(flat_logits)))

    # correctness vs. a pure-JAX reference (tolerance covers the approximate
    # EUP reciprocal in the in-kernel softmax).
    ref_logits, ref_enc, ref_dsa, ref_dea = reference_forward(params, enc_inputs, dec_inputs)
    assert float(jnp.max(jnp.abs(flat_logits - ref_logits))) < 1e-2
    for l in range(n_layers):
        assert float(jnp.max(jnp.abs(enc_attns[l] - ref_enc[l]))) < 1e-2
        assert float(jnp.max(jnp.abs(dec_self_attns[l] - ref_dsa[l]))) < 1e-2
        assert float(jnp.max(jnp.abs(dec_enc_attns[l] - ref_dea[l]))) < 1e-2

    print("KERNEL_OK")
</pallas_src>

<mosaic_0001>
module attributes {stable_mosaic.version = 11 : i64} {
  func.func @kernel(%arg0: i32, %arg1: memref<1x5x32xf32, #tpu.memory_space<vmem>>, %arg2: memref<1x5x32xf32, #tpu.memory_space<vmem>>, %arg3: memref<1x5x5xf32, #tpu.memory_space<vmem>>, %arg4: memref<1x5x5xf32, #tpu.memory_space<vmem>>, %arg5: memref<1x5x5xf32, #tpu.memory_space<vmem>>, %arg6: memref<1120x128xf32, #tpu.memory_space<vmem>>, %arg7: memref<1x5x128xf32, #tpu.memory_space<vmem>>, %arg8: memref<1x2x4x5x128xf32, #tpu.memory_space<vmem>>, %arg9: memref<1x2x4x5x128xf32, #tpu.memory_space<vmem>>, %arg10: memref<1x2x4x5x128xf32, #tpu.memory_space<vmem>>, %arg11: memref<5x32xf32, #tpu.memory_space<vmem>>) attributes {dimension_semantics = [#tpu.dimension_semantics<parallel>], iteration_bounds = array<i64: 2>, scalar_prefetch = 0 : i64, scratch_operands = 1 : i64, tpu.core_type = #tpu.core_type<tc>, window_params = [{transform_indices = @transform_0, window_bounds = array<i64: 1, 5, 32>}, {transform_indices = @transform_1, window_bounds = array<i64: 1, 5, 32>}, {transform_indices = @transform_2, window_bounds = array<i64: 1, 5, 5>}, {transform_indices = @transform_3, window_bounds = array<i64: 1, 5, 5>}, {transform_indices = @transform_4, window_bounds = array<i64: 1, 5, 5>}, {pipeline_mode = #tpu.pipeline_mode<synchronous>, transform_indices = @transform_5, window_bounds = array<i64: 1120, 128>}, {transform_indices = @transform_6, window_bounds = array<i64: 1, 5, 128>}, {transform_indices = @transform_7, window_bounds = array<i64: 1, 2, 4, 5, 128>}, {transform_indices = @transform_8, window_bounds = array<i64: 1, 2, 4, 5, 128>}, {transform_indices = @transform_9, window_bounds = array<i64: 1, 2, 4, 5, 128>}]} {
    %cst = arith.constant 0.000000e+00 : f32
    %0 = vector.broadcast %cst : f32 to vector<1x2x4x5x128xf32>
    %c0 = arith.constant 0 : index
    %c0_0 = arith.constant 0 : index
    %c0_1 = arith.constant 0 : index
    %c0_2 = arith.constant 0 : index
    %c0_3 = arith.constant 0 : index
    %1 = vector.load %arg8[%c0, %c0_0, %c0_1, %c0_2, %c0_3] : memref<1x2x4x5x128xf32, #tpu.memory_space<vmem>>, vector<1x2x4x5x128xf32>
    tpu.vector_store %arg8[%c0, %c0_0, %c0_1, %c0_2, %c0_3], %0 {strides = array<i32>} : memref<1x2x4x5x128xf32, #tpu.memory_space<vmem>>, vector<1x2x4x5x128xf32>,
    %cst_4 = arith.constant 0.000000e+00 : f32
    %2 = vector.broadcast %cst_4 : f32 to vector<1x2x4x5x128xf32>
    %c0_5 = arith.constant 0 : index
    %c0_6 = arith.constant 0 : index
    %c0_7 = arith.constant 0 : index
    %c0_8 = arith.constant 0 : index
    %c0_9 = arith.constant 0 : index
    %3 = vector.load %arg9[%c0_5, %c0_6, %c0_7, %c0_8, %c0_9] : memref<1x2x4x5x128xf32, #tpu.memory_space<vmem>>, vector<1x2x4x5x128xf32>
    tpu.vector_store %arg9[%c0_5, %c0_6, %c0_7, %c0_8, %c0_9], %2 {strides = array<i32>} : memref<1x2x4x5x128xf32, #tpu.memory_space<vmem>>, vector<1x2x4x5x128xf32>,
    %cst_10 = arith.constant 0.000000e+00 : f32
    %4 = vector.broadcast %cst_10 : f32 to vector<1x2x4x5x128xf32>
    %c0_11 = arith.constant 0 : index
    %c0_12 = arith.constant 0 : index
    %c0_13 = arith.constant 0 : index
    %c0_14 = arith.constant 0 : index
    %c0_15 = arith.constant 0 : index
    %5 = vector.load %arg10[%c0_11, %c0_12, %c0_13, %c0_14, %c0_15] : memref<1x2x4x5x128xf32, #tpu.memory_space<vmem>>, vector<1x2x4x5x128xf32>
    tpu.vector_store %arg10[%c0_11, %c0_12, %c0_13, %c0_14, %c0_15], %4 {strides = array<i32>} : memref<1x2x4x5x128xf32, #tpu.memory_space<vmem>>, vector<1x2x4x5x128xf32>,
    %c0_16 = arith.constant 0 : index
    %c0_17 = arith.constant 0 : index
    %c0_18 = arith.constant 0 : index
    %6 = vector.load %arg1[%c0_16, %c0_17, %c0_18] : memref<1x5x32xf32, #tpu.memory_space<vmem>>, vector<1x5x32xf32>
    %7 = vector.shape_cast %6 : vector<1x5x32xf32> to vector<5x32xf32>
    %c0_19 = arith.constant 0 : index
    %c0_20 = arith.constant 0 : index
    %c0_21 = arith.constant 0 : index
    %8 = vector.load %arg2[%c0_19, %c0_20, %c0_21] : memref<1x5x32xf32, #tpu.memory_space<vmem>>, vector<1x5x32xf32>
    %9 = vector.shape_cast %8 : vector<1x5x32xf32> to vector<5x32xf32>
    %c0_22 = arith.constant 0 : index
    %c0_23 = arith.constant 0 : index
    %c0_24 = arith.constant 0 : index
    %10 = vector.load %arg3[%c0_22, %c0_23, %c0_24] : memref<1x5x5xf32, #tpu.memory_space<vmem>>, vector<1x5x5xf32>
    %11 = vector.shape_cast %10 : vector<1x5x5xf32> to vector<5x5xf32>
    %c0_25 = arith.constant 0 : index
    %c0_26 = arith.constant 0 : index
    %c0_27 = arith.constant 0 : index
    %12 = vector.load %arg4[%c0_25, %c0_26, %c0_27] : memref<1x5x5xf32, #tpu.memory_space<vmem>>, vector<1x5x5xf32>
    %13 = vector.shape_cast %12 : vector<1x5x5xf32> to vector<5x5xf32>
    %c0_28 = arith.constant 0 : index
    %c0_29 = arith.constant 0 : index
    %c0_30 = arith.constant 0 : index
    %14 = vector.load %arg5[%c0_28, %c0_29, %c0_30] : memref<1x5x5xf32, #tpu.memory_space<vmem>>, vector<1x5x5xf32>
    %15 = vector.shape_cast %14 : vector<1x5x5xf32> to vector<5x5xf32>
    %c0_31 = arith.constant 0 : index
    %c0_32 = arith.constant 0 : index
    %16 = vector.load %arg6[%c0_31, %c0_32] : memref<1120x128xf32, #tpu.memory_space<vmem>>, vector<32x96xf32>
    %c32 = arith.constant 32 : index
    %c0_33 = arith.constant 0 : index
    %17 = vector.load %arg6[%c32, %c0_33] : memref<1120x128xf32, #tpu.memory_space<vmem>>, vector<1x96xf32>
    %c40 = arith.constant 40 : index
    %c0_34 = arith.constant 0 : index
    %18 = vector.load %arg6[%c40, %c0_34] : memref<1120x128xf32, #tpu.memory_space<vmem>>, vector<32x32xf32>
    %c72 = arith.constant 72 : index
    %c0_35 = arith.constant 0 : index
    %19 = vector.load %arg6[%c72, %c0_35] : memref<1120x128xf32, #tpu.memory_space<vmem>>, vector<1x32xf32>
    %c80 = arith.constant 80 : index
    %c0_36 = arith.constant 0 : index
    %20 = vector.load %arg6[%c80, %c0_36] : memref<1120x128xf32, #tpu.memory_space<vmem>>, vector<1x32xf32>
    %c88 = arith.constant 88 : index
    %c0_37 = arith.constant 0 : index
    %21 = vector.load %arg6[%c88, %c0_37] : memref<1120x128xf32, #tpu.memory_space<vmem>>, vector<1x32xf32>
    %cst_38 = arith.constant dense<0.000000e+00> : vector<5x96xf32>
    %22 = tpu.matmul %7, %16, %cst_38 {dimension_numbers = #tpu.dot_dimension_numbers<[1], [0], [0], [1], [0, 0, 1, 1], [], []>} : vector<5x32xf32>, vector<32x96xf32>, vector<5x96xf32> -> vector<5x96xf32>
    %23 = vector.broadcast %17 : vector<1x96xf32> to vector<5x96xf32>
    %24 = arith.addf %22, %23 : vector<5x96xf32>
    %25 = vector.extract_strided_slice %24 {offsets = [0, 0], sizes = [5, 8], strides = [1, 1]} : vector<5x96xf32> to vector<5x8xf32>
    %26 = vector.extract_strided_slice %24 {offsets = [0, 32], sizes = [5, 8], strides = [1, 1]} : vector<5x96xf32> to vector<5x8xf32>
    %27 = vector.extract_strided_slice %24 {offsets = [0, 64], sizes = [5, 8], strides = [1, 1]} : vector<5x96xf32> to vector<5x8xf32>
    "tpu.trace_start"() <{level = 10 : i32, message = "qd,kd->qk"}> : () -> ()
    %cst_39 = arith.constant dense<0.000000e+00> : vector<5x5xf32>
    %28 = tpu.matmul %25, %26, %cst_39 {dimension_numbers = #tpu.dot_dimension_numbers<[1], [1], [0], [0], [0, 0, 1, 0], [], []>} : vector<5x8xf32>, vector<5x8xf32>, vector<5x5xf32> -> vector<5x5xf32>
    "tpu.trace_stop"() : () -> ()
    %29 = arith.addf %28, %11 : vector<5x5xf32>
    %cst_40 = arith.constant dense<0xFF800000> : vector<5xf32>
    %30 = vector.multi_reduction <maximumf>, %29, %cst_40 [1] : vector<5x5xf32> to vector<5xf32>
    %31 = vector.shape_cast %30 : vector<5xf32> to vector<5x1xf32>
    %32 = vector.broadcast %31 : vector<5x1xf32> to vector<5x5xf32>
    %33 = arith.subf %29, %32 : vector<5x5xf32>
    %34 = math.exp %33 : vector<5x5xf32>
    %cst_41 = arith.constant dense<0.000000e+00> : vector<5xf32>
    %35 = vector.multi_reduction <add>, %34, %cst_41 [1] : vector<5x5xf32> to vector<5xf32>
    %36 = vector.shape_cast %35 : vector<5xf32> to vector<5x1xf32>
    %37 = tpu.reciprocal %36 {approx = true} : vector<5x1xf32> -> vector<5x1xf32>
    %38 = vector.broadcast %37 : vector<5x1xf32> to vector<5x5xf32>
    %39 = arith.mulf %34, %38 : vector<5x5xf32>
    %c0_42 = arith.constant 0 : index
    %c0_43 = arith.constant 0 : index
    %c0_44 = arith.constant 0 : index
    %c0_45 = arith.constant 0 : index
    %c0_46 = arith.constant 0 : index
    %40 = vector.load %arg8[%c0_42, %c0_43, %c0_44, %c0_45, %c0_46] : memref<1x2x4x5x128xf32, #tpu.memory_space<vmem>>, vector<1x1x1x5x5xf32>
    %41 = vector.shape_cast %40 : vector<1x1x1x5x5xf32> to vector<5x5xf32>
    %42 = vector.shape_cast %39 : vector<5x5xf32> to vector<1x1x1x5x5xf32>
    tpu.vector_store %arg8[%c0_42, %c0_43, %c0_44, %c0_45, %c0_46], %42 {strides = array<i32>} : memref<1x2x4x5x128xf32, #tpu.memory_space<vmem>>, vector<1x1x1x5x5xf32>,
    %cst_47 = arith.constant dense<0.000000e+00> : vector<5x8xf32>
    %43 = tpu.matmul %39, %27, %cst_47 {dimension_numbers = #tpu.dot_dimension_numbers<[1], [0], [0], [1], [0, 0, 1, 1], [], []>} : vector<5x5xf32>, vector<5x8xf32>, vector<5x8xf32> -> vector<5x8xf32>
    %c0_48 = arith.constant 0 : index
    %c0_49 = arith.constant 0 : index
    %44 = vector.load %arg11[%c0_48, %c0_49] : memref<5x32xf32, #tpu.memory_space<vmem>>, vector<5x8xf32>
    tpu.vector_store %arg11[%c0_48, %c0_49], %43 {strides = array<i32>} : memref<5x32xf32, #tpu.memory_space<vmem>>, vector<5x8xf32>,
    %45 = vector.extract_strided_slice %24 {offsets = [0, 8], sizes = [5, 8], strides = [1, 1]} : vector<5x96xf32> to vector<5x8xf32>
    %46 = vector.extract_strided_slice %24 {offsets = [0, 40], sizes = [5, 8], strides = [1, 1]} : vector<5x96xf32> to vector<5x8xf32>
    %47 = vector.extract_strided_slice %24 {offsets = [0, 72], sizes = [5, 8], strides = [1, 1]} : vector<5x96xf32> to vector<5x8xf32>
    "tpu.trace_start"() <{level = 10 : i32, message = "qd,kd->qk"}> : () -> ()
    %cst_50 = arith.constant dense<0.000000e+00> : vector<5x5xf32>
    %48 = tpu.matmul %45, %46, %cst_50 {dimension_numbers = #tpu.dot_dimension_numbers<[1], [1], [0], [0], [0, 0, 1, 0], [], []>} : vector<5x8xf32>, vector<5x8xf32>, vector<5x5xf32> -> vector<5x5xf32>
    "tpu.trace_stop"() : () -> ()
    %49 = arith.addf %48, %11 : vector<5x5xf32>
    %cst_51 = arith.constant dense<0xFF800000> : vector<5xf32>
    %50 = vector.multi_reduction <maximumf>, %49, %cst_51 [1] : vector<5x5xf32> to vector<5xf32>
    %51 = vector.shape_cast %50 : vector<5xf32> to vector<5x1xf32>
    %52 = vector.broadcast %51 : vector<5x1xf32> to vector<5x5xf32>
    %53 = arith.subf %49, %52 : vector<5x5xf32>
    %54 = math.exp %53 : vector<5x5xf32>
    %cst_52 = arith.constant dense<0.000000e+00> : vector<5xf32>
    %55 = vector.multi_reduction <add>, %54, %cst_52 [1] : vector<5x5xf32> to vector<5xf32>
    %56 = vector.shape_cast %55 : vector<5xf32> to vector<5x1xf32>
    %57 = tpu.reciprocal %56 {approx = true} : vector<5x1xf32> -> vector<5x1xf32>
    %58 = vector.broadcast %57 : vector<5x1xf32> to vector<5x5xf32>
    %59 = arith.mulf %54, %58 : vector<5x5xf32>
    %c0_53 = arith.constant 0 : index
    %c0_54 = arith.constant 0 : index
    %c1 = arith.constant 1 : index
    %c0_55 = arith.constant 0 : index
    %c0_56 = arith.constant 0 : index
    %60 = vector.load %arg8[%c0_53, %c0_54, %c1, %c0_55, %c0_56] : memref<1x2x4x5x128xf32, #tpu.memory_space<vmem>>, vector<1x1x1x5x5xf32>
    %61 = vector.shape_cast %60 : vector<1x1x1x5x5xf32> to vector<5x5xf32>
    %62 = vector.shape_cast %59 : vector<5x5xf32> to vector<1x1x1x5x5xf32>
    tpu.vector_store %arg8[%c0_53, %c0_54, %c1, %c0_55, %c0_56], %62 {strides = array<i32>} : memref<1x2x4x5x128xf32, #tpu.memory_space<vmem>>, vector<1x1x1x5x5xf32>,
    %cst_57 = arith.constant dense<0.000000e+00> : vector<5x8xf32>
    %63 = tpu.matmul %59, %47, %cst_57 {dimension_numbers = #tpu.dot_dimension_numbers<[1], [0], [0], [1], [0, 0, 1, 1], [], []>} : vector<5x5xf32>, vector<5x8xf32>, vector<5x8xf32> -> vector<5x8xf32>
    %c0_58 = arith.constant 0 : index
    %c8 = arith.constant 8 : index
    %64 = vector.load %arg11[%c0_58, %c8] : memref<5x32xf32, #tpu.memory_space<vmem>>, vector<5x8xf32>
    tpu.vector_store %arg11[%c0_58, %c8], %63 {strides = array<i32>} : memref<5x32xf32, #tpu.memory_space<vmem>>, vector<5x8xf32>,
    %65 = vector.extract_strided_slice %24 {offsets = [0, 16], sizes = [5, 8], strides = [1, 1]} : vector<5x96xf32> to vector<5x8xf32>
    %66 = vector.extract_strided_slice %24 {offsets = [0, 48], sizes = [5, 8], strides = [1, 1]} : vector<5x96xf32> to vector<5x8xf32>
    %67 = vector.extract_strided_slice %24 {offsets = [0, 80], sizes = [5, 8], strides = [1, 1]} : vector<5x96xf32> to vector<5x8xf32>
    "tpu.trace_start"() <{level = 10 : i32, message = "qd,kd->qk"}> : () -> ()
    %cst_59 = arith.constant dense<0.000000e+00> : vector<5x5xf32>
    %68 = tpu.matmul %65, %66, %cst_59 {dimension_numbers = #tpu.dot_dimension_numbers<[1], [1], [0], [0], [0, 0, 1, 0], [], []>} : vector<5x8xf32>, vector<5x8xf32>, vector<5x5xf32> -> vector<5x5xf32>
    "tpu.trace_stop"() : () -> ()
    %69 = arith.addf %68, %11 : vector<5x5xf32>
    %cst_60 = arith.constant dense<0xFF800000> : vector<5xf32>
    %70 = vector.multi_reduction <maximumf>, %69, %cst_60 [1] : vector<5x5xf32> to vector<5xf32>
    %71 = vector.shape_cast %70 : vector<5xf32> to vector<5x1xf32>
    %72 = vector.broadcast %71 : vector<5x1xf32> to vector<5x5xf32>
    %73 = arith.subf %69, %72 : vector<5x5xf32>
    %74 = math.exp %73 : vector<5x5xf32>
    %cst_61 = arith.constant dense<0.000000e+00> : vector<5xf32>
    %75 = vector.multi_reduction <add>, %74, %cst_61 [1] : vector<5x5xf32> to vector<5xf32>
    %76 = vector.shape_cast %75 : vector<5xf32> to vector<5x1xf32>
    %77 = tpu.reciprocal %76 {approx = true} : vector<5x1xf32> -> vector<5x1xf32>
    %78 = vector.broadcast %77 : vector<5x1xf32> to vector<5x5xf32>
    %79 = arith.mulf %74, %78 : vector<5x5xf32>
    %c0_62 = arith.constant 0 : index
    %c0_63 = arith.constant 0 : index
    %c2 = arith.constant 2 : index
    %c0_64 = arith.constant 0 : index
    %c0_65 = arith.constant 0 : index
    %80 = vector.load %arg8[%c0_62, %c0_63, %c2, %c0_64, %c0_65] : memref<1x2x4x5x128xf32, #tpu.memory_space<vmem>>, vector<1x1x1x5x5xf32>
    %81 = vector.shape_cast %80 : vector<1x1x1x5x5xf32> to vector<5x5xf32>
    %82 = vector.shape_cast %79 : vector<5x5xf32> to vector<1x1x1x5x5xf32>
    tpu.vector_store %arg8[%c0_62, %c0_63, %c2, %c0_64, %c0_65], %82 {strides = array<i32>} : memref<1x2x4x5x128xf32, #tpu.memory_space<vmem>>, vector<1x1x1x5x5xf32>,
    %cst_66 = arith.constant dense<0.000000e+00> : vector<5x8xf32>
    %83 = tpu.matmul %79, %67, %cst_66 {dimension_numbers = #tpu.dot_dimension_numbers<[1], [0], [0], [1], [0, 0, 1, 1], [], []>} : vector<5x5xf32>, vector<5x8xf32>, vector<5x8xf32> -> vector<5x8xf32>
    %c0_67 = arith.constant 0 : index
    %c16 = arith.constant 16 : index
    %84 = vector.load %arg11[%c0_67, %c16] : memref<5x32xf32, #tpu.memory_space<vmem>>, vector<5x8xf32>
    tpu.vector_store %arg11[%c0_67, %c16], %83 {strides = array<i32>} : memref<5x32xf32, #tpu.memory_space<vmem>>, vector<5x8xf32>,
    %85 = vector.extract_strided_slice %24 {offsets = [0, 24], sizes = [5, 8], strides = [1, 1]} : vector<5x96xf32> to vector<5x8xf32>
    %86 = vector.extract_strided_slice %24 {offsets = [0, 56], sizes = [5, 8], strides = [1, 1]} : vector<5x96xf32> to vector<5x8xf32>
    %87 = vector.extract_strided_slice %24 {offsets = [0, 88], sizes = [5, 8], strides = [1, 1]} : vector<5x96xf32> to vector<5x8xf32>
    "tpu.trace_start"() <{level = 10 : i32, message = "qd,kd->qk"}> : () -> ()
    %cst_68 = arith.constant dense<0.000000e+00> : vector<5x5xf32>
    %88 = tpu.matmul %85, %86, %cst_68 {dimension_numbers = #tpu.dot_dimension_numbers<[1], [1], [0], [0], [0, 0, 1, 0], [], []>} : vector<5x8xf32>, vector<5x8xf32>, vector<5x5xf32> -> vector<5x5xf32>
    "tpu.trace_stop"() : () -> ()
    %89 = arith.addf %88, %11 : vector<5x5xf32>
    %cst_69 = arith.constant dense<0xFF800000> : vector<5xf32>
    %90 = vector.multi_reduction <maximumf>, %89, %cst_69 [1] : vector<5x5xf32> to vector<5xf32>
    %91 = vector.shape_cast %90 : vector<5xf32> to vector<5x1xf32>
    %92 = vector.broadcast %91 : vector<5x1xf32> to vector<5x5xf32>
    %93 = arith.subf %89, %92 : vector<5x5xf32>
    %94 = math.exp %93 : vector<5x5xf32>
    %cst_70 = arith.constant dense<0.000000e+00> : vector<5xf32>
    %95 = vector.multi_reduction <add>, %94, %cst_70 [1] : vector<5x5xf32> to vector<5xf32>
    %96 = vector.shape_cast %95 : vector<5xf32> to vector<5x1xf32>
    %97 = tpu.reciprocal %96 {approx = true} : vector<5x1xf32> -> vector<5x1xf32>
    %98 = vector.broadcast %97 : vector<5x1xf32> to vector<5x5xf32>
    %99 = arith.mulf %94, %98 : vector<5x5xf32>
    %c0_71 = arith.constant 0 : index
    %c0_72 = arith.constant 0 : index
    %c3 = arith.constant 3 : index
    %c0_73 = arith.constant 0 : index
    %c0_74 = arith.constant 0 : index
    %100 = vector.load %arg8[%c0_71, %c0_72, %c3, %c0_73, %c0_74] : memref<1x2x4x5x128xf32, #tpu.memory_space<vmem>>, vector<1x1x1x5x5xf32>
    %101 = vector.shape_cast %100 : vector<1x1x1x5x5xf32> to vector<5x5xf32>
    %102 = vector.shape_cast %99 : vector<5x5xf32> to vector<1x1x1x5x5xf32>
    tpu.vector_store %arg8[%c0_71, %c0_72, %c3, %c0_73, %c0_74], %102 {strides = array<i32>} : memref<1x2x4x5x128xf32, #tpu.memory_space<vmem>>, vector<1x1x1x5x5xf32>,
    %cst_75 = arith.constant dense<0.000000e+00> : vector<5x8xf32>
    %103 = tpu.matmul %99, %87, %cst_75 {dimension_numbers = #tpu.dot_dimension_numbers<[1], [0], [0], [1], [0, 0, 1, 1], [], []>} : vector<5x5xf32>, vector<5x8xf32>, vector<5x8xf32> -> vector<5x8xf32>
    %c0_76 = arith.constant 0 : index
    %c24 = arith.constant 24 : index
    %104 = vector.load %arg11[%c0_76, %c24] : memref<5x32xf32, #tpu.memory_space<vmem>>, vector<5x8xf32>
    tpu.vector_store %arg11[%c0_76, %c24], %103 {strides = array<i32>} : memref<5x32xf32, #tpu.memory_space<vmem>>, vector<5x8xf32>,
    %c0_77 = arith.constant 0 : index
    %c0_78 = arith.constant 0 : index
    %105 = vector.load %arg11[%c0_77, %c0_78] : memref<5x32xf32, #tpu.memory_space<vmem>>, vector<5x32xf32>
    %cst_79 = arith.constant dense<0.000000e+00> : vector<5x32xf32>
    %106 = tpu.matmul %105, %18, %cst_79 {dimension_numbers = #tpu.dot_dimension_numbers<[1], [0], [0], [1], [0, 0, 1, 1], [], []>} : vector<5x32xf32>, vector<32x32xf32>, vector<5x32xf32> -> vector<5x32xf32>
    %107 = vector.broadcast %19 : vector<1x32xf32> to vector<5x32xf32>
    %108 = arith.addf %106, %107 : vector<5x32xf32>
    %109 = arith.addf %108, %7 : vector<5x32xf32>
    %cst_80 = arith.constant dense<0.000000e+00> : vector<5xf32>
    %110 = vector.multi_reduction <add>, %109, %cst_80 [1] : vector<5x32xf32> to vector<5xf32>
    %111 = vector.shape_cast %110 : vector<5xf32> to vector<5x1xf32>
    %cst_81 = arith.constant 3.200000e+01 : f32
    %112 = vector.broadcast %cst_81 : f32 to vector<5x1xf32>
    %113 = arith.divf %111, %112 : vector<5x1xf32>
    %114 = vector.broadcast %113 : vector<5x1xf32> to vector<5x32xf32>
    %115 = arith.subf %109, %114 : vector<5x32xf32>
    %116 = arith.mulf %115, %115 : vector<5x32xf32>
    %cst_82 = arith.constant dense<0.000000e+00> : vector<5xf32>
    %117 = vector.multi_reduction <add>, %116, %cst_82 [1] : vector<5x32xf32> to vector<5xf32>
    %118 = vector.shape_cast %117 : vector<5xf32> to vector<5x1xf32>
    %cst_83 = arith.constant 3.200000e+01 : f32
    %119 = vector.broadcast %cst_83 : f32 to vector<5x1xf32>
    %120 = arith.divf %118, %119 : vector<5x1xf32>
    %121 = vector.broadcast %113 : vector<5x1xf32> to vector<5x32xf32>
    %122 = arith.subf %109, %121 : vector<5x32xf32>
    %cst_84 = arith.constant 9.99999974E-6 : f32
    %123 = vector.broadcast %cst_84 : f32 to vector<5x1xf32>
    %124 = arith.addf %120, %123 : vector<5x1xf32>
    %125 = math.rsqrt %124 : vector<5x1xf32>
    %126 = vector.broadcast %125 : vector<5x1xf32> to vector<5x32xf32>
    %127 = arith.mulf %122, %126 : vector<5x32xf32>
    %128 = vector.broadcast %20 : vector<1x32xf32> to vector<5x32xf32>
    %129 = arith.mulf %127, %128 : vector<5x32xf32>
    %130 = vector.broadcast %21 : vector<1x32xf32> to vector<5x32xf32>
    %131 = arith.addf %129, %130 : vector<5x32xf32>
    %c96 = arith.constant 96 : index
    %c0_85 = arith.constant 0 : index
    %132 = vector.load %arg6[%c96, %c0_85] : memref<1120x128xf32, #tpu.memory_space<vmem>>, vector<32x64xf32>
    %c128 = arith.constant 128 : index
    %c0_86 = arith.constant 0 : index
    %133 = vector.load %arg6[%c128, %c0_86] : memref<1120x128xf32, #tpu.memory_space<vmem>>, vector<1x64xf32>
    %c136 = arith.constant 136 : index
    %c0_87 = arith.constant 0 : index
    %134 = vector.load %arg6[%c136, %c0_87] : memref<1120x128xf32, #tpu.memory_space<vmem>>, vector<64x32xf32>
    %c200 = arith.constant 200 : index
    %c0_88 = arith.constant 0 : index
    %135 = vector.load %arg6[%c200, %c0_88] : memref<1120x128xf32, #tpu.memory_space<vmem>>, vector<1x32xf32>
    %c208 = arith.constant 208 : index
    %c0_89 = arith.constant 0 : index
    %136 = vector.load %arg6[%c208, %c0_89] : memref<1120x128xf32, #tpu.memory_space<vmem>>, vector<1x32xf32>
    %c216 = arith.constant 216 : index
    %c0_90 = arith.constant 0 : index
    %137 = vector.load %arg6[%c216, %c0_90] : memref<1120x128xf32, #tpu.memory_space<vmem>>, vector<1x32xf32>
    %cst_91 = arith.constant dense<0.000000e+00> : vector<5x64xf32>
    %138 = tpu.matmul %131, %132, %cst_91 {dimension_numbers = #tpu.dot_dimension_numbers<[1], [0], [0], [1], [0, 0, 1, 1], [], []>} : vector<5x32xf32>, vector<32x64xf32>, vector<5x64xf32> -> vector<5x64xf32>
    %139 = vector.broadcast %133 : vector<1x64xf32> to vector<5x64xf32>
    %140 = arith.addf %138, %139 : vector<5x64xf32>
    %cst_92 = arith.constant 0.000000e+00 : f32
    %141 = vector.broadcast %cst_92 : f32 to vector<5x64xf32>
    %142 = arith.maximumf %140, %141 : vector<5x64xf32>
    %cst_93 = arith.constant dense<0.000000e+00> : vector<5x32xf32>
    %143 = tpu.matmul %142, %134, %cst_93 {dimension_numbers = #tpu.dot_dimension_numbers<[1], [0], [0], [1], [0, 0, 1, 1], [], []>} : vector<5x64xf32>, vector<64x32xf32>, vector<5x32xf32> -> vector<5x32xf32>
    %144 = vector.broadcast %135 : vector<1x32xf32> to vector<5x32xf32>
    %145 = arith.addf %143, %144 : vector<5x32xf32>
    %146 = arith.addf %145, %131 : vector<5x32xf32>
    %cst_94 = arith.constant dense<0.000000e+00> : vector<5xf32>
    %147 = vector.multi_reduction <add>, %146, %cst_94 [1] : vector<5x32xf32> to vector<5xf32>
    %148 = vector.shape_cast %147 : vector<5xf32> to vector<5x1xf32>
    %cst_95 = arith.constant 3.200000e+01 : f32
    %149 = vector.broadcast %cst_95 : f32 to vector<5x1xf32>
    %150 = arith.divf %148, %149 : vector<5x1xf32>
    %151 = vector.broadcast %150 : vector<5x1xf32> to vector<5x32xf32>
    %152 = arith.subf %146, %151 : vector<5x32xf32>
    %153 = arith.mulf %152, %152 : vector<5x32xf32>
    %cst_96 = arith.constant dense<0.000000e+00> : vector<5xf32>
    %154 = vector.multi_reduction <add>, %153, %cst_96 [1] : vector<5x32xf32> to vector<5xf32>
    %155 = vector.shape_cast %154 : vector<5xf32> to vector<5x1xf32>
    %cst_97 = arith.constant 3.200000e+01 : f32
    %156 = vector.broadcast %cst_97 : f32 to vector<5x1xf32>
    %157 = arith.divf %155, %156 : vector<5x1xf32>
    %158 = vector.broadcast %150 : vector<5x1xf32> to vector<5x32xf32>
    %159 = arith.subf %146, %158 : vector<5x32xf32>
    %cst_98 = arith.constant 9.99999974E-6 : f32
    %160 = vector.broadcast %cst_98 : f32 to vector<5x1xf32>
    %161 = arith.addf %157, %160 : vector<5x1xf32>
    %162 = math.rsqrt %161 : vector<5x1xf32>
    %163 = vector.broadcast %162 : vector<5x1xf32> to vector<5x32xf32>
    %164 = arith.mulf %159, %163 : vector<5x32xf32>
    %165 = vector.broadcast %136 : vector<1x32xf32> to vector<5x32xf32>
    %166 = arith.mulf %164, %165 : vector<5x32xf32>
    %167 = vector.broadcast %137 : vector<1x32xf32> to vector<5x32xf32>
    %168 = arith.addf %166, %167 : vector<5x32xf32>
    %c224 = arith.constant 224 : index
    %c0_99 = arith.constant 0 : index
    %169 = vector.load %arg6[%c224, %c0_99] : memref<1120x128xf32, #tpu.memory_space<vmem>>, vector<32x96xf32>
    %c256 = arith.constant 256 : index
    %c0_100 = arith.constant 0 : index
    %170 = vector.load %arg6[%c256, %c0_100] : memref<1120x128xf32, #tpu.memory_space<vmem>>, vector<1x96xf32>
    %c264 = arith.constant 264 : index
    %c0_101 = arith.constant 0 : index
    %171 = vector.load %arg6[%c264, %c0_101] : memref<1120x128xf32, #tpu.memory_space<vmem>>, vector<32x32xf32>
    %c296 = arith.constant 296 : index
    %c0_102 = arith.constant 0 : index
    %172 = vector.load %arg6[%c296, %c0_102] : memref<1120x128xf32, #tpu.memory_space<vmem>>, vector<1x32xf32>
    %c304 = arith.constant 304 : index
    %c0_103 = arith.constant 0 : index
    %173 = vector.load %arg6[%c304, %c0_103] : memref<1120x128xf32, #tpu.memory_space<vmem>>, vector<1x32xf32>
    %c312 = arith.constant 312 : index
    %c0_104 = arith.constant 0 : index
    %174 = vector.load %arg6[%c312, %c0_104] : memref<1120x128xf32, #tpu.memory_space<vmem>>, vector<1x32xf32>
    %cst_105 = arith.constant dense<0.000000e+00> : vector<5x96xf32>
    %175 = tpu.matmul %168, %169, %cst_105 {dimension_numbers = #tpu.dot_dimension_numbers<[1], [0], [0], [1], [0, 0, 1, 1], [], []>} : vector<5x32xf32>, vector<32x96xf32>, vector<5x96xf32> -> vector<5x96xf32>
    %176 = vector.broadcast %170 : vector<1x96xf32> to vector<5x96xf32>
    %177 = arith.addf %175, %176 : vector<5x96xf32>
    %178 = vector.extract_strided_slice %177 {offsets = [0, 0], sizes = [5, 8], strides = [1, 1]} : vector<5x96xf32> to vector<5x8xf32>
    %179 = vector.extract_strided_slice %177 {offsets = [0, 32], sizes = [5, 8], strides = [1, 1]} : vector<5x96xf32> to vector<5x8xf32>
    %180 = vector.extract_strided_slice %177 {offsets = [0, 64], sizes = [5, 8], strides = [1, 1]} : vector<5x96xf32> to vector<5x8xf32>
    "tpu.trace_start"() <{level = 10 : i32, message = "qd,kd->qk"}> : () -> ()
    %cst_106 = arith.constant dense<0.000000e+00> : vector<5x5xf32>
    %181 = tpu.matmul %178, %179, %cst_106 {dimension_numbers = #tpu.dot_dimension_numbers<[1], [1], [0], [0], [0, 0, 1, 0], [], []>} : vector<5x8xf32>, vector<5x8xf32>, vector<5x5xf32> -> vector<5x5xf32>
    "tpu.trace_stop"() : () -> ()
    %182 = arith.addf %181, %11 : vector<5x5xf32>
    %cst_107 = arith.constant dense<0xFF800000> : vector<5xf32>
    %183 = vector.multi_reduction <maximumf>, %182, %cst_107 [1] : vector<5x5xf32> to vector<5xf32>
    %184 = vector.shape_cast %183 : vector<5xf32> to vector<5x1xf32>
    %185 = vector.broadcast %184 : vector<5x1xf32> to vector<5x5xf32>
    %186 = arith.subf %182, %185 : vector<5x5xf32>
    %187 = math.exp %186 : vector<5x5xf32>
    %cst_108 = arith.constant dense<0.000000e+00> : vector<5xf32>
    %188 = vector.multi_reduction <add>, %187, %cst_108 [1] : vector<5x5xf32> to vector<5xf32>
    %189 = vector.shape_cast %188 : vector<5xf32> to vector<5x1xf32>
    %190 = tpu.reciprocal %189 {approx = true} : vector<5x1xf32> -> vector<5x1xf32>
    %191 = vector.broadcast %190 : vector<5x1xf32> to vector<5x5xf32>
    %192 = arith.mulf %187, %191 : vector<5x5xf32>
    %c0_109 = arith.constant 0 : index
    %c1_110 = arith.constant 1 : index
    %c0_111 = arith.constant 0 : index
    %c0_112 = arith.constant 0 : index
    %c0_113 = arith.constant 0 : index
    %193 = vector.load %arg8[%c0_109, %c1_110, %c0_111, %c0_112, %c0_113] : memref<1x2x4x5x128xf32, #tpu.memory_space<vmem>>, vector<1x1x1x5x5xf32>
    %194 = vector.shape_cast %193 : vector<1x1x1x5x5xf32> to vector<5x5xf32>
    %195 = vector.shape_cast %192 : vector<5x5xf32> to vector<1x1x1x5x5xf32>
    tpu.vector_store %arg8[%c0_109, %c1_110, %c0_111, %c0_112, %c0_113], %195 {strides = array<i32>} : memref<1x2x4x5x128xf32, #tpu.memory_space<vmem>>, vector<1x1x1x5x5xf32>,
    %cst_114 = arith.constant dense<0.000000e+00> : vector<5x8xf32>
    %196 = tpu.matmul %192, %180, %cst_114 {dimension_numbers = #tpu.dot_dimension_numbers<[1], [0], [0], [1], [0, 0, 1, 1], [], []>} : vector<5x5xf32>, vector<5x8xf32>, vector<5x8xf32> -> vector<5x8xf32>
    %c0_115 = arith.constant 0 : index
    %c0_116 = arith.constant 0 : index
    %197 = vector.load %arg11[%c0_115, %c0_116] : memref<5x32xf32, #tpu.memory_space<vmem>>, vector<5x8xf32>
    tpu.vector_store %arg11[%c0_115, %c0_116], %196 {strides = array<i32>} : memref<5x32xf32, #tpu.memory_space<vmem>>, vector<5x8xf32>,
    %198 = vector.extract_strided_slice %177 {offsets = [0, 8], sizes = [5, 8], strides = [1, 1]} : vector<5x96xf32> to vector<5x8xf32>
    %199 = vector.extract_strided_slice %177 {offsets = [0, 40], sizes = [5, 8], strides = [1, 1]} : vector<5x96xf32> to vector<5x8xf32>
    %200 = vector.extract_strided_slice %177 {offsets = [0, 72], sizes = [5, 8], strides = [1, 1]} : vector<5x96xf32> to vector<5x8xf32>
    "tpu.trace_start"() <{level = 10 : i32, message = "qd,kd->qk"}> : () -> ()
    %cst_117 = arith.constant dense<0.000000e+00> : vector<5x5xf32>
    %201 = tpu.matmul %198, %199, %cst_117 {dimension_numbers = #tpu.dot_dimension_numbers<[1], [1], [0], [0], [0, 0, 1, 0], [], []>} : vector<5x8xf32>, vector<5x8xf32>, vector<5x5xf32> -> vector<5x5xf32>
    "tpu.trace_stop"() : () -> ()
    %202 = arith.addf %201, %11 : vector<5x5xf32>
    %cst_118 = arith.constant dense<0xFF800000> : vector<5xf32>
    %203 = vector.multi_reduction <maximumf>, %202, %cst_118 [1] : vector<5x5xf32> to vector<5xf32>
    %204 = vector.shape_cast %203 : vector<5xf32> to vector<5x1xf32>
    %205 = vector.broadcast %204 : vector<5x1xf32> to vector<5x5xf32>
    %206 = arith.subf %202, %205 : vector<5x5xf32>
    %207 = math.exp %206 : vector<5x5xf32>
    %cst_119 = arith.constant dense<0.000000e+00> : vector<5xf32>
    %208 = vector.multi_reduction <add>, %207, %cst_119 [1] : vector<5x5xf32> to vector<5xf32>
    %209 = vector.shape_cast %208 : vector<5xf32> to vector<5x1xf32>
    %210 = tpu.reciprocal %209 {approx = true} : vector<5x1xf32> -> vector<5x1xf32>
    %211 = vector.broadcast %210 : vector<5x1xf32> to vector<5x5xf32>
    %212 = arith.mulf %207, %211 : vector<5x5xf32>
    %c0_120 = arith.constant 0 : index
    %c1_121 = arith.constant 1 : index
    %c1_122 = arith.constant 1 : index
    %c0_123 = arith.constant 0 : index
    %c0_124 = arith.constant 0 : index
    %213 = vector.load %arg8[%c0_120, %c1_121, %c1_122, %c0_123, %c0_124] : memref<1x2x4x5x128xf32, #tpu.memory_space<vmem>>, vector<1x1x1x5x5xf32>
    %214 = vector.shape_cast %213 : vector<1x1x1x5x5xf32> to vector<5x5xf32>
    %215 = vector.shape_cast %212 : vector<5x5xf32> to vector<1x1x1x5x5xf32>
    tpu.vector_store %arg8[%c0_120, %c1_121, %c1_122, %c0_123, %c0_124], %215 {strides = array<i32>} : memref<1x2x4x5x128xf32, #tpu.memory_space<vmem>>, vector<1x1x1x5x5xf32>,
    %cst_125 = arith.constant dense<0.000000e+00> : vector<5x8xf32>
    %216 = tpu.matmul %212, %200, %cst_125 {dimension_numbers = #tpu.dot_dimension_numbers<[1], [0], [0], [1], [0, 0, 1, 1], [], []>} : vector<5x5xf32>, vector<5x8xf32>, vector<5x8xf32> -> vector<5x8xf32>
    %c0_126 = arith.constant 0 : index
    %c8_127 = arith.constant 8 : index
    %217 = vector.load %arg11[%c0_126, %c8_127] : memref<5x32xf32, #tpu.memory_space<vmem>>, vector<5x8xf32>
    tpu.vector_store %arg11[%c0_126, %c8_127], %216 {strides = array<i32>} : memref<5x32xf32, #tpu.memory_space<vmem>>, vector<5x8xf32>,
    %218 = vector.extract_strided_slice %177 {offsets = [0, 16], sizes = [5, 8], strides = [1, 1]} : vector<5x96xf32> to vector<5x8xf32>
    %219 = vector.extract_strided_slice %177 {offsets = [0, 48], sizes = [5, 8], strides = [1, 1]} : vector<5x96xf32> to vector<5x8xf32>
    %220 = vector.extract_strided_slice %177 {offsets = [0, 80], sizes = [5, 8], strides = [1, 1]} : vector<5x96xf32> to vector<5x8xf32>
    "tpu.trace_start"() <{level = 10 : i32, message = "qd,kd->qk"}> : () -> ()
    %cst_128 = arith.constant dense<0.000000e+00> : vector<5x5xf32>
    %221 = tpu.matmul %218, %219, %cst_128 {dimension_numbers = #tpu.dot_dimension_numbers<[1], [1], [0], [0], [0, 0, 1, 0], [], []>} : vector<5x8xf32>, vector<5x8xf32>, vector<5x5xf32> -> vector<5x5xf32>
    "tpu.trace_stop"() : () -> ()
    %222 = arith.addf %221, %11 : vector<5x5xf32>
    %cst_129 = arith.constant dense<0xFF800000> : vector<5xf32>
    %223 = vector.multi_reduction <maximumf>, %222, %cst_129 [1] : vector<5x5xf32> to vector<5xf32>
    %224 = vector.shape_cast %223 : vector<5xf32> to vector<5x1xf32>
    %225 = vector.broadcast %224 : vector<5x1xf32> to vector<5x5xf32>
    %226 = arith.subf %222, %225 : vector<5x5xf32>
    %227 = math.exp %226 : vector<5x5xf32>
    %cst_130 = arith.constant dense<0.000000e+00> : vector<5xf32>
    %228 = vector.multi_reduction <add>, %227, %cst_130 [1] : vector<5x5xf32> to vector<5xf32>
    %229 = vector.shape_cast %228 : vector<5xf32> to vector<5x1xf32>
    %230 = tpu.reciprocal %229 {approx = true} : vector<5x1xf32> -> vector<5x1xf32>
    %231 = vector.broadcast %230 : vector<5x1xf32> to vector<5x5xf32>
    %232 = arith.mulf %227, %231 : vector<5x5xf32>
    %c0_131 = arith.constant 0 : index
    %c1_132 = arith.constant 1 : index
    %c2_133 = arith.constant 2 : index
    %c0_134 = arith.constant 0 : index
    %c0_135 = arith.constant 0 : index
    %233 = vector.load %arg8[%c0_131, %c1_132, %c2_133, %c0_134, %c0_135] : memref<1x2x4x5x128xf32, #tpu.memory_space<vmem>>, vector<1x1x1x5x5xf32>
    %234 = vector.shape_cast %233 : vector<1x1x1x5x5xf32> to vector<5x5xf32>
    %235 = vector.shape_cast %232 : vector<5x5xf32> to vector<1x1x1x5x5xf32>
    tpu.vector_store %arg8[%c0_131, %c1_132, %c2_133, %c0_134, %c0_135], %235 {strides = array<i32>} : memref<1x2x4x5x128xf32, #tpu.memory_space<vmem>>, vector<1x1x1x5x5xf32>,
    %cst_136 = arith.constant dense<0.000000e+00> : vector<5x8xf32>
    %236 = tpu.matmul %232, %220, %cst_136 {dimension_numbers = #tpu.dot_dimension_numbers<[1], [0], [0], [1], [0, 0, 1, 1], [], []>} : vector<5x5xf32>, vector<5x8xf32>, vector<5x8xf32> -> vector<5x8xf32>
    %c0_137 = arith.constant 0 : index
    %c16_138 = arith.constant 16 : index
    %237 = vector.load %arg11[%c0_137, %c16_138] : memref<5x32xf32, #tpu.memory_space<vmem>>, vector<5x8xf32>
    tpu.vector_store %arg11[%c0_137, %c16_138], %236 {strides = array<i32>} : memref<5x32xf32, #tpu.memory_space<vmem>>, vector<5x8xf32>,
    %238 = vector.extract_strided_slice %177 {offsets = [0, 24], sizes = [5, 8], strides = [1, 1]} : vector<5x96xf32> to vector<5x8xf32>
    %239 = vector.extract_strided_slice %177 {offsets = [0, 56], sizes = [5, 8], strides = [1, 1]} : vector<5x96xf32> to vector<5x8xf32>
    %240 = vector.extract_strided_slice %177 {offsets = [0, 88], sizes = [5, 8], strides = [1, 1]} : vector<5x96xf32> to vector<5x8xf32>
    "tpu.trace_start"() <{level = 10 : i32, message = "qd,kd->qk"}> : () -> ()
    %cst_139 = arith.constant dense<0.000000e+00> : vector<5x5xf32>
    %241 = tpu.matmul %238, %239, %cst_139 {dimension_numbers = #tpu.dot_dimension_numbers<[1], [1], [0], [0], [0, 0, 1, 0], [], []>} : vector<5x8xf32>, vector<5x8xf32>, vector<5x5xf32> -> vector<5x5xf32>
    "tpu.trace_stop"() : () -> ()
    %242 = arith.addf %241, %11 : vector<5x5xf32>
    %cst_140 = arith.constant dense<0xFF800000> : vector<5xf32>
    %243 = vector.multi_reduction <maximumf>, %242, %cst_140 [1] : vector<5x5xf32> to vector<5xf32>
    %244 = vector.shape_cast %243 : vector<5xf32> to vector<5x1xf32>
    %245 = vector.broadcast %244 : vector<5x1xf32> to vector<5x5xf32>
    %246 = arith.subf %242, %245 : vector<5x5xf32>
    %247 = math.exp %246 : vector<5x5xf32>
    %cst_141 = arith.constant dense<0.000000e+00> : vector<5xf32>
    %248 = vector.multi_reduction <add>, %247, %cst_141 [1] : vector<5x5xf32> to vector<5xf32>
    %249 = vector.shape_cast %248 : vector<5xf32> to vector<5x1xf32>
    %250 = tpu.reciprocal %249 {approx = true} : vector<5x1xf32> -> vector<5x1xf32>
    %251 = vector.broadcast %250 : vector<5x1xf32> to vector<5x5xf32>
    %252 = arith.mulf %247, %251 : vector<5x5xf32>
    %c0_142 = arith.constant 0 : index
    %c1_143 = arith.constant 1 : index
    %c3_144 = arith.constant 3 : index
    %c0_145 = arith.constant 0 : index
    %c0_146 = arith.constant 0 : index
    %253 = vector.load %arg8[%c0_142, %c1_143, %c3_144, %c0_145, %c0_146] : memref<1x2x4x5x128xf32, #tpu.memory_space<vmem>>, vector<1x1x1x5x5xf32>
    %254 = vector.shape_cast %253 : vector<1x1x1x5x5xf32> to vector<5x5xf32>
    %255 = vector.shape_cast %252 : vector<5x5xf32> to vector<1x1x1x5x5xf32>
    tpu.vector_store %arg8[%c0_142, %c1_143, %c3_144, %c0_145, %c0_146], %255 {strides = array<i32>} : memref<1x2x4x5x128xf32, #tpu.memory_space<vmem>>, vector<1x1x1x5x5xf32>,
    %cst_147 = arith.constant dense<0.000000e+00> : vector<5x8xf32>
    %256 = tpu.matmul %252, %240, %cst_147 {dimension_numbers = #tpu.dot_dimension_numbers<[1], [0], [0], [1], [0, 0, 1, 1], [], []>} : vector<5x5xf32>, vector<5x8xf32>, vector<5x8xf32> -> vector<5x8xf32>
    %c0_148 = arith.constant 0 : index
    %c24_149 = arith.constant 24 : index
    %257 = vector.load %arg11[%c0_148, %c24_149] : memref<5x32xf32, #tpu.memory_space<vmem>>, vector<5x8xf32>
    tpu.vector_store %arg11[%c0_148, %c24_149], %256 {strides = array<i32>} : memref<5x32xf32, #tpu.memory_space<vmem>>, vector<5x8xf32>,
    %c0_150 = arith.constant 0 : index
    %c0_151 = arith.constant 0 : index
    %258 = vector.load %arg11[%c0_150, %c0_151] : memref<5x32xf32, #tpu.memory_space<vmem>>, vector<5x32xf32>
    %cst_152 = arith.constant dense<0.000000e+00> : vector<5x32xf32>
    %259 = tpu.matmul %258, %171, %cst_152 {dimension_numbers = #tpu.dot_dimension_numbers<[1], [0], [0], [1], [0, 0, 1, 1], [], []>} : vector<5x32xf32>, vector<32x32xf32>, vector<5x32xf32> -> vector<5x32xf32>
    %260 = vector.broadcast %172 : vector<1x32xf32> to vector<5x32xf32>
    %261 = arith.addf %259, %260 : vector<5x32xf32>
    %262 = arith.addf %261, %168 : vector<5x32xf32>
    %cst_153 = arith.constant dense<0.000000e+00> : vector<5xf32>
    %263 = vector.multi_reduction <add>, %262, %cst_153 [1] : vector<5x32xf32> to vector<5xf32>
    %264 = vector.shape_cast %263 : vector<5xf32> to vector<5x1xf32>
    %cst_154 = arith.constant 3.200000e+01 : f32
    %265 = vector.broadcast %cst_154 : f32 to vector<5x1xf32>
    %266 = arith.divf %264, %265 : vector<5x1xf32>
    %267 = vector.broadcast %266 : vector<5x1xf32> to vector<5x32xf32>
    %268 = arith.subf %262, %267 : vector<5x32xf32>
    %269 = arith.mulf %268, %268 : vector<5x32xf32>
    %cst_155 = arith.constant dense<0.000000e+00> : vector<5xf32>
    %270 = vector.multi_reduction <add>, %269, %cst_155 [1] : vector<5x32xf32> to vector<5xf32>
    %271 = vector.shape_cast %270 : vector<5xf32> to vector<5x1xf32>
    %cst_156 = arith.constant 3.200000e+01 : f32
    %272 = vector.broadcast %cst_156 : f32 to vector<5x1xf32>
    %273 = arith.divf %271, %272 : vector<5x1xf32>
    %274 = vector.broadcast %266 : vector<5x1xf32> to vector<5x32xf32>
    %275 = arith.subf %262, %274 : vector<5x32xf32>
    %cst_157 = arith.constant 9.99999974E-6 : f32
    %276 = vector.broadcast %cst_157 : f32 to vector<5x1xf32>
    %277 = arith.addf %273, %276 : vector<5x1xf32>
    %278 = math.rsqrt %277 : vector<5x1xf32>
    %279 = vector.broadcast %278 : vector<5x1xf32> to vector<5x32xf32>
    %280 = arith.mulf %275, %279 : vector<5x32xf32>
    %281 = vector.broadcast %173 : vector<1x32xf32> to vector<5x32xf32>
    %282 = arith.mulf %280, %281 : vector<5x32xf32>
    %283 = vector.broadcast %174 : vector<1x32xf32> to vector<5x32xf32>
    %284 = arith.addf %282, %283 : vector<5x32xf32>
    %c320 = arith.constant 320 : index
    %c0_158 = arith.constant 0 : index
    %285 = vector.load %arg6[%c320, %c0_158] : memref<1120x128xf32, #tpu.memory_space<vmem>>, vector<32x64xf32>
    %c352 = arith.constant 352 : index
    %c0_159 = arith.constant 0 : index
    %286 = vector.load %arg6[%c352, %c0_159] : memref<1120x128xf32, #tpu.memory_space<vmem>>, vector<1x64xf32>
    %c360 = arith.constant 360 : index
    %c0_160 = arith.constant 0 : index
    %287 = vector.load %arg6[%c360, %c0_160] : memref<1120x128xf32, #tpu.memory_space<vmem>>, vector<64x32xf32>
    %c424 = arith.constant 424 : index
    %c0_161 = arith.constant 0 : index
    %288 = vector.load %arg6[%c424, %c0_161] : memref<1120x128xf32, #tpu.memory_space<vmem>>, vector<1x32xf32>
    %c432 = arith.constant 432 : index
    %c0_162 = arith.constant 0 : index
    %289 = vector.load %arg6[%c432, %c0_162] : memref<1120x128xf32, #tpu.memory_space<vmem>>, vector<1x32xf32>
    %c440 = arith.constant 440 : index
    %c0_163 = arith.constant 0 : index
    %290 = vector.load %arg6[%c440, %c0_163] : memref<1120x128xf32, #tpu.memory_space<vmem>>, vector<1x32xf32>
    %cst_164 = arith.constant dense<0.000000e+00> : vector<5x64xf32>
    %291 = tpu.matmul %284, %285, %cst_164 {dimension_numbers = #tpu.dot_dimension_numbers<[1], [0], [0], [1], [0, 0, 1, 1], [], []>} : vector<5x32xf32>, vector<32x64xf32>, vector<5x64xf32> -> vector<5x64xf32>
    %292 = vector.broadcast %286 : vector<1x64xf32> to vector<5x64xf32>
    %293 = arith.addf %291, %292 : vector<5x64xf32>
    %cst_165 = arith.constant 0.000000e+00 : f32
    %294 = vector.broadcast %cst_165 : f32 to vector<5x64xf32>
    %295 = arith.maximumf %293, %294 : vector<5x64xf32>
    %cst_166 = arith.constant dense<0.000000e+00> : vector<5x32xf32>
    %296 = tpu.matmul %295, %287, %cst_166 {dimension_numbers = #tpu.dot_dimension_numbers<[1], [0], [0], [1], [0, 0, 1, 1], [], []>} : vector<5x64xf32>, vector<64x32xf32>, vector<5x32xf32> -> vector<5x32xf32>
    %297 = vector.broadcast %288 : vector<1x32xf32> to vector<5x32xf32>
    %298 = arith.addf %296, %297 : vector<5x32xf32>
    %299 = arith.addf %298, %284 : vector<5x32xf32>
    %cst_167 = arith.constant dense<0.000000e+00> : vector<5xf32>
    %300 = vector.multi_reduction <add>, %299, %cst_167 [1] : vector<5x32xf32> to vector<5xf32>
    %301 = vector.shape_cast %300 : vector<5xf32> to vector<5x1xf32>
    %cst_168 = arith.constant 3.200000e+01 : f32
    %302 = vector.broadcast %cst_168 : f32 to vector<5x1xf32>
    %303 = arith.divf %301, %302 : vector<5x1xf32>
    %304 = vector.broadcast %303 : vector<5x1xf32> to vector<5x32xf32>
    %305 = arith.subf %299, %304 : vector<5x32xf32>
    %306 = arith.mulf %305, %305 : vector<5x32xf32>
    %cst_169 = arith.constant dense<0.000000e+00> : vector<5xf32>
    %307 = vector.multi_reduction <add>, %306, %cst_169 [1] : vector<5x32xf32> to vector<5xf32>
    %308 = vector.shape_cast %307 : vector<5xf32> to vector<5x1xf32>
    %cst_170 = arith.constant 3.200000e+01 : f32
    %309 = vector.broadcast %cst_170 : f32 to vector<5x1xf32>
    %310 = arith.divf %308, %309 : vector<5x1xf32>
    %311 = vector.broadcast %303 : vector<5x1xf32> to vector<5x32xf32>
    %312 = arith.subf %299, %311 : vector<5x32xf32>
    %cst_171 = arith.constant 9.99999974E-6 : f32
    %313 = vector.broadcast %cst_171 : f32 to vector<5x1xf32>
    %314 = arith.addf %310, %313 : vector<5x1xf32>
    %315 = math.rsqrt %314 : vector<5x1xf32>
    %316 = vector.broadcast %315 : vector<5x1xf32> to vector<5x32xf32>
    %317 = arith.mulf %312, %316 : vector<5x32xf32>
    %318 = vector.broadcast %289 : vector<1x32xf32> to vector<5x32xf32>
    %319 = arith.mulf %317, %318 : vector<5x32xf32>
    %320 = vector.broadcast %290 : vector<1x32xf32> to vector<5x32xf32>
    %321 = arith.addf %319, %320 : vector<5x32xf32>
    %c448 = arith.constant 448 : index
    %c0_172 = arith.constant 0 : index
    %322 = vector.load %arg6[%c448, %c0_172] : memref<1120x128xf32, #tpu.memory_space<vmem>>, vector<32x96xf32>
    %c480 = arith.constant 480 : index
    %c0_173 = arith.constant 0 : index
    %323 = vector.load %arg6[%c480, %c0_173] : memref<1120x128xf32, #tpu.memory_space<vmem>>, vector<1x96xf32>
    %c488 = arith.constant 488 : index
    %c0_174 = arith.constant 0 : index
    %324 = vector.load %arg6[%c488, %c0_174] : memref<1120x128xf32, #tpu.memory_space<vmem>>, vector<32x32xf32>
    %c520 = arith.constant 520 : index
    %c0_175 = arith.constant 0 : index
    %325 = vector.load %arg6[%c520, %c0_175] : memref<1120x128xf32, #tpu.memory_space<vmem>>, vector<1x32xf32>
    %c528 = arith.constant 528 : index
    %c0_176 = arith.constant 0 : index
    %326 = vector.load %arg6[%c528, %c0_176] : memref<1120x128xf32, #tpu.memory_space<vmem>>, vector<1x32xf32>
    %c536 = arith.constant 536 : index
    %c0_177 = arith.constant 0 : index
    %327 = vector.load %arg6[%c536, %c0_177] : memref<1120x128xf32, #tpu.memory_space<vmem>>, vector<1x32xf32>
    %cst_178 = arith.constant dense<0.000000e+00> : vector<5x96xf32>
    %328 = tpu.matmul %9, %322, %cst_178 {dimension_numbers = #tpu.dot_dimension_numbers<[1], [0], [0], [1], [0, 0, 1, 1], [], []>} : vector<5x32xf32>, vector<32x96xf32>, vector<5x96xf32> -> vector<5x96xf32>
    %329 = vector.broadcast %323 : vector<1x96xf32> to vector<5x96xf32>
    %330 = arith.addf %328, %329 : vector<5x96xf32>
    %331 = vector.extract_strided_slice %330 {offsets = [0, 0], sizes = [5, 8], strides = [1, 1]} : vector<5x96xf32> to vector<5x8xf32>
    %332 = vector.extract_strided_slice %330 {offsets = [0, 32], sizes = [5, 8], strides = [1, 1]} : vector<5x96xf32> to vector<5x8xf32>
    %333 = vector.extract_strided_slice %330 {offsets = [0, 64], sizes = [5, 8], strides = [1, 1]} : vector<5x96xf32> to vector<5x8xf32>
    "tpu.trace_start"() <{level = 10 : i32, message = "qd,kd->qk"}> : () -> ()
    %cst_179 = arith.constant dense<0.000000e+00> : vector<5x5xf32>
    %334 = tpu.matmul %331, %332, %cst_179 {dimension_numbers = #tpu.dot_dimension_numbers<[1], [1], [0], [0], [0, 0, 1, 0], [], []>} : vector<5x8xf32>, vector<5x8xf32>, vector<5x5xf32> -> vector<5x5xf32>
    "tpu.trace_stop"() : () -> ()
    %335 = arith.addf %334, %13 : vector<5x5xf32>
    %cst_180 = arith.constant dense<0xFF800000> : vector<5xf32>
    %336 = vector.multi_reduction <maximumf>, %335, %cst_180 [1] : vector<5x5xf32> to vector<5xf32>
    %337 = vector.shape_cast %336 : vector<5xf32> to vector<5x1xf32>
    %338 = vector.broadcast %337 : vector<5x1xf32> to vector<5x5xf32>
    %339 = arith.subf %335, %338 : vector<5x5xf32>
    %340 = math.exp %339 : vector<5x5xf32>
    %cst_181 = arith.constant dense<0.000000e+00> : vector<5xf32>
    %341 = vector.multi_reduction <add>, %340, %cst_181 [1] : vector<5x5xf32> to vector<5xf32>
    %342 = vector.shape_cast %341 : vector<5xf32> to vector<5x1xf32>
    %343 = tpu.reciprocal %342 {approx = true} : vector<5x1xf32> -> vector<5x1xf32>
    %344 = vector.broadcast %343 : vector<5x1xf32> to vector<5x5xf32>
    %345 = arith.mulf %340, %344 : vector<5x5xf32>
    %c0_182 = arith.constant 0 : index
    %c0_183 = arith.constant 0 : index
    %c0_184 = arith.constant 0 : index
    %c0_185 = arith.constant 0 : index
    %c0_186 = arith.constant 0 : index
    %346 = vector.load %arg9[%c0_182, %c0_183, %c0_184, %c0_185, %c0_186] : memref<1x2x4x5x128xf32, #tpu.memory_space<vmem>>, vector<1x1x1x5x5xf32>
    %347 = vector.shape_cast %346 : vector<1x1x1x5x5xf32> to vector<5x5xf32>
    %348 = vector.shape_cast %345 : vector<5x5xf32> to vector<1x1x1x5x5xf32>
    tpu.vector_store %arg9[%c0_182, %c0_183, %c0_184, %c0_185, %c0_186], %348 {strides = array<i32>} : memref<1x2x4x5x128xf32, #tpu.memory_space<vmem>>, vector<1x1x1x5x5xf32>,
    %cst_187 = arith.constant dense<0.000000e+00> : vector<5x8xf32>
    %349 = tpu.matmul %345, %333, %cst_187 {dimension_numbers = #tpu.dot_dimension_numbers<[1], [0], [0], [1], [0, 0, 1, 1], [], []>} : vector<5x5xf32>, vector<5x8xf32>, vector<5x8xf32> -> vector<5x8xf32>
    %c0_188 = arith.constant 0 : index
    %c0_189 = arith.constant 0 : index
    %350 = vector.load %arg11[%c0_188, %c0_189] : memref<5x32xf32, #tpu.memory_space<vmem>>, vector<5x8xf32>
    tpu.vector_store %arg11[%c0_188, %c0_189], %349 {strides = array<i32>} : memref<5x32xf32, #tpu.memory_space<vmem>>, vector<5x8xf32>,
    %351 = vector.extract_strided_slice %330 {offsets = [0, 8], sizes = [5, 8], strides = [1, 1]} : vector<5x96xf32> to vector<5x8xf32>
    %352 = vector.extract_strided_slice %330 {offsets = [0, 40], sizes = [5, 8], strides = [1, 1]} : vector<5x96xf32> to vector<5x8xf32>
    %353 = vector.extract_strided_slice %330 {offsets = [0, 72], sizes = [5, 8], strides = [1, 1]} : vector<5x96xf32> to vector<5x8xf32>
    "tpu.trace_start"() <{level = 10 : i32, message = "qd,kd->qk"}> : () -> ()
    %cst_190 = arith.constant dense<0.000000e+00> : vector<5x5xf32>
    %354 = tpu.matmul %351, %352, %cst_190 {dimension_numbers = #tpu.dot_dimension_numbers<[1], [1], [0], [0], [0, 0, 1, 0], [], []>} : vector<5x8xf32>, vector<5x8xf32>, vector<5x5xf32> -> vector<5x5xf32>
    "tpu.trace_stop"() : () -> ()
    %355 = arith.addf %354, %13 : vector<5x5xf32>
    %cst_191 = arith.constant dense<0xFF800000> : vector<5xf32>
    %356 = vector.multi_reduction <maximumf>, %355, %cst_191 [1] : vector<5x5xf32> to vector<5xf32>
    %357 = vector.shape_cast %356 : vector<5xf32> to vector<5x1xf32>
    %358 = vector.broadcast %357 : vector<5x1xf32> to vector<5x5xf32>
    %359 = arith.subf %355, %358 : vector<5x5xf32>
    %360 = math.exp %359 : vector<5x5xf32>
    %cst_192 = arith.constant dense<0.000000e+00> : vector<5xf32>
    %361 = vector.multi_reduction <add>, %360, %cst_192 [1] : vector<5x5xf32> to vector<5xf32>
    %362 = vector.shape_cast %361 : vector<5xf32> to vector<5x1xf32>
    %363 = tpu.reciprocal %362 {approx = true} : vector<5x1xf32> -> vector<5x1xf32>
    %364 = vector.broadcast %363 : vector<5x1xf32> to vector<5x5xf32>
    %365 = arith.mulf %360, %364 : vector<5x5xf32>
    %c0_193 = arith.constant 0 : index
    %c0_194 = arith.constant 0 : index
    %c1_195 = arith.constant 1 : index
    %c0_196 = arith.constant 0 : index
    %c0_197 = arith.constant 0 : index
    %366 = vector.load %arg9[%c0_193, %c0_194, %c1_195, %c0_196, %c0_197] : memref<1x2x4x5x128xf32, #tpu.memory_space<vmem>>, vector<1x1x1x5x5xf32>
    %367 = vector.shape_cast %366 : vector<1x1x1x5x5xf32> to vector<5x5xf32>
    %368 = vector.shape_cast %365 : vector<5x5xf32> to vector<1x1x1x5x5xf32>
    tpu.vector_store %arg9[%c0_193, %c0_194, %c1_195, %c0_196, %c0_197], %368 {strides = array<i32>} : memref<1x2x4x5x128xf32, #tpu.memory_space<vmem>>, vector<1x1x1x5x5xf32>,
    %cst_198 = arith.constant dense<0.000000e+00> : vector<5x8xf32>
    %369 = tpu.matmul %365, %353, %cst_198 {dimension_numbers = #tpu.dot_dimension_numbers<[1], [0], [0], [1], [0, 0, 1, 1], [], []>} : vector<5x5xf32>, vector<5x8xf32>, vector<5x8xf32> -> vector<5x8xf32>
    %c0_199 = arith.constant 0 : index
    %c8_200 = arith.constant 8 : index
    %370 = vector.load %arg11[%c0_199, %c8_200] : memref<5x32xf32, #tpu.memory_space<vmem>>, vector<5x8xf32>
    tpu.vector_store %arg11[%c0_199, %c8_200], %369 {strides = array<i32>} : memref<5x32xf32, #tpu.memory_space<vmem>>, vector<5x8xf32>,
    %371 = vector.extract_strided_slice %330 {offsets = [0, 16], sizes = [5, 8], strides = [1, 1]} : vector<5x96xf32> to vector<5x8xf32>
    %372 = vector.extract_strided_slice %330 {offsets = [0, 48], sizes = [5, 8], strides = [1, 1]} : vector<5x96xf32> to vector<5x8xf32>
    %373 = vector.extract_strided_slice %330 {offsets = [0, 80], sizes = [5, 8], strides = [1, 1]} : vector<5x96xf32> to vector<5x8xf32>
    "tpu.trace_start"() <{level = 10 : i32, message = "qd,kd->qk"}> : () -> ()
    %cst_201 = arith.constant dense<0.000000e+00> : vector<5x5xf32>
    %374 = tpu.matmul %371, %372, %cst_201 {dimension_numbers = #tpu.dot_dimension_numbers<[1], [1], [0], [0], [0, 0, 1, 0], [], []>} : vector<5x8xf32>, vector<5x8xf32>, vector<5x5xf32> -> vector<5x5xf32>
    "tpu.trace_stop"() : () -> ()
    %375 = arith.addf %374, %13 : vector<5x5xf32>
    %cst_202 = arith.constant dense<0xFF800000> : vector<5xf32>
    %376 = vector.multi_reduction <maximumf>, %375, %cst_202 [1] : vector<5x5xf32> to vector<5xf32>
    %377 = vector.shape_cast %376 : vector<5xf32> to vector<5x1xf32>
    %378 = vector.broadcast %377 : vector<5x1xf32> to vector<5x5xf32>
    %379 = arith.subf %375, %378 : vector<5x5xf32>
    %380 = math.exp %379 : vector<5x5xf32>
    %cst_203 = arith.constant dense<0.000000e+00> : vector<5xf32>
    %381 = vector.multi_reduction <add>, %380, %cst_203 [1] : vector<5x5xf32> to vector<5xf32>
    %382 = vector.shape_cast %381 : vector<5xf32> to vector<5x1xf32>
    %383 = tpu.reciprocal %382 {approx = true} : vector<5x1xf32> -> vector<5x1xf32>
    %384 = vector.broadcast %383 : vector<5x1xf32> to vector<5x5xf32>
    %385 = arith.mulf %380, %384 : vector<5x5xf32>
    %c0_204 = arith.constant 0 : index
    %c0_205 = arith.constant 0 : index
    %c2_206 = arith.constant 2 : index
    %c0_207 = arith.constant 0 : index
    %c0_208 = arith.constant 0 : index
    %386 = vector.load %arg9[%c0_204, %c0_205, %c2_206, %c0_207, %c0_208] : memref<1x2x4x5x128xf32, #tpu.memory_space<vmem>>, vector<1x1x1x5x5xf32>
    %387 = vector.shape_cast %386 : vector<1x1x1x5x5xf32> to vector<5x5xf32>
    %388 = vector.shape_cast %385 : vector<5x5xf32> to vector<1x1x1x5x5xf32>
    tpu.vector_store %arg9[%c0_204, %c0_205, %c2_206, %c0_207, %c0_208], %388 {strides = array<i32>} : memref<1x2x4x5x128xf32, #tpu.memory_space<vmem>>, vector<1x1x1x5x5xf32>,
    %cst_209 = arith.constant dense<0.000000e+00> : vector<5x8xf32>
    %389 = tpu.matmul %385, %373, %cst_209 {dimension_numbers = #tpu.dot_dimension_numbers<[1], [0], [0], [1], [0, 0, 1, 1], [], []>} : vector<5x5xf32>, vector<5x8xf32>, vector<5x8xf32> -> vector<5x8xf32>
    %c0_210 = arith.constant 0 : index
    %c16_211 = arith.constant 16 : index
    %390 = vector.load %arg11[%c0_210, %c16_211] : memref<5x32xf32, #tpu.memory_space<vmem>>, vector<5x8xf32>
    tpu.vector_store %arg11[%c0_210, %c16_211], %389 {strides = array<i32>} : memref<5x32xf32, #tpu.memory_space<vmem>>, vector<5x8xf32>,
    %391 = vector.extract_strided_slice %330 {offsets = [0, 24], sizes = [5, 8], strides = [1, 1]} : vector<5x96xf32> to vector<5x8xf32>
    %392 = vector.extract_strided_slice %330 {offsets = [0, 56], sizes = [5, 8], strides = [1, 1]} : vector<5x96xf32> to vector<5x8xf32>
    %393 = vector.extract_strided_slice %330 {offsets = [0, 88], sizes = [5, 8], strides = [1, 1]} : vector<5x96xf32> to vector<5x8xf32>
    "tpu.trace_start"() <{level = 10 : i32, message = "qd,kd->qk"}> : () -> ()
    %cst_212 = arith.constant dense<0.000000e+00> : vector<5x5xf32>
    %394 = tpu.matmul %391, %392, %cst_212 {dimension_numbers = #tpu.dot_dimension_numbers<[1], [1], [0], [0], [0, 0, 1, 0], [], []>} : vector<5x8xf32>, vector<5x8xf32>, vector<5x5xf32> -> vector<5x5xf32>
    "tpu.trace_stop"() : () -> ()
    %395 = arith.addf %394, %13 : vector<5x5xf32>
    %cst_213 = arith.constant dense<0xFF800000> : vector<5xf32>
    %396 = vector.multi_reduction <maximumf>, %395, %cst_213 [1] : vector<5x5xf32> to vector<5xf32>
    %397 = vector.shape_cast %396 : vector<5xf32> to vector<5x1xf32>
    %398 = vector.broadcast %397 : vector<5x1xf32> to vector<5x5xf32>
    %399 = arith.subf %395, %398 : vector<5x5xf32>
    %400 = math.exp %399 : vector<5x5xf32>
    %cst_214 = arith.constant dense<0.000000e+00> : vector<5xf32>
    %401 = vector.multi_reduction <add>, %400, %cst_214 [1] : vector<5x5xf32> to vector<5xf32>
    %402 = vector.shape_cast %401 : vector<5xf32> to vector<5x1xf32>
    %403 = tpu.reciprocal %402 {approx = true} : vector<5x1xf32> -> vector<5x1xf32>
    %404 = vector.broadcast %403 : vector<5x1xf32> to vector<5x5xf32>
    %405 = arith.mulf %400, %404 : vector<5x5xf32>
    %c0_215 = arith.constant 0 : index
    %c0_216 = arith.constant 0 : index
    %c3_217 = arith.constant 3 : index
    %c0_218 = arith.constant 0 : index
    %c0_219 = arith.constant 0 : index
    %406 = vector.load %arg9[%c0_215, %c0_216, %c3_217, %c0_218, %c0_219] : memref<1x2x4x5x128xf32, #tpu.memory_space<vmem>>, vector<1x1x1x5x5xf32>
    %407 = vector.shape_cast %406 : vector<1x1x1x5x5xf32> to vector<5x5xf32>
    %408 = vector.shape_cast %405 : vector<5x5xf32> to vector<1x1x1x5x5xf32>
    tpu.vector_store %arg9[%c0_215, %c0_216, %c3_217, %c0_218, %c0_219], %408 {strides = array<i32>} : memref<1x2x4x5x128xf32, #tpu.memory_space<vmem>>, vector<1x1x1x5x5xf32>,
    %cst_220 = arith.constant dense<0.000000e+00> : vector<5x8xf32>
    %409 = tpu.matmul %405, %393, %cst_220 {dimension_numbers = #tpu.dot_dimension_numbers<[1], [0], [0], [1], [0, 0, 1, 1], [], []>} : vector<5x5xf32>, vector<5x8xf32>, vector<5x8xf32> -> vector<5x8xf32>
    %c0_221 = arith.constant 0 : index
    %c24_222 = arith.constant 24 : index
    %410 = vector.load %arg11[%c0_221, %c24_222] : memref<5x32xf32, #tpu.memory_space<vmem>>, vector<5x8xf32>
    tpu.vector_store %arg11[%c0_221, %c24_222], %409 {strides = array<i32>} : memref<5x32xf32, #tpu.memory_space<vmem>>, vector<5x8xf32>,
    %c0_223 = arith.constant 0 : index
    %c0_224 = arith.constant 0 : index
    %411 = vector.load %arg11[%c0_223, %c0_224] : memref<5x32xf32, #tpu.memory_space<vmem>>, vector<5x32xf32>
    %cst_225 = arith.constant dense<0.000000e+00> : vector<5x32xf32>
    %412 = tpu.matmul %411, %324, %cst_225 {dimension_numbers = #tpu.dot_dimension_numbers<[1], [0], [0], [1], [0, 0, 1, 1], [], []>} : vector<5x32xf32>, vector<32x32xf32>, vector<5x32xf32> -> vector<5x32xf32>
    %413 = vector.broadcast %325 : vector<1x32xf32> to vector<5x32xf32>
    %414 = arith.addf %412, %413 : vector<5x32xf32>
    %415 = arith.addf %414, %9 : vector<5x32xf32>
    %cst_226 = arith.constant dense<0.000000e+00> : vector<5xf32>
    %416 = vector.multi_reduction <add>, %415, %cst_226 [1] : vector<5x32xf32> to vector<5xf32>
    %417 = vector.shape_cast %416 : vector<5xf32> to vector<5x1xf32>
    %cst_227 = arith.constant 3.200000e+01 : f32
    %418 = vector.broadcast %cst_227 : f32 to vector<5x1xf32>
    %419 = arith.divf %417, %418 : vector<5x1xf32>
    %420 = vector.broadcast %419 : vector<5x1xf32> to vector<5x32xf32>
    %421 = arith.subf %415, %420 : vector<5x32xf32>
    %422 = arith.mulf %421, %421 : vector<5x32xf32>
    %cst_228 = arith.constant dense<0.000000e+00> : vector<5xf32>
    %423 = vector.multi_reduction <add>, %422, %cst_228 [1] : vector<5x32xf32> to vector<5xf32>
    %424 = vector.shape_cast %423 : vector<5xf32> to vector<5x1xf32>
    %cst_229 = arith.constant 3.200000e+01 : f32
    %425 = vector.broadcast %cst_229 : f32 to vector<5x1xf32>
    %426 = arith.divf %424, %425 : vector<5x1xf32>
    %427 = vector.broadcast %419 : vector<5x1xf32> to vector<5x32xf32>
    %428 = arith.subf %415, %427 : vector<5x32xf32>
    %cst_230 = arith.constant 9.99999974E-6 : f32
    %429 = vector.broadcast %cst_230 : f32 to vector<5x1xf32>
    %430 = arith.addf %426, %429 : vector<5x1xf32>
    %431 = math.rsqrt %430 : vector<5x1xf32>
    %432 = vector.broadcast %431 : vector<5x1xf32> to vector<5x32xf32>
    %433 = arith.mulf %428, %432 : vector<5x32xf32>
    %434 = vector.broadcast %326 : vector<1x32xf32> to vector<5x32xf32>
    %435 = arith.mulf %433, %434 : vector<5x32xf32>
    %436 = vector.broadcast %327 : vector<1x32xf32> to vector<5x32xf32>
    %437 = arith.addf %435, %436 : vector<5x32xf32>
    %c544 = arith.constant 544 : index
    %c0_231 = arith.constant 0 : index
    %438 = vector.load %arg6[%c544, %c0_231] : memref<1120x128xf32, #tpu.memory_space<vmem>>, vector<32x96xf32>
    %c576 = arith.constant 576 : index
    %c0_232 = arith.constant 0 : index
    %439 = vector.load %arg6[%c576, %c0_232] : memref<1120x128xf32, #tpu.memory_space<vmem>>, vector<1x96xf32>
    %c584 = arith.constant 584 : index
    %c0_233 = arith.constant 0 : index
    %440 = vector.load %arg6[%c584, %c0_233] : memref<1120x128xf32, #tpu.memory_space<vmem>>, vector<32x32xf32>
    %c616 = arith.constant 616 : index
    %c0_234 = arith.constant 0 : index
    %441 = vector.load %arg6[%c616, %c0_234] : memref<1120x128xf32, #tpu.memory_space<vmem>>, vector<1x32xf32>
    %c624 = arith.constant 624 : index
    %c0_235 = arith.constant 0 : index
    %442 = vector.load %arg6[%c624, %c0_235] : memref<1120x128xf32, #tpu.memory_space<vmem>>, vector<1x32xf32>
    %c632 = arith.constant 632 : index
    %c0_236 = arith.constant 0 : index
    %443 = vector.load %arg6[%c632, %c0_236] : memref<1120x128xf32, #tpu.memory_space<vmem>>, vector<1x32xf32>
    %cst_237 = arith.constant dense<0.000000e+00> : vector<5x96xf32>
    %444 = tpu.matmul %437, %438, %cst_237 {dimension_numbers = #tpu.dot_dimension_numbers<[1], [0], [0], [1], [0, 0, 1, 1], [], []>} : vector<5x32xf32>, vector<32x96xf32>, vector<5x96xf32> -> vector<5x96xf32>
    %445 = vector.broadcast %439 : vector<1x96xf32> to vector<5x96xf32>
    %446 = arith.addf %444, %445 : vector<5x96xf32>
    %cst_238 = arith.constant dense<0.000000e+00> : vector<5x96xf32>
    %447 = tpu.matmul %321, %438, %cst_238 {dimension_numbers = #tpu.dot_dimension_numbers<[1], [0], [0], [1], [0, 0, 1, 1], [], []>} : vector<5x32xf32>, vector<32x96xf32>, vector<5x96xf32> -> vector<5x96xf32>
    %448 = vector.broadcast %439 : vector<1x96xf32> to vector<5x96xf32>
    %449 = arith.addf %447, %448 : vector<5x96xf32>
    %450 = vector.extract_strided_slice %446 {offsets = [0, 0], sizes = [5, 8], strides = [1, 1]} : vector<5x96xf32> to vector<5x8xf32>
    %451 = vector.extract_strided_slice %449 {offsets = [0, 32], sizes = [5, 8], strides = [1, 1]} : vector<5x96xf32> to vector<5x8xf32>
    %452 = vector.extract_strided_slice %449 {offsets = [0, 64], sizes = [5, 8], strides = [1, 1]} : vector<5x96xf32> to vector<5x8xf32>
    "tpu.trace_start"() <{level = 10 : i32, message = "qd,kd->qk"}> : () -> ()
    %cst_239 = arith.constant dense<0.000000e+00> : vector<5x5xf32>
    %453 = tpu.matmul %450, %451, %cst_239 {dimension_numbers = #tpu.dot_dimension_numbers<[1], [1], [0], [0], [0, 0, 1, 0], [], []>} : vector<5x8xf32>, vector<5x8xf32>, vector<5x5xf32> -> vector<5x5xf32>
    "tpu.trace_stop"() : () -> ()
    %454 = arith.addf %453, %15 : vector<5x5xf32>
    %cst_240 = arith.constant dense<0xFF800000> : vector<5xf32>
    %455 = vector.multi_reduction <maximumf>, %454, %cst_240 [1] : vector<5x5xf32> to vector<5xf32>
    %456 = vector.shape_cast %455 : vector<5xf32> to vector<5x1xf32>
    %457 = vector.broadcast %456 : vector<5x1xf32> to vector<5x5xf32>
    %458 = arith.subf %454, %457 : vector<5x5xf32>
    %459 = math.exp %458 : vector<5x5xf32>
    %cst_241 = arith.constant dense<0.000000e+00> : vector<5xf32>
    %460 = vector.multi_reduction <add>, %459, %cst_241 [1] : vector<5x5xf32> to vector<5xf32>
    %461 = vector.shape_cast %460 : vector<5xf32> to vector<5x1xf32>
    %462 = tpu.reciprocal %461 {approx = true} : vector<5x1xf32> -> vector<5x1xf32>
    %463 = vector.broadcast %462 : vector<5x1xf32> to vector<5x5xf32>
    %464 = arith.mulf %459, %463 : vector<5x5xf32>
    %c0_242 = arith.constant 0 : index
    %c0_243 = arith.constant 0 : index
    %c0_244 = arith.constant 0 : index
    %c0_245 = arith.constant 0 : index
    %c0_246 = arith.constant 0 : index
    %465 = vector.load %arg10[%c0_242, %c0_243, %c0_244, %c0_245, %c0_246] : memref<1x2x4x5x128xf32, #tpu.memory_space<vmem>>, vector<1x1x1x5x5xf32>
    %466 = vector.shape_cast %465 : vector<1x1x1x5x5xf32> to vector<5x5xf32>
    %467 = vector.shape_cast %464 : vector<5x5xf32> to vector<1x1x1x5x5xf32>
    tpu.vector_store %arg10[%c0_242, %c0_243, %c0_244, %c0_245, %c0_246], %467 {strides = array<i32>} : memref<1x2x4x5x128xf32, #tpu.memory_space<vmem>>, vector<1x1x1x5x5xf32>,
    %cst_247 = arith.constant dense<0.000000e+00> : vector<5x8xf32>
    %468 = tpu.matmul %464, %452, %cst_247 {dimension_numbers = #tpu.dot_dimension_numbers<[1], [0], [0], [1], [0, 0, 1, 1], [], []>} : vector<5x5xf32>, vector<5x8xf32>, vector<5x8xf32> -> vector<5x8xf32>
    %c0_248 = arith.constant 0 : index
    %c0_249 = arith.constant 0 : index
    %469 = vector.load %arg11[%c0_248, %c0_249] : memref<5x32xf32, #tpu.memory_space<vmem>>, vector<5x8xf32>
    tpu.vector_store %arg11[%c0_248, %c0_249], %468 {strides = array<i32>} : memref<5x32xf32, #tpu.memory_space<vmem>>, vector<5x8xf32>,
    %470 = vector.extract_strided_slice %446 {offsets = [0, 8], sizes = [5, 8], strides = [1, 1]} : vector<5x96xf32> to vector<5x8xf32>
    %471 = vector.extract_strided_slice %449 {offsets = [0, 40], sizes = [5, 8], strides = [1, 1]} : vector<5x96xf32> to vector<5x8xf32>
    %472 = vector.extract_strided_slice %449 {offsets = [0, 72], sizes = [5, 8], strides = [1, 1]} : vector<5x96xf32> to vector<5x8xf32>
    "tpu.trace_start"() <{level = 10 : i32, message = "qd,kd->qk"}> : () -> ()
    %cst_250 = arith.constant dense<0.000000e+00> : vector<5x5xf32>
    %473 = tpu.matmul %470, %471, %cst_250 {dimension_numbers = #tpu.dot_dimension_numbers<[1], [1], [0], [0], [0, 0, 1, 0], [], []>} : vector<5x8xf32>, vector<5x8xf32>, vector<5x5xf32> -> vector<5x5xf32>
    "tpu.trace_stop"() : () -> ()
    %474 = arith.addf %473, %15 : vector<5x5xf32>
    %cst_251 = arith.constant dense<0xFF800000> : vector<5xf32>
    %475 = vector.multi_reduction <maximumf>, %474, %cst_251 [1] : vector<5x5xf32> to vector<5xf32>
    %476 = vector.shape_cast %475 : vector<5xf32> to vector<5x1xf32>
    %477 = vector.broadcast %476 : vector<5x1xf32> to vector<5x5xf32>
    %478 = arith.subf %474, %477 : vector<5x5xf32>
    %479 = math.exp %478 : vector<5x5xf32>
    %cst_252 = arith.constant dense<0.000000e+00> : vector<5xf32>
    %480 = vector.multi_reduction <add>, %479, %cst_252 [1] : vector<5x5xf32> to vector<5xf32>
    %481 = vector.shape_cast %480 : vector<5xf32> to vector<5x1xf32>
    %482 = tpu.reciprocal %481 {approx = true} : vector<5x1xf32> -> vector<5x1xf32>
    %483 = vector.broadcast %482 : vector<5x1xf32> to vector<5x5xf32>
    %484 = arith.mulf %479, %483 : vector<5x5xf32>
    %c0_253 = arith.constant 0 : index
    %c0_254 = arith.constant 0 : index
    %c1_255 = arith.constant 1 : index
    %c0_256 = arith.constant 0 : index
    %c0_257 = arith.constant 0 : index
    %485 = vector.load %arg10[%c0_253, %c0_254, %c1_255, %c0_256, %c0_257] : memref<1x2x4x5x128xf32, #tpu.memory_space<vmem>>, vector<1x1x1x5x5xf32>
    %486 = vector.shape_cast %485 : vector<1x1x1x5x5xf32> to vector<5x5xf32>
    %487 = vector.shape_cast %484 : vector<5x5xf32> to vector<1x1x1x5x5xf32>
    tpu.vector_store %arg10[%c0_253, %c0_254, %c1_255, %c0_256, %c0_257], %487 {strides = array<i32>} : memref<1x2x4x5x128xf32, #tpu.memory_space<vmem>>, vector<1x1x1x5x5xf32>,
    %cst_258 = arith.constant dense<0.000000e+00> : vector<5x8xf32>
    %488 = tpu.matmul %484, %472, %cst_258 {dimension_numbers = #tpu.dot_dimension_numbers<[1], [0], [0], [1], [0, 0, 1, 1], [], []>} : vector<5x5xf32>, vector<5x8xf32>, vector<5x8xf32> -> vector<5x8xf32>
    %c0_259 = arith.constant 0 : index
    %c8_260 = arith.constant 8 : index
    %489 = vector.load %arg11[%c0_259, %c8_260] : memref<5x32xf32, #tpu.memory_space<vmem>>, vector<5x8xf32>
    tpu.vector_store %arg11[%c0_259, %c8_260], %488 {strides = array<i32>} : memref<5x32xf32, #tpu.memory_space<vmem>>, vector<5x8xf32>,
    %490 = vector.extract_strided_slice %446 {offsets = [0, 16], sizes = [5, 8], strides = [1, 1]} : vector<5x96xf32> to vector<5x8xf32>
    %491 = vector.extract_strided_slice %449 {offsets = [0, 48], sizes = [5, 8], strides = [1, 1]} : vector<5x96xf32> to vector<5x8xf32>
    %492 = vector.extract_strided_slice %449 {offsets = [0, 80], sizes = [5, 8], strides = [1, 1]} : vector<5x96xf32> to vector<5x8xf32>
    "tpu.trace_start"() <{level = 10 : i32, message = "qd,kd->qk"}> : () -> ()
    %cst_261 = arith.constant dense<0.000000e+00> : vector<5x5xf32>
    %493 = tpu.matmul %490, %491, %cst_261 {dimension_numbers = #tpu.dot_dimension_numbers<[1], [1], [0], [0], [0, 0, 1, 0], [], []>} : vector<5x8xf32>, vector<5x8xf32>, vector<5x5xf32> -> vector<5x5xf32>
    "tpu.trace_stop"() : () -> ()
    %494 = arith.addf %493, %15 : vector<5x5xf32>
    %cst_262 = arith.constant dense<0xFF800000> : vector<5xf32>
    %495 = vector.multi_reduction <maximumf>, %494, %cst_262 [1] : vector<5x5xf32> to vector<5xf32>
    %496 = vector.shape_cast %495 : vector<5xf32> to vector<5x1xf32>
    %497 = vector.broadcast %496 : vector<5x1xf32> to vector<5x5xf32>
    %498 = arith.subf %494, %497 : vector<5x5xf32>
    %499 = math.exp %498 : vector<5x5xf32>
    %cst_263 = arith.constant dense<0.000000e+00> : vector<5xf32>
    %500 = vector.multi_reduction <add>, %499, %cst_263 [1] : vector<5x5xf32> to vector<5xf32>
    %501 = vector.shape_cast %500 : vector<5xf32> to vector<5x1xf32>
    %502 = tpu.reciprocal %501 {approx = true} : vector<5x1xf32> -> vector<5x1xf32>
    %503 = vector.broadcast %502 : vector<5x1xf32> to vector<5x5xf32>
    %504 = arith.mulf %499, %503 : vector<5x5xf32>
    %c0_264 = arith.constant 0 : index
    %c0_265 = arith.constant 0 : index
    %c2_266 = arith.constant 2 : index
    %c0_267 = arith.constant 0 : index
    %c0_268 = arith.constant 0 : index
    %505 = vector.load %arg10[%c0_264, %c0_265, %c2_266, %c0_267, %c0_268] : memref<1x2x4x5x128xf32, #tpu.memory_space<vmem>>, vector<1x1x1x5x5xf32>
    %506 = vector.shape_cast %505 : vector<1x1x1x5x5xf32> to vector<5x5xf32>
    %507 = vector.shape_cast %504 : vector<5x5xf32> to vector<1x1x1x5x5xf32>
    tpu.vector_store %arg10[%c0_264, %c0_265, %c2_266, %c0_267, %c0_268], %507 {strides = array<i32>} : memref<1x2x4x5x128xf32, #tpu.memory_space<vmem>>, vector<1x1x1x5x5xf32>,
    %cst_269 = arith.constant dense<0.000000e+00> : vector<5x8xf32>
    %508 = tpu.matmul %504, %492, %cst_269 {dimension_numbers = #tpu.dot_dimension_numbers<[1], [0], [0], [1], [0, 0, 1, 1], [], []>} : vector<5x5xf32>, vector<5x8xf32>, vector<5x8xf32> -> vector<5x8xf32>
    %c0_270 = arith.constant 0 : index
    %c16_271 = arith.constant 16 : index
    %509 = vector.load %arg11[%c0_270, %c16_271] : memref<5x32xf32, #tpu.memory_space<vmem>>, vector<5x8xf32>
    tpu.vector_store %arg11[%c0_270, %c16_271], %508 {strides = array<i32>} : memref<5x32xf32, #tpu.memory_space<vmem>>, vector<5x8xf32>,
    %510 = vector.extract_strided_slice %446 {offsets = [0, 24], sizes = [5, 8], strides = [1, 1]} : vector<5x96xf32> to vector<5x8xf32>
    %511 = vector.extract_strided_slice %449 {offsets = [0, 56], sizes = [5, 8], strides = [1, 1]} : vector<5x96xf32> to vector<5x8xf32>
    %512 = vector.extract_strided_slice %449 {offsets = [0, 88], sizes = [5, 8], strides = [1, 1]} : vector<5x96xf32> to vector<5x8xf32>
    "tpu.trace_start"() <{level = 10 : i32, message = "qd,kd->qk"}> : () -> ()
    %cst_272 = arith.constant dense<0.000000e+00> : vector<5x5xf32>
    %513 = tpu.matmul %510, %511, %cst_272 {dimension_numbers = #tpu.dot_dimension_numbers<[1], [1], [0], [0], [0, 0, 1, 0], [], []>} : vector<5x8xf32>, vector<5x8xf32>, vector<5x5xf32> -> vector<5x5xf32>
    "tpu.trace_stop"() : () -> ()
    %514 = arith.addf %513, %15 : vector<5x5xf32>
    %cst_273 = arith.constant dense<0xFF800000> : vector<5xf32>
    %515 = vector.multi_reduction <maximumf>, %514, %cst_273 [1] : vector<5x5xf32> to vector<5xf32>
    %516 = vector.shape_cast %515 : vector<5xf32> to vector<5x1xf32>
    %517 = vector.broadcast %516 : vector<5x1xf32> to vector<5x5xf32>
    %518 = arith.subf %514, %517 : vector<5x5xf32>
    %519 = math.exp %518 : vector<5x5xf32>
    %cst_274 = arith.constant dense<0.000000e+00> : vector<5xf32>
    %520 = vector.multi_reduction <add>, %519, %cst_274 [1] : vector<5x5xf32> to vector<5xf32>
    %521 = vector.shape_cast %520 : vector<5xf32> to vector<5x1xf32>
    %522 = tpu.reciprocal %521 {approx = true} : vector<5x1xf32> -> vector<5x1xf32>
    %523 = vector.broadcast %522 : vector<5x1xf32> to vector<5x5xf32>
    %524 = arith.mulf %519, %523 : vector<5x5xf32>
    %c0_275 = arith.constant 0 : index
    %c0_276 = arith.constant 0 : index
    %c3_277 = arith.constant 3 : index
    %c0_278 = arith.constant 0 : index
    %c0_279 = arith.constant 0 : index
    %525 = vector.load %arg10[%c0_275, %c0_276, %c3_277, %c0_278, %c0_279] : memref<1x2x4x5x128xf32, #tpu.memory_space<vmem>>, vector<1x1x1x5x5xf32>
    %526 = vector.shape_cast %525 : vector<1x1x1x5x5xf32> to vector<5x5xf32>
    %527 = vector.shape_cast %524 : vector<5x5xf32> to vector<1x1x1x5x5xf32>
    tpu.vector_store %arg10[%c0_275, %c0_276, %c3_277, %c0_278, %c0_279], %527 {strides = array<i32>} : memref<1x2x4x5x128xf32, #tpu.memory_space<vmem>>, vector<1x1x1x5x5xf32>,
    %cst_280 = arith.constant dense<0.000000e+00> : vector<5x8xf32>
    %528 = tpu.matmul %524, %512, %cst_280 {dimension_numbers = #tpu.dot_dimension_numbers<[1], [0], [0], [1], [0, 0, 1, 1], [], []>} : vector<5x5xf32>, vector<5x8xf32>, vector<5x8xf32> -> vector<5x8xf32>
    %c0_281 = arith.constant 0 : index
    %c24_282 = arith.constant 24 : index
    %529 = vector.load %arg11[%c0_281, %c24_282] : memref<5x32xf32, #tpu.memory_space<vmem>>, vector<5x8xf32>
    tpu.vector_store %arg11[%c0_281, %c24_282], %528 {strides = array<i32>} : memref<5x32xf32, #tpu.memory_space<vmem>>, vector<5x8xf32>,
    %c0_283 = arith.constant 0 : index
    %c0_284 = arith.constant 0 : index
    %530 = vector.load %arg11[%c0_283, %c0_284] : memref<5x32xf32, #tpu.memory_space<vmem>>, vector<5x32xf32>
    %cst_285 = arith.constant dense<0.000000e+00> : vector<5x32xf32>
    %531 = tpu.matmul %530, %440, %cst_285 {dimension_numbers = #tpu.dot_dimension_numbers<[1], [0], [0], [1], [0, 0, 1, 1], [], []>} : vector<5x32xf32>, vector<32x32xf32>, vector<5x32xf32> -> vector<5x32xf32>
    %532 = vector.broadcast %441 : vector<1x32xf32> to vector<5x32xf32>
    %533 = arith.addf %531, %532 : vector<5x32xf32>
    %534 = arith.addf %533, %437 : vector<5x32xf32>
    %cst_286 = arith.constant dense<0.000000e+00> : vector<5xf32>
    %535 = vector.multi_reduction <add>, %534, %cst_286 [1] : vector<5x32xf32> to vector<5xf32>
    %536 = vector.shape_cast %535 : vector<5xf32> to vector<5x1xf32>
    %cst_287 = arith.constant 3.200000e+01 : f32
    %537 = vector.broadcast %cst_287 : f32 to vector<5x1xf32>
    %538 = arith.divf %536, %537 : vector<5x1xf32>
    %539 = vector.broadcast %538 : vector<5x1xf32> to vector<5x32xf32>
    %540 = arith.subf %534, %539 : vector<5x32xf32>
    %541 = arith.mulf %540, %540 : vector<5x32xf32>
    %cst_288 = arith.constant dense<0.000000e+00> : vector<5xf32>
    %542 = vector.multi_reduction <add>, %541, %cst_288 [1] : vector<5x32xf32> to vector<5xf32>
    %543 = vector.shape_cast %542 : vector<5xf32> to vector<5x1xf32>
    %cst_289 = arith.constant 3.200000e+01 : f32
    %544 = vector.broadcast %cst_289 : f32 to vector<5x1xf32>
    %545 = arith.divf %543, %544 : vector<5x1xf32>
    %546 = vector.broadcast %538 : vector<5x1xf32> to vector<5x32xf32>
    %547 = arith.subf %534, %546 : vector<5x32xf32>
    %cst_290 = arith.constant 9.99999974E-6 : f32
    %548 = vector.broadcast %cst_290 : f32 to vector<5x1xf32>
    %549 = arith.addf %545, %548 : vector<5x1xf32>
    %550 = math.rsqrt %549 : vector<5x1xf32>
    %551 = vector.broadcast %550 : vector<5x1xf32> to vector<5x32xf32>
    %552 = arith.mulf %547, %551 : vector<5x32xf32>
    %553 = vector.broadcast %442 : vector<1x32xf32> to vector<5x32xf32>
    %554 = arith.mulf %552, %553 : vector<5x32xf32>
    %555 = vector.broadcast %443 : vector<1x32xf32> to vector<5x32xf32>
    %556 = arith.addf %554, %555 : vector<5x32xf32>
    %c640 = arith.constant 640 : index
    %c0_291 = arith.constant 0 : index
    %557 = vector.load %arg6[%c640, %c0_291] : memref<1120x128xf32, #tpu.memory_space<vmem>>, vector<32x64xf32>
    %c672 = arith.constant 672 : index
    %c0_292 = arith.constant 0 : index
    %558 = vector.load %arg6[%c672, %c0_292] : memref<1120x128xf32, #tpu.memory_space<vmem>>, vector<1x64xf32>
    %c680 = arith.constant 680 : index
    %c0_293 = arith.constant 0 : index
    %559 = vector.load %arg6[%c680, %c0_293] : memref<1120x128xf32, #tpu.memory_space<vmem>>, vector<64x32xf32>
    %c744 = arith.constant 744 : index
    %c0_294 = arith.constant 0 : index
    %560 = vector.load %arg6[%c744, %c0_294] : memref<1120x128xf32, #tpu.memory_space<vmem>>, vector<1x32xf32>
    %c752 = arith.constant 752 : index
    %c0_295 = arith.constant 0 : index
    %561 = vector.load %arg6[%c752, %c0_295] : memref<1120x128xf32, #tpu.memory_space<vmem>>, vector<1x32xf32>
    %c760 = arith.constant 760 : index
    %c0_296 = arith.constant 0 : index
    %562 = vector.load %arg6[%c760, %c0_296] : memref<1120x128xf32, #tpu.memory_space<vmem>>, vector<1x32xf32>
    %cst_297 = arith.constant dense<0.000000e+00> : vector<5x64xf32>
    %563 = tpu.matmul %556, %557, %cst_297 {dimension_numbers = #tpu.dot_dimension_numbers<[1], [0], [0], [1], [0, 0, 1, 1], [], []>} : vector<5x32xf32>, vector<32x64xf32>, vector<5x64xf32> -> vector<5x64xf32>
    %564 = vector.broadcast %558 : vector<1x64xf32> to vector<5x64xf32>
    %565 = arith.addf %563, %564 : vector<5x64xf32>
    %cst_298 = arith.constant 0.000000e+00 : f32
    %566 = vector.broadcast %cst_298 : f32 to vector<5x64xf32>
    %567 = arith.maximumf %565, %566 : vector<5x64xf32>
    %cst_299 = arith.constant dense<0.000000e+00> : vector<5x32xf32>
    %568 = tpu.matmul %567, %559, %cst_299 {dimension_numbers = #tpu.dot_dimension_numbers<[1], [0], [0], [1], [0, 0, 1, 1], [], []>} : vector<5x64xf32>, vector<64x32xf32>, vector<5x32xf32> -> vector<5x32xf32>
    %569 = vector.broadcast %560 : vector<1x32xf32> to vector<5x32xf32>
    %570 = arith.addf %568, %569 : vector<5x32xf32>
    %571 = arith.addf %570, %556 : vector<5x32xf32>
    %cst_300 = arith.constant dense<0.000000e+00> : vector<5xf32>
    %572 = vector.multi_reduction <add>, %571, %cst_300 [1] : vector<5x32xf32> to vector<5xf32>
    %573 = vector.shape_cast %572 : vector<5xf32> to vector<5x1xf32>
    %cst_301 = arith.constant 3.200000e+01 : f32
    %574 = vector.broadcast %cst_301 : f32 to vector<5x1xf32>
    %575 = arith.divf %573, %574 : vector<5x1xf32>
    %576 = vector.broadcast %575 : vector<5x1xf32> to vector<5x32xf32>
    %577 = arith.subf %571, %576 : vector<5x32xf32>
    %578 = arith.mulf %577, %577 : vector<5x32xf32>
    %cst_302 = arith.constant dense<0.000000e+00> : vector<5xf32>
    %579 = vector.multi_reduction <add>, %578, %cst_302 [1] : vector<5x32xf32> to vector<5xf32>
    %580 = vector.shape_cast %579 : vector<5xf32> to vector<5x1xf32>
    %cst_303 = arith.constant 3.200000e+01 : f32
    %581 = vector.broadcast %cst_303 : f32 to vector<5x1xf32>
    %582 = arith.divf %580, %581 : vector<5x1xf32>
    %583 = vector.broadcast %575 : vector<5x1xf32> to vector<5x32xf32>
    %584 = arith.subf %571, %583 : vector<5x32xf32>
    %cst_304 = arith.constant 9.99999974E-6 : f32
    %585 = vector.broadcast %cst_304 : f32 to vector<5x1xf32>
    %586 = arith.addf %582, %585 : vector<5x1xf32>
    %587 = math.rsqrt %586 : vector<5x1xf32>
    %588 = vector.broadcast %587 : vector<5x1xf32> to vector<5x32xf32>
    %589 = arith.mulf %584, %588 : vector<5x32xf32>
    %590 = vector.broadcast %561 : vector<1x32xf32> to vector<5x32xf32>
    %591 = arith.mulf %589, %590 : vector<5x32xf32>
    %592 = vector.broadcast %562 : vector<1x32xf32> to vector<5x32xf32>
    %593 = arith.addf %591, %592 : vector<5x32xf32>
    %c768 = arith.constant 768 : index
    %c0_305 = arith.constant 0 : index
    %594 = vector.load %arg6[%c768, %c0_305] : memref<1120x128xf32, #tpu.memory_space<vmem>>, vector<32x96xf32>
    %c800 = arith.constant 800 : index
    %c0_306 = arith.constant 0 : index
    %595 = vector.load %arg6[%c800, %c0_306] : memref<1120x128xf32, #tpu.memory_space<vmem>>, vector<1x96xf32>
    %c808 = arith.constant 808 : index
    %c0_307 = arith.constant 0 : index
    %596 = vector.load %arg6[%c808, %c0_307] : memref<1120x128xf32, #tpu.memory_space<vmem>>, vector<32x32xf32>
    %c840 = arith.constant 840 : index
    %c0_308 = arith.constant 0 : index
    %597 = vector.load %arg6[%c840, %c0_308] : memref<1120x128xf32, #tpu.memory_space<vmem>>, vector<1x32xf32>
    %c848 = arith.constant 848 : index
    %c0_309 = arith.constant 0 : index
    %598 = vector.load %arg6[%c848, %c0_309] : memref<1120x128xf32, #tpu.memory_space<vmem>>, vector<1x32xf32>
    %c856 = arith.constant 856 : index
    %c0_310 = arith.constant 0 : index
    %599 = vector.load %arg6[%c856, %c0_310] : memref<1120x128xf32, #tpu.memory_space<vmem>>, vector<1x32xf32>
    %cst_311 = arith.constant dense<0.000000e+00> : vector<5x96xf32>
    %600 = tpu.matmul %593, %594, %cst_311 {dimension_numbers = #tpu.dot_dimension_numbers<[1], [0], [0], [1], [0, 0, 1, 1], [], []>} : vector<5x32xf32>, vector<32x96xf32>, vector<5x96xf32> -> vector<5x96xf32>
    %601 = vector.broadcast %595 : vector<1x96xf32> to vector<5x96xf32>
    %602 = arith.addf %600, %601 : vector<5x96xf32>
    %603 = vector.extract_strided_slice %602 {offsets = [0, 0], sizes = [5, 8], strides = [1, 1]} : vector<5x96xf32> to vector<5x8xf32>
    %604 = vector.extract_strided_slice %602 {offsets = [0, 32], sizes = [5, 8], strides = [1, 1]} : vector<5x96xf32> to vector<5x8xf32>
    %605 = vector.extract_strided_slice %602 {offsets = [0, 64], sizes = [5, 8], strides = [1, 1]} : vector<5x96xf32> to vector<5x8xf32>
    "tpu.trace_start"() <{level = 10 : i32, message = "qd,kd->qk"}> : () -> ()
    %cst_312 = arith.constant dense<0.000000e+00> : vector<5x5xf32>
    %606 = tpu.matmul %603, %604, %cst_312 {dimension_numbers = #tpu.dot_dimension_numbers<[1], [1], [0], [0], [0, 0, 1, 0], [], []>} : vector<5x8xf32>, vector<5x8xf32>, vector<5x5xf32> -> vector<5x5xf32>
    "tpu.trace_stop"() : () -> ()
    %607 = arith.addf %606, %13 : vector<5x5xf32>
    %cst_313 = arith.constant dense<0xFF800000> : vector<5xf32>
    %608 = vector.multi_reduction <maximumf>, %607, %cst_313 [1] : vector<5x5xf32> to vector<5xf32>
    %609 = vector.shape_cast %608 : vector<5xf32> to vector<5x1xf32>
    %610 = vector.broadcast %609 : vector<5x1xf32> to vector<5x5xf32>
    %611 = arith.subf %607, %610 : vector<5x5xf32>
    %612 = math.exp %611 : vector<5x5xf32>
    %cst_314 = arith.constant dense<0.000000e+00> : vector<5xf32>
    %613 = vector.multi_reduction <add>, %612, %cst_314 [1] : vector<5x5xf32> to vector<5xf32>
    %614 = vector.shape_cast %613 : vector<5xf32> to vector<5x1xf32>
    %615 = tpu.reciprocal %614 {approx = true} : vector<5x1xf32> -> vector<5x1xf32>
    %616 = vector.broadcast %615 : vector<5x1xf32> to vector<5x5xf32>
    %617 = arith.mulf %612, %616 : vector<5x5xf32>
    %c0_315 = arith.constant 0 : index
    %c1_316 = arith.constant 1 : index
    %c0_317 = arith.constant 0 : index
    %c0_318 = arith.constant 0 : index
    %c0_319 = arith.constant 0 : index
    %618 = vector.load %arg9[%c0_315, %c1_316, %c0_317, %c0_318, %c0_319] : memref<1x2x4x5x128xf32, #tpu.memory_space<vmem>>, vector<1x1x1x5x5xf32>
    %619 = vector.shape_cast %618 : vector<1x1x1x5x5xf32> to vector<5x5xf32>
    %620 = vector.shape_cast %617 : vector<5x5xf32> to vector<1x1x1x5x5xf32>
    tpu.vector_store %arg9[%c0_315, %c1_316, %c0_317, %c0_318, %c0_319], %620 {strides = array<i32>} : memref<1x2x4x5x128xf32, #tpu.memory_space<vmem>>, vector<1x1x1x5x5xf32>,
    %cst_320 = arith.constant dense<0.000000e+00> : vector<5x8xf32>
    %621 = tpu.matmul %617, %605, %cst_320 {dimension_numbers = #tpu.dot_dimension_numbers<[1], [0], [0], [1], [0, 0, 1, 1], [], []>} : vector<5x5xf32>, vector<5x8xf32>, vector<5x8xf32> -> vector<5x8xf32>
    %c0_321 = arith.constant 0 : index
    %c0_322 = arith.constant 0 : index
    %622 = vector.load %arg11[%c0_321, %c0_322] : memref<5x32xf32, #tpu.memory_space<vmem>>, vector<5x8xf32>
    tpu.vector_store %arg11[%c0_321, %c0_322], %621 {strides = array<i32>} : memref<5x32xf32, #tpu.memory_space<vmem>>, vector<5x8xf32>,
    %623 = vector.extract_strided_slice %602 {offsets = [0, 8], sizes = [5, 8], strides = [1, 1]} : vector<5x96xf32> to vector<5x8xf32>
    %624 = vector.extract_strided_slice %602 {offsets = [0, 40], sizes = [5, 8], strides = [1, 1]} : vector<5x96xf32> to vector<5x8xf32>
    %625 = vector.extract_strided_slice %602 {offsets = [0, 72], sizes = [5, 8], strides = [1, 1]} : vector<5x96xf32> to vector<5x8xf32>
    "tpu.trace_start"() <{level = 10 : i32, message = "qd,kd->qk"}> : () -> ()
    %cst_323 = arith.constant dense<0.000000e+00> : vector<5x5xf32>
    %626 = tpu.matmul %623, %624, %cst_323 {dimension_numbers = #tpu.dot_dimension_numbers<[1], [1], [0], [0], [0, 0, 1, 0], [], []>} : vector<5x8xf32>, vector<5x8xf32>, vector<5x5xf32> -> vector<5x5xf32>
    "tpu.trace_stop"() : () -> ()
    %627 = arith.addf %626, %13 : vector<5x5xf32>
    %cst_324 = arith.constant dense<0xFF800000> : vector<5xf32>
    %628 = vector.multi_reduction <maximumf>, %627, %cst_324 [1] : vector<5x5xf32> to vector<5xf32>
    %629 = vector.shape_cast %628 : vector<5xf32> to vector<5x1xf32>
    %630 = vector.broadcast %629 : vector<5x1xf32> to vector<5x5xf32>
    %631 = arith.subf %627, %630 : vector<5x5xf32>
    %632 = math.exp %631 : vector<5x5xf32>
    %cst_325 = arith.constant dense<0.000000e+00> : vector<5xf32>
    %633 = vector.multi_reduction <add>, %632, %cst_325 [1] : vector<5x5xf32> to vector<5xf32>
    %634 = vector.shape_cast %633 : vector<5xf32> to vector<5x1xf32>
    %635 = tpu.reciprocal %634 {approx = true} : vector<5x1xf32> -> vector<5x1xf32>
    %636 = vector.broadcast %635 : vector<5x1xf32> to vector<5x5xf32>
    %637 = arith.mulf %632, %636 : vector<5x5xf32>
    %c0_326 = arith.constant 0 : index
    %c1_327 = arith.constant 1 : index
    %c1_328 = arith.constant 1 : index
    %c0_329 = arith.constant 0 : index
    %c0_330 = arith.constant 0 : index
    %638 = vector.load %arg9[%c0_326, %c1_327, %c1_328, %c0_329, %c0_330] : memref<1x2x4x5x128xf32, #tpu.memory_space<vmem>>, vector<1x1x1x5x5xf32>
    %639 = vector.shape_cast %638 : vector<1x1x1x5x5xf32> to vector<5x5xf32>
    %640 = vector.shape_cast %637 : vector<5x5xf32> to vector<1x1x1x5x5xf32>
    tpu.vector_store %arg9[%c0_326, %c1_327, %c1_328, %c0_329, %c0_330], %640 {strides = array<i32>} : memref<1x2x4x5x128xf32, #tpu.memory_space<vmem>>, vector<1x1x1x5x5xf32>,
    %cst_331 = arith.constant dense<0.000000e+00> : vector<5x8xf32>
    %641 = tpu.matmul %637, %625, %cst_331 {dimension_numbers = #tpu.dot_dimension_numbers<[1], [0], [0], [1], [0, 0, 1, 1], [], []>} : vector<5x5xf32>, vector<5x8xf32>, vector<5x8xf32> -> vector<5x8xf32>
    %c0_332 = arith.constant 0 : index
    %c8_333 = arith.constant 8 : index
    %642 = vector.load %arg11[%c0_332, %c8_333] : memref<5x32xf32, #tpu.memory_space<vmem>>, vector<5x8xf32>
    tpu.vector_store %arg11[%c0_332, %c8_333], %641 {strides = array<i32>} : memref<5x32xf32, #tpu.memory_space<vmem>>, vector<5x8xf32>,
    %643 = vector.extract_strided_slice %602 {offsets = [0, 16], sizes = [5, 8], strides = [1, 1]} : vector<5x96xf32> to vector<5x8xf32>
    %644 = vector.extract_strided_slice %602 {offsets = [0, 48], sizes = [5, 8], strides = [1, 1]} : vector<5x96xf32> to vector<5x8xf32>
    %645 = vector.extract_strided_slice %602 {offsets = [0, 80], sizes = [5, 8], strides = [1, 1]} : vector<5x96xf32> to vector<5x8xf32>
    "tpu.trace_start"() <{level = 10 : i32, message = "qd,kd->qk"}> : () -> ()
    %cst_334 = arith.constant dense<0.000000e+00> : vector<5x5xf32>
    %646 = tpu.matmul %643, %644, %cst_334 {dimension_numbers = #tpu.dot_dimension_numbers<[1], [1], [0], [0], [0, 0, 1, 0], [], []>} : vector<5x8xf32>, vector<5x8xf32>, vector<5x5xf32> -> vector<5x5xf32>
    "tpu.trace_stop"() : () -> ()
    %647 = arith.addf %646, %13 : vector<5x5xf32>
    %cst_335 = arith.constant dense<0xFF800000> : vector<5xf32>
    %648 = vector.multi_reduction <maximumf>, %647, %cst_335 [1] : vector<5x5xf32> to vector<5xf32>
    %649 = vector.shape_cast %648 : vector<5xf32> to vector<5x1xf32>
    %650 = vector.broadcast %649 : vector<5x1xf32> to vector<5x5xf32>
    %651 = arith.subf %647, %650 : vector<5x5xf32>
    %652 = math.exp %651 : vector<5x5xf32>
    %cst_336 = arith.constant dense<0.000000e+00> : vector<5xf32>
    %653 = vector.multi_reduction <add>, %652, %cst_336 [1] : vector<5x5xf32> to vector<5xf32>
    %654 = vector.shape_cast %653 : vector<5xf32> to vector<5x1xf32>
    %655 = tpu.reciprocal %654 {approx = true} : vector<5x1xf32> -> vector<5x1xf32>
    %656 = vector.broadcast %655 : vector<5x1xf32> to vector<5x5xf32>
    %657 = arith.mulf %652, %656 : vector<5x5xf32>
    %c0_337 = arith.constant 0 : index
    %c1_338 = arith.constant 1 : index
    %c2_339 = arith.constant 2 : index
    %c0_340 = arith.constant 0 : index
    %c0_341 = arith.constant 0 : index
    %658 = vector.load %arg9[%c0_337, %c1_338, %c2_339, %c0_340, %c0_341] : memref<1x2x4x5x128xf32, #tpu.memory_space<vmem>>, vector<1x1x1x5x5xf32>
    %659 = vector.shape_cast %658 : vector<1x1x1x5x5xf32> to vector<5x5xf32>
    %660 = vector.shape_cast %657 : vector<5x5xf32> to vector<1x1x1x5x5xf32>
    tpu.vector_store %arg9[%c0_337, %c1_338, %c2_339, %c0_340, %c0_341], %660 {strides = array<i32>} : memref<1x2x4x5x128xf32, #tpu.memory_space<vmem>>, vector<1x1x1x5x5xf32>,
    %cst_342 = arith.constant dense<0.000000e+00> : vector<5x8xf32>
    %661 = tpu.matmul %657, %645, %cst_342 {dimension_numbers = #tpu.dot_dimension_numbers<[1], [0], [0], [1], [0, 0, 1, 1], [], []>} : vector<5x5xf32>, vector<5x8xf32>, vector<5x8xf32> -> vector<5x8xf32>
    %c0_343 = arith.constant 0 : index
    %c16_344 = arith.constant 16 : index
    %662 = vector.load %arg11[%c0_343, %c16_344] : memref<5x32xf32, #tpu.memory_space<vmem>>, vector<5x8xf32>
    tpu.vector_store %arg11[%c0_343, %c16_344], %661 {strides = array<i32>} : memref<5x32xf32, #tpu.memory_space<vmem>>, vector<5x8xf32>,
    %663 = vector.extract_strided_slice %602 {offsets = [0, 24], sizes = [5, 8], strides = [1, 1]} : vector<5x96xf32> to vector<5x8xf32>
    %664 = vector.extract_strided_slice %602 {offsets = [0, 56], sizes = [5, 8], strides = [1, 1]} : vector<5x96xf32> to vector<5x8xf32>
    %665 = vector.extract_strided_slice %602 {offsets = [0, 88], sizes = [5, 8], strides = [1, 1]} : vector<5x96xf32> to vector<5x8xf32>
    "tpu.trace_start"() <{level = 10 : i32, message = "qd,kd->qk"}> : () -> ()
    %cst_345 = arith.constant dense<0.000000e+00> : vector<5x5xf32>
    %666 = tpu.matmul %663, %664, %cst_345 {dimension_numbers = #tpu.dot_dimension_numbers<[1], [1], [0], [0], [0, 0, 1, 0], [], []>} : vector<5x8xf32>, vector<5x8xf32>, vector<5x5xf32> -> vector<5x5xf32>
    "tpu.trace_stop"() : () -> ()
    %667 = arith.addf %666, %13 : vector<5x5xf32>
    %cst_346 = arith.constant dense<0xFF800000> : vector<5xf32>
    %668 = vector.multi_reduction <maximumf>, %667, %cst_346 [1] : vector<5x5xf32> to vector<5xf32>
    %669 = vector.shape_cast %668 : vector<5xf32> to vector<5x1xf32>
    %670 = vector.broadcast %669 : vector<5x1xf32> to vector<5x5xf32>
    %671 = arith.subf %667, %670 : vector<5x5xf32>
    %672 = math.exp %671 : vector<5x5xf32>
    %cst_347 = arith.constant dense<0.000000e+00> : vector<5xf32>
    %673 = vector.multi_reduction <add>, %672, %cst_347 [1] : vector<5x5xf32> to vector<5xf32>
    %674 = vector.shape_cast %673 : vector<5xf32> to vector<5x1xf32>
    %675 = tpu.reciprocal %674 {approx = true} : vector<5x1xf32> -> vector<5x1xf32>
    %676 = vector.broadcast %675 : vector<5x1xf32> to vector<5x5xf32>
    %677 = arith.mulf %672, %676 : vector<5x5xf32>
    %c0_348 = arith.constant 0 : index
    %c1_349 = arith.constant 1 : index
    %c3_350 = arith.constant 3 : index
    %c0_351 = arith.constant 0 : index
    %c0_352 = arith.constant 0 : index
    %678 = vector.load %arg9[%c0_348, %c1_349, %c3_350, %c0_351, %c0_352] : memref<1x2x4x5x128xf32, #tpu.memory_space<vmem>>, vector<1x1x1x5x5xf32>
    %679 = vector.shape_cast %678 : vector<1x1x1x5x5xf32> to vector<5x5xf32>
    %680 = vector.shape_cast %677 : vector<5x5xf32> to vector<1x1x1x5x5xf32>
    tpu.vector_store %arg9[%c0_348, %c1_349, %c3_350, %c0_351, %c0_352], %680 {strides = array<i32>} : memref<1x2x4x5x128xf32, #tpu.memory_space<vmem>>, vector<1x1x1x5x5xf32>,
    %cst_353 = arith.constant dense<0.000000e+00> : vector<5x8xf32>
    %681 = tpu.matmul %677, %665, %cst_353 {dimension_numbers = #tpu.dot_dimension_numbers<[1], [0], [0], [1], [0, 0, 1, 1], [], []>} : vector<5x5xf32>, vector<5x8xf32>, vector<5x8xf32> -> vector<5x8xf32>
    %c0_354 = arith.constant 0 : index
    %c24_355 = arith.constant 24 : index
    %682 = vector.load %arg11[%c0_354, %c24_355] : memref<5x32xf32, #tpu.memory_space<vmem>>, vector<5x8xf32>
    tpu.vector_store %arg11[%c0_354, %c24_355], %681 {strides = array<i32>} : memref<5x32xf32, #tpu.memory_space<vmem>>, vector<5x8xf32>,
    %c0_356 = arith.constant 0 : index
    %c0_357 = arith.constant 0 : index
    %683 = vector.load %arg11[%c0_356, %c0_357] : memref<5x32xf32, #tpu.memory_space<vmem>>, vector<5x32xf32>
    %cst_358 = arith.constant dense<0.000000e+00> : vector<5x32xf32>
    %684 = tpu.matmul %683, %596, %cst_358 {dimension_numbers = #tpu.dot_dimension_numbers<[1], [0], [0], [1], [0, 0, 1, 1], [], []>} : vector<5x32xf32>, vector<32x32xf32>, vector<5x32xf32> -> vector<5x32xf32>
    %685 = vector.broadcast %597 : vector<1x32xf32> to vector<5x32xf32>
    %686 = arith.addf %684, %685 : vector<5x32xf32>
    %687 = arith.addf %686, %593 : vector<5x32xf32>
    %cst_359 = arith.constant dense<0.000000e+00> : vector<5xf32>
    %688 = vector.multi_reduction <add>, %687, %cst_359 [1] : vector<5x32xf32> to vector<5xf32>
    %689 = vector.shape_cast %688 : vector<5xf32> to vector<5x1xf32>
    %cst_360 = arith.constant 3.200000e+01 : f32
    %690 = vector.broadcast %cst_360 : f32 to vector<5x1xf32>
    %691 = arith.divf %689, %690 : vector<5x1xf32>
    %692 = vector.broadcast %691 : vector<5x1xf32> to vector<5x32xf32>
    %693 = arith.subf %687, %692 : vector<5x32xf32>
    %694 = arith.mulf %693, %693 : vector<5x32xf32>
    %cst_361 = arith.constant dense<0.000000e+00> : vector<5xf32>
    %695 = vector.multi_reduction <add>, %694, %cst_361 [1] : vector<5x32xf32> to vector<5xf32>
    %696 = vector.shape_cast %695 : vector<5xf32> to vector<5x1xf32>
    %cst_362 = arith.constant 3.200000e+01 : f32
    %697 = vector.broadcast %cst_362 : f32 to vector<5x1xf32>
    %698 = arith.divf %696, %697 : vector<5x1xf32>
    %699 = vector.broadcast %691 : vector<5x1xf32> to vector<5x32xf32>
    %700 = arith.subf %687, %699 : vector<5x32xf32>
    %cst_363 = arith.constant 9.99999974E-6 : f32
    %701 = vector.broadcast %cst_363 : f32 to vector<5x1xf32>
    %702 = arith.addf %698, %701 : vector<5x1xf32>
    %703 = math.rsqrt %702 : vector<5x1xf32>
    %704 = vector.broadcast %703 : vector<5x1xf32> to vector<5x32xf32>
    %705 = arith.mulf %700, %704 : vector<5x32xf32>
    %706 = vector.broadcast %598 : vector<1x32xf32> to vector<5x32xf32>
    %707 = arith.mulf %705, %706 : vector<5x32xf32>
    %708 = vector.broadcast %599 : vector<1x32xf32> to vector<5x32xf32>
    %709 = arith.addf %707, %708 : vector<5x32xf32>
    %c864 = arith.constant 864 : index
    %c0_364 = arith.constant 0 : index
    %710 = vector.load %arg6[%c864, %c0_364] : memref<1120x128xf32, #tpu.memory_space<vmem>>, vector<32x96xf32>
    %c896 = arith.constant 896 : index
    %c0_365 = arith.constant 0 : index
    %711 = vector.load %arg6[%c896, %c0_365] : memref<1120x128xf32, #tpu.memory_space<vmem>>, vector<1x96xf32>
    %c904 = arith.constant 904 : index
    %c0_366 = arith.constant 0 : index
    %712 = vector.load %arg6[%c904, %c0_366] : memref<1120x128xf32, #tpu.memory_space<vmem>>, vector<32x32xf32>
    %c936 = arith.constant 936 : index
    %c0_367 = arith.constant 0 : index
    %713 = vector.load %arg6[%c936, %c0_367] : memref<1120x128xf32, #tpu.memory_space<vmem>>, vector<1x32xf32>
    %c944 = arith.constant 944 : index
    %c0_368 = arith.constant 0 : index
    %714 = vector.load %arg6[%c944, %c0_368] : memref<1120x128xf32, #tpu.memory_space<vmem>>, vector<1x32xf32>
    %c952 = arith.constant 952 : index
    %c0_369 = arith.constant 0 : index
    %715 = vector.load %arg6[%c952, %c0_369] : memref<1120x128xf32, #tpu.memory_space<vmem>>, vector<1x32xf32>
    %cst_370 = arith.constant dense<0.000000e+00> : vector<5x96xf32>
    %716 = tpu.matmul %709, %710, %cst_370 {dimension_numbers = #tpu.dot_dimension_numbers<[1], [0], [0], [1], [0, 0, 1, 1], [], []>} : vector<5x32xf32>, vector<32x96xf32>, vector<5x96xf32> -> vector<5x96xf32>
    %717 = vector.broadcast %711 : vector<1x96xf32> to vector<5x96xf32>
    %718 = arith.addf %716, %717 : vector<5x96xf32>
    %cst_371 = arith.constant dense<0.000000e+00> : vector<5x96xf32>
    %719 = tpu.matmul %321, %710, %cst_371 {dimension_numbers = #tpu.dot_dimension_numbers<[1], [0], [0], [1], [0, 0, 1, 1], [], []>} : vector<5x32xf32>, vector<32x96xf32>, vector<5x96xf32> -> vector<5x96xf32>
    %720 = vector.broadcast %711 : vector<1x96xf32> to vector<5x96xf32>
    %721 = arith.addf %719, %720 : vector<5x96xf32>
    %722 = vector.extract_strided_slice %718 {offsets = [0, 0], sizes = [5, 8], strides = [1, 1]} : vector<5x96xf32> to vector<5x8xf32>
    %723 = vector.extract_strided_slice %721 {offsets = [0, 32], sizes = [5, 8], strides = [1, 1]} : vector<5x96xf32> to vector<5x8xf32>
    %724 = vector.extract_strided_slice %721 {offsets = [0, 64], sizes = [5, 8], strides = [1, 1]} : vector<5x96xf32> to vector<5x8xf32>
    "tpu.trace_start"() <{level = 10 : i32, message = "qd,kd->qk"}> : () -> ()
    %cst_372 = arith.constant dense<0.000000e+00> : vector<5x5xf32>
    %725 = tpu.matmul %722, %723, %cst_372 {dimension_numbers = #tpu.dot_dimension_numbers<[1], [1], [0], [0], [0, 0, 1, 0], [], []>} : vector<5x8xf32>, vector<5x8xf32>, vector<5x5xf32> -> vector<5x5xf32>
    "tpu.trace_stop"() : () -> ()
    %726 = arith.addf %725, %15 : vector<5x5xf32>
    %cst_373 = arith.constant dense<0xFF800000> : vector<5xf32>
    %727 = vector.multi_reduction <maximumf>, %726, %cst_373 [1] : vector<5x5xf32> to vector<5xf32>
    %728 = vector.shape_cast %727 : vector<5xf32> to vector<5x1xf32>
    %729 = vector.broadcast %728 : vector<5x1xf32> to vector<5x5xf32>
    %730 = arith.subf %726, %729 : vector<5x5xf32>
    %731 = math.exp %730 : vector<5x5xf32>
    %cst_374 = arith.constant dense<0.000000e+00> : vector<5xf32>
    %732 = vector.multi_reduction <add>, %731, %cst_374 [1] : vector<5x5xf32> to vector<5xf32>
    %733 = vector.shape_cast %732 : vector<5xf32> to vector<5x1xf32>
    %734 = tpu.reciprocal %733 {approx = true} : vector<5x1xf32> -> vector<5x1xf32>
    %735 = vector.broadcast %734 : vector<5x1xf32> to vector<5x5xf32>
    %736 = arith.mulf %731, %735 : vector<5x5xf32>
    %c0_375 = arith.constant 0 : index
    %c1_376 = arith.constant 1 : index
    %c0_377 = arith.constant 0 : index
    %c0_378 = arith.constant 0 : index
    %c0_379 = arith.constant 0 : index
    %737 = vector.load %arg10[%c0_375, %c1_376, %c0_377, %c0_378, %c0_379] : memref<1x2x4x5x128xf32, #tpu.memory_space<vmem>>, vector<1x1x1x5x5xf32>
    %738 = vector.shape_cast %737 : vector<1x1x1x5x5xf32> to vector<5x5xf32>
    %739 = vector.shape_cast %736 : vector<5x5xf32> to vector<1x1x1x5x5xf32>
    tpu.vector_store %arg10[%c0_375, %c1_376, %c0_377, %c0_378, %c0_379], %739 {strides = array<i32>} : memref<1x2x4x5x128xf32, #tpu.memory_space<vmem>>, vector<1x1x1x5x5xf32>,
    %cst_380 = arith.constant dense<0.000000e+00> : vector<5x8xf32>
    %740 = tpu.matmul %736, %724, %cst_380 {dimension_numbers = #tpu.dot_dimension_numbers<[1], [0], [0], [1], [0, 0, 1, 1], [], []>} : vector<5x5xf32>, vector<5x8xf32>, vector<5x8xf32> -> vector<5x8xf32>
    %c0_381 = arith.constant 0 : index
    %c0_382 = arith.constant 0 : index
    %741 = vector.load %arg11[%c0_381, %c0_382] : memref<5x32xf32, #tpu.memory_space<vmem>>, vector<5x8xf32>
    tpu.vector_store %arg11[%c0_381, %c0_382], %740 {strides = array<i32>} : memref<5x32xf32, #tpu.memory_space<vmem>>, vector<5x8xf32>,
    %742 = vector.extract_strided_slice %718 {offsets = [0, 8], sizes = [5, 8], strides = [1, 1]} : vector<5x96xf32> to vector<5x8xf32>
    %743 = vector.extract_strided_slice %721 {offsets = [0, 40], sizes = [5, 8], strides = [1, 1]} : vector<5x96xf32> to vector<5x8xf32>
    %744 = vector.extract_strided_slice %721 {offsets = [0, 72], sizes = [5, 8], strides = [1, 1]} : vector<5x96xf32> to vector<5x8xf32>
    "tpu.trace_start"() <{level = 10 : i32, message = "qd,kd->qk"}> : () -> ()
    %cst_383 = arith.constant dense<0.000000e+00> : vector<5x5xf32>
    %745 = tpu.matmul %742, %743, %cst_383 {dimension_numbers = #tpu.dot_dimension_numbers<[1], [1], [0], [0], [0, 0, 1, 0], [], []>} : vector<5x8xf32>, vector<5x8xf32>, vector<5x5xf32> -> vector<5x5xf32>
    "tpu.trace_stop"() : () -> ()
    %746 = arith.addf %745, %15 : vector<5x5xf32>
    %cst_384 = arith.constant dense<0xFF800000> : vector<5xf32>
    %747 = vector.multi_reduction <maximumf>, %746, %cst_384 [1] : vector<5x5xf32> to vector<5xf32>
    %748 = vector.shape_cast %747 : vector<5xf32> to vector<5x1xf32>
    %749 = vector.broadcast %748 : vector<5x1xf32> to vector<5x5xf32>
    %750 = arith.subf %746, %749 : vector<5x5xf32>
    %751 = math.exp %750 : vector<5x5xf32>
    %cst_385 = arith.constant dense<0.000000e+00> : vector<5xf32>
    %752 = vector.multi_reduction <add>, %751, %cst_385 [1] : vector<5x5xf32> to vector<5xf32>
    %753 = vector.shape_cast %752 : vector<5xf32> to vector<5x1xf32>
    %754 = tpu.reciprocal %753 {approx = true} : vector<5x1xf32> -> vector<5x1xf32>
    %755 = vector.broadcast %754 : vector<5x1xf32> to vector<5x5xf32>
    %756 = arith.mulf %751, %755 : vector<5x5xf32>
    %c0_386 = arith.constant 0 : index
    %c1_387 = arith.constant 1 : index
    %c1_388 = arith.constant 1 : index
    %c0_389 = arith.constant 0 : index
    %c0_390 = arith.constant 0 : index
    %757 = vector.load %arg10[%c0_386, %c1_387, %c1_388, %c0_389, %c0_390] : memref<1x2x4x5x128xf32, #tpu.memory_space<vmem>>, vector<1x1x1x5x5xf32>
    %758 = vector.shape_cast %757 : vector<1x1x1x5x5xf32> to vector<5x5xf32>
    %759 = vector.shape_cast %756 : vector<5x5xf32> to vector<1x1x1x5x5xf32>
    tpu.vector_store %arg10[%c0_386, %c1_387, %c1_388, %c0_389, %c0_390], %759 {strides = array<i32>} : memref<1x2x4x5x128xf32, #tpu.memory_space<vmem>>, vector<1x1x1x5x5xf32>,
    %cst_391 = arith.constant dense<0.000000e+00> : vector<5x8xf32>
    %760 = tpu.matmul %756, %744, %cst_391 {dimension_numbers = #tpu.dot_dimension_numbers<[1], [0], [0], [1], [0, 0, 1, 1], [], []>} : vector<5x5xf32>, vector<5x8xf32>, vector<5x8xf32> -> vector<5x8xf32>
    %c0_392 = arith.constant 0 : index
    %c8_393 = arith.constant 8 : index
    %761 = vector.load %arg11[%c0_392, %c8_393] : memref<5x32xf32, #tpu.memory_space<vmem>>, vector<5x8xf32>
    tpu.vector_store %arg11[%c0_392, %c8_393], %760 {strides = array<i32>} : memref<5x32xf32, #tpu.memory_space<vmem>>, vector<5x8xf32>,
    %762 = vector.extract_strided_slice %718 {offsets = [0, 16], sizes = [5, 8], strides = [1, 1]} : vector<5x96xf32> to vector<5x8xf32>
    %763 = vector.extract_strided_slice %721 {offsets = [0, 48], sizes = [5, 8], strides = [1, 1]} : vector<5x96xf32> to vector<5x8xf32>
    %764 = vector.extract_strided_slice %721 {offsets = [0, 80], sizes = [5, 8], strides = [1, 1]} : vector<5x96xf32> to vector<5x8xf32>
    "tpu.trace_start"() <{level = 10 : i32, message = "qd,kd->qk"}> : () -> ()
    %cst_394 = arith.constant dense<0.000000e+00> : vector<5x5xf32>
    %765 = tpu.matmul %762, %763, %cst_394 {dimension_numbers = #tpu.dot_dimension_numbers<[1], [1], [0], [0], [0, 0, 1, 0], [], []>} : vector<5x8xf32>, vector<5x8xf32>, vector<5x5xf32> -> vector<5x5xf32>
    "tpu.trace_stop"() : () -> ()
    %766 = arith.addf %765, %15 : vector<5x5xf32>
    %cst_395 = arith.constant dense<0xFF800000> : vector<5xf32>
    %767 = vector.multi_reduction <maximumf>, %766, %cst_395 [1] : vector<5x5xf32> to vector<5xf32>
    %768 = vector.shape_cast %767 : vector<5xf32> to vector<5x1xf32>
    %769 = vector.broadcast %768 : vector<5x1xf32> to vector<5x5xf32>
    %770 = arith.subf %766, %769 : vector<5x5xf32>
    %771 = math.exp %770 : vector<5x5xf32>
    %cst_396 = arith.constant dense<0.000000e+00> : vector<5xf32>
    %772 = vector.multi_reduction <add>, %771, %cst_396 [1] : vector<5x5xf32> to vector<5xf32>
    %773 = vector.shape_cast %772 : vector<5xf32> to vector<5x1xf32>
    %774 = tpu.reciprocal %773 {approx = true} : vector<5x1xf32> -> vector<5x1xf32>
    %775 = vector.broadcast %774 : vector<5x1xf32> to vector<5x5xf32>
    %776 = arith.mulf %771, %775 : vector<5x5xf32>
    %c0_397 = arith.constant 0 : index
    %c1_398 = arith.constant 1 : index
    %c2_399 = arith.constant 2 : index
    %c0_400 = arith.constant 0 : index
    %c0_401 = arith.constant 0 : index
    %777 = vector.load %arg10[%c0_397, %c1_398, %c2_399, %c0_400, %c0_401] : memref<1x2x4x5x128xf32, #tpu.memory_space<vmem>>, vector<1x1x1x5x5xf32>
    %778 = vector.shape_cast %777 : vector<1x1x1x5x5xf32> to vector<5x5xf32>
    %779 = vector.shape_cast %776 : vector<5x5xf32> to vector<1x1x1x5x5xf32>
    tpu.vector_store %arg10[%c0_397, %c1_398, %c2_399, %c0_400, %c0_401], %779 {strides = array<i32>} : memref<1x2x4x5x128xf32, #tpu.memory_space<vmem>>, vector<1x1x1x5x5xf32>,
    %cst_402 = arith.constant dense<0.000000e+00> : vector<5x8xf32>
    %780 = tpu.matmul %776, %764, %cst_402 {dimension_numbers = #tpu.dot_dimension_numbers<[1], [0], [0], [1], [0, 0, 1, 1], [], []>} : vector<5x5xf32>, vector<5x8xf32>, vector<5x8xf32> -> vector<5x8xf32>
    %c0_403 = arith.constant 0 : index
    %c16_404 = arith.constant 16 : index
    %781 = vector.load %arg11[%c0_403, %c16_404] : memref<5x32xf32, #tpu.memory_space<vmem>>, vector<5x8xf32>
    tpu.vector_store %arg11[%c0_403, %c16_404], %780 {strides = array<i32>} : memref<5x32xf32, #tpu.memory_space<vmem>>, vector<5x8xf32>,
    %782 = vector.extract_strided_slice %718 {offsets = [0, 24], sizes = [5, 8], strides = [1, 1]} : vector<5x96xf32> to vector<5x8xf32>
    %783 = vector.extract_strided_slice %721 {offsets = [0, 56], sizes = [5, 8], strides = [1, 1]} : vector<5x96xf32> to vector<5x8xf32>
    %784 = vector.extract_strided_slice %721 {offsets = [0, 88], sizes = [5, 8], strides = [1, 1]} : vector<5x96xf32> to vector<5x8xf32>
    "tpu.trace_start"() <{level = 10 : i32, message = "qd,kd->qk"}> : () -> ()
    %cst_405 = arith.constant dense<0.000000e+00> : vector<5x5xf32>
    %785 = tpu.matmul %782, %783, %cst_405 {dimension_numbers = #tpu.dot_dimension_numbers<[1], [1], [0], [0], [0, 0, 1, 0], [], []>} : vector<5x8xf32>, vector<5x8xf32>, vector<5x5xf32> -> vector<5x5xf32>
    "tpu.trace_stop"() : () -> ()
    %786 = arith.addf %785, %15 : vector<5x5xf32>
    %cst_406 = arith.constant dense<0xFF800000> : vector<5xf32>
    %787 = vector.multi_reduction <maximumf>, %786, %cst_406 [1] : vector<5x5xf32> to vector<5xf32>
    %788 = vector.shape_cast %787 : vector<5xf32> to vector<5x1xf32>
    %789 = vector.broadcast %788 : vector<5x1xf32> to vector<5x5xf32>
    %790 = arith.subf %786, %789 : vector<5x5xf32>
    %791 = math.exp %790 : vector<5x5xf32>
    %cst_407 = arith.constant dense<0.000000e+00> : vector<5xf32>
    %792 = vector.multi_reduction <add>, %791, %cst_407 [1] : vector<5x5xf32> to vector<5xf32>
    %793 = vector.shape_cast %792 : vector<5xf32> to vector<5x1xf32>
    %794 = tpu.reciprocal %793 {approx = true} : vector<5x1xf32> -> vector<5x1xf32>
    %795 = vector.broadcast %794 : vector<5x1xf32> to vector<5x5xf32>
    %796 = arith.mulf %791, %795 : vector<5x5xf32>
    %c0_408 = arith.constant 0 : index
    %c1_409 = arith.constant 1 : index
    %c3_410 = arith.constant 3 : index
    %c0_411 = arith.constant 0 : index
    %c0_412 = arith.constant 0 : index
    %797 = vector.load %arg10[%c0_408, %c1_409, %c3_410, %c0_411, %c0_412] : memref<1x2x4x5x128xf32, #tpu.memory_space<vmem>>, vector<1x1x1x5x5xf32>
    %798 = vector.shape_cast %797 : vector<1x1x1x5x5xf32> to vector<5x5xf32>
    %799 = vector.shape_cast %796 : vector<5x5xf32> to vector<1x1x1x5x5xf32>
    tpu.vector_store %arg10[%c0_408, %c1_409, %c3_410, %c0_411, %c0_412], %799 {strides = array<i32>} : memref<1x2x4x5x128xf32, #tpu.memory_space<vmem>>, vector<1x1x1x5x5xf32>,
    %cst_413 = arith.constant dense<0.000000e+00> : vector<5x8xf32>
    %800 = tpu.matmul %796, %784, %cst_413 {dimension_numbers = #tpu.dot_dimension_numbers<[1], [0], [0], [1], [0, 0, 1, 1], [], []>} : vector<5x5xf32>, vector<5x8xf32>, vector<5x8xf32> -> vector<5x8xf32>
    %c0_414 = arith.constant 0 : index
    %c24_415 = arith.constant 24 : index
    %801 = vector.load %arg11[%c0_414, %c24_415] : memref<5x32xf32, #tpu.memory_space<vmem>>, vector<5x8xf32>
    tpu.vector_store %arg11[%c0_414, %c24_415], %800 {strides = array<i32>} : memref<5x32xf32, #tpu.memory_space<vmem>>, vector<5x8xf32>,
    %c0_416 = arith.constant 0 : index
    %c0_417 = arith.constant 0 : index
    %802 = vector.load %arg11[%c0_416, %c0_417] : memref<5x32xf32, #tpu.memory_space<vmem>>, vector<5x32xf32>
    %cst_418 = arith.constant dense<0.000000e+00> : vector<5x32xf32>
    %803 = tpu.matmul %802, %712, %cst_418 {dimension_numbers = #tpu.dot_dimension_numbers<[1], [0], [0], [1], [0, 0, 1, 1], [], []>} : vector<5x32xf32>, vector<32x32xf32>, vector<5x32xf32> -> vector<5x32xf32>
    %804 = vector.broadcast %713 : vector<1x32xf32> to vector<5x32xf32>
    %805 = arith.addf %803, %804 : vector<5x32xf32>
    %806 = arith.addf %805, %709 : vector<5x32xf32>
    %cst_419 = arith.constant dense<0.000000e+00> : vector<5xf32>
    %807 = vector.multi_reduction <add>, %806, %cst_419 [1] : vector<5x32xf32> to vector<5xf32>
    %808 = vector.shape_cast %807 : vector<5xf32> to vector<5x1xf32>
    %cst_420 = arith.constant 3.200000e+01 : f32
    %809 = vector.broadcast %cst_420 : f32 to vector<5x1xf32>
    %810 = arith.divf %808, %809 : vector<5x1xf32>
    %811 = vector.broadcast %810 : vector<5x1xf32> to vector<5x32xf32>
    %812 = arith.subf %806, %811 : vector<5x32xf32>
    %813 = arith.mulf %812, %812 : vector<5x32xf32>
    %cst_421 = arith.constant dense<0.000000e+00> : vector<5xf32>
    %814 = vector.multi_reduction <add>, %813, %cst_421 [1] : vector<5x32xf32> to vector<5xf32>
    %815 = vector.shape_cast %814 : vector<5xf32> to vector<5x1xf32>
    %cst_422 = arith.constant 3.200000e+01 : f32
    %816 = vector.broadcast %cst_422 : f32 to vector<5x1xf32>
    %817 = arith.divf %815, %816 : vector<5x1xf32>
    %818 = vector.broadcast %810 : vector<5x1xf32> to vector<5x32xf32>
    %819 = arith.subf %806, %818 : vector<5x32xf32>
    %cst_423 = arith.constant 9.99999974E-6 : f32
    %820 = vector.broadcast %cst_423 : f32 to vector<5x1xf32>
    %821 = arith.addf %817, %820 : vector<5x1xf32>
    %822 = math.rsqrt %821 : vector<5x1xf32>
    %823 = vector.broadcast %822 : vector<5x1xf32> to vector<5x32xf32>
    %824 = arith.mulf %819, %823 : vector<5x32xf32>
    %825 = vector.broadcast %714 : vector<1x32xf32> to vector<5x32xf32>
    %826 = arith.mulf %824, %825 : vector<5x32xf32>
    %827 = vector.broadcast %715 : vector<1x32xf32> to vector<5x32xf32>
    %828 = arith.addf %826, %827 : vector<5x32xf32>
    %c960 = arith.constant 960 : index
    %c0_424 = arith.constant 0 : index
    %829 = vector.load %arg6[%c960, %c0_424] : memref<1120x128xf32, #tpu.memory_space<vmem>>, vector<32x64xf32>
    %c992 = arith.constant 992 : index
    %c0_425 = arith.constant 0 : index
    %830 = vector.load %arg6[%c992, %c0_425] : memref<1120x128xf32, #tpu.memory_space<vmem>>, vector<1x64xf32>
    %c1000 = arith.constant 1000 : index
    %c0_426 = arith.constant 0 : index
    %831 = vector.load %arg6[%c1000, %c0_426] : memref<1120x128xf32, #tpu.memory_space<vmem>>, vector<64x32xf32>
    %c1064 = arith.constant 1064 : index
    %c0_427 = arith.constant 0 : index
    %832 = vector.load %arg6[%c1064, %c0_427] : memref<1120x128xf32, #tpu.memory_space<vmem>>, vector<1x32xf32>
    %c1072 = arith.constant 1072 : index
    %c0_428 = arith.constant 0 : index
    %833 = vector.load %arg6[%c1072, %c0_428] : memref<1120x128xf32, #tpu.memory_space<vmem>>, vector<1x32xf32>
    %c1080 = arith.constant 1080 : index
    %c0_429 = arith.constant 0 : index
    %834 = vector.load %arg6[%c1080, %c0_429] : memref<1120x128xf32, #tpu.memory_space<vmem>>, vector<1x32xf32>
    %cst_430 = arith.constant dense<0.000000e+00> : vector<5x64xf32>
    %835 = tpu.matmul %828, %829, %cst_430 {dimension_numbers = #tpu.dot_dimension_numbers<[1], [0], [0], [1], [0, 0, 1, 1], [], []>} : vector<5x32xf32>, vector<32x64xf32>, vector<5x64xf32> -> vector<5x64xf32>
    %836 = vector.broadcast %830 : vector<1x64xf32> to vector<5x64xf32>
    %837 = arith.addf %835, %836 : vector<5x64xf32>
    %cst_431 = arith.constant 0.000000e+00 : f32
    %838 = vector.broadcast %cst_431 : f32 to vector<5x64xf32>
    %839 = arith.maximumf %837, %838 : vector<5x64xf32>
    %cst_432 = arith.constant dense<0.000000e+00> : vector<5x32xf32>
    %840 = tpu.matmul %839, %831, %cst_432 {dimension_numbers = #tpu.dot_dimension_numbers<[1], [0], [0], [1], [0, 0, 1, 1], [], []>} : vector<5x64xf32>, vector<64x32xf32>, vector<5x32xf32> -> vector<5x32xf32>
    %841 = vector.broadcast %832 : vector<1x32xf32> to vector<5x32xf32>
    %842 = arith.addf %840, %841 : vector<5x32xf32>
    %843 = arith.addf %842, %828 : vector<5x32xf32>
    %cst_433 = arith.constant dense<0.000000e+00> : vector<5xf32>
    %844 = vector.multi_reduction <add>, %843, %cst_433 [1] : vector<5x32xf32> to vector<5xf32>
    %845 = vector.shape_cast %844 : vector<5xf32> to vector<5x1xf32>
    %cst_434 = arith.constant 3.200000e+01 : f32
    %846 = vector.broadcast %cst_434 : f32 to vector<5x1xf32>
    %847 = arith.divf %845, %846 : vector<5x1xf32>
    %848 = vector.broadcast %847 : vector<5x1xf32> to vector<5x32xf32>
    %849 = arith.subf %843, %848 : vector<5x32xf32>
    %850 = arith.mulf %849, %849 : vector<5x32xf32>
    %cst_435 = arith.constant dense<0.000000e+00> : vector<5xf32>
    %851 = vector.multi_reduction <add>, %850, %cst_435 [1] : vector<5x32xf32> to vector<5xf32>
    %852 = vector.shape_cast %851 : vector<5xf32> to vector<5x1xf32>
    %cst_436 = arith.constant 3.200000e+01 : f32
    %853 = vector.broadcast %cst_436 : f32 to vector<5x1xf32>
    %854 = arith.divf %852, %853 : vector<5x1xf32>
    %855 = vector.broadcast %847 : vector<5x1xf32> to vector<5x32xf32>
    %856 = arith.subf %843, %855 : vector<5x32xf32>
    %cst_437 = arith.constant 9.99999974E-6 : f32
    %857 = vector.broadcast %cst_437 : f32 to vector<5x1xf32>
    %858 = arith.addf %854, %857 : vector<5x1xf32>
    %859 = math.rsqrt %858 : vector<5x1xf32>
    %860 = vector.broadcast %859 : vector<5x1xf32> to vector<5x32xf32>
    %861 = arith.mulf %856, %860 : vector<5x32xf32>
    %862 = vector.broadcast %833 : vector<1x32xf32> to vector<5x32xf32>
    %863 = arith.mulf %861, %862 : vector<5x32xf32>
    %864 = vector.broadcast %834 : vector<1x32xf32> to vector<5x32xf32>
    %865 = arith.addf %863, %864 : vector<5x32xf32>
    %c1088 = arith.constant 1088 : index
    %c0_438 = arith.constant 0 : index
    %866 = vector.load %arg6[%c1088, %c0_438] : memref<1120x128xf32, #tpu.memory_space<vmem>>, vector<32x128xf32>
    %cst_439 = arith.constant dense<0.000000e+00> : vector<5x128xf32>
    %867 = tpu.matmul %865, %866, %cst_439 {dimension_numbers = #tpu.dot_dimension_numbers<[1], [0], [0], [1], [0, 0, 1, 1], [], []>} : vector<5x32xf32>, vector<32x128xf32>, vector<5x128xf32> -> vector<5x128xf32>
    %c0_440 = arith.constant 0 : index
    %c0_441 = arith.constant 0 : index
    %c0_442 = arith.constant 0 : index
    %868 = vector.load %arg7[%c0_440, %c0_441, %c0_442] : memref<1x5x128xf32, #tpu.memory_space<vmem>>, vector<1x5x128xf32>
    %869 = vector.shape_cast %868 : vector<1x5x128xf32> to vector<5x128xf32>
    %870 = vector.shape_cast %867 : vector<5x128xf32> to vector<1x5x128xf32>
    tpu.vector_store %arg7[%c0_440, %c0_441, %c0_442], %870 {strides = array<i32>} : memref<1x5x128xf32, #tpu.memory_space<vmem>>, vector<1x5x128xf32>,
    return
  }
  func.func @transform_0(%arg0: i32) -> (i32, i32, i32) {
    %c0_i32 = arith.constant 0 : i32
    %c0_i32_0 = arith.constant 0 : i32
    %c0_i32_1 = arith.constant 0 : i32
    return %arg0, %c0_i32, %c0_i32_0 : i32, i32, i32
  }
  func.func @transform_1(%arg0: i32) -> (i32, i32, i32) {
    %c0_i32 = arith.constant 0 : i32
    %c0_i32_0 = arith.constant 0 : i32
    %c0_i32_1 = arith.constant 0 : i32
    return %arg0, %c0_i32, %c0_i32_0 : i32, i32, i32
  }
  func.func @transform_2(%arg0: i32) -> (i32, i32, i32) {
    %c0_i32 = arith.constant 0 : i32
    %c0_i32_0 = arith.constant 0 : i32
    %c0_i32_1 = arith.constant 0 : i32
    return %arg0, %c0_i32, %c0_i32_0 : i32, i32, i32
  }
  func.func @transform_3(%arg0: i32) -> (i32, i32, i32) {
    %c0_i32 = arith.constant 0 : i32
    %c0_i32_0 = arith.constant 0 : i32
    %c0_i32_1 = arith.constant 0 : i32
    return %arg0, %c0_i32, %c0_i32_0 : i32, i32, i32
  }
  func.func @transform_4(%arg0: i32) -> (i32, i32, i32) {
    %c0_i32 = arith.constant 0 : i32
    %c0_i32_0 = arith.constant 0 : i32
    %c0_i32_1 = arith.constant 0 : i32
    return %arg0, %c0_i32, %c0_i32_0 : i32, i32, i32
  }
  func.func @transform_5(%arg0: i32) -> (i32, i32) {
    %c0_i32 = arith.constant 0 : i32
    %c0_i32_0 = arith.constant 0 : i32
    %c0_i32_1 = arith.constant 0 : i32
    return %c0_i32, %c0_i32_0 : i32, i32
  }
  func.func @transform_6(%arg0: i32) -> (i32, i32, i32) {
    %c0_i32 = arith.constant 0 : i32
    %c0_i32_0 = arith.constant 0 : i32
    %c0_i32_1 = arith.constant 0 : i32
    return %arg0, %c0_i32, %c0_i32_0 : i32, i32, i32
  }
  func.func @transform_7(%arg0: i32) -> (i32, i32, i32, i32, i32) {
    %c0_i32 = arith.constant 0 : i32
    %c0_i32_0 = arith.constant 0 : i32
    %c0_i32_1 = arith.constant 0 : i32
    %c0_i32_2 = arith.constant 0 : i32
    %c0_i32_3 = arith.constant 0 : i32
    return %arg0, %c0_i32, %c0_i32_0, %c0_i32_1, %c0_i32_2 : i32, i32, i32, i32, i32
  }
  func.func @transform_8(%arg0: i32) -> (i32, i32, i32, i32, i32) {
    %c0_i32 = arith.constant 0 : i32
    %c0_i32_0 = arith.constant 0 : i32
    %c0_i32_1 = arith.constant 0 : i32
    %c0_i32_2 = arith.constant 0 : i32
    %c0_i32_3 = arith.constant 0 : i32
    return %arg0, %c0_i32, %c0_i32_0, %c0_i32_1, %c0_i32_2 : i32, i32, i32, i32, i32
  }
  func.func @transform_9(%arg0: i32) -> (i32, i32, i32, i32, i32) {
    %c0_i32 = arith.constant 0 : i32
    %c0_i32_0 = arith.constant 0 : i32
    %c0_i32_1 = arith.constant 0 : i32
    %c0_i32_2 = arith.constant 0 : i32
    %c0_i32_3 = arith.constant 0 : i32
    return %arg0, %c0_i32, %c0_i32_0, %c0_i32_1, %c0_i32_2 : i32, i32, i32, i32, i32
  }
}

</mosaic_0001>

<llo_original>
// kernel: tpu_custom_call.1
$region0: #{tpu_custom_call.1}
  #allocation0 [shape = 'u32[]', space=smem, size = 0x4, offset = 0x4, fixed_abs, tag = 'smem constant byte address 0x4 - core index']
  #allocation1 [shape = 'u32[144,128]{1,0:T(1,128)}', space=vmem, size = 0x12000, scoped, tag = 'internal scratch']
  #allocation2 [shape = 'f32[5,32]{1,0:T(8,128)}', space=vmem, size = 0x1000, scoped, tag = 'scratch operand']
  %s0 = inlined_call_operand.vmem [shape: f32[2,5,32], index: 0, kind: input, shape index: {}]
  %s1 = inlined_call_operand.vmem [shape: f32[2,5,32], index: 1, kind: input, shape index: {}]
  %s2 = inlined_call_operand.vmem [shape: f32[2,5,5], index: 2, kind: input, shape index: {}]
  %s3 = inlined_call_operand.vmem [shape: f32[2,5,5], index: 3, kind: input, shape index: {}]
  %s4 = inlined_call_operand.vmem [shape: f32[2,5,5], index: 4, kind: input, shape index: {}]
  %s5 = inlined_call_operand.hbm [shape: f32[1120,128], index: 5, kind: input, shape index: {}]
  %s6 = inlined_call_operand.vmem [shape: f32[2,5,128], index: 6, kind: output, shape index: {0}]
  %s7 = inlined_call_operand.vmem [shape: f32[2,2,4,5,128], index: 7, kind: output, shape index: {1}]
  %s8 = inlined_call_operand.vmem [shape: f32[2,2,4,5,128], index: 8, kind: output, shape index: {2}]
  %s9 = inlined_call_operand.vmem [shape: f32[2,2,4,5,128], index: 9, kind: output, shape index: {3}]
  %10 = xla_tuple %s6, %s7, %s8, %s9
  %s11 = sld [smem:[#allocation0]]
  $region85: #{tpu_custom_call.1} parent=0
    _
  %s13 = ssub.s32 1, %s11
  %s14 = scalar_select 0, %s13, %s11
  $region1: #{tpu_custom_call.1} parent=0
    #allocation3 [shape = 'u8[573440]{0}', space=vmem, size = 0x8c000, scoped, tag = 'input window, operand 5, single buffered']
    #allocation4 [shape = 's32[2]{0}', space=sflag, size = 0x8, scoped, tag = 'scoped memory for tpu_custom_call.1']
    %15 = vsyncpa [#allocation4], 0
    loop: start=0, step=1, limit=4
    $region2: #{tpu_custom_call.1} parent=1 // loop_pre_header
      _
    $region3: #{tpu_custom_call.1} parent=1 // loop_header
      %s17 = sphi 0, %s21
      %p18 = scmp.ge.s32.totalorder %s17, 4
      %s27 = sphi 0, %s29
      %s30 = sphi 0, %s27
      %s31 = sphi 0, %s30
      %s47 = sphi 0, %s31
      %s53 = sphi 0, %s55
      %s56 = sphi 0, %s53
      %s57 = sphi 0, %s56
      %s73 = sphi 0, %s57
      %s79 = sphi 0, %s81
      %s82 = sphi 0, %s79
      %s83 = sphi 0, %s82
      %s99 = sphi 0, %s83
      %s105 = sphi 0, %s107
      %s108 = sphi 0, %s105
      %s109 = sphi 0, %s108
      %s125 = sphi 0, %s109
      %s131 = sphi 0, %s133
      %s134 = sphi 0, %s131
      %s135 = sphi 0, %s134
      %s151 = sphi 0, %s135
      %s155 = sphi 0, %s155
      %s157 = sphi 0, %s155
      %s158 = sphi 0, %s157
      %s172 = sphi 0, %s158
      %s178 = sphi 0, %s180
      %s181 = sphi 0, %s178
      %s182 = sphi 0, %s181
      %s198 = sphi 0, %s182
      %s204 = sphi 0, %s206
      %s207 = sphi 0, %s204
      %s208 = sphi 0, %s207
      %s224 = sphi 0, %s208
      %s230 = sphi 0, %s232
      %s233 = sphi 0, %s230
      %s234 = sphi 0, %s233
      %s250 = sphi 0, %s234
      %s256 = sphi 0, %s258
      %s259 = sphi 0, %s256
      %s260 = sphi 0, %s259
      %s276 = sphi 0, %s260
    $region4: #{tpu_custom_call.1} parent=1 // loop_header_branch
      %20 = sbr.rel (%p18) target = $region8
    $region5: #{tpu_custom_call.1} parent=1 // loop_body
      %s22 = ssub.s32 %s17, 1
      %s23 = ssub.s32 %s17, 2
      %s24 = sadd.s32 %s17, 1
      %s25 = ssub.s32 %s17, %s24
      %p26 = scmp.eq.s32.totalorder %s25, 0
      %s28 = sadd.s32 %s27, 1
      %s29 = scalar_select %p26, %s27, %s28
      %p32 = pneg %p26
      %p33 = scmp.eq.s32.totalorder %s17, 1
      %p34 = por %p32, %p33
      %p35 = scmp.ne.s32.totalorder %s27, %s30
      %p36 = scmp.eq.s32.totalorder %s17, 0
      %p37 = por %p35, %p36
      %p38 = scmp.ne.s32.totalorder %s27, %s30
      %p39 = scmp.eq.s32.totalorder %s22, 1
      %p40 = por %p38, %p39
      %p41 = scmp.ne.s32.totalorder %s30, %s31
      %p42 = scmp.eq.s32.totalorder %s22, 0
      %p43 = por %p41, %p42
      %p44 = scmp.ne.s32.totalorder %s30, %s31
      %p45 = scmp.eq.s32.totalorder %s23, 1
      %p46 = por %p44, %p45
      %p48 = scmp.ne.s32.totalorder %s31, %s47
      %p49 = scmp.eq.s32.totalorder %s23, 0
      %p50 = por %p48, %p49
      %s51 = ssub.s32 %s17, %s24
      %p52 = scmp.eq.s32.totalorder %s51, 0
      %s54 = sadd.s32 %s53, 1
      %s55 = scalar_select %p52, %s53, %s54
      %p58 = pneg %p52
      %p59 = scmp.eq.s32.totalorder %s17, 1
      %p60 = por %p58, %p59
      %p61 = scmp.ne.s32.totalorder %s53, %s56
      %p62 = scmp.eq.s32.totalorder %s17, 0
      %p63 = por %p61, %p62
      %p64 = scmp.ne.s32.totalorder %s53, %s56
      %p65 = scmp.eq.s32.totalorder %s22, 1
      %p66 = por %p64, %p65
      %p67 = scmp.ne.s32.totalorder %s56, %s57
      %p68 = scmp.eq.s32.totalorder %s22, 0
      %p69 = por %p67, %p68
      %p70 = scmp.ne.s32.totalorder %s56, %s57
      %p71 = scmp.eq.s32.totalorder %s23, 1
      %p72 = por %p70, %p71
      %p74 = scmp.ne.s32.totalorder %s57, %s73
      %p75 = scmp.eq.s32.totalorder %s23, 0
      %p76 = por %p74, %p75
      %s77 = ssub.s32 %s17, %s24
      %p78 = scmp.eq.s32.totalorder %s77, 0
      %s80 = sadd.s32 %s79, 1
      %s81 = scalar_select %p78, %s79, %s80
      %p84 = pneg %p78
      %p85 = scmp.eq.s32.totalorder %s17, 1
      %p86 = por %p84, %p85
      %p87 = scmp.ne.s32.totalorder %s79, %s82
      %p88 = scmp.eq.s32.totalorder %s17, 0
      %p89 = por %p87, %p88
      %p90 = scmp.ne.s32.totalorder %s79, %s82
      %p91 = scmp.eq.s32.totalorder %s22, 1
      %p92 = por %p90, %p91
      %p93 = scmp.ne.s32.totalorder %s82, %s83
      %p94 = scmp.eq.s32.totalorder %s22, 0
      %p95 = por %p93, %p94
      %p96 = scmp.ne.s32.totalorder %s82, %s83
      %p97 = scmp.eq.s32.totalorder %s23, 1
      %p98 = por %p96, %p97
      %p100 = scmp.ne.s32.totalorder %s83, %s99
      %p101 = scmp.eq.s32.totalorder %s23, 0
      %p102 = por %p100, %p101
      %s103 = ssub.s32 %s17, %s24
      %p104 = scmp.eq.s32.totalorder %s103, 0
      %s106 = sadd.s32 %s105, 1
      %s107 = scalar_select %p104, %s105, %s106
      %p110 = pneg %p104
      %p111 = scmp.eq.s32.totalorder %s17, 1
      %p112 = por %p110, %p111
      %p113 = scmp.ne.s32.totalorder %s105, %s108
      %p114 = scmp.eq.s32.totalorder %s17, 0
      %p115 = por %p113, %p114
      %p116 = scmp.ne.s32.totalorder %s105, %s108
      %p117 = scmp.eq.s32.totalorder %s22, 1
      %p118 = por %p116, %p117
      %p119 = scmp.ne.s32.totalorder %s108, %s109
      %p120 = scmp.eq.s32.totalorder %s22, 0
      %p121 = por %p119, %p120
      %p122 = scmp.ne.s32.totalorder %s108, %s109
      %p123 = scmp.eq.s32.totalorder %s23, 1
      %p124 = por %p122, %p123
      %p126 = scmp.ne.s32.totalorder %s109, %s125
      %p127 = scmp.eq.s32.totalorder %s23, 0
      %p128 = por %p126, %p127
      %s129 = ssub.s32 %s17, %s24
      %p130 = scmp.eq.s32.totalorder %s129, 0
      %s132 = sadd.s32 %s131, 1
      %s133 = scalar_select %p130, %s131, %s132
      %p136 = pneg %p130
      %p137 = scmp.eq.s32.totalorder %s17, 1
      %p138 = por %p136, %p137
      %p139 = scmp.ne.s32.totalorder %s131, %s134
      %p140 = scmp.eq.s32.totalorder %s17, 0
      %p141 = por %p139, %p140
      %p142 = scmp.ne.s32.totalorder %s131, %s134
      %p143 = scmp.eq.s32.totalorder %s22, 1
      %p144 = por %p142, %p143
      %p145 = scmp.ne.s32.totalorder %s134, %s135
      %p146 = scmp.eq.s32.totalorder %s22, 0
      %p147 = por %p145, %p146
      %p148 = scmp.ne.s32.totalorder %s134, %s135
      %p149 = scmp.eq.s32.totalorder %s23, 1
      %p150 = por %p148, %p149
      %p152 = scmp.ne.s32.totalorder %s135, %s151
      %p153 = scmp.eq.s32.totalorder %s23, 0
      %p154 = por %p152, %p153
      %s156 = sadd.s32 %s155, 1
      %p159 = scmp.eq.s32.totalorder %s17, 1
      %p160 = scmp.ne.s32.totalorder %s155, %s157
      %p161 = scmp.eq.s32.totalorder %s17, 0
      %p162 = por %p160, %p161
      %p163 = scmp.ne.s32.totalorder %s155, %s157
      %p164 = scmp.eq.s32.totalorder %s22, 1
      %p165 = por %p163, %p164
      %p166 = scmp.ne.s32.totalorder %s157, %s158
      %p167 = scmp.eq.s32.totalorder %s22, 0
      %p168 = por %p166, %p167
      %p169 = scmp.ne.s32.totalorder %s157, %s158
      %p170 = scmp.eq.s32.totalorder %s23, 1
      %p171 = por %p169, %p170
      %p173 = scmp.ne.s32.totalorder %s158, %s172
      %p174 = scmp.eq.s32.totalorder %s23, 0
      %p175 = por %p173, %p174
      %s176 = ssub.s32 %s17, %s24
      %p177 = scmp.eq.s32.totalorder %s176, 0
      %s179 = sadd.s32 %s178, 1
      %s180 = scalar_select %p177, %s178, %s179
      %p183 = pneg %p177
      %p184 = scmp.eq.s32.totalorder %s17, 1
      %p185 = por %p183, %p184
      %p186 = scmp.ne.s32.totalorder %s178, %s181
      %p187 = scmp.eq.s32.totalorder %s17, 0
      %p188 = por %p186, %p187
      %p189 = scmp.ne.s32.totalorder %s178, %s181
      %p190 = scmp.eq.s32.totalorder %s22, 1
      %p191 = por %p189, %p190
      %p192 = scmp.ne.s32.totalorder %s181, %s182
      %p193 = scmp.eq.s32.totalorder %s22, 0
      %p194 = por %p192, %p193
      %p195 = scmp.ne.s32.totalorder %s181, %s182
      %p196 = scmp.eq.s32.totalorder %s23, 1
      %p197 = por %p195, %p196
      %p199 = scmp.ne.s32.totalorder %s182, %s198
      %p200 = scmp.eq.s32.totalorder %s23, 0
      %p201 = por %p199, %p200
      %s202 = ssub.s32 %s17, %s24
      %p203 = scmp.eq.s32.totalorder %s202, 0
      %s205 = sadd.s32 %s204, 1
      %s206 = scalar_select %p203, %s204, %s205
      %p209 = pneg %p203
      %p210 = scmp.eq.s32.totalorder %s17, 1
      %p211 = por %p209, %p210
      %p212 = scmp.ne.s32.totalorder %s204, %s207
      %p213 = scmp.eq.s32.totalorder %s17, 0
      %p214 = por %p212, %p213
      %p215 = scmp.ne.s32.totalorder %s204, %s207
      %p216 = scmp.eq.s32.totalorder %s22, 1
      %p217 = por %p215, %p216
      %p218 = scmp.ne.s32.totalorder %s207, %s208
      %p219 = scmp.eq.s32.totalorder %s22, 0
      %p220 = por %p218, %p219
      %p221 = scmp.ne.s32.totalorder %s207, %s208
      %p222 = scmp.eq.s32.totalorder %s23, 1
      %p223 = por %p221, %p222
      %p225 = scmp.ne.s32.totalorder %s208, %s224
      %p226 = scmp.eq.s32.totalorder %s23, 0
      %p227 = por %p225, %p226
      %s228 = ssub.s32 %s17, %s24
      %p229 = scmp.eq.s32.totalorder %s228, 0
      %s231 = sadd.s32 %s230, 1
      %s232 = scalar_select %p229, %s230, %s231
      %p235 = pneg %p229
      %p236 = scmp.eq.s32.totalorder %s17, 1
      %p237 = por %p235, %p236
      %p238 = scmp.ne.s32.totalorder %s230, %s233
      %p239 = scmp.eq.s32.totalorder %s17, 0
      %p240 = por %p238, %p239
      %p241 = scmp.ne.s32.totalorder %s230, %s233
      %p242 = scmp.eq.s32.totalorder %s22, 1
      %p243 = por %p241, %p242
      %p244 = scmp.ne.s32.totalorder %s233, %s234
      %p245 = scmp.eq.s32.totalorder %s22, 0
      %p246 = por %p244, %p245
      %p247 = scmp.ne.s32.totalorder %s233, %s234
      %p248 = scmp.eq.s32.totalorder %s23, 1
      %p249 = por %p247, %p248
      %p251 = scmp.ne.s32.totalorder %s234, %s250
      %p252 = scmp.eq.s32.totalorder %s23, 0
      %p253 = por %p251, %p252
      %s254 = ssub.s32 %s17, %s24
      %p255 = scmp.eq.s32.totalorder %s254, 0
      %s257 = sadd.s32 %s256, 1
      %s258 = scalar_select %p255, %s256, %s257
      %p261 = pneg %p255
      %p262 = scmp.eq.s32.totalorder %s17, 1
      %p263 = por %p261, %p262
      %p264 = scmp.ne.s32.totalorder %s256, %s259
      %p265 = scmp.eq.s32.totalorder %s17, 0
      %p266 = por %p264, %p265
      %p267 = scmp.ne.s32.totalorder %s256, %s259
      %p268 = scmp.eq.s32.totalorder %s22, 1
      %p269 = por %p267, %p268
      %p270 = scmp.ne.s32.totalorder %s259, %s260
      %p271 = scmp.eq.s32.totalorder %s22, 0
      %p272 = por %p270, %p271
      %p273 = scmp.ne.s32.totalorder %s259, %s260
      %p274 = scmp.eq.s32.totalorder %s23, 1
      %p275 = por %p273, %p274
      %p277 = scmp.ne.s32.totalorder %s260, %s276
      %p278 = scmp.eq.s32.totalorder %s23, 0
      %p279 = por %p277, %p278
      %p280 = scmp.le.s32.totalorder 1, %s17
      %p281 = scmp.lt.s32.totalorder %s17, 3
      %p282 = pnand %p280, %p281
      %p283 = pneg %p282
      // Predicated region
      $region9: #{tpu_custom_call.1} parent=5 // pred_check
        _
      $region10: #{tpu_custom_call.1} parent=5 // pred_check_branch
        %285 = sbr.rel (%p282) target = $region12
      $region11: #{tpu_custom_call.1} parent=5 // pred_region
        %s286 = ssub.s32 %s17, 1
        // Predicated region
        $region13: #{tpu_custom_call.1} parent=11 // pred_check
          %p287 = pneg %p168
        $region14: #{tpu_custom_call.1} parent=11 // pred_check_branch
          %289 = sbr.rel (%p287) target = $region16
        $region15: #{tpu_custom_call.1} parent=11 // pred_region
          %s291 = ssub.s32 17920, 17920
          %292 = vsyncadd [#allocation4], %s291
          %s293 = sshll.u32 [#allocation3], 4
          %s294 = int_to_ptr.vmem [resolvable:$true] %s293
          %299 = dma.hbm_to_vmem [thread:$0]  %s5, 17920, %s294, [#allocation4], 128, 128, 8
        $region16: #{tpu_custom_call.1} parent=11 // pred_fallthru
          _
      $region12: #{tpu_custom_call.1} parent=5 // pred_fallthru
        _
      %p300 = scmp.lt.s32.totalorder %s17, 2
      // Predicated region
      $region17: #{tpu_custom_call.1} parent=5 // pred_check
        %p301 = pneg %p300
      $region18: #{tpu_custom_call.1} parent=5 // pred_check_branch
        %303 = sbr.rel (%p301) target = $region20
      $region19: #{tpu_custom_call.1} parent=5 // pred_region
        // Predicated region
        $region21: #{tpu_custom_call.1} parent=19 // pred_check
          %p304 = pneg %p37
        $region22: #{tpu_custom_call.1} parent=19 // pred_check_branch
          %306 = sbr.rel (%p304) target = $region24
        $region23: #{tpu_custom_call.1} parent=19 // pred_region
          %p307 = scmp.lt.s32.totalorder %s17, 1
          %s308 = scalar_select %p307, %s17, 1
          %s309 = smul.addr %s308, 8
          %s310 = scalar_lea.vmem %s0, %s309
        $region24: #{tpu_custom_call.1} parent=19 // pred_fallthru
          _
        // Predicated region
        $region25: #{tpu_custom_call.1} parent=19 // pred_check
          %p311 = pneg %p63
        $region26: #{tpu_custom_call.1} parent=19 // pred_check_branch
          %313 = sbr.rel (%p311) target = $region28
        $region27: #{tpu_custom_call.1} parent=19 // pred_region
          %p314 = scmp.lt.s32.totalorder %s17, 1
          %s315 = scalar_select %p314, %s17, 1
          %s316 = smul.addr %s315, 8
          %s317 = scalar_lea.vmem %s1, %s316
        $region28: #{tpu_custom_call.1} parent=19 // pred_fallthru
          _
        // Predicated region
        $region29: #{tpu_custom_call.1} parent=19 // pred_check
          %p318 = pneg %p89
        $region30: #{tpu_custom_call.1} parent=19 // pred_check_branch
          %320 = sbr.rel (%p318) target = $region32
        $region31: #{tpu_custom_call.1} parent=19 // pred_region
          %p321 = scmp.lt.s32.totalorder %s17, 1
          %s322 = scalar_select %p321, %s17, 1
          %s323 = smul.addr %s322, 8
          %s324 = scalar_lea.vmem %s2, %s323
        $region32: #{tpu_custom_call.1} parent=19 // pred_fallthru
          _
        // Predicated region
        $region33: #{tpu_custom_call.1} parent=19 // pred_check
          %p325 = pneg %p115
        $region34: #{tpu_custom_call.1} parent=19 // pred_check_branch
          %327 = sbr.rel (%p325) target = $region36
        $region35: #{tpu_custom_call.1} parent=19 // pred_region
          %p328 = scmp.lt.s32.totalorder %s17, 1
          %s329 = scalar_select %p328, %s17, 1
          %s330 = smul.addr %s329, 8
          %s331 = scalar_lea.vmem %s3, %s330
        $region36: #{tpu_custom_call.1} parent=19 // pred_fallthru
          _
        // Predicated region
        $region37: #{tpu_custom_call.1} parent=19 // pred_check
          %p332 = pneg %p141
        $region38: #{tpu_custom_call.1} parent=19 // pred_check_branch
          %334 = sbr.rel (%p332) target = $region40
        $region39: #{tpu_custom_call.1} parent=19 // pred_region
          %p335 = scmp.lt.s32.totalorder %s17, 1
          %s336 = scalar_select %p335, %s17, 1
          %s337 = smul.addr %s336, 8
          %s338 = scalar_lea.vmem %s4, %s337
        $region40: #{tpu_custom_call.1} parent=19 // pred_fallthru
          _
      $region20: #{tpu_custom_call.1} parent=5 // pred_fallthru
        _
      %p339 = scmp.le.s32.totalorder 1, %s17
      %p340 = scmp.lt.s32.totalorder %s17, 3
      %p341 = pnand %p339, %p340
      %p342 = pneg %p341
      // Predicated region
      $region41: #{tpu_custom_call.1} parent=5 // pred_check
        _
      $region42: #{tpu_custom_call.1} parent=5 // pred_check_branch
        %344 = sbr.rel (%p341) target = $region44
      $region43: #{tpu_custom_call.1} parent=5 // pred_region
        %s345 = ssub.s32 %s17, 1
        // Predicated region
        $region45: #{tpu_custom_call.1} parent=43 // pred_check
          %p346 = pneg %p168
        $region46: #{tpu_custom_call.1} parent=43 // pred_check_branch
          %348 = sbr.rel (%p346) target = $region48
        $region47: #{tpu_custom_call.1} parent=43 // pred_region
          %349 = dma.done [#allocation4], 17920
        $region48: #{tpu_custom_call.1} parent=43 // pred_fallthru
          _
        %p350 = scmp.lt.s32.totalorder %s22, 1
        %s351 = scalar_select %p350, %s22, 1
        %s352 = smul.addr %s351, 8
        %s353 = scalar_lea.vmem %s0, %s352
        %p354 = pneg %p43
        %p355 = pneg %p40
        %p356 = scmp.lt.s32.totalorder %s22, 1
        %s357 = scalar_select %p356, %s22, 1
        %s358 = smul.addr %s357, 8
        %s359 = scalar_lea.vmem %s1, %s358
        %p360 = pneg %p69
        %p361 = pneg %p66
        %p362 = scmp.lt.s32.totalorder %s22, 1
        %s363 = scalar_select %p362, %s22, 1
        %s364 = smul.addr %s363, 8
        %s365 = scalar_lea.vmem %s2, %s364
        %p366 = pneg %p95
        %p367 = pneg %p92
        %p368 = scmp.lt.s32.totalorder %s22, 1
        %s369 = scalar_select %p368, %s22, 1
        %s370 = smul.addr %s369, 8
        %s371 = scalar_lea.vmem %s3, %s370
        %p372 = pneg %p121
        %p373 = pneg %p118
        %p374 = scmp.lt.s32.totalorder %s22, 1
        %s375 = scalar_select %p374, %s22, 1
        %s376 = smul.addr %s375, 8
        %s377 = scalar_lea.vmem %s4, %s376
        %p378 = pneg %p147
        %p379 = pneg %p144
        %p380 = pneg %p168
        %p381 = pneg %p165
        %p382 = pneg %p194
        %p383 = pneg %p191
        %p384 = scmp.lt.s32.totalorder %s22, 1
        %s385 = scalar_select %p384, %s22, 1
        %s386 = smul.addr %s385, 8
        %s387 = scalar_lea.vmem %s6, %s386
        %p388 = pneg %p220
        %p389 = pneg %p217
        %p390 = scmp.lt.s32.totalorder %s22, 1
        %s391 = scalar_select %p390, %s22, 1
        %s392 = smul.addr %s391, 8
        %s393 = smul.addr %s392, 8
        %s394 = scalar_lea.vmem %s7, %s393
        %p395 = pneg %p246
        %p396 = pneg %p243
        %p397 = scmp.lt.s32.totalorder %s22, 1
        %s398 = scalar_select %p397, %s22, 1
        %s399 = smul.addr %s398, 8
        %s400 = smul.addr %s399, 8
        %s401 = scalar_lea.vmem %s8, %s400
        %p402 = pneg %p272
        %p403 = pneg %p269
        %p404 = scmp.lt.s32.totalorder %s22, 1
        %s405 = scalar_select %p404, %s22, 1
        %s406 = smul.addr %s405, 8
        %s407 = smul.addr %s406, 8
        %s408 = scalar_lea.vmem %s9, %s407
        %p409 = scmp.lt.s32.totalorder %s22, 1
        %s410 = scalar_select %p409, %s22, 1
        %s411 = smul.addr %s410, 8
        %s412 = scalar_lea.vmem %s0, %s411
        %p413 = scmp.lt.s32.totalorder %s22, 1
        %s414 = scalar_select %p413, %s22, 1
        %s415 = smul.addr %s414, 8
        %s416 = scalar_lea.vmem %s1, %s415
        %p417 = scmp.lt.s32.totalorder %s22, 1
        %s418 = scalar_select %p417, %s22, 1
        %s419 = smul.addr %s418, 8
        %s420 = scalar_lea.vmem %s2, %s419
        %p421 = scmp.lt.s32.totalorder %s22, 1
        %s422 = scalar_select %p421, %s22, 1
        %s423 = smul.addr %s422, 8
        %s424 = scalar_lea.vmem %s3, %s423
        %p425 = scmp.lt.s32.totalorder %s22, 1
        %s426 = scalar_select %p425, %s22, 1
        %s427 = smul.addr %s426, 8
        %s428 = scalar_lea.vmem %s4, %s427
        %p429 = scmp.lt.s32.totalorder %s22, 1
        %s430 = scalar_select %p429, %s22, 1
        %s431 = smul.addr %s430, 8
        %s432 = scalar_lea.vmem %s6, %s431
        %p433 = scmp.lt.s32.totalorder %s22, 1
        %s434 = scalar_select %p433, %s22, 1
        %s435 = smul.addr %s434, 8
        %s436 = smul.addr %s435, 8
        %s437 = scalar_lea.vmem %s7, %s436
        %p438 = scmp.lt.s32.totalorder %s22, 1
        %s439 = scalar_select %p438, %s22, 1
        %s440 = smul.addr %s439, 8
        %s441 = smul.addr %s440, 8
        %s442 = scalar_lea.vmem %s8, %s441
        %p443 = scmp.lt.s32.totalorder %s22, 1
        %s444 = scalar_select %p443, %s22, 1
        %s445 = smul.addr %s444, 8
        %s446 = smul.addr %s445, 8
        %s447 = scalar_lea.vmem %s9, %s446
        %448 = vst [vmem:[%s437] sm:$0x1f] 0.0
        %449 = vst [vmem:[%s437 + $0x8] sm:$0x1f] 0.0
        %450 = vst [vmem:[%s437 + $0x10] sm:$0x1f] 0.0
        %451 = vst [vmem:[%s437 + $0x18] sm:$0x1f] 0.0
        %452 = vst [vmem:[%s437 + $0x20] sm:$0x1f] 0.0
        %453 = vst [vmem:[%s437 + $0x28] sm:$0x1f] 0.0
        %454 = vst [vmem:[%s437 + $0x30] sm:$0x1f] 0.0
        %455 = vst [vmem:[%s437 + $0x38] sm:$0x1f] 0.0
        %456 = vst [vmem:[%s442] sm:$0x1f] 0.0
        %457 = vst [vmem:[%s442 + $0x8] sm:$0x1f] 0.0
        %458 = vst [vmem:[%s442 + $0x10] sm:$0x1f] 0.0
        %459 = vst [vmem:[%s442 + $0x18] sm:$0x1f] 0.0
        %460 = vst [vmem:[%s442 + $0x20] sm:$0x1f] 0.0
        %461 = vst [vmem:[%s442 + $0x28] sm:$0x1f] 0.0
        %462 = vst [vmem:[%s442 + $0x30] sm:$0x1f] 0.0
        %463 = vst [vmem:[%s442 + $0x38] sm:$0x1f] 0.0
        %464 = vst [vmem:[%s447] sm:$0x1f] 0.0
        %465 = vst [vmem:[%s447 + $0x8] sm:$0x1f] 0.0
        %466 = vst [vmem:[%s447 + $0x10] sm:$0x1f] 0.0
        %467 = vst [vmem:[%s447 + $0x18] sm:$0x1f] 0.0
        %468 = vst [vmem:[%s447 + $0x20] sm:$0x1f] 0.0
        %469 = vst [vmem:[%s447 + $0x28] sm:$0x1f] 0.0
        %470 = vst [vmem:[%s447 + $0x30] sm:$0x1f] 0.0
        %471 = vst [vmem:[%s447 + $0x38] sm:$0x1f] 0.0
        %v472 = vld [vmem:[%s412] sm:$0x1f]
        %v473 = vld [vmem:[%s416] sm:$0x1f]
        %v474 = vld [vmem:[%s420] sm:$0x1f]
        %v475 = vld [vmem:[%s424] sm:$0x1f]
        %v476 = vld [vmem:[%s428] sm:$0x1f]
        %v477 = vld [vmem:[#allocation3] sm:$0xff]
        %v478 = vld [vmem:[#allocation3 + $0x8] sm:$0xff]
        %v479 = vld [vmem:[#allocation3 + $0x10] sm:$0xff]
        %v480 = vld [vmem:[#allocation3 + $0x18] sm:$0xff]
        %v481 = vld [vmem:[#allocation3 + $0x20] sm:$0x1]
        %v482 = vld [vmem:[#allocation3 + $0x28] sm:$0xff]
        %v483 = vld [vmem:[#allocation3 + $0x30] sm:$0xff]
        %v484 = vld [vmem:[#allocation3 + $0x38] sm:$0xff]
        %v485 = vld [vmem:[#allocation3 + $0x40] sm:$0xff]
        %v486 = vld [vmem:[#allocation3 + $0x48] sm:$0x1]
        %v487 = vld [vmem:[#allocation3 + $0x50] sm:$0x1]
        %v488 = vld [vmem:[#allocation3 + $0x58] sm:$0x1]
        %v489 = vlaneseq
        %v490 = vshrl.u32 %v489, 7
        %v491 = vsub.s32 0, %v490
        %v492 = vrot.slane %v481, %v491
        %vm493 = vcmask 261120
        %v495 = vsel %vm493, %v472, 0
        %497 = vmatprep.subr.mxu0 0.0
        %498 = vmatpush1.msra.mxu0 %v477
        %499 = vmatprep.subr.mxu0 0.0
        %500 = vmatpush1.msra.mxu0 %v478
        %501 = vmatprep.subr.mxu0 0.0
        %502 = vmatpush1.msra.mxu0 %v479
        %503 = vmatprep.subr.mxu0 0.0
        %504 = vmatpush1.msra.mxu0 %v480
        %505 = vmatprep.subr.mxu0 0.0
        %506 = vmatpush1.msra.mxu0 0.0
        %507 = vmatprep.subr.mxu0 0.0
        %508 = vmatpush1.msra.mxu0 0.0
        %509 = vmatprep.subr.mxu0 0.0
        %510 = vmatpush1.msra.mxu0 0.0
        %511 = vmatprep.subr.mxu0 0.0
        %512 = vmatpush1.msra.mxu0 0.0
        %513 = vmatprep.subr.mxu0 0.0
        %514 = vmatpush1.msra.mxu0 0.0
        %515 = vmatprep.subr.mxu0 0.0
        %516 = vmatpush1.msra.mxu0 0.0
        %517 = vmatprep.subr.mxu0 0.0
        %518 = vmatpush1.msra.mxu0 0.0
        %519 = vmatprep.subr.mxu0 0.0
        %520 = vmatpush1.msra.mxu0 0.0
        %521 = vmatprep.subr.mxu0 0.0
        %522 = vmatpush1.msra.mxu0 0.0
        %523 = vmatprep.subr.mxu0 0.0
        %524 = vmatpush1.msra.mxu0 0.0
        %525 = vmatprep.subr.mxu0 0.0
        %526 = vmatpush1.msra.mxu0 0.0
        %527 = vmatprep.subr.mxu0 0.0
        %528 = vmatpush1.msra.mxu0 0.0
        %529 = vmatprep.subr.mxu0 0.0
        %530 = vmatpush1.msra.mxu0 0.0
        %531 = vmatprep.subr.mxu0 0.0
        %532 = vmatpush1.msra.mxu0 0.0
        %533 = vmatprep.subr.mxu0 0.0
        %534 = vmatpush1.msra.mxu0 0.0
        %535 = vmatprep.subr.mxu0 0.0
        %536 = vmatpush1.msra.mxu0 0.0
        %537 = vmatprep.subr.mxu0 0.0
        %538 = vmatpush1.msra.mxu0 0.0
        %539 = vmatprep.subr.mxu0 0.0
        %540 = vmatpush1.msra.mxu0 0.0
        %541 = vmatprep.subr.mxu0 0.0
        %542 = vmatpush1.msra.mxu0 0.0
        %543 = vmatprep.subr.mxu0 0.0
        %544 = vmatpush1.msra.mxu0 0.0
        %545 = vmatprep.subr.mxu0 0.0
        %546 = vmatpush1.msra.mxu0 0.0
        %547 = vmatprep.subr.mxu0 0.0
        %548 = vmatpush1.msra.mxu0 0.0
        %549 = vmatprep.subr.mxu0 0.0
        %550 = vmatpush1.msra.mxu0 0.0
        %551 = vmatprep.subr.mxu0 0.0
        %552 = vmatpush1.msra.mxu0 0.0
        %553 = vmatprep.subr.mxu0 0.0
        %554 = vmatpush1.msra.mxu0 0.0
        %555 = vmatprep.subr.mxu0 0.0
        %556 = vmatpush1.msra.mxu0 0.0
        %557 = vmatprep.subr.mxu0 0.0
        %558 = vmatpush1.msra.mxu0 0.0
        %559 = vmatprep.subr.mxu0 0.0
        %560 = vmatpush1.msra.mxu0 0.0
        %561 = vmatprep.mubr.f32.mxu0 0.0
        %562 = vmatmul.mubr.f32.gmra.mrb[0].mxu0 %v495
        %v563 = vpop.f32.mrb[0].mxu0
        %v564 = vadd.f32 %v492, %v563
        %v565 = vpop.f32.mrb[0].mxu0
        %566 = vdwg.mxu0
        %568 = vrot.lane.b32.xlu0 %v564, 96
        %v569 = vpop.permute.xlu0 %568
        %vm570 = vcmask 64512
        %v571 = vsel %vm570, %v564, 0
        %v573 = vsel %vm570, %v569, 0
        %575 = vmatprep.subr.mxu0 0.0
        %576 = vmatpush1.xpose.msra.mxu0 %v573
        %577 = vmatprep.subr.mxu0 0.0
        %578 = vmatpush1.xpose.msra.mxu0 0.0
        %579 = vmatprep.subr.mxu0 0.0
        %580 = vmatpush1.xpose.msra.mxu0 0.0
        %581 = vmatprep.subr.mxu0 0.0
        %582 = vmatpush1.xpose.msra.mxu0 0.0
        %583 = vmatprep.subr.mxu0 0.0
        %584 = vmatpush1.xpose.msra.mxu0 0.0
        %585 = vmatprep.subr.mxu0 0.0
        %586 = vmatpush1.xpose.msra.mxu0 0.0
        %587 = vmatprep.subr.mxu0 0.0
        %588 = vmatpush1.xpose.msra.mxu0 0.0
        %589 = vmatprep.subr.mxu0 0.0
        %590 = vmatpush1.xpose.msra.mxu0 0.0
        %591 = vmatprep.subr.mxu0 0.0
        %592 = vmatpush1.xpose.msra.mxu0 0.0
        %593 = vmatprep.subr.mxu0 0.0
        %594 = vmatpush1.xpose.msra.mxu0 0.0
        %595 = vmatprep.subr.mxu0 0.0
        %596 = vmatpush1.xpose.msra.mxu0 0.0
        %597 = vmatprep.subr.mxu0 0.0
        %598 = vmatpush1.xpose.msra.mxu0 0.0
        %599 = vmatprep.subr.mxu0 0.0
        %600 = vmatpush1.xpose.msra.mxu0 0.0
        %601 = vmatprep.subr.mxu0 0.0
        %602 = vmatpush1.xpose.msra.mxu0 0.0
        %603 = vmatprep.subr.mxu0 0.0
        %604 = vmatpush1.xpose.msra.mxu0 0.0
        %605 = vmatprep.subr.mxu0 0.0
        %606 = vmatpush1.xpose.msra.mxu0 0.0
        %607 = vmatprep.subr.mxu0 0.0
        %608 = vmatpush1.xpose.msra.mxu0 0.0
        %609 = vmatprep.subr.mxu0 0.0
        %610 = vmatpush1.xpose.msra.mxu0 0.0
        %611 = vmatprep.subr.mxu0 0.0
        %612 = vmatpush1.xpose.msra.mxu0 0.0
        %613 = vmatprep.subr.mxu0 0.0
        %614 = vmatpush1.xpose.msra.mxu0 0.0
        %615 = vmatprep.subr.mxu0 0.0
        %616 = vmatpush1.xpose.msra.mxu0 0.0
        %617 = vmatprep.subr.mxu0 0.0
        %618 = vmatpush1.xpose.msra.mxu0 0.0
        %619 = vmatprep.subr.mxu0 0.0
        %620 = vmatpush1.xpose.msra.mxu0 0.0
        %621 = vmatprep.subr.mxu0 0.0
        %622 = vmatpush1.xpose.msra.mxu0 0.0
        %623 = vmatprep.subr.mxu0 0.0
        %624 = vmatpush1.xpose.msra.mxu0 0.0
        %625 = vmatprep.subr.mxu0 0.0
        %626 = vmatpush1.xpose.msra.mxu0 0.0
        %627 = vmatprep.subr.mxu0 0.0
        %628 = vmatpush1.xpose.msra.mxu0 0.0
        %629 = vmatprep.subr.mxu0 0.0
        %630 = vmatpush1.xpose.msra.mxu0 0.0
        %631 = vmatprep.subr.mxu0 0.0
        %632 = vmatpush1.xpose.msra.mxu0 0.0
        %633 = vmatprep.subr.mxu0 0.0
        %634 = vmatpush1.xpose.msra.mxu0 0.0
        %635 = vmatprep.subr.mxu0 0.0
        %636 = vmatpush1.xpose.msra.mxu0 0.0
        %637 = vmatprep.subr.mxu0 0.0
        %638 = vmatpush1.xpose.msra.mxu0 0.0
        %639 = vmatprep.mubr.f32.mxu0 0.0
        %640 = vmatmul.mubr.f32.gmra.mrb[0].mxu0 %v571
        %v641 = vpop.f32.mrb[0].mxu0
        %v642 = vadd.f32 %v474, %v641
        %v643 = vpop.f32.mrb[0].mxu0
        %644 = vdwg.mxu0
        %vm645 = vcmask 36864
        %v646 = vsel %vm645, %v642, -inf
        %647 = vmax.xlane.f32.xlu0 %v646
        %v648 = vpop.xlane.xlu0 %647
        %v649 = vsub.f32 %v642, %v648
        %v650 = vmul.f32 %v649, 1.442695
        %v651 = vpow.pop %v650
        %v652 = vsel %vm645, %v651, 0.0
        %653 = vadd.xlane.f32.xlu0 %v652
        %v654 = vpop.xlane.xlu0 %653
        %v655 = vrcp.pop %v654
        %v656 = vmul.f32 %v651, %v655
        %657 = vst.msk [vmem:[%s437] sm:$0x1f] %vm645, %v656
        %658 = vrot.lane.b32.xlu0 %v564, 64
        %v659 = vpop.permute.xlu0 %658
        %vm660 = vcmask 39936
        %v662 = vsel %vm660, %v656, 0
        %vm664 = vcmask 1044480
        %v665 = vsel %vm664, %v659, 0
        %667 = vmatprep.subr.mxu0 0.0
        %668 = vmatpush1.msra.mxu0 %v665
        %669 = vmatprep.subr.mxu0 0.0
        %670 = vmatpush1.msra.mxu0 0.0
        %671 = vmatprep.subr.mxu0 0.0
        %672 = vmatpush1.msra.mxu0 0.0
        %673 = vmatprep.subr.mxu0 0.0
        %674 = vmatpush1.msra.mxu0 0.0
        %675 = vmatprep.subr.mxu0 0.0
        %676 = vmatpush1.msra.mxu0 0.0
        %677 = vmatprep.subr.mxu0 0.0
        %678 = vmatpush1.msra.mxu0 0.0
        %679 = vmatprep.subr.mxu0 0.0
        %680 = vmatpush1.msra.mxu0 0.0
        %681 = vmatprep.subr.mxu0 0.0
        %682 = vmatpush1.msra.mxu0 0.0
        %683 = vmatprep.subr.mxu0 0.0
        %684 = vmatpush1.msra.mxu0 0.0
        %685 = vmatprep.subr.mxu0 0.0
        %686 = vmatpush1.msra.mxu0 0.0
        %687 = vmatprep.subr.mxu0 0.0
        %688 = vmatpush1.msra.mxu0 0.0
        %689 = vmatprep.subr.mxu0 0.0
        %690 = vmatpush1.msra.mxu0 0.0
        %691 = vmatprep.subr.mxu0 0.0
        %692 = vmatpush1.msra.mxu0 0.0
        %693 = vmatprep.subr.mxu0 0.0
        %694 = vmatpush1.msra.mxu0 0.0
        %695 = vmatprep.subr.mxu0 0.0
        %696 = vmatpush1.msra.mxu0 0.0
        %697 = vmatprep.subr.mxu0 0.0
        %698 = vmatpush1.msra.mxu0 0.0
        %699 = vmatprep.subr.mxu0 0.0
        %700 = vmatpush1.msra.mxu0 0.0
        %701 = vmatprep.subr.mxu0 0.0
        %702 = vmatpush1.msra.mxu0 0.0
        %703 = vmatprep.subr.mxu0 0.0
        %704 = vmatpush1.msra.mxu0 0.0
        %705 = vmatprep.subr.mxu0 0.0
        %706 = vmatpush1.msra.mxu0 0.0
        %707 = vmatprep.subr.mxu0 0.0
        %708 = vmatpush1.msra.mxu0 0.0
        %709 = vmatprep.subr.mxu0 0.0
        %710 = vmatpush1.msra.mxu0 0.0
        %711 = vmatprep.subr.mxu0 0.0
        %712 = vmatpush1.msra.mxu0 0.0
        %713 = vmatprep.subr.mxu0 0.0
        %714 = vmatpush1.msra.mxu0 0.0
        %715 = vmatprep.subr.mxu0 0.0
        %716 = vmatpush1.msra.mxu0 0.0
        %717 = vmatprep.subr.mxu0 0.0
        %718 = vmatpush1.msra.mxu0 0.0
        %719 = vmatprep.subr.mxu0 0.0
        %720 = vmatpush1.msra.mxu0 0.0
        %721 = vmatprep.subr.mxu0 0.0
        %722 = vmatpush1.msra.mxu0 0.0
        %723 = vmatprep.subr.mxu0 0.0
        %724 = vmatpush1.msra.mxu0 0.0
        %725 = vmatprep.subr.mxu0 0.0
        %726 = vmatpush1.msra.mxu0 0.0
        %727 = vmatprep.subr.mxu0 0.0
        %728 = vmatpush1.msra.mxu0 0.0
        %729 = vmatprep.subr.mxu0 0.0
        %730 = vmatpush1.msra.mxu0 0.0
        %731 = vmatprep.mubr.f32.mxu0 0.0
        %732 = vmatmul.mubr.f32.gmra.mrb[0].mxu0 %v662
        %v733 = vpop.f32.mrb[0].mxu0
        %v734 = vadd.f32 0.0, %v733
        %v735 = vpop.f32.mrb[0].mxu0
        %736 = vdwg.mxu0
        %vm737 = vcmask 61440
        %738 = vst.msk [vmem:[#allocation2] sm:$0x1f] %vm737, %v734
        %739 = vrot.lane.b32.xlu0 %v564, 120
        %v740 = vpop.permute.xlu0 %739
        %741 = vrot.lane.b32.xlu0 %v564, 88
        %v742 = vpop.permute.xlu0 %741
        %v743 = vsel %vm570, %v740, 0
        %v745 = vsel %vm570, %v742, 0
        %747 = vmatprep.subr.mxu0 0.0
        %748 = vmatpush1.xpose.msra.mxu0 %v745
        %749 = vmatprep.subr.mxu0 0.0
        %750 = vmatpush1.xpose.msra.mxu0 0.0
        %751 = vmatprep.subr.mxu0 0.0
        %752 = vmatpush1.xpose.msra.mxu0 0.0
        %753 = vmatprep.subr.mxu0 0.0
        %754 = vmatpush1.xpose.msra.mxu0 0.0
        %755 = vmatprep.subr.mxu0 0.0
        %756 = vmatpush1.xpose.msra.mxu0 0.0
        %757 = vmatprep.subr.mxu0 0.0
        %758 = vmatpush1.xpose.msra.mxu0 0.0
        %759 = vmatprep.subr.mxu0 0.0
        %760 = vmatpush1.xpose.msra.mxu0 0.0
        %761 = vmatprep.subr.mxu0 0.0
        %762 = vmatpush1.xpose.msra.mxu0 0.0
        %763 = vmatprep.subr.mxu0 0.0
        %764 = vmatpush1.xpose.msra.mxu0 0.0
        %765 = vmatprep.subr.mxu0 0.0
        %766 = vmatpush1.xpose.msra.mxu0 0.0
        %767 = vmatprep.subr.mxu0 0.0
        %768 = vmatpush1.xpose.msra.mxu0 0.0
        %769 = vmatprep.subr.mxu0 0.0
        %770 = vmatpush1.xpose.msra.mxu0 0.0
        %771 = vmatprep.subr.mxu0 0.0
        %772 = vmatpush1.xpose.msra.mxu0 0.0
        %773 = vmatprep.subr.mxu0 0.0
        %774 = vmatpush1.xpose.msra.mxu0 0.0
        %775 = vmatprep.subr.mxu0 0.0
        %776 = vmatpush1.xpose.msra.mxu0 0.0
        %777 = vmatprep.subr.mxu0 0.0
        %778 = vmatpush1.xpose.msra.mxu0 0.0
        %779 = vmatprep.subr.mxu0 0.0
        %780 = vmatpush1.xpose.msra.mxu0 0.0
        %781 = vmatprep.subr.mxu0 0.0
        %782 = vmatpush1.xpose.msra.mxu0 0.0
        %783 = vmatprep.subr.mxu0 0.0
        %784 = vmatpush1.xpose.msra.mxu0 0.0
        %785 = vmatprep.subr.mxu0 0.0
        %786 = vmatpush1.xpose.msra.mxu0 0.0
        %787 = vmatprep.subr.mxu0 0.0
        %788 = vmatpush1.xpose.msra.mxu0 0.0
        %789 = vmatprep.subr.mxu0 0.0
        %790 = vmatpush1.xpose.msra.mxu0 0.0
        %791 = vmatprep.subr.mxu0 0.0
        %792 = vmatpush1.xpose.msra.mxu0 0.0
        %793 = vmatprep.subr.mxu0 0.0
        %794 = vmatpush1.xpose.msra.mxu0 0.0
        %795 = vmatprep.subr.mxu0 0.0
        %796 = vmatpush1.xpose.msra.mxu0 0.0
        %797 = vmatprep.subr.mxu0 0.0
        %798 = vmatpush1.xpose.msra.mxu0 0.0
        %799 = vmatprep.subr.mxu0 0.0
        %800 = vmatpush1.xpose.msra.mxu0 0.0
        %801 = vmatprep.subr.mxu0 0.0
        %802 = vmatpush1.xpose.msra.mxu0 0.0
        %803 = vmatprep.subr.mxu0 0.0
        %804 = vmatpush1.xpose.msra.mxu0 0.0
        %805 = vmatprep.subr.mxu0 0.0
        %806 = vmatpush1.xpose.msra.mxu0 0.0
        %807 = vmatprep.subr.mxu0 0.0
        %808 = vmatpush1.xpose.msra.mxu0 0.0
        %809 = vmatprep.subr.mxu0 0.0
        %810 = vmatpush1.xpose.msra.mxu0 0.0
        %811 = vmatprep.mubr.f32.mxu0 0.0
        %812 = vmatmul.mubr.f32.gmra.mrb[0].mxu0 %v743
        %v813 = vpop.f32.mrb[0].mxu0
        %v814 = vadd.f32 %v474, %v813
        %v815 = vpop.f32.mrb[0].mxu0
        %816 = vdwg.mxu0
        %v817 = vsel %vm645, %v814, -inf
        %818 = vmax.xlane.f32.xlu0 %v817
        %v819 = vpop.xlane.xlu0 %818
        %v820 = vsub.f32 %v814, %v819
        %v821 = vmul.f32 %v820, 1.442695
        %v822 = vpow.pop %v821
        %v823 = vsel %vm645, %v822, 0.0
        %824 = vadd.xlane.f32.xlu0 %v823
        %v825 = vpop.xlane.xlu0 %824
        %v826 = vrcp.pop %v825
        %v827 = vmul.f32 %v822, %v826
        %s828 = scalar_lea.vmem %s437, 8
        %829 = vst.msk [vmem:[%s828] sm:$0x1f] %vm645, %v827
        %830 = vrot.lane.b32.xlu0 %v564, 56
        %v831 = vpop.permute.xlu0 %830
        %v833 = vsel %vm660, %v827, 0
        %v835 = vsel %vm664, %v831, 0
        %837 = vmatprep.subr.mxu0 0.0
        %838 = vmatpush1.msra.mxu0 %v835
        %839 = vmatprep.subr.mxu0 0.0
        %840 = vmatpush1.msra.mxu0 0.0
        %841 = vmatprep.subr.mxu0 0.0
        %842 = vmatpush1.msra.mxu0 0.0
        %843 = vmatprep.subr.mxu0 0.0
        %844 = vmatpush1.msra.mxu0 0.0
        %845 = vmatprep.subr.mxu0 0.0
        %846 = vmatpush1.msra.mxu0 0.0
        %847 = vmatprep.subr.mxu0 0.0
        %848 = vmatpush1.msra.mxu0 0.0
        %849 = vmatprep.subr.mxu0 0.0
        %850 = vmatpush1.msra.mxu0 0.0
        %851 = vmatprep.subr.mxu0 0.0
        %852 = vmatpush1.msra.mxu0 0.0
        %853 = vmatprep.subr.mxu0 0.0
        %854 = vmatpush1.msra.mxu0 0.0
        %855 = vmatprep.subr.mxu0 0.0
        %856 = vmatpush1.msra.mxu0 0.0
        %857 = vmatprep.subr.mxu0 0.0
        %858 = vmatpush1.msra.mxu0 0.0
        %859 = vmatprep.subr.mxu0 0.0
        %860 = vmatpush1.msra.mxu0 0.0
        %861 = vmatprep.subr.mxu0 0.0
        %862 = vmatpush1.msra.mxu0 0.0
        %863 = vmatprep.subr.mxu0 0.0
        %864 = vmatpush1.msra.mxu0 0.0
        %865 = vmatprep.subr.mxu0 0.0
        %866 = vmatpush1.msra.mxu0 0.0
        %867 = vmatprep.subr.mxu0 0.0
        %868 = vmatpush1.msra.mxu0 0.0
        %869 = vmatprep.subr.mxu0 0.0
        %870 = vmatpush1.msra.mxu0 0.0
        %871 = vmatprep.subr.mxu0 0.0
        %872 = vmatpush1.msra.mxu0 0.0
        %873 = vmatprep.subr.mxu0 0.0
        %874 = vmatpush1.msra.mxu0 0.0
        %875 = vmatprep.subr.mxu0 0.0
        %876 = vmatpush1.msra.mxu0 0.0
        %877 = vmatprep.subr.mxu0 0.0
        %878 = vmatpush1.msra.mxu0 0.0
        %879 = vmatprep.subr.mxu0 0.0
        %880 = vmatpush1.msra.mxu0 0.0
        %881 = vmatprep.subr.mxu0 0.0
        %882 = vmatpush1.msra.mxu0 0.0
        %883 = vmatprep.subr.mxu0 0.0
        %884 = vmatpush1.msra.mxu0 0.0
        %885 = vmatprep.subr.mxu0 0.0
        %886 = vmatpush1.msra.mxu0 0.0
        %887 = vmatprep.subr.mxu0 0.0
        %888 = vmatpush1.msra.mxu0 0.0
        %889 = vmatprep.subr.mxu0 0.0
        %890 = vmatpush1.msra.mxu0 0.0
        %891 = vmatprep.subr.mxu0 0.0
        %892 = vmatpush1.msra.mxu0 0.0
        %893 = vmatprep.subr.mxu0 0.0
        %894 = vmatpush1.msra.mxu0 0.0
        %895 = vmatprep.subr.mxu0 0.0
        %896 = vmatpush1.msra.mxu0 0.0
        %897 = vmatprep.subr.mxu0 0.0
        %898 = vmatpush1.msra.mxu0 0.0
        %899 = vmatprep.subr.mxu0 0.0
        %900 = vmatpush1.msra.mxu0 0.0
        %901 = vmatprep.mubr.f32.mxu0 0.0
        %902 = vmatmul.mubr.f32.gmra.mrb[0].mxu0 %v833
        %v903 = vpop.f32.mrb[0].mxu0
        %v904 = vadd.f32 0.0, %v903
        %v905 = vpop.f32.mrb[0].mxu0
        %906 = vdwg.mxu0
        %908 = vrot.lane.b32.xlu0 %v904, 8
        %v909 = vpop.permute.xlu0 %908
        %vm911 = vcmask 127040
        %912 = vst.msk [vmem:[#allocation2] sm:$0x1f] %vm911, %v909
        %913 = vrot.lane.b32.xlu0 %v564, 112
        %v914 = vpop.permute.xlu0 %913
        %915 = vrot.lane.b32.xlu0 %v564, 80
        %v916 = vpop.permute.xlu0 %915
        %v917 = vsel %vm570, %v914, 0
        %v919 = vsel %vm570, %v916, 0
        %921 = vmatprep.subr.mxu0 0.0
        %922 = vmatpush1.xpose.msra.mxu0 %v919
        %923 = vmatprep.subr.mxu0 0.0
        %924 = vmatpush1.xpose.msra.mxu0 0.0
        %925 = vmatprep.subr.mxu0 0.0
        %926 = vmatpush1.xpose.msra.mxu0 0.0
        %927 = vmatprep.subr.mxu0 0.0
        %928 = vmatpush1.xpose.msra.mxu0 0.0
        %929 = vmatprep.subr.mxu0 0.0
        %930 = vmatpush1.xpose.msra.mxu0 0.0
        %931 = vmatprep.subr.mxu0 0.0
        %932 = vmatpush1.xpose.msra.mxu0 0.0
        %933 = vmatprep.subr.mxu0 0.0
        %934 = vmatpush1.xpose.msra.mxu0 0.0
        %935 = vmatprep.subr.mxu0 0.0
        %936 = vmatpush1.xpose.msra.mxu0 0.0
        %937 = vmatprep.subr.mxu0 0.0
        %938 = vmatpush1.xpose.msra.mxu0 0.0
        %939 = vmatprep.subr.mxu0 0.0
        %940 = vmatpush1.xpose.msra.mxu0 0.0
        %941 = vmatprep.subr.mxu0 0.0
        %942 = vmatpush1.xpose.msra.mxu0 0.0
        %943 = vmatprep.subr.mxu0 0.0
        %944 = vmatpush1.xpose.msra.mxu0 0.0
        %945 = vmatprep.subr.mxu0 0.0
        %946 = vmatpush1.xpose.msra.mxu0 0.0
        %947 = vmatprep.subr.mxu0 0.0
        %948 = vmatpush1.xpose.msra.mxu0 0.0
        %949 = vmatprep.subr.mxu0 0.0
        %950 = vmatpush1.xpose.msra.mxu0 0.0
        %951 = vmatprep.subr.mxu0 0.0
        %952 = vmatpush1.xpose.msra.mxu0 0.0
        %953 = vmatprep.subr.mxu0 0.0
        %954 = vmatpush1.xpose.msra.mxu0 0.0
        %955 = vmatprep.subr.mxu0 0.0
        %956 = vmatpush1.xpose.msra.mxu0 0.0
        %957 = vmatprep.subr.mxu0 0.0
        %958 = vmatpush1.xpose.msra.mxu0 0.0
        %959 = vmatprep.subr.mxu0 0.0
        %960 = vmatpush1.xpose.msra.mxu0 0.0
        %961 = vmatprep.subr.mxu0 0.0
        %962 = vmatpush1.xpose.msra.mxu0 0.0
        %963 = vmatprep.subr.mxu0 0.0
        %964 = vmatpush1.xpose.msra.mxu0 0.0
        %965 = vmatprep.subr.mxu0 0.0
        %966 = vmatpush1.xpose.msra.mxu0 0.0
        %967 = vmatprep.subr.mxu0 0.0
        %968 = vmatpush1.xpose.msra.mxu0 0.0
        %969 = vmatprep.subr.mxu0 0.0
        %970 = vmatpush1.xpose.msra.mxu0 0.0
        %971 = vmatprep.subr.mxu0 0.0
        %972 = vmatpush1.xpose.msra.mxu0 0.0
        %973 = vmatprep.subr.mxu0 0.0
        %974 = vmatpush1.xpose.msra.mxu0 0.0
        %975 = vmatprep.subr.mxu0 0.0
        %976 = vmatpush1.xpose.msra.mxu0 0.0
        %977 = vmatprep.subr.mxu0 0.0
        %978 = vmatpush1.xpose.msra.mxu0 0.0
        %979 = vmatprep.subr.mxu0 0.0
        %980 = vmatpush1.xpose.msra.mxu0 0.0
        %981 = vmatprep.subr.mxu0 0.0
        %982 = vmatpush1.xpose.msra.mxu0 0.0
        %983 = vmatprep.subr.mxu0 0.0
        %984 = vmatpush1.xpose.msra.mxu0 0.0
        %985 = vmatprep.mubr.f32.mxu0 0.0
        %986 = vmatmul.mubr.f32.gmra.mrb[0].mxu0 %v917
        %v987 = vpop.f32.mrb[0].mxu0
        %v988 = vadd.f32 %v474, %v987
        %v989 = vpop.f32.mrb[0].mxu0
        %990 = vdwg.mxu0
        %v991 = vsel %vm645, %v988, -inf
        %992 = vmax.xlane.f32.xlu0 %v991
        %v993 = vpop.xlane.xlu0 %992
        %v994 = vsub.f32 %v988, %v993
        %v995 = vmul.f32 %v994, 1.442695
        %v996 = vpow.pop %v995
        %v997 = vsel %vm645, %v996, 0.0
        %998 = vadd.xlane.f32.xlu0 %v997
        %v999 = vpop.xlane.xlu0 %998
        %v1000 = vrcp.pop %v999
        %v1001 = vmul.f32 %v996, %v1000
        %s1002 = scalar_lea.vmem %s437, 16
        %1003 = vst.msk [vmem:[%s1002] sm:$0x1f] %vm645, %v1001
        %1004 = vrot.lane.b32.xlu0 %v564, 48
        %v1005 = vpop.permute.xlu0 %1004
        %v1007 = vsel %vm660, %v1001, 0
        %v1009 = vsel %vm664, %v1005, 0
        %1011 = vmatprep.subr.mxu0 0.0
        %1012 = vmatpush1.msra.mxu0 %v1009
        %1013 = vmatprep.subr.mxu0 0.0
        %1014 = vmatpush1.msra.mxu0 0.0
        %1015 = vmatprep.subr.mxu0 0.0
        %1016 = vmatpush1.msra.mxu0 0.0
        %1017 = vmatprep.subr.mxu0 0.0
        %1018 = vmatpush1.msra.mxu0 0.0
        %1019 = vmatprep.subr.mxu0 0.0
        %1020 = vmatpush1.msra.mxu0 0.0
        %1021 = vmatprep.subr.mxu0 0.0
        %1022 = vmatpush1.msra.mxu0 0.0
        %1023 = vmatprep.subr.mxu0 0.0
        %1024 = vmatpush1.msra.mxu0 0.0
        %1025 = vmatprep.subr.mxu0 0.0
        %1026 = vmatpush1.msra.mxu0 0.0
        %1027 = vmatprep.subr.mxu0 0.0
        %1028 = vmatpush1.msra.mxu0 0.0
        %1029 = vmatprep.subr.mxu0 0.0
        %1030 = vmatpush1.msra.mxu0 0.0
        %1031 = vmatprep.subr.mxu0 0.0
        %1032 = vmatpush1.msra.mxu0 0.0
        %1033 = vmatprep.subr.mxu0 0.0
        %1034 = vmatpush1.msra.mxu0 0.0
        %1035 = vmatprep.subr.mxu0 0.0
        %1036 = vmatpush1.msra.mxu0 0.0
        %1037 = vmatprep.subr.mxu0 0.0
        %1038 = vmatpush1.msra.mxu0 0.0
        %1039 = vmatprep.subr.mxu0 0.0
        %1040 = vmatpush1.msra.mxu0 0.0
        %1041 = vmatprep.subr.mxu0 0.0
        %1042 = vmatpush1.msra.mxu0 0.0
        %1043 = vmatprep.subr.mxu0 0.0
        %1044 = vmatpush1.msra.mxu0 0.0
        %1045 = vmatprep.subr.mxu0 0.0
        %1046 = vmatpush1.msra.mxu0 0.0
        %1047 = vmatprep.subr.mxu0 0.0
        %1048 = vmatpush1.msra.mxu0 0.0
        %1049 = vmatprep.subr.mxu0 0.0
        %1050 = vmatpush1.msra.mxu0 0.0
        %1051 = vmatprep.subr.mxu0 0.0
        %1052 = vmatpush1.msra.mxu0 0.0
        %1053 = vmatprep.subr.mxu0 0.0
        %1054 = vmatpush1.msra.mxu0 0.0
        %1055 = vmatprep.subr.mxu0 0.0
        %1056 = vmatpush1.msra.mxu0 0.0
        %1057 = vmatprep.subr.mxu0 0.0
        %1058 = vmatpush1.msra.mxu0 0.0
        %1059 = vmatprep.subr.mxu0 0.0
        %1060 = vmatpush1.msra.mxu0 0.0
        %1061 = vmatprep.subr.mxu0 0.0
        %1062 = vmatpush1.msra.mxu0 0.0
        %1063 = vmatprep.subr.mxu0 0.0
        %1064 = vmatpush1.msra.mxu0 0.0
        %1065 = vmatprep.subr.mxu0 0.0
        %1066 = vmatpush1.msra.mxu0 0.0
        %1067 = vmatprep.subr.mxu0 0.0
        %1068 = vmatpush1.msra.mxu0 0.0
        %1069 = vmatprep.subr.mxu0 0.0
        %1070 = vmatpush1.msra.mxu0 0.0
        %1071 = vmatprep.subr.mxu0 0.0
        %1072 = vmatpush1.msra.mxu0 0.0
        %1073 = vmatprep.subr.mxu0 0.0
        %1074 = vmatpush1.msra.mxu0 0.0
        %1075 = vmatprep.mubr.f32.mxu0 0.0
        %1076 = vmatmul.mubr.f32.gmra.mrb[0].mxu0 %v1007
        %v1077 = vpop.f32.mrb[0].mxu0
        %v1078 = vadd.f32 0.0, %v1077
        %v1079 = vpop.f32.mrb[0].mxu0
        %1080 = vdwg.mxu0
        %1082 = vrot.lane.b32.xlu0 %v1078, 16
        %v1083 = vpop.permute.xlu0 %1082
        %vm1085 = vcmask 192640
        %1086 = vst.msk [vmem:[#allocation2] sm:$0x1f] %vm1085, %v1083
        %1087 = vrot.lane.b32.xlu0 %v564, 104
        %v1088 = vpop.permute.xlu0 %1087
        %1089 = vrot.lane.b32.xlu0 %v564, 72
        %v1090 = vpop.permute.xlu0 %1089
        %v1091 = vsel %vm570, %v1088, 0
        %v1093 = vsel %vm570, %v1090, 0
        %1095 = vmatprep.subr.mxu0 0.0
        %1096 = vmatpush1.xpose.msra.mxu0 %v1093
        %1097 = vmatprep.subr.mxu0 0.0
        %1098 = vmatpush1.xpose.msra.mxu0 0.0
        %1099 = vmatprep.subr.mxu0 0.0
        %1100 = vmatpush1.xpose.msra.mxu0 0.0
        %1101 = vmatprep.subr.mxu0 0.0
        %1102 = vmatpush1.xpose.msra.mxu0 0.0
        %1103 = vmatprep.subr.mxu0 0.0
        %1104 = vmatpush1.xpose.msra.mxu0 0.0
        %1105 = vmatprep.subr.mxu0 0.0
        %1106 = vmatpush1.xpose.msra.mxu0 0.0
        %1107 = vmatprep.subr.mxu0 0.0
        %1108 = vmatpush1.xpose.msra.mxu0 0.0
        %1109 = vmatprep.subr.mxu0 0.0
        %1110 = vmatpush1.xpose.msra.mxu0 0.0
        %1111 = vmatprep.subr.mxu0 0.0
        %1112 = vmatpush1.xpose.msra.mxu0 0.0
        %1113 = vmatprep.subr.mxu0 0.0
        %1114 = vmatpush1.xpose.msra.mxu0 0.0
        %1115 = vmatprep.subr.mxu0 0.0
        %1116 = vmatpush1.xpose.msra.mxu0 0.0
        %1117 = vmatprep.subr.mxu0 0.0
        %1118 = vmatpush1.xpose.msra.mxu0 0.0
        %1119 = vmatprep.subr.mxu0 0.0
        %1120 = vmatpush1.xpose.msra.mxu0 0.0
        %1121 = vmatprep.subr.mxu0 0.0
        %1122 = vmatpush1.xpose.msra.mxu0 0.0
        %1123 = vmatprep.subr.mxu0 0.0
        %1124 = vmatpush1.xpose.msra.mxu0 0.0
        %1125 = vmatprep.subr.mxu0 0.0
        %1126 = vmatpush1.xpose.msra.mxu0 0.0
        %1127 = vmatprep.subr.mxu0 0.0
        %1128 = vmatpush1.xpose.msra.mxu0 0.0
        %1129 = vmatprep.subr.mxu0 0.0
        %1130 = vmatpush1.xpose.msra.mxu0 0.0
        %1131 = vmatprep.subr.mxu0 0.0
        %1132 = vmatpush1.xpose.msra.mxu0 0.0
        %1133 = vmatprep.subr.mxu0 0.0
        %1134 = vmatpush1.xpose.msra.mxu0 0.0
        %1135 = vmatprep.subr.mxu0 0.0
        %1136 = vmatpush1.xpose.msra.mxu0 0.0
        %1137 = vmatprep.subr.mxu0 0.0
        %1138 = vmatpush1.xpose.msra.mxu0 0.0
        %1139 = vmatprep.subr.mxu0 0.0
        %1140 = vmatpush1.xpose.msra.mxu0 0.0
        %1141 = vmatprep.subr.mxu0 0.0
        %1142 = vmatpush1.xpose.msra.mxu0 0.0
        %1143 = vmatprep.subr.mxu0 0.0
        %1144 = vmatpush1.xpose.msra.mxu0 0.0
        %1145 = vmatprep.subr.mxu0 0.0
        %1146 = vmatpush1.xpose.msra.mxu0 0.0
        %1147 = vmatprep.subr.mxu0 0.0
        %1148 = vmatpush1.xpose.msra.mxu0 0.0
        %1149 = vmatprep.subr.mxu0 0.0
        %1150 = vmatpush1.xpose.msra.mxu0 0.0
        %1151 = vmatprep.subr.mxu0 0.0
        %1152 = vmatpush1.xpose.msra.mxu0 0.0
        %1153 = vmatprep.subr.mxu0 0.0
        %1154 = vmatpush1.xpose.msra.mxu0 0.0
        %1155 = vmatprep.subr.mxu0 0.0
        %1156 = vmatpush1.xpose.msra.mxu0 0.0
        %1157 = vmatprep.subr.mxu0 0.0
        %1158 = vmatpush1.xpose.msra.mxu0 0.0
        %1159 = vmatprep.mubr.f32.mxu0 0.0
        %1160 = vmatmul.mubr.f32.gmra.mrb[0].mxu0 %v1091
        %v1161 = vpop.f32.mrb[0].mxu0
        %v1162 = vadd.f32 %v474, %v1161
        %v1163 = vpop.f32.mrb[0].mxu0
        %1164 = vdwg.mxu0
        %v1165 = vsel %vm645, %v1162, -inf
        %1166 = vmax.xlane.f32.xlu0 %v1165
        %v1167 = vpop.xlane.xlu0 %1166
        %v1168 = vsub.f32 %v1162, %v1167
        %v1169 = vmul.f32 %v1168, 1.442695
        %v1170 = vpow.pop %v1169
        %v1171 = vsel %vm645, %v1170, 0.0
        %1172 = vadd.xlane.f32.xlu0 %v1171
        %v1173 = vpop.xlane.xlu0 %1172
        %v1174 = vrcp.pop %v1173
        %v1175 = vmul.f32 %v1170, %v1174
        %s1176 = scalar_lea.vmem %s437, 24
        %1177 = vst.msk [vmem:[%s1176] sm:$0x1f] %vm645, %v1175
        %1178 = vrot.lane.b32.xlu0 %v564, 40
        %v1179 = vpop.permute.xlu0 %1178
        %v1181 = vsel %vm660, %v1175, 0
        %v1183 = vsel %vm664, %v1179, 0
        %1185 = vmatprep.subr.mxu0 0.0
        %1186 = vmatpush1.msra.mxu0 %v1183
        %1187 = vmatprep.subr.mxu0 0.0
        %1188 = vmatpush1.msra.mxu0 0.0
        %1189 = vmatprep.subr.mxu0 0.0
        %1190 = vmatpush1.msra.mxu0 0.0
        %1191 = vmatprep.subr.mxu0 0.0
        %1192 = vmatpush1.msra.mxu0 0.0
        %1193 = vmatprep.subr.mxu0 0.0
        %1194 = vmatpush1.msra.mxu0 0.0
        %1195 = vmatprep.subr.mxu0 0.0
        %1196 = vmatpush1.msra.mxu0 0.0
        %1197 = vmatprep.subr.mxu0 0.0
        %1198 = vmatpush1.msra.mxu0 0.0
        %1199 = vmatprep.subr.mxu0 0.0
        %1200 = vmatpush1.msra.mxu0 0.0
        %1201 = vmatprep.subr.mxu0 0.0
        %1202 = vmatpush1.msra.mxu0 0.0
        %1203 = vmatprep.subr.mxu0 0.0
        %1204 = vmatpush1.msra.mxu0 0.0
        %1205 = vmatprep.subr.mxu0 0.0
        %1206 = vmatpush1.msra.mxu0 0.0
        %1207 = vmatprep.subr.mxu0 0.0
        %1208 = vmatpush1.msra.mxu0 0.0
        %1209 = vmatprep.subr.mxu0 0.0
        %1210 = vmatpush1.msra.mxu0 0.0
        %1211 = vmatprep.subr.mxu0 0.0
        %1212 = vmatpush1.msra.mxu0 0.0
        %1213 = vmatprep.subr.mxu0 0.0
        %1214 = vmatpush1.msra.mxu0 0.0
        %1215 = vmatprep.subr.mxu0 0.0
        %1216 = vmatpush1.msra.mxu0 0.0
        %1217 = vmatprep.subr.mxu0 0.0
        %1218 = vmatpush1.msra.mxu0 0.0
        %1219 = vmatprep.subr.mxu0 0.0
        %1220 = vmatpush1.msra.mxu0 0.0
        %1221 = vmatprep.subr.mxu0 0.0
        %1222 = vmatpush1.msra.mxu0 0.0
        %1223 = vmatprep.subr.mxu0 0.0
        %1224 = vmatpush1.msra.mxu0 0.0
        %1225 = vmatprep.subr.mxu0 0.0
        %1226 = vmatpush1.msra.mxu0 0.0
        %1227 = vmatprep.subr.mxu0 0.0
        %1228 = vmatpush1.msra.mxu0 0.0
        %1229 = vmatprep.subr.mxu0 0.0
        %1230 = vmatpush1.msra.mxu0 0.0
        %1231 = vmatprep.subr.mxu0 0.0
        %1232 = vmatpush1.msra.mxu0 0.0
        %1233 = vmatprep.subr.mxu0 0.0
        %1234 = vmatpush1.msra.mxu0 0.0
        %1235 = vmatprep.subr.mxu0 0.0
        %1236 = vmatpush1.msra.mxu0 0.0
        %1237 = vmatprep.subr.mxu0 0.0
        %1238 = vmatpush1.msra.mxu0 0.0
        %1239 = vmatprep.subr.mxu0 0.0
        %1240 = vmatpush1.msra.mxu0 0.0
        %1241 = vmatprep.subr.mxu0 0.0
        %1242 = vmatpush1.msra.mxu0 0.0
        %1243 = vmatprep.subr.mxu0 0.0
        %1244 = vmatpush1.msra.mxu0 0.0
        %1245 = vmatprep.subr.mxu0 0.0
        %1246 = vmatpush1.msra.mxu0 0.0
        %1247 = vmatprep.subr.mxu0 0.0
        %1248 = vmatpush1.msra.mxu0 0.0
        %1249 = vmatprep.mubr.f32.mxu0 0.0
        %1250 = vmatmul.mubr.f32.gmra.mrb[0].mxu0 %v1181
        %v1251 = vpop.f32.mrb[0].mxu0
        %v1252 = vadd.f32 0.0, %v1251
        %v1253 = vpop.f32.mrb[0].mxu0
        %1254 = vdwg.mxu0
        %1256 = vrot.lane.b32.xlu0 %v1252, 24
        %v1257 = vpop.permute.xlu0 %1256
        %vm1259 = vcmask 258240
        %1260 = vst.msk [vmem:[#allocation2] sm:$0x1f] %vm1259, %v1257
        %v1261 = vld [vmem:[#allocation2] sm:$0x1f]
        %v1262 = vlaneseq
        %v1263 = vshrl.u32 %v1262, 7
        %v1264 = vsub.s32 0, %v1263
        %v1265 = vrot.slane %v486, %v1264
        %v1267 = vsel %vm493, %v1261, 0
        %1269 = vmatprep.subr.mxu0 0.0
        %1270 = vmatpush1.msra.mxu0 %v482
        %1271 = vmatprep.subr.mxu0 0.0
        %1272 = vmatpush1.msra.mxu0 %v483
        %1273 = vmatprep.subr.mxu0 0.0
        %1274 = vmatpush1.msra.mxu0 %v484
        %1275 = vmatprep.subr.mxu0 0.0
        %1276 = vmatpush1.msra.mxu0 %v485
        %1277 = vmatprep.subr.mxu0 0.0
        %1278 = vmatpush1.msra.mxu0 0.0
        %1279 = vmatprep.subr.mxu0 0.0
        %1280 = vmatpush1.msra.mxu0 0.0
        %1281 = vmatprep.subr.mxu0 0.0
        %1282 = vmatpush1.msra.mxu0 0.0
        %1283 = vmatprep.subr.mxu0 0.0
        %1284 = vmatpush1.msra.mxu0 0.0
        %1285 = vmatprep.subr.mxu0 0.0
        %1286 = vmatpush1.msra.mxu0 0.0
        %1287 = vmatprep.subr.mxu0 0.0
        %1288 = vmatpush1.msra.mxu0 0.0
        %1289 = vmatprep.subr.mxu0 0.0
        %1290 = vmatpush1.msra.mxu0 0.0
        %1291 = vmatprep.subr.mxu0 0.0
        %1292 = vmatpush1.msra.mxu0 0.0
        %1293 = vmatprep.subr.mxu0 0.0
        %1294 = vmatpush1.msra.mxu0 0.0
        %1295 = vmatprep.subr.mxu0 0.0
        %1296 = vmatpush1.msra.mxu0 0.0
        %1297 = vmatprep.subr.mxu0 0.0
        %1298 = vmatpush1.msra.mxu0 0.0
        %1299 = vmatprep.subr.mxu0 0.0
        %1300 = vmatpush1.msra.mxu0 0.0
        %1301 = vmatprep.subr.mxu0 0.0
        %1302 = vmatpush1.msra.mxu0 0.0
        %1303 = vmatprep.subr.mxu0 0.0
        %1304 = vmatpush1.msra.mxu0 0.0
        %1305 = vmatprep.subr.mxu0 0.0
        %1306 = vmatpush1.msra.mxu0 0.0
        %1307 = vmatprep.subr.mxu0 0.0
        %1308 = vmatpush1.msra.mxu0 0.0
        %1309 = vmatprep.subr.mxu0 0.0
        %1310 = vmatpush1.msra.mxu0 0.0
        %1311 = vmatprep.subr.mxu0 0.0
        %1312 = vmatpush1.msra.mxu0 0.0
        %1313 = vmatprep.subr.mxu0 0.0
        %1314 = vmatpush1.msra.mxu0 0.0
        %1315 = vmatprep.subr.mxu0 0.0
        %1316 = vmatpush1.msra.mxu0 0.0
        %1317 = vmatprep.subr.mxu0 0.0
        %1318 = vmatpush1.msra.mxu0 0.0
        %1319 = vmatprep.subr.mxu0 0.0
        %1320 = vmatpush1.msra.mxu0 0.0
        %1321 = vmatprep.subr.mxu0 0.0
        %1322 = vmatpush1.msra.mxu0 0.0
        %1323 = vmatprep.subr.mxu0 0.0
        %1324 = vmatpush1.msra.mxu0 0.0
        %1325 = vmatprep.subr.mxu0 0.0
        %1326 = vmatpush1.msra.mxu0 0.0
        %1327 = vmatprep.subr.mxu0 0.0
        %1328 = vmatpush1.msra.mxu0 0.0
        %1329 = vmatprep.subr.mxu0 0.0
        %1330 = vmatpush1.msra.mxu0 0.0
        %1331 = vmatprep.subr.mxu0 0.0
        %1332 = vmatpush1.msra.mxu0 0.0
        %1333 = vmatprep.mubr.f32.mxu0 0.0
        %1334 = vmatmul.mubr.f32.gmra.mrb[0].mxu0 %v1267
        %v1335 = vpop.f32.mrb[0].mxu0
        %v1336 = vadd.f32 %v1265, %v1335
        %v1337 = vpop.f32.mrb[0].mxu0
        %1338 = vdwg.mxu0
        %v1339 = vadd.f32 %v1336, %v472
        %vm1340 = vcmask 258048
        %v1341 = vsel %vm1340, %v1339, 0.0
        %1342 = vadd.xlane.f32.xlu0 %v1341
        %v1343 = vpop.xlane.xlu0 %1342
        %v1344 = vrcp.pop 32.0
        %v1345 = vmul.f32 %v1343, %v1344
        %v1346 = vsub.f32 %v1339, %v1345
        %v1347 = vmul.f32 %v1346, %v1346
        %v1348 = vsel %vm1340, %v1347, 0.0
        %1349 = vadd.xlane.f32.xlu0 %v1348
        %v1350 = vpop.xlane.xlu0 %1349
        %v1351 = vmul.f32 %v1350, %v1344
        %v1352 = vadd.f32 %v1351, 1e-05
        %v1353 = vrsqrt.pop %v1352
        %v1354 = vmul.f32 %v1346, %v1353
        %v1355 = vlaneseq
        %v1356 = vshrl.u32 %v1355, 7
        %v1357 = vsub.s32 0, %v1356
        %v1358 = vrot.slane %v487, %v1357
        %v1359 = vmul.f32 %v1354, %v1358
        %v1360 = vlaneseq
        %v1361 = vshrl.u32 %v1360, 7
        %v1362 = vsub.s32 0, %v1361
        %v1363 = vrot.slane %v488, %v1362
        %v1364 = vadd.f32 %v1359, %v1363
        %v1365 = vld [vmem:[#allocation3 + $0x60] sm:$0xff]
        %v1366 = vld [vmem:[#allocation3 + $0x68] sm:$0xff]
        %v1367 = vld [vmem:[#allocation3 + $0x70] sm:$0xff]
        %v1368 = vld [vmem:[#allocation3 + $0x78] sm:$0xff]
        %v1369 = vld [vmem:[#allocation3 + $0x80] sm:$0x1]
        %v1370 = vld [vmem:[#allocation3 + $0x88] sm:$0xff]
        %v1371 = vld [vmem:[#allocation3 + $0x90] sm:$0xff]
        %v1372 = vld [vmem:[#allocation3 + $0x98] sm:$0xff]
        %v1373 = vld [vmem:[#allocation3 + $0xa0] sm:$0xff]
        %v1374 = vld [vmem:[#allocation3 + $0xa8] sm:$0xff]
        %v1375 = vld [vmem:[#allocation3 + $0xb0] sm:$0xff]
        %v1376 = vld [vmem:[#allocation3 + $0xb8] sm:$0xff]
        %v1377 = vld [vmem:[#allocation3 + $0xc0] sm:$0xff]
        %v1378 = vld [vmem:[#allocation3 + $0xc8] sm:$0x1]
        %v1379 = vld [vmem:[#allocation3 + $0xd0] sm:$0x1]
        %v1380 = vld [vmem:[#allocation3 + $0xd8] sm:$0x1]
        %v1381 = vlaneseq
        %v1382 = vshrl.u32 %v1381, 7
        %v1383 = vsub.s32 0, %v1382
        %v1384 = vrot.slane %v1369, %v1383
        %v1386 = vsel %vm493, %v1364, 0
        %1388 = vmatprep.subr.mxu0 0.0
        %1389 = vmatpush1.msra.mxu0 %v1365
        %1390 = vmatprep.subr.mxu0 0.0
        %1391 = vmatpush1.msra.mxu0 %v1366
        %1392 = vmatprep.subr.mxu0 0.0
        %1393 = vmatpush1.msra.mxu0 %v1367
        %1394 = vmatprep.subr.mxu0 0.0
        %1395 = vmatpush1.msra.mxu0 %v1368
        %1396 = vmatprep.subr.mxu0 0.0
        %1397 = vmatpush1.msra.mxu0 0.0
        %1398 = vmatprep.subr.mxu0 0.0
        %1399 = vmatpush1.msra.mxu0 0.0
        %1400 = vmatprep.subr.mxu0 0.0
        %1401 = vmatpush1.msra.mxu0 0.0
        %1402 = vmatprep.subr.mxu0 0.0
        %1403 = vmatpush1.msra.mxu0 0.0
        %1404 = vmatprep.subr.mxu0 0.0
        %1405 = vmatpush1.msra.mxu0 0.0
        %1406 = vmatprep.subr.mxu0 0.0
        %1407 = vmatpush1.msra.mxu0 0.0
        %1408 = vmatprep.subr.mxu0 0.0
        %1409 = vmatpush1.msra.mxu0 0.0
        %1410 = vmatprep.subr.mxu0 0.0
        %1411 = vmatpush1.msra.mxu0 0.0
        %1412 = vmatprep.subr.mxu0 0.0
        %1413 = vmatpush1.msra.mxu0 0.0
        %1414 = vmatprep.subr.mxu0 0.0
        %1415 = vmatpush1.msra.mxu0 0.0
        %1416 = vmatprep.subr.mxu0 0.0
        %1417 = vmatpush1.msra.mxu0 0.0
        %1418 = vmatprep.subr.mxu0 0.0
        %1419 = vmatpush1.msra.mxu0 0.0
        %1420 = vmatprep.subr.mxu0 0.0
        %1421 = vmatpush1.msra.mxu0 0.0
        %1422 = vmatprep.subr.mxu0 0.0
        %1423 = vmatpush1.msra.mxu0 0.0
        %1424 = vmatprep.subr.mxu0 0.0
        %1425 = vmatpush1.msra.mxu0 0.0
        %1426 = vmatprep.subr.mxu0 0.0
        %1427 = vmatpush1.msra.mxu0 0.0
        %1428 = vmatprep.subr.mxu0 0.0
        %1429 = vmatpush1.msra.mxu0 0.0
        %1430 = vmatprep.subr.mxu0 0.0
        %1431 = vmatpush1.msra.mxu0 0.0
        %1432 = vmatprep.subr.mxu0 0.0
        %1433 = vmatpush1.msra.mxu0 0.0
        %1434 = vmatprep.subr.mxu0 0.0
        %1435 = vmatpush1.msra.mxu0 0.0
        %1436 = vmatprep.subr.mxu0 0.0
        %1437 = vmatpush1.msra.mxu0 0.0
        %1438 = vmatprep.subr.mxu0 0.0
        %1439 = vmatpush1.msra.mxu0 0.0
        %1440 = vmatprep.subr.mxu0 0.0
        %1441 = vmatpush1.msra.mxu0 0.0
        %1442 = vmatprep.subr.mxu0 0.0
        %1443 = vmatpush1.msra.mxu0 0.0
        %1444 = vmatprep.subr.mxu0 0.0
        %1445 = vmatpush1.msra.mxu0 0.0
        %1446 = vmatprep.subr.mxu0 0.0
        %1447 = vmatpush1.msra.mxu0 0.0
        %1448 = vmatprep.subr.mxu0 0.0
        %1449 = vmatpush1.msra.mxu0 0.0
        %1450 = vmatprep.subr.mxu0 0.0
        %1451 = vmatpush1.msra.mxu0 0.0
        %1452 = vmatprep.mubr.f32.mxu0 0.0
        %1453 = vmatmul.mubr.f32.gmra.mrb[0].mxu0 %v1386
        %v1454 = vpop.f32.mrb[0].mxu0
        %v1455 = vadd.f32 %v1384, %v1454
        %v1456 = vpop.f32.mrb[0].mxu0
        %1457 = vdwg.mxu0
        %v1458 = vmax.f32 %v1455, 0.0
        %v1459 = vlaneseq
        %v1460 = vshrl.u32 %v1459, 7
        %v1461 = vsub.s32 0, %v1460
        %v1462 = vrot.slane %v1378, %v1461
        %vm1463 = vcmask 523264
        %v1465 = vsel %vm1463, %v1458, 0
        %1467 = vmatprep.subr.mxu0 0.0
        %1468 = vmatpush1.msra.mxu0 %v1370
        %1469 = vmatprep.subr.mxu0 0.0
        %1470 = vmatpush1.msra.mxu0 %v1371
        %1471 = vmatprep.subr.mxu0 0.0
        %1472 = vmatpush1.msra.mxu0 %v1372
        %1473 = vmatprep.subr.mxu0 0.0
        %1474 = vmatpush1.msra.mxu0 %v1373
        %1475 = vmatprep.subr.mxu0 0.0
        %1476 = vmatpush1.msra.mxu0 %v1374
        %1477 = vmatprep.subr.mxu0 0.0
        %1478 = vmatpush1.msra.mxu0 %v1375
        %1479 = vmatprep.subr.mxu0 0.0
        %1480 = vmatpush1.msra.mxu0 %v1376
        %1481 = vmatprep.subr.mxu0 0.0
        %1482 = vmatpush1.msra.mxu0 %v1377
        %1483 = vmatprep.subr.mxu0 0.0
        %1484 = vmatpush1.msra.mxu0 0.0
        %1485 = vmatprep.subr.mxu0 0.0
        %1486 = vmatpush1.msra.mxu0 0.0
        %1487 = vmatprep.subr.mxu0 0.0
        %1488 = vmatpush1.msra.mxu0 0.0
        %1489 = vmatprep.subr.mxu0 0.0
        %1490 = vmatpush1.msra.mxu0 0.0
        %1491 = vmatprep.subr.mxu0 0.0
        %1492 = vmatpush1.msra.mxu0 0.0
        %1493 = vmatprep.subr.mxu0 0.0
        %1494 = vmatpush1.msra.mxu0 0.0
        %1495 = vmatprep.subr.mxu0 0.0
        %1496 = vmatpush1.msra.mxu0 0.0
        %1497 = vmatprep.subr.mxu0 0.0
        %1498 = vmatpush1.msra.mxu0 0.0
        %1499 = vmatprep.subr.mxu0 0.0
        %1500 = vmatpush1.msra.mxu0 0.0
        %1501 = vmatprep.subr.mxu0 0.0
        %1502 = vmatpush1.msra.mxu0 0.0
        %1503 = vmatprep.subr.mxu0 0.0
        %1504 = vmatpush1.msra.mxu0 0.0
        %1505 = vmatprep.subr.mxu0 0.0
        %1506 = vmatpush1.msra.mxu0 0.0
        %1507 = vmatprep.subr.mxu0 0.0
        %1508 = vmatpush1.msra.mxu0 0.0
        %1509 = vmatprep.subr.mxu0 0.0
        %1510 = vmatpush1.msra.mxu0 0.0
        %1511 = vmatprep.subr.mxu0 0.0
        %1512 = vmatpush1.msra.mxu0 0.0
        %1513 = vmatprep.subr.mxu0 0.0
        %1514 = vmatpush1.msra.mxu0 0.0
        %1515 = vmatprep.subr.mxu0 0.0
        %1516 = vmatpush1.msra.mxu0 0.0
        %1517 = vmatprep.subr.mxu0 0.0
        %1518 = vmatpush1.msra.mxu0 0.0
        %1519 = vmatprep.subr.mxu0 0.0
        %1520 = vmatpush1.msra.mxu0 0.0
        %1521 = vmatprep.subr.mxu0 0.0
        %1522 = vmatpush1.msra.mxu0 0.0
        %1523 = vmatprep.subr.mxu0 0.0
        %1524 = vmatpush1.msra.mxu0 0.0
        %1525 = vmatprep.subr.mxu0 0.0
        %1526 = vmatpush1.msra.mxu0 0.0
        %1527 = vmatprep.subr.mxu0 0.0
        %1528 = vmatpush1.msra.mxu0 0.0
        %1529 = vmatprep.subr.mxu0 0.0
        %1530 = vmatpush1.msra.mxu0 0.0
        %1531 = vmatprep.mubr.f32.mxu0 0.0
        %1532 = vmatmul.mubr.f32.gmra.mrb[0].mxu0 %v1465
        %v1533 = vpop.f32.mrb[0].mxu0
        %v1534 = vadd.f32 %v1462, %v1533
        %v1535 = vpop.f32.mrb[0].mxu0
        %1536 = vdwg.mxu0
        %v1537 = vadd.f32 %v1534, %v1364
        %v1538 = vsel %vm1340, %v1537, 0.0
        %1539 = vadd.xlane.f32.xlu0 %v1538
        %v1540 = vpop.xlane.xlu0 %1539
        %v1541 = vmul.f32 %v1540, %v1344
        %v1542 = vsub.f32 %v1537, %v1541
        %v1543 = vmul.f32 %v1542, %v1542
        %v1544 = vsel %vm1340, %v1543, 0.0
        %1545 = vadd.xlane.f32.xlu0 %v1544
        %v1546 = vpop.xlane.xlu0 %1545
        %v1547 = vmul.f32 %v1546, %v1344
        %v1548 = vadd.f32 %v1547, 1e-05
        %v1549 = vrsqrt.pop %v1548
        %v1550 = vmul.f32 %v1542, %v1549
        %v1551 = vlaneseq
        %v1552 = vshrl.u32 %v1551, 7
        %v1553 = vsub.s32 0, %v1552
        %v1554 = vrot.slane %v1379, %v1553
        %v1555 = vmul.f32 %v1550, %v1554
        %v1556 = vlaneseq
        %v1557 = vshrl.u32 %v1556, 7
        %v1558 = vsub.s32 0, %v1557
        %v1559 = vrot.slane %v1380, %v1558
        %v1560 = vadd.f32 %v1555, %v1559
        %v1561 = vld [vmem:[#allocation3 + $0xe0] sm:$0xff]
        %v1562 = vld [vmem:[#allocation3 + $0xe8] sm:$0xff]
        %v1563 = vld [vmem:[#allocation3 + $0xf0] sm:$0xff]
        %v1564 = vld [vmem:[#allocation3 + $0xf8] sm:$0xff]
        %v1565 = vld [vmem:[#allocation3 + $0x100] sm:$0x1]
        %v1566 = vld [vmem:[#allocation3 + $0x108] sm:$0xff]
        %v1567 = vld [vmem:[#allocation3 + $0x110] sm:$0xff]
        %v1568 = vld [vmem:[#allocation3 + $0x118] sm:$0xff]
        %v1569 = vld [vmem:[#allocation3 + $0x120] sm:$0xff]
        %v1570 = vld [vmem:[#allocation3 + $0x128] sm:$0x1]
        %v1571 = vld [vmem:[#allocation3 + $0x130] sm:$0x1]
        %v1572 = vld [vmem:[#allocation3 + $0x138] sm:$0x1]
        %v1573 = vlaneseq
        %v1574 = vshrl.u32 %v1573, 7
        %v1575 = vsub.s32 0, %v1574
        %v1576 = vrot.slane %v1565, %v1575
        %v1578 = vsel %vm493, %v1560, 0
        %1580 = vmatprep.subr.mxu0 0.0
        %1581 = vmatpush1.msra.mxu0 %v1561
        %1582 = vmatprep.subr.mxu0 0.0
        %1583 = vmatpush1.msra.mxu0 %v1562
        %1584 = vmatprep.subr.mxu0 0.0
        %1585 = vmatpush1.msra.mxu0 %v1563
        %1586 = vmatprep.subr.mxu0 0.0
        %1587 = vmatpush1.msra.mxu0 %v1564
        %1588 = vmatprep.subr.mxu0 0.0
        %1589 = vmatpush1.msra.mxu0 0.0
        %1590 = vmatprep.subr.mxu0 0.0
        %1591 = vmatpush1.msra.mxu0 0.0
        %1592 = vmatprep.subr.mxu0 0.0
        %1593 = vmatpush1.msra.mxu0 0.0
        %1594 = vmatprep.subr.mxu0 0.0
        %1595 = vmatpush1.msra.mxu0 0.0
        %1596 = vmatprep.subr.mxu0 0.0
        %1597 = vmatpush1.msra.mxu0 0.0
        %1598 = vmatprep.subr.mxu0 0.0
        %1599 = vmatpush1.msra.mxu0 0.0
        %1600 = vmatprep.subr.mxu0 0.0
        %1601 = vmatpush1.msra.mxu0 0.0
        %1602 = vmatprep.subr.mxu0 0.0
        %1603 = vmatpush1.msra.mxu0 0.0
        %1604 = vmatprep.subr.mxu0 0.0
        %1605 = vmatpush1.msra.mxu0 0.0
        %1606 = vmatprep.subr.mxu0 0.0
        %1607 = vmatpush1.msra.mxu0 0.0
        %1608 = vmatprep.subr.mxu0 0.0
        %1609 = vmatpush1.msra.mxu0 0.0
        %1610 = vmatprep.subr.mxu0 0.0
        %1611 = vmatpush1.msra.mxu0 0.0
        %1612 = vmatprep.subr.mxu0 0.0
        %1613 = vmatpush1.msra.mxu0 0.0
        %1614 = vmatprep.subr.mxu0 0.0
        %1615 = vmatpush1.msra.mxu0 0.0
        %1616 = vmatprep.subr.mxu0 0.0
        %1617 = vmatpush1.msra.mxu0 0.0
        %1618 = vmatprep.subr.mxu0 0.0
        %1619 = vmatpush1.msra.mxu0 0.0
        %1620 = vmatprep.subr.mxu0 0.0
        %1621 = vmatpush1.msra.mxu0 0.0
        %1622 = vmatprep.subr.mxu0 0.0
        %1623 = vmatpush1.msra.mxu0 0.0
        %1624 = vmatprep.subr.mxu0 0.0
        %1625 = vmatpush1.msra.mxu0 0.0
        %1626 = vmatprep.subr.mxu0 0.0
        %1627 = vmatpush1.msra.mxu0 0.0
        %1628 = vmatprep.subr.mxu0 0.0
        %1629 = vmatpush1.msra.mxu0 0.0
        %1630 = vmatprep.subr.mxu0 0.0
        %1631 = vmatpush1.msra.mxu0 0.0
        %1632 = vmatprep.subr.mxu0 0.0
        %1633 = vmatpush1.msra.mxu0 0.0
        %1634 = vmatprep.subr.mxu0 0.0
        %1635 = vmatpush1.msra.mxu0 0.0
        %1636 = vmatprep.subr.mxu0 0.0
        %1637 = vmatpush1.msra.mxu0 0.0
        %1638 = vmatprep.subr.mxu0 0.0
        %1639 = vmatpush1.msra.mxu0 0.0
        %1640 = vmatprep.subr.mxu0 0.0
        %1641 = vmatpush1.msra.mxu0 0.0
        %1642 = vmatprep.subr.mxu0 0.0
        %1643 = vmatpush1.msra.mxu0 0.0
        %1644 = vmatprep.mubr.f32.mxu0 0.0
        %1645 = vmatmul.mubr.f32.gmra.mrb[0].mxu0 %v1578
        %v1646 = vpop.f32.mrb[0].mxu0
        %v1647 = vadd.f32 %v1576, %v1646
        %v1648 = vpop.f32.mrb[0].mxu0
        %1649 = vdwg.mxu0
        %1651 = vrot.lane.b32.xlu0 %v1647, 96
        %v1652 = vpop.permute.xlu0 %1651
        %v1653 = vsel %vm570, %v1647, 0
        %v1655 = vsel %vm570, %v1652, 0
        %1657 = vmatprep.subr.mxu0 0.0
        %1658 = vmatpush1.xpose.msra.mxu0 %v1655
        %1659 = vmatprep.subr.mxu0 0.0
        %1660 = vmatpush1.xpose.msra.mxu0 0.0
        %1661 = vmatprep.subr.mxu0 0.0
        %1662 = vmatpush1.xpose.msra.mxu0 0.0
        %1663 = vmatprep.subr.mxu0 0.0
        %1664 = vmatpush1.xpose.msra.mxu0 0.0
        %1665 = vmatprep.subr.mxu0 0.0
        %1666 = vmatpush1.xpose.msra.mxu0 0.0
        %1667 = vmatprep.subr.mxu0 0.0
        %1668 = vmatpush1.xpose.msra.mxu0 0.0
        %1669 = vmatprep.subr.mxu0 0.0
        %1670 = vmatpush1.xpose.msra.mxu0 0.0
        %1671 = vmatprep.subr.mxu0 0.0
        %1672 = vmatpush1.xpose.msra.mxu0 0.0
        %1673 = vmatprep.subr.mxu0 0.0
        %1674 = vmatpush1.xpose.msra.mxu0 0.0
        %1675 = vmatprep.subr.mxu0 0.0
        %1676 = vmatpush1.xpose.msra.mxu0 0.0
        %1677 = vmatprep.subr.mxu0 0.0
        %1678 = vmatpush1.xpose.msra.mxu0 0.0
        %1679 = vmatprep.subr.mxu0 0.0
        %1680 = vmatpush1.xpose.msra.mxu0 0.0
        %1681 = vmatprep.subr.mxu0 0.0
        %1682 = vmatpush1.xpose.msra.mxu0 0.0
        %1683 = vmatprep.subr.mxu0 0.0
        %1684 = vmatpush1.xpose.msra.mxu0 0.0
        %1685 = vmatprep.subr.mxu0 0.0
        %1686 = vmatpush1.xpose.msra.mxu0 0.0
        %1687 = vmatprep.subr.mxu0 0.0
        %1688 = vmatpush1.xpose.msra.mxu0 0.0
        %1689 = vmatprep.subr.mxu0 0.0
        %1690 = vmatpush1.xpose.msra.mxu0 0.0
        %1691 = vmatprep.subr.mxu0 0.0
        %1692 = vmatpush1.xpose.msra.mxu0 0.0
        %1693 = vmatprep.subr.mxu0 0.0
        %1694 = vmatpush1.xpose.msra.mxu0 0.0
        %1695 = vmatprep.subr.mxu0 0.0
        %1696 = vmatpush1.xpose.msra.mxu0 0.0
        %1697 = vmatprep.subr.mxu0 0.0
        %1698 = vmatpush1.xpose.msra.mxu0 0.0
        %1699 = vmatprep.subr.mxu0 0.0
        %1700 = vmatpush1.xpose.msra.mxu0 0.0
        %1701 = vmatprep.subr.mxu0 0.0
        %1702 = vmatpush1.xpose.msra.mxu0 0.0
        %1703 = vmatprep.subr.mxu0 0.0
        %1704 = vmatpush1.xpose.msra.mxu0 0.0
        %1705 = vmatprep.subr.mxu0 0.0
        %1706 = vmatpush1.xpose.msra.mxu0 0.0
        %1707 = vmatprep.subr.mxu0 0.0
        %1708 = vmatpush1.xpose.msra.mxu0 0.0
        %1709 = vmatprep.subr.mxu0 0.0
        %1710 = vmatpush1.xpose.msra.mxu0 0.0
        %1711 = vmatprep.subr.mxu0 0.0
        %1712 = vmatpush1.xpose.msra.mxu0 0.0
        %1713 = vmatprep.subr.mxu0 0.0
        %1714 = vmatpush1.xpose.msra.mxu0 0.0
        %1715 = vmatprep.subr.mxu0 0.0
        %1716 = vmatpush1.xpose.msra.mxu0 0.0
        %1717 = vmatprep.subr.mxu0 0.0
        %1718 = vmatpush1.xpose.msra.mxu0 0.0
        %1719 = vmatprep.subr.mxu0 0.0
        %1720 = vmatpush1.xpose.msra.mxu0 0.0
        %1721 = vmatprep.mubr.f32.mxu0 0.0
        %1722 = vmatmul.mubr.f32.gmra.mrb[0].mxu0 %v1653
        %v1723 = vpop.f32.mrb[0].mxu0
        %v1724 = vadd.f32 %v474, %v1723
        %v1725 = vpop.f32.mrb[0].mxu0
        %1726 = vdwg.mxu0
        %v1727 = vsel %vm645, %v1724, -inf
        %1728 = vmax.xlane.f32.xlu0 %v1727
        %v1729 = vpop.xlane.xlu0 %1728
        %v1730 = vsub.f32 %v1724, %v1729
        %v1731 = vmul.f32 %v1730, 1.442695
        %v1732 = vpow.pop %v1731
        %v1733 = vsel %vm645, %v1732, 0.0
        %1734 = vadd.xlane.f32.xlu0 %v1733
        %v1735 = vpop.xlane.xlu0 %1734
        %v1736 = vrcp.pop %v1735
        %v1737 = vmul.f32 %v1732, %v1736
        %s1738 = scalar_lea.vmem %s437, 32
        %1739 = vst.msk [vmem:[%s1738] sm:$0x1f] %vm645, %v1737
        %1740 = vrot.lane.b32.xlu0 %v1647, 64
        %v1741 = vpop.permute.xlu0 %1740
        %v1743 = vsel %vm660, %v1737, 0
        %v1745 = vsel %vm664, %v1741, 0
        %1747 = vmatprep.subr.mxu0 0.0
        %1748 = vmatpush1.msra.mxu0 %v1745
        %1749 = vmatprep.subr.mxu0 0.0
        %1750 = vmatpush1.msra.mxu0 0.0
        %1751 = vmatprep.subr.mxu0 0.0
        %1752 = vmatpush1.msra.mxu0 0.0
        %1753 = vmatprep.subr.mxu0 0.0
        %1754 = vmatpush1.msra.mxu0 0.0
        %1755 = vmatprep.subr.mxu0 0.0
        %1756 = vmatpush1.msra.mxu0 0.0
        %1757 = vmatprep.subr.mxu0 0.0
        %1758 = vmatpush1.msra.mxu0 0.0
        %1759 = vmatprep.subr.mxu0 0.0
        %1760 = vmatpush1.msra.mxu0 0.0
        %1761 = vmatprep.subr.mxu0 0.0
        %1762 = vmatpush1.msra.mxu0 0.0
        %1763 = vmatprep.subr.mxu0 0.0
        %1764 = vmatpush1.msra.mxu0 0.0
        %1765 = vmatprep.subr.mxu0 0.0
        %1766 = vmatpush1.msra.mxu0 0.0
        %1767 = vmatprep.subr.mxu0 0.0
        %1768 = vmatpush1.msra.mxu0 0.0
        %1769 = vmatprep.subr.mxu0 0.0
        %1770 = vmatpush1.msra.mxu0 0.0
        %1771 = vmatprep.subr.mxu0 0.0
        %1772 = vmatpush1.msra.mxu0 0.0
        %1773 = vmatprep.subr.mxu0 0.0
        %1774 = vmatpush1.msra.mxu0 0.0
        %1775 = vmatprep.subr.mxu0 0.0
        %1776 = vmatpush1.msra.mxu0 0.0
        %1777 = vmatprep.subr.mxu0 0.0
        %1778 = vmatpush1.msra.mxu0 0.0
        %1779 = vmatprep.subr.mxu0 0.0
        %1780 = vmatpush1.msra.mxu0 0.0
        %1781 = vmatprep.subr.mxu0 0.0
        %1782 = vmatpush1.msra.mxu0 0.0
        %1783 = vmatprep.subr.mxu0 0.0
        %1784 = vmatpush1.msra.mxu0 0.0
        %1785 = vmatprep.subr.mxu0 0.0
        %1786 = vmatpush1.msra.mxu0 0.0
        %1787 = vmatprep.subr.mxu0 0.0
        %1788 = vmatpush1.msra.mxu0 0.0
        %1789 = vmatprep.subr.mxu0 0.0
        %1790 = vmatpush1.msra.mxu0 0.0
        %1791 = vmatprep.subr.mxu0 0.0
        %1792 = vmatpush1.msra.mxu0 0.0
        %1793 = vmatprep.subr.mxu0 0.0
        %1794 = vmatpush1.msra.mxu0 0.0
        %1795 = vmatprep.subr.mxu0 0.0
        %1796 = vmatpush1.msra.mxu0 0.0
        %1797 = vmatprep.subr.mxu0 0.0
        %1798 = vmatpush1.msra.mxu0 0.0
        %1799 = vmatprep.subr.mxu0 0.0
        %1800 = vmatpush1.msra.mxu0 0.0
        %1801 = vmatprep.subr.mxu0 0.0
        %1802 = vmatpush1.msra.mxu0 0.0
        %1803 = vmatprep.subr.mxu0 0.0
        %1804 = vmatpush1.msra.mxu0 0.0
        %1805 = vmatprep.subr.mxu0 0.0
        %1806 = vmatpush1.msra.mxu0 0.0
        %1807 = vmatprep.subr.mxu0 0.0
        %1808 = vmatpush1.msra.mxu0 0.0
        %1809 = vmatprep.subr.mxu0 0.0
        %1810 = vmatpush1.msra.mxu0 0.0
        %1811 = vmatprep.mubr.f32.mxu0 0.0
        %1812 = vmatmul.mubr.f32.gmra.mrb[0].mxu0 %v1743
        %v1813 = vpop.f32.mrb[0].mxu0
        %v1814 = vadd.f32 0.0, %v1813
        %v1815 = vpop.f32.mrb[0].mxu0
        %1816 = vdwg.mxu0
        %1817 = vst.msk [vmem:[#allocation2] sm:$0x1f] %vm737, %v1814
        %1818 = vrot.lane.b32.xlu0 %v1647, 120
        %v1819 = vpop.permute.xlu0 %1818
        %1820 = vrot.lane.b32.xlu0 %v1647, 88
        %v1821 = vpop.permute.xlu0 %1820
        %v1822 = vsel %vm570, %v1819, 0
        %v1824 = vsel %vm570, %v1821, 0
        %1826 = vmatprep.subr.mxu0 0.0
        %1827 = vmatpush1.xpose.msra.mxu0 %v1824
        %1828 = vmatprep.subr.mxu0 0.0
        %1829 = vmatpush1.xpose.msra.mxu0 0.0
        %1830 = vmatprep.subr.mxu0 0.0
        %1831 = vmatpush1.xpose.msra.mxu0 0.0
        %1832 = vmatprep.subr.mxu0 0.0
        %1833 = vmatpush1.xpose.msra.mxu0 0.0
        %1834 = vmatprep.subr.mxu0 0.0
        %1835 = vmatpush1.xpose.msra.mxu0 0.0
        %1836 = vmatprep.subr.mxu0 0.0
        %1837 = vmatpush1.xpose.msra.mxu0 0.0
        %1838 = vmatprep.subr.mxu0 0.0
        %1839 = vmatpush1.xpose.msra.mxu0 0.0
        %1840 = vmatprep.subr.mxu0 0.0
        %1841 = vmatpush1.xpose.msra.mxu0 0.0
        %1842 = vmatprep.subr.mxu0 0.0
        %1843 = vmatpush1.xpose.msra.mxu0 0.0
        %1844 = vmatprep.subr.mxu0 0.0
        %1845 = vmatpush1.xpose.msra.mxu0 0.0
        %1846 = vmatprep.subr.mxu0 0.0
        %1847 = vmatpush1.xpose.msra.mxu0 0.0
        %1848 = vmatprep.subr.mxu0 0.0
        %1849 = vmatpush1.xpose.msra.mxu0 0.0
        %1850 = vmatprep.subr.mxu0 0.0
        %1851 = vmatpush1.xpose.msra.mxu0 0.0
        %1852 = vmatprep.subr.mxu0 0.0
        %1853 = vmatpush1.xpose.msra.mxu0 0.0
        %1854 = vmatprep.subr.mxu0 0.0
        %1855 = vmatpush1.xpose.msra.mxu0 0.0
        %1856 = vmatprep.subr.mxu0 0.0
        %1857 = vmatpush1.xpose.msra.mxu0 0.0
        %1858 = vmatprep.subr.mxu0 0.0
        %1859 = vmatpush1.xpose.msra.mxu0 0.0
        %1860 = vmatprep.subr.mxu0 0.0
        %1861 = vmatpush1.xpose.msra.mxu0 0.0
        %1862 = vmatprep.subr.mxu0 0.0
        %1863 = vmatpush1.xpose.msra.mxu0 0.0
        %1864 = vmatprep.subr.mxu0 0.0
        %1865 = vmatpush1.xpose.msra.mxu0 0.0
        %1866 = vmatprep.subr.mxu0 0.0
        %1867 = vmatpush1.xpose.msra.mxu0 0.0
        %1868 = vmatprep.subr.mxu0 0.0
        %1869 = vmatpush1.xpose.msra.mxu0 0.0
        %1870 = vmatprep.subr.mxu0 0.0
        %1871 = vmatpush1.xpose.msra.mxu0 0.0
        %1872 = vmatprep.subr.mxu0 0.0
        %1873 = vmatpush1.xpose.msra.mxu0 0.0
        %1874 = vmatprep.subr.mxu0 0.0
        %1875 = vmatpush1.xpose.msra.mxu0 0.0
        %1876 = vmatprep.subr.mxu0 0.0
        %1877 = vmatpush1.xpose.msra.mxu0 0.0
        %1878 = vmatprep.subr.mxu0 0.0
        %1879 = vmatpush1.xpose.msra.mxu0 0.0
        %1880 = vmatprep.subr.mxu0 0.0
        %1881 = vmatpush1.xpose.msra.mxu0 0.0
        %1882 = vmatprep.subr.mxu0 0.0
        %1883 = vmatpush1.xpose.msra.mxu0 0.0
        %1884 = vmatprep.subr.mxu0 0.0
        %1885 = vmatpush1.xpose.msra.mxu0 0.0
        %1886 = vmatprep.subr.mxu0 0.0
        %1887 = vmatpush1.xpose.msra.mxu0 0.0
        %1888 = vmatprep.subr.mxu0 0.0
        %1889 = vmatpush1.xpose.msra.mxu0 0.0
        %1890 = vmatprep.mubr.f32.mxu0 0.0
        %1891 = vmatmul.mubr.f32.gmra.mrb[0].mxu0 %v1822
        %v1892 = vpop.f32.mrb[0].mxu0
        %v1893 = vadd.f32 %v474, %v1892
        %v1894 = vpop.f32.mrb[0].mxu0
        %1895 = vdwg.mxu0
        %v1896 = vsel %vm645, %v1893, -inf
        %1897 = vmax.xlane.f32.xlu0 %v1896
        %v1898 = vpop.xlane.xlu0 %1897
        %v1899 = vsub.f32 %v1893, %v1898
        %v1900 = vmul.f32 %v1899, 1.442695
        %v1901 = vpow.pop %v1900
        %v1902 = vsel %vm645, %v1901, 0.0
        %1903 = vadd.xlane.f32.xlu0 %v1902
        %v1904 = vpop.xlane.xlu0 %1903
        %v1905 = vrcp.pop %v1904
        %v1906 = vmul.f32 %v1901, %v1905
        %s1907 = scalar_lea.vmem %s437, 40
        %1908 = vst.msk [vmem:[%s1907] sm:$0x1f] %vm645, %v1906
        %1909 = vrot.lane.b32.xlu0 %v1647, 56
        %v1910 = vpop.permute.xlu0 %1909
        %v1912 = vsel %vm660, %v1906, 0
        %v1914 = vsel %vm664, %v1910, 0
        %1916 = vmatprep.subr.mxu0 0.0
        %1917 = vmatpush1.msra.mxu0 %v1914
        %1918 = vmatprep.subr.mxu0 0.0
        %1919 = vmatpush1.msra.mxu0 0.0
        %1920 = vmatprep.subr.mxu0 0.0
        %1921 = vmatpush1.msra.mxu0 0.0
        %1922 = vmatprep.subr.mxu0 0.0
        %1923 = vmatpush1.msra.mxu0 0.0
        %1924 = vmatprep.subr.mxu0 0.0
        %1925 = vmatpush1.msra.mxu0 0.0
        %1926 = vmatprep.subr.mxu0 0.0
        %1927 = vmatpush1.msra.mxu0 0.0
        %1928 = vmatprep.subr.mxu0 0.0
        %1929 = vmatpush1.msra.mxu0 0.0
        %1930 = vmatprep.subr.mxu0 0.0
        %1931 = vmatpush1.msra.mxu0 0.0
        %1932 = vmatprep.subr.mxu0 0.0
        %1933 = vmatpush1.msra.mxu0 0.0
        %1934 = vmatprep.subr.mxu0 0.0
        %1935 = vmatpush1.msra.mxu0 0.0
        %1936 = vmatprep.subr.mxu0 0.0
        %1937 = vmatpush1.msra.mxu0 0.0
        %1938 = vmatprep.subr.mxu0 0.0
        %1939 = vmatpush1.msra.mxu0 0.0
        %1940 = vmatprep.subr.mxu0 0.0
        %1941 = vmatpush1.msra.mxu0 0.0
        %1942 = vmatprep.subr.mxu0 0.0
        %1943 = vmatpush1.msra.mxu0 0.0
        %1944 = vmatprep.subr.mxu0 0.0
        %1945 = vmatpush1.msra.mxu0 0.0
        %1946 = vmatprep.subr.mxu0 0.0
        %1947 = vmatpush1.msra.mxu0 0.0
        %1948 = vmatprep.subr.mxu0 0.0
        %1949 = vmatpush1.msra.mxu0 0.0
        %1950 = vmatprep.subr.mxu0 0.0
        %1951 = vmatpush1.msra.mxu0 0.0
        %1952 = vmatprep.subr.mxu0 0.0
        %1953 = vmatpush1.msra.mxu0 0.0
        %1954 = vmatprep.subr.mxu0 0.0
        %1955 = vmatpush1.msra.mxu0 0.0
        %1956 = vmatprep.subr.mxu0 0.0
        %1957 = vmatpush1.msra.mxu0 0.0
        %1958 = vmatprep.subr.mxu0 0.0
        %1959 = vmatpush1.msra.mxu0 0.0
        %1960 = vmatprep.subr.mxu0 0.0
        %1961 = vmatpush1.msra.mxu0 0.0
        %1962 = vmatprep.subr.mxu0 0.0
        %1963 = vmatpush1.msra.mxu0 0.0
        %1964 = vmatprep.subr.mxu0 0.0
        %1965 = vmatpush1.msra.mxu0 0.0
        %1966 = vmatprep.subr.mxu0 0.0
        %1967 = vmatpush1.msra.mxu0 0.0
        %1968 = vmatprep.subr.mxu0 0.0
        %1969 = vmatpush1.msra.mxu0 0.0
        %1970 = vmatprep.subr.mxu0 0.0
        %1971 = vmatpush1.msra.mxu0 0.0
        %1972 = vmatprep.subr.mxu0 0.0
        %1973 = vmatpush1.msra.mxu0 0.0
        %1974 = vmatprep.subr.mxu0 0.0
        %1975 = vmatpush1.msra.mxu0 0.0
        %1976 = vmatprep.subr.mxu0 0.0
        %1977 = vmatpush1.msra.mxu0 0.0
        %1978 = vmatprep.subr.mxu0 0.0
        %1979 = vmatpush1.msra.mxu0 0.0
        %1980 = vmatprep.mubr.f32.mxu0 0.0
        %1981 = vmatmul.mubr.f32.gmra.mrb[0].mxu0 %v1912
        %v1982 = vpop.f32.mrb[0].mxu0
        %v1983 = vadd.f32 0.0, %v1982
        %v1984 = vpop.f32.mrb[0].mxu0
        %1985 = vdwg.mxu0
        %1987 = vrot.lane.b32.xlu0 %v1983, 8
        %v1988 = vpop.permute.xlu0 %1987
        %1990 = vst.msk [vmem:[#allocation2] sm:$0x1f] %vm911, %v1988
        %1991 = vrot.lane.b32.xlu0 %v1647, 112
        %v1992 = vpop.permute.xlu0 %1991
        %1993 = vrot.lane.b32.xlu0 %v1647, 80
        %v1994 = vpop.permute.xlu0 %1993
        %v1995 = vsel %vm570, %v1992, 0
        %v1997 = vsel %vm570, %v1994, 0
        %1999 = vmatprep.subr.mxu0 0.0
        %2000 = vmatpush1.xpose.msra.mxu0 %v1997
        %2001 = vmatprep.subr.mxu0 0.0
        %2002 = vmatpush1.xpose.msra.mxu0 0.0
        %2003 = vmatprep.subr.mxu0 0.0
        %2004 = vmatpush1.xpose.msra.mxu0 0.0
        %2005 = vmatprep.subr.mxu0 0.0
        %2006 = vmatpush1.xpose.msra.mxu0 0.0
        %2007 = vmatprep.subr.mxu0 0.0
        %2008 = vmatpush1.xpose.msra.mxu0 0.0
        %2009 = vmatprep.subr.mxu0 0.0
        %2010 = vmatpush1.xpose.msra.mxu0 0.0
        %2011 = vmatprep.subr.mxu0 0.0
        %2012 = vmatpush1.xpose.msra.mxu0 0.0
        %2013 = vmatprep.subr.mxu0 0.0
        %2014 = vmatpush1.xpose.msra.mxu0 0.0
        %2015 = vmatprep.subr.mxu0 0.0
        %2016 = vmatpush1.xpose.msra.mxu0 0.0
        %2017 = vmatprep.subr.mxu0 0.0
        %2018 = vmatpush1.xpose.msra.mxu0 0.0
        %2019 = vmatprep.subr.mxu0 0.0
        %2020 = vmatpush1.xpose.msra.mxu0 0.0
        %2021 = vmatprep.subr.mxu0 0.0
        %2022 = vmatpush1.xpose.msra.mxu0 0.0
        %2023 = vmatprep.subr.mxu0 0.0
        %2024 = vmatpush1.xpose.msra.mxu0 0.0
        %2025 = vmatprep.subr.mxu0 0.0
        %2026 = vmatpush1.xpose.msra.mxu0 0.0
        %2027 = vmatprep.subr.mxu0 0.0
        %2028 = vmatpush1.xpose.msra.mxu0 0.0
        %2029 = vmatprep.subr.mxu0 0.0
        %2030 = vmatpush1.xpose.msra.mxu0 0.0
        %2031 = vmatprep.subr.mxu0 0.0
        %2032 = vmatpush1.xpose.msra.mxu0 0.0
        %2033 = vmatprep.subr.mxu0 0.0
        %2034 = vmatpush1.xpose.msra.mxu0 0.0
        %2035 = vmatprep.subr.mxu0 0.0
        %2036 = vmatpush1.xpose.msra.mxu0 0.0
        %2037 = vmatprep.subr.mxu0 0.0
        %2038 = vmatpush1.xpose.msra.mxu0 0.0
        %2039 = vmatprep.subr.mxu0 0.0
        %2040 = vmatpush1.xpose.msra.mxu0 0.0
        %2041 = vmatprep.subr.mxu0 0.0
        %2042 = vmatpush1.xpose.msra.mxu0 0.0
        %2043 = vmatprep.subr.mxu0 0.0
        %2044 = vmatpush1.xpose.msra.mxu0 0.0
        %2045 = vmatprep.subr.mxu0 0.0
        %2046 = vmatpush1.xpose.msra.mxu0 0.0
        %2047 = vmatprep.subr.mxu0 0.0
        %2048 = vmatpush1.xpose.msra.mxu0 0.0
        %2049 = vmatprep.subr.mxu0 0.0
        %2050 = vmatpush1.xpose.msra.mxu0 0.0
        %2051 = vmatprep.subr.mxu0 0.0
        %2052 = vmatpush1.xpose.msra.mxu0 0.0
        %2053 = vmatprep.subr.mxu0 0.0
        %2054 = vmatpush1.xpose.msra.mxu0 0.0
        %2055 = vmatprep.subr.mxu0 0.0
        %2056 = vmatpush1.xpose.msra.mxu0 0.0
        %2057 = vmatprep.subr.mxu0 0.0
        %2058 = vmatpush1.xpose.msra.mxu0 0.0
        %2059 = vmatprep.subr.mxu0 0.0
        %2060 = vmatpush1.xpose.msra.mxu0 0.0
        %2061 = vmatprep.subr.mxu0 0.0
        %2062 = vmatpush1.xpose.msra.mxu0 0.0
        %2063 = vmatprep.mubr.f32.mxu0 0.0
        %2064 = vmatmul.mubr.f32.gmra.mrb[0].mxu0 %v1995
        %v2065 = vpop.f32.mrb[0].mxu0
        %v2066 = vadd.f32 %v474, %v2065
        %v2067 = vpop.f32.mrb[0].mxu0
        %2068 = vdwg.mxu0
        %v2069 = vsel %vm645, %v2066, -inf
        %2070 = vmax.xlane.f32.xlu0 %v2069
        %v2071 = vpop.xlane.xlu0 %2070
        %v2072 = vsub.f32 %v2066, %v2071
        %v2073 = vmul.f32 %v2072, 1.442695
        %v2074 = vpow.pop %v2073
        %v2075 = vsel %vm645, %v2074, 0.0
        %2076 = vadd.xlane.f32.xlu0 %v2075
        %v2077 = vpop.xlane.xlu0 %2076
        %v2078 = vrcp.pop %v2077
        %v2079 = vmul.f32 %v2074, %v2078
        %s2080 = scalar_lea.vmem %s437, 48
        %2081 = vst.msk [vmem:[%s2080] sm:$0x1f] %vm645, %v2079
        %2082 = vrot.lane.b32.xlu0 %v1647, 48
        %v2083 = vpop.permute.xlu0 %2082
        %v2085 = vsel %vm660, %v2079, 0
        %v2087 = vsel %vm664, %v2083, 0
        %2089 = vmatprep.subr.mxu0 0.0
        %2090 = vmatpush1.msra.mxu0 %v2087
        %2091 = vmatprep.subr.mxu0 0.0
        %2092 = vmatpush1.msra.mxu0 0.0
        %2093 = vmatprep.subr.mxu0 0.0
        %2094 = vmatpush1.msra.mxu0 0.0
        %2095 = vmatprep.subr.mxu0 0.0
        %2096 = vmatpush1.msra.mxu0 0.0
        %2097 = vmatprep.subr.mxu0 0.0
        %2098 = vmatpush1.msra.mxu0 0.0
        %2099 = vmatprep.subr.mxu0 0.0
        %2100 = vmatpush1.msra.mxu0 0.0
        %2101 = vmatprep.subr.mxu0 0.0
        %2102 = vmatpush1.msra.mxu0 0.0
        %2103 = vmatprep.subr.mxu0 0.0
        %2104 = vmatpush1.msra.mxu0 0.0
        %2105 = vmatprep.subr.mxu0 0.0
        %2106 = vmatpush1.msra.mxu0 0.0
        %2107 = vmatprep.subr.mxu0 0.0
        %2108 = vmatpush1.msra.mxu0 0.0
        %2109 = vmatprep.subr.mxu0 0.0
        %2110 = vmatpush1.msra.mxu0 0.0
        %2111 = vmatprep.subr.mxu0 0.0
        %2112 = vmatpush1.msra.mxu0 0.0
        %2113 = vmatprep.subr.mxu0 0.0
        %2114 = vmatpush1.msra.mxu0 0.0
        %2115 = vmatprep.subr.mxu0 0.0
        %2116 = vmatpush1.msra.mxu0 0.0
        %2117 = vmatprep.subr.mxu0 0.0
        %2118 = vmatpush1.msra.mxu0 0.0
        %2119 = vmatprep.subr.mxu0 0.0
        %2120 = vmatpush1.msra.mxu0 0.0
        %2121 = vmatprep.subr.mxu0 0.0
        %2122 = vmatpush1.msra.mxu0 0.0
        %2123 = vmatprep.subr.mxu0 0.0
        %2124 = vmatpush1.msra.mxu0 0.0
        %2125 = vmatprep.subr.mxu0 0.0
        %2126 = vmatpush1.msra.mxu0 0.0
        %2127 = vmatprep.subr.mxu0 0.0
        %2128 = vmatpush1.msra.mxu0 0.0
        %2129 = vmatprep.subr.mxu0 0.0
        %2130 = vmatpush1.msra.mxu0 0.0
        %2131 = vmatprep.subr.mxu0 0.0
        %2132 = vmatpush1.msra.mxu0 0.0
        %2133 = vmatprep.subr.mxu0 0.0
        %2134 = vmatpush1.msra.mxu0 0.0
        %2135 = vmatprep.subr.mxu0 0.0
        %2136 = vmatpush1.msra.mxu0 0.0
        %2137 = vmatprep.subr.mxu0 0.0
        %2138 = vmatpush1.msra.mxu0 0.0
        %2139 = vmatprep.subr.mxu0 0.0
        %2140 = vmatpush1.msra.mxu0 0.0
        %2141 = vmatprep.subr.mxu0 0.0
        %2142 = vmatpush1.msra.mxu0 0.0
        %2143 = vmatprep.subr.mxu0 0.0
        %2144 = vmatpush1.msra.mxu0 0.0
        %2145 = vmatprep.subr.mxu0 0.0
        %2146 = vmatpush1.msra.mxu0 0.0
        %2147 = vmatprep.subr.mxu0 0.0
        %2148 = vmatpush1.msra.mxu0 0.0
        %2149 = vmatprep.subr.mxu0 0.0
        %2150 = vmatpush1.msra.mxu0 0.0
        %2151 = vmatprep.subr.mxu0 0.0
        %2152 = vmatpush1.msra.mxu0 0.0
        %2153 = vmatprep.mubr.f32.mxu0 0.0
        %2154 = vmatmul.mubr.f32.gmra.mrb[0].mxu0 %v2085
        %v2155 = vpop.f32.mrb[0].mxu0
        %v2156 = vadd.f32 0.0, %v2155
        %v2157 = vpop.f32.mrb[0].mxu0
        %2158 = vdwg.mxu0
        %2160 = vrot.lane.b32.xlu0 %v2156, 16
        %v2161 = vpop.permute.xlu0 %2160
        %2163 = vst.msk [vmem:[#allocation2] sm:$0x1f] %vm1085, %v2161
        %2164 = vrot.lane.b32.xlu0 %v1647, 104
        %v2165 = vpop.permute.xlu0 %2164
        %2166 = vrot.lane.b32.xlu0 %v1647, 72
        %v2167 = vpop.permute.xlu0 %2166
        %v2168 = vsel %vm570, %v2165, 0
        %v2170 = vsel %vm570, %v2167, 0
        %2172 = vmatprep.subr.mxu0 0.0
        %2173 = vmatpush1.xpose.msra.mxu0 %v2170
        %2174 = vmatprep.subr.mxu0 0.0
        %2175 = vmatpush1.xpose.msra.mxu0 0.0
        %2176 = vmatprep.subr.mxu0 0.0
        %2177 = vmatpush1.xpose.msra.mxu0 0.0
        %2178 = vmatprep.subr.mxu0 0.0
        %2179 = vmatpush1.xpose.msra.mxu0 0.0
        %2180 = vmatprep.subr.mxu0 0.0
        %2181 = vmatpush1.xpose.msra.mxu0 0.0
        %2182 = vmatprep.subr.mxu0 0.0
        %2183 = vmatpush1.xpose.msra.mxu0 0.0
        %2184 = vmatprep.subr.mxu0 0.0
        %2185 = vmatpush1.xpose.msra.mxu0 0.0
        %2186 = vmatprep.subr.mxu0 0.0
        %2187 = vmatpush1.xpose.msra.mxu0 0.0
        %2188 = vmatprep.subr.mxu0 0.0
        %2189 = vmatpush1.xpose.msra.mxu0 0.0
        %2190 = vmatprep.subr.mxu0 0.0
        %2191 = vmatpush1.xpose.msra.mxu0 0.0
        %2192 = vmatprep.subr.mxu0 0.0
        %2193 = vmatpush1.xpose.msra.mxu0 0.0
        %2194 = vmatprep.subr.mxu0 0.0
        %2195 = vmatpush1.xpose.msra.mxu0 0.0
        %2196 = vmatprep.subr.mxu0 0.0
        %2197 = vmatpush1.xpose.msra.mxu0 0.0
        %2198 = vmatprep.subr.mxu0 0.0
        %2199 = vmatpush1.xpose.msra.mxu0 0.0
        %2200 = vmatprep.subr.mxu0 0.0
        %2201 = vmatpush1.xpose.msra.mxu0 0.0
        %2202 = vmatprep.subr.mxu0 0.0
        %2203 = vmatpush1.xpose.msra.mxu0 0.0
        %2204 = vmatprep.subr.mxu0 0.0
        %2205 = vmatpush1.xpose.msra.mxu0 0.0
        %2206 = vmatprep.subr.mxu0 0.0
        %2207 = vmatpush1.xpose.msra.mxu0 0.0
        %2208 = vmatprep.subr.mxu0 0.0
        %2209 = vmatpush1.xpose.msra.mxu0 0.0
        %2210 = vmatprep.subr.mxu0 0.0
        %2211 = vmatpush1.xpose.msra.mxu0 0.0
        %2212 = vmatprep.subr.mxu0 0.0
        %2213 = vmatpush1.xpose.msra.mxu0 0.0
        %2214 = vmatprep.subr.mxu0 0.0
        %2215 = vmatpush1.xpose.msra.mxu0 0.0
        %2216 = vmatprep.subr.mxu0 0.0
        %2217 = vmatpush1.xpose.msra.mxu0 0.0
        %2218 = vmatprep.subr.mxu0 0.0
        %2219 = vmatpush1.xpose.msra.mxu0 0.0
        %2220 = vmatprep.subr.mxu0 0.0
        %2221 = vmatpush1.xpose.msra.mxu0 0.0
        %2222 = vmatprep.subr.mxu0 0.0
        %2223 = vmatpush1.xpose.msra.mxu0 0.0
        %2224 = vmatprep.subr.mxu0 0.0
        %2225 = vmatpush1.xpose.msra.mxu0 0.0
        %2226 = vmatprep.subr.mxu0 0.0
        %2227 = vmatpush1.xpose.msra.mxu0 0.0
        %2228 = vmatprep.subr.mxu0 0.0
        %2229 = vmatpush1.xpose.msra.mxu0 0.0
        %2230 = vmatprep.subr.mxu0 0.0
        %2231 = vmatpush1.xpose.msra.mxu0 0.0
        %2232 = vmatprep.subr.mxu0 0.0
        %2233 = vmatpush1.xpose.msra.mxu0 0.0
        %2234 = vmatprep.subr.mxu0 0.0
        %2235 = vmatpush1.xpose.msra.mxu0 0.0
        %2236 = vmatprep.mubr.f32.mxu0 0.0
        %2237 = vmatmul.mubr.f32.gmra.mrb[0].mxu0 %v2168
        %v2238 = vpop.f32.mrb[0].mxu0
        %v2239 = vadd.f32 %v474, %v2238
        %v2240 = vpop.f32.mrb[0].mxu0
        %2241 = vdwg.mxu0
        %v2242 = vsel %vm645, %v2239, -inf
        %2243 = vmax.xlane.f32.xlu0 %v2242
        %v2244 = vpop.xlane.xlu0 %2243
        %v2245 = vsub.f32 %v2239, %v2244
        %v2246 = vmul.f32 %v2245, 1.442695
        %v2247 = vpow.pop %v2246
        %v2248 = vsel %vm645, %v2247, 0.0
        %2249 = vadd.xlane.f32.xlu0 %v2248
        %v2250 = vpop.xlane.xlu0 %2249
        %v2251 = vrcp.pop %v2250
        %v2252 = vmul.f32 %v2247, %v2251
        %s2253 = scalar_lea.vmem %s437, 56
        %2254 = vst.msk [vmem:[%s2253] sm:$0x1f] %vm645, %v2252
        %2255 = vrot.lane.b32.xlu0 %v1647, 40
        %v2256 = vpop.permute.xlu0 %2255
        %v2258 = vsel %vm660, %v2252, 0
        %v2260 = vsel %vm664, %v2256, 0
        %2262 = vmatprep.subr.mxu0 0.0
        %2263 = vmatpush1.msra.mxu0 %v2260
        %2264 = vmatprep.subr.mxu0 0.0
        %2265 = vmatpush1.msra.mxu0 0.0
        %2266 = vmatprep.subr.mxu0 0.0
        %2267 = vmatpush1.msra.mxu0 0.0
        %2268 = vmatprep.subr.mxu0 0.0
        %2269 = vmatpush1.msra.mxu0 0.0
        %2270 = vmatprep.subr.mxu0 0.0
        %2271 = vmatpush1.msra.mxu0 0.0
        %2272 = vmatprep.subr.mxu0 0.0
        %2273 = vmatpush1.msra.mxu0 0.0
        %2274 = vmatprep.subr.mxu0 0.0
        %2275 = vmatpush1.msra.mxu0 0.0
        %2276 = vmatprep.subr.mxu0 0.0
        %2277 = vmatpush1.msra.mxu0 0.0
        %2278 = vmatprep.subr.mxu0 0.0
        %2279 = vmatpush1.msra.mxu0 0.0
        %2280 = vmatprep.subr.mxu0 0.0
        %2281 = vmatpush1.msra.mxu0 0.0
        %2282 = vmatprep.subr.mxu0 0.0
        %2283 = vmatpush1.msra.mxu0 0.0
        %2284 = vmatprep.subr.mxu0 0.0
        %2285 = vmatpush1.msra.mxu0 0.0
        %2286 = vmatprep.subr.mxu0 0.0
        %2287 = vmatpush1.msra.mxu0 0.0
        %2288 = vmatprep.subr.mxu0 0.0
        %2289 = vmatpush1.msra.mxu0 0.0
        %2290 = vmatprep.subr.mxu0 0.0
        %2291 = vmatpush1.msra.mxu0 0.0
        %2292 = vmatprep.subr.mxu0 0.0
        %2293 = vmatpush1.msra.mxu0 0.0
        %2294 = vmatprep.subr.mxu0 0.0
        %2295 = vmatpush1.msra.mxu0 0.0
        %2296 = vmatprep.subr.mxu0 0.0
        %2297 = vmatpush1.msra.mxu0 0.0
        %2298 = vmatprep.subr.mxu0 0.0
        %2299 = vmatpush1.msra.mxu0 0.0
        %2300 = vmatprep.subr.mxu0 0.0
        %2301 = vmatpush1.msra.mxu0 0.0
        %2302 = vmatprep.subr.mxu0 0.0
        %2303 = vmatpush1.msra.mxu0 0.0
        %2304 = vmatprep.subr.mxu0 0.0
        %2305 = vmatpush1.msra.mxu0 0.0
        %2306 = vmatprep.subr.mxu0 0.0
        %2307 = vmatpush1.msra.mxu0 0.0
        %2308 = vmatprep.subr.mxu0 0.0
        %2309 = vmatpush1.msra.mxu0 0.0
        %2310 = vmatprep.subr.mxu0 0.0
        %2311 = vmatpush1.msra.mxu0 0.0
        %2312 = vmatprep.subr.mxu0 0.0
        %2313 = vmatpush1.msra.mxu0 0.0
        %2314 = vmatprep.subr.mxu0 0.0
        %2315 = vmatpush1.msra.mxu0 0.0
        %2316 = vmatprep.subr.mxu0 0.0
        %2317 = vmatpush1.msra.mxu0 0.0
        %2318 = vmatprep.subr.mxu0 0.0
        %2319 = vmatpush1.msra.mxu0 0.0
        %2320 = vmatprep.subr.mxu0 0.0
        %2321 = vmatpush1.msra.mxu0 0.0
        %2322 = vmatprep.subr.mxu0 0.0
        %2323 = vmatpush1.msra.mxu0 0.0
        %2324 = vmatprep.subr.mxu0 0.0
        %2325 = vmatpush1.msra.mxu0 0.0
        %2326 = vmatprep.mubr.f32.mxu0 0.0
        %2327 = vmatmul.mubr.f32.gmra.mrb[0].mxu0 %v2258
        %v2328 = vpop.f32.mrb[0].mxu0
        %v2329 = vadd.f32 0.0, %v2328
        %v2330 = vpop.f32.mrb[0].mxu0
        %2331 = vdwg.mxu0
        %2333 = vrot.lane.b32.xlu0 %v2329, 24
        %v2334 = vpop.permute.xlu0 %2333
        %2336 = vst.msk [vmem:[#allocation2] sm:$0x1f] %vm1259, %v2334
        %v2337 = vld [vmem:[#allocation2] sm:$0x1f]
        %v2338 = vlaneseq
        %v2339 = vshrl.u32 %v2338, 7
        %v2340 = vsub.s32 0, %v2339
        %v2341 = vrot.slane %v1570, %v2340
        %v2343 = vsel %vm493, %v2337, 0
        %2345 = vmatprep.subr.mxu0 0.0
        %2346 = vmatpush1.msra.mxu0 %v1566
        %2347 = vmatprep.subr.mxu0 0.0
        %2348 = vmatpush1.msra.mxu0 %v1567
        %2349 = vmatprep.subr.mxu0 0.0
        %2350 = vmatpush1.msra.mxu0 %v1568
        %2351 = vmatprep.subr.mxu0 0.0
        %2352 = vmatpush1.msra.mxu0 %v1569
        %2353 = vmatprep.subr.mxu0 0.0
        %2354 = vmatpush1.msra.mxu0 0.0
        %2355 = vmatprep.subr.mxu0 0.0
        %2356 = vmatpush1.msra.mxu0 0.0
        %2357 = vmatprep.subr.mxu0 0.0
        %2358 = vmatpush1.msra.mxu0 0.0
        %2359 = vmatprep.subr.mxu0 0.0
        %2360 = vmatpush1.msra.mxu0 0.0
        %2361 = vmatprep.subr.mxu0 0.0
        %2362 = vmatpush1.msra.mxu0 0.0
        %2363 = vmatprep.subr.mxu0 0.0
        %2364 = vmatpush1.msra.mxu0 0.0
        %2365 = vmatprep.subr.mxu0 0.0
        %2366 = vmatpush1.msra.mxu0 0.0
        %2367 = vmatprep.subr.mxu0 0.0
        %2368 = vmatpush1.msra.mxu0 0.0
        %2369 = vmatprep.subr.mxu0 0.0
        %2370 = vmatpush1.msra.mxu0 0.0
        %2371 = vmatprep.subr.mxu0 0.0
        %2372 = vmatpush1.msra.mxu0 0.0
        %2373 = vmatprep.subr.mxu0 0.0
        %2374 = vmatpush1.msra.mxu0 0.0
        %2375 = vmatprep.subr.mxu0 0.0
        %2376 = vmatpush1.msra.mxu0 0.0
        %2377 = vmatprep.subr.mxu0 0.0
        %2378 = vmatpush1.msra.mxu0 0.0
        %2379 = vmatprep.subr.mxu0 0.0
        %2380 = vmatpush1.msra.mxu0 0.0
        %2381 = vmatprep.subr.mxu0 0.0
        %2382 = vmatpush1.msra.mxu0 0.0
        %2383 = vmatprep.subr.mxu0 0.0
        %2384 = vmatpush1.msra.mxu0 0.0
        %2385 = vmatprep.subr.mxu0 0.0
        %2386 = vmatpush1.msra.mxu0 0.0
        %2387 = vmatprep.subr.mxu0 0.0
        %2388 = vmatpush1.msra.mxu0 0.0
        %2389 = vmatprep.subr.mxu0 0.0
        %2390 = vmatpush1.msra.mxu0 0.0
        %2391 = vmatprep.subr.mxu0 0.0
        %2392 = vmatpush1.msra.mxu0 0.0
        %2393 = vmatprep.subr.mxu0 0.0
        %2394 = vmatpush1.msra.mxu0 0.0
        %2395 = vmatprep.subr.mxu0 0.0
        %2396 = vmatpush1.msra.mxu0 0.0
        %2397 = vmatprep.subr.mxu0 0.0
        %2398 = vmatpush1.msra.mxu0 0.0
        %2399 = vmatprep.subr.mxu0 0.0
        %2400 = vmatpush1.msra.mxu0 0.0
        %2401 = vmatprep.subr.mxu0 0.0
        %2402 = vmatpush1.msra.mxu0 0.0
        %2403 = vmatprep.subr.mxu0 0.0
        %2404 = vmatpush1.msra.mxu0 0.0
        %2405 = vmatprep.subr.mxu0 0.0
        %2406 = vmatpush1.msra.mxu0 0.0
        %2407 = vmatprep.subr.mxu0 0.0
        %2408 = vmatpush1.msra.mxu0 0.0
        %2409 = vmatprep.mubr.f32.mxu0 0.0
        %2410 = vmatmul.mubr.f32.gmra.mrb[0].mxu0 %v2343
        %v2411 = vpop.f32.mrb[0].mxu0
        %v2412 = vadd.f32 %v2341, %v2411
        %v2413 = vpop.f32.mrb[0].mxu0
        %2414 = vdwg.mxu0
        %v2415 = vadd.f32 %v2412, %v1560
        %v2416 = vsel %vm1340, %v2415, 0.0
        %2417 = vadd.xlane.f32.xlu0 %v2416
        %v2418 = vpop.xlane.xlu0 %2417
        %v2419 = vmul.f32 %v2418, %v1344
        %v2420 = vsub.f32 %v2415, %v2419
        %v2421 = vmul.f32 %v2420, %v2420
        %v2422 = vsel %vm1340, %v2421, 0.0
        %2423 = vadd.xlane.f32.xlu0 %v2422
        %v2424 = vpop.xlane.xlu0 %2423
        %v2425 = vmul.f32 %v2424, %v1344
        %v2426 = vadd.f32 %v2425, 1e-05
        %v2427 = vrsqrt.pop %v2426
        %v2428 = vmul.f32 %v2420, %v2427
        %v2429 = vlaneseq
        %v2430 = vshrl.u32 %v2429, 7
        %v2431 = vsub.s32 0, %v2430
        %v2432 = vrot.slane %v1571, %v2431
        %v2433 = vmul.f32 %v2428, %v2432
        %v2434 = vlaneseq
        %v2435 = vshrl.u32 %v2434, 7
        %v2436 = vsub.s32 0, %v2435
        %v2437 = vrot.slane %v1572, %v2436
        %v2438 = vadd.f32 %v2433, %v2437
        %v2439 = vld [vmem:[#allocation3 + $0x140] sm:$0xff]
        %v2440 = vld [vmem:[#allocation3 + $0x148] sm:$0xff]
        %v2441 = vld [vmem:[#allocation3 + $0x150] sm:$0xff]
        %v2442 = vld [vmem:[#allocation3 + $0x158] sm:$0xff]
        %v2443 = vld [vmem:[#allocation3 + $0x160] sm:$0x1]
        %v2444 = vld [vmem:[#allocation3 + $0x168] sm:$0xff]
        %v2445 = vld [vmem:[#allocation3 + $0x170] sm:$0xff]
        %v2446 = vld [vmem:[#allocation3 + $0x178] sm:$0xff]
        %v2447 = vld [vmem:[#allocation3 + $0x180] sm:$0xff]
        %v2448 = vld [vmem:[#allocation3 + $0x188] sm:$0xff]
        %v2449 = vld [vmem:[#allocation3 + $0x190] sm:$0xff]
        %v2450 = vld [vmem:[#allocation3 + $0x198] sm:$0xff]
        %v2451 = vld [vmem:[#allocation3 + $0x1a0] sm:$0xff]
        %v2452 = vld [vmem:[#allocation3 + $0x1a8] sm:$0x1]
        %v2453 = vld [vmem:[#allocation3 + $0x1b0] sm:$0x1]
        %v2454 = vld [vmem:[#allocation3 + $0x1b8] sm:$0x1]
        %v2455 = vlaneseq
        %v2456 = vshrl.u32 %v2455, 7
        %v2457 = vsub.s32 0, %v2456
        %v2458 = vrot.slane %v2443, %v2457
        %v2460 = vsel %vm493, %v2438, 0
        %2462 = vmatprep.subr.mxu0 0.0
        %2463 = vmatpush1.msra.mxu0 %v2439
        %2464 = vmatprep.subr.mxu0 0.0
        %2465 = vmatpush1.msra.mxu0 %v2440
        %2466 = vmatprep.subr.mxu0 0.0
        %2467 = vmatpush1.msra.mxu0 %v2441
        %2468 = vmatprep.subr.mxu0 0.0
        %2469 = vmatpush1.msra.mxu0 %v2442
        %2470 = vmatprep.subr.mxu0 0.0
        %2471 = vmatpush1.msra.mxu0 0.0
        %2472 = vmatprep.subr.mxu0 0.0
        %2473 = vmatpush1.msra.mxu0 0.0
        %2474 = vmatprep.subr.mxu0 0.0
        %2475 = vmatpush1.msra.mxu0 0.0
        %2476 = vmatprep.subr.mxu0 0.0
        %2477 = vmatpush1.msra.mxu0 0.0
        %2478 = vmatprep.subr.mxu0 0.0
        %2479 = vmatpush1.msra.mxu0 0.0
        %2480 = vmatprep.subr.mxu0 0.0
        %2481 = vmatpush1.msra.mxu0 0.0
        %2482 = vmatprep.subr.mxu0 0.0
        %2483 = vmatpush1.msra.mxu0 0.0
        %2484 = vmatprep.subr.mxu0 0.0
        %2485 = vmatpush1.msra.mxu0 0.0
        %2486 = vmatprep.subr.mxu0 0.0
        %2487 = vmatpush1.msra.mxu0 0.0
        %2488 = vmatprep.subr.mxu0 0.0
        %2489 = vmatpush1.msra.mxu0 0.0
        %2490 = vmatprep.subr.mxu0 0.0
        %2491 = vmatpush1.msra.mxu0 0.0
        %2492 = vmatprep.subr.mxu0 0.0
        %2493 = vmatpush1.msra.mxu0 0.0
        %2494 = vmatprep.subr.mxu0 0.0
        %2495 = vmatpush1.msra.mxu0 0.0
        %2496 = vmatprep.subr.mxu0 0.0
        %2497 = vmatpush1.msra.mxu0 0.0
        %2498 = vmatprep.subr.mxu0 0.0
        %2499 = vmatpush1.msra.mxu0 0.0
        %2500 = vmatprep.subr.mxu0 0.0
        %2501 = vmatpush1.msra.mxu0 0.0
        %2502 = vmatprep.subr.mxu0 0.0
        %2503 = vmatpush1.msra.mxu0 0.0
        %2504 = vmatprep.subr.mxu0 0.0
        %2505 = vmatpush1.msra.mxu0 0.0
        %2506 = vmatprep.subr.mxu0 0.0
        %2507 = vmatpush1.msra.mxu0 0.0
        %2508 = vmatprep.subr.mxu0 0.0
        %2509 = vmatpush1.msra.mxu0 0.0
        %2510 = vmatprep.subr.mxu0 0.0
        %2511 = vmatpush1.msra.mxu0 0.0
        %2512 = vmatprep.subr.mxu0 0.0
        %2513 = vmatpush1.msra.mxu0 0.0
        %2514 = vmatprep.subr.mxu0 0.0
        %2515 = vmatpush1.msra.mxu0 0.0
        %2516 = vmatprep.subr.mxu0 0.0
        %2517 = vmatpush1.msra.mxu0 0.0
        %2518 = vmatprep.subr.mxu0 0.0
        %2519 = vmatpush1.msra.mxu0 0.0
        %2520 = vmatprep.subr.mxu0 0.0
        %2521 = vmatpush1.msra.mxu0 0.0
        %2522 = vmatprep.subr.mxu0 0.0
        %2523 = vmatpush1.msra.mxu0 0.0
        %2524 = vmatprep.subr.mxu0 0.0
        %2525 = vmatpush1.msra.mxu0 0.0
        %2526 = vmatprep.mubr.f32.mxu0 0.0
        %2527 = vmatmul.mubr.f32.gmra.mrb[0].mxu0 %v2460
        %v2528 = vpop.f32.mrb[0].mxu0
        %v2529 = vadd.f32 %v2458, %v2528
        %v2530 = vpop.f32.mrb[0].mxu0
        %2531 = vdwg.mxu0
        %v2532 = vmax.f32 %v2529, 0.0
        %v2533 = vlaneseq
        %v2534 = vshrl.u32 %v2533, 7
        %v2535 = vsub.s32 0, %v2534
        %v2536 = vrot.slane %v2452, %v2535
        %v2538 = vsel %vm1463, %v2532, 0
        %2540 = vmatprep.subr.mxu0 0.0
        %2541 = vmatpush1.msra.mxu0 %v2444
        %2542 = vmatprep.subr.mxu0 0.0
        %2543 = vmatpush1.msra.mxu0 %v2445
        %2544 = vmatprep.subr.mxu0 0.0
        %2545 = vmatpush1.msra.mxu0 %v2446
        %2546 = vmatprep.subr.mxu0 0.0
        %2547 = vmatpush1.msra.mxu0 %v2447
        %2548 = vmatprep.subr.mxu0 0.0
        %2549 = vmatpush1.msra.mxu0 %v2448
        %2550 = vmatprep.subr.mxu0 0.0
        %2551 = vmatpush1.msra.mxu0 %v2449
        %2552 = vmatprep.subr.mxu0 0.0
        %2553 = vmatpush1.msra.mxu0 %v2450
        %2554 = vmatprep.subr.mxu0 0.0
        %2555 = vmatpush1.msra.mxu0 %v2451
        %2556 = vmatprep.subr.mxu0 0.0
        %2557 = vmatpush1.msra.mxu0 0.0
        %2558 = vmatprep.subr.mxu0 0.0
        %2559 = vmatpush1.msra.mxu0 0.0
        %2560 = vmatprep.subr.mxu0 0.0
        %2561 = vmatpush1.msra.mxu0 0.0
        %2562 = vmatprep.subr.mxu0 0.0
        %2563 = vmatpush1.msra.mxu0 0.0
        %2564 = vmatprep.subr.mxu0 0.0
        %2565 = vmatpush1.msra.mxu0 0.0
        %2566 = vmatprep.subr.mxu0 0.0
        %2567 = vmatpush1.msra.mxu0 0.0
        %2568 = vmatprep.subr.mxu0 0.0
        %2569 = vmatpush1.msra.mxu0 0.0
        %2570 = vmatprep.subr.mxu0 0.0
        %2571 = vmatpush1.msra.mxu0 0.0
        %2572 = vmatprep.subr.mxu0 0.0
        %2573 = vmatpush1.msra.mxu0 0.0
        %2574 = vmatprep.subr.mxu0 0.0
        %2575 = vmatpush1.msra.mxu0 0.0
        %2576 = vmatprep.subr.mxu0 0.0
        %2577 = vmatpush1.msra.mxu0 0.0
        %2578 = vmatprep.subr.mxu0 0.0
        %2579 = vmatpush1.msra.mxu0 0.0
        %2580 = vmatprep.subr.mxu0 0.0
        %2581 = vmatpush1.msra.mxu0 0.0
        %2582 = vmatprep.subr.mxu0 0.0
        %2583 = vmatpush1.msra.mxu0 0.0
        %2584 = vmatprep.subr.mxu0 0.0
        %2585 = vmatpush1.msra.mxu0 0.0
        %2586 = vmatprep.subr.mxu0 0.0
        %2587 = vmatpush1.msra.mxu0 0.0
        %2588 = vmatprep.subr.mxu0 0.0
        %2589 = vmatpush1.msra.mxu0 0.0
        %2590 = vmatprep.subr.mxu0 0.0
        %2591 = vmatpush1.msra.mxu0 0.0
        %2592 = vmatprep.subr.mxu0 0.0
        %2593 = vmatpush1.msra.mxu0 0.0
        %2594 = vmatprep.subr.mxu0 0.0
        %2595 = vmatpush1.msra.mxu0 0.0
        %2596 = vmatprep.subr.mxu0 0.0
        %2597 = vmatpush1.msra.mxu0 0.0
        %2598 = vmatprep.subr.mxu0 0.0
        %2599 = vmatpush1.msra.mxu0 0.0
        %2600 = vmatprep.subr.mxu0 0.0
        %2601 = vmatpush1.msra.mxu0 0.0
        %2602 = vmatprep.subr.mxu0 0.0
        %2603 = vmatpush1.msra.mxu0 0.0
        %2604 = vmatprep.mubr.f32.mxu0 0.0
        %2605 = vmatmul.mubr.f32.gmra.mrb[0].mxu0 %v2538
        %v2606 = vpop.f32.mrb[0].mxu0
        %v2607 = vadd.f32 %v2536, %v2606
        %v2608 = vpop.f32.mrb[0].mxu0
        %2609 = vdwg.mxu0
        %v2610 = vadd.f32 %v2607, %v2438
        %v2611 = vsel %vm1340, %v2610, 0.0
        %2612 = vadd.xlane.f32.xlu0 %v2611
        %v2613 = vpop.xlane.xlu0 %2612
        %v2614 = vmul.f32 %v2613, %v1344
        %v2615 = vsub.f32 %v2610, %v2614
        %v2616 = vmul.f32 %v2615, %v2615
        %v2617 = vsel %vm1340, %v2616, 0.0
        %2618 = vadd.xlane.f32.xlu0 %v2617
        %v2619 = vpop.xlane.xlu0 %2618
        %v2620 = vmul.f32 %v2619, %v1344
        %v2621 = vadd.f32 %v2620, 1e-05
        %v2622 = vrsqrt.pop %v2621
        %v2623 = vmul.f32 %v2615, %v2622
        %v2624 = vlaneseq
        %v2625 = vshrl.u32 %v2624, 7
        %v2626 = vsub.s32 0, %v2625
        %v2627 = vrot.slane %v2453, %v2626
        %v2628 = vmul.f32 %v2623, %v2627
        %v2629 = vlaneseq
        %v2630 = vshrl.u32 %v2629, 7
        %v2631 = vsub.s32 0, %v2630
        %v2632 = vrot.slane %v2454, %v2631
        %v2633 = vadd.f32 %v2628, %v2632
        %v2634 = vld [vmem:[#allocation3 + $0x1c0] sm:$0xff]
        %v2635 = vld [vmem:[#allocation3 + $0x1c8] sm:$0xff]
        %v2636 = vld [vmem:[#allocation3 + $0x1d0] sm:$0xff]
        %v2637 = vld [vmem:[#allocation3 + $0x1d8] sm:$0xff]
        %v2638 = vld [vmem:[#allocation3 + $0x1e0] sm:$0x1]
        %v2639 = vld [vmem:[#allocation3 + $0x1e8] sm:$0xff]
        %v2640 = vld [vmem:[#allocation3 + $0x1f0] sm:$0xff]
        %v2641 = vld [vmem:[#allocation3 + $0x1f8] sm:$0xff]
        %v2642 = vld [vmem:[#allocation3 + $0x200] sm:$0xff]
        %v2643 = vld [vmem:[#allocation3 + $0x208] sm:$0x1]
        %v2644 = vld [vmem:[#allocation3 + $0x210] sm:$0x1]
        %v2645 = vld [vmem:[#allocation3 + $0x218] sm:$0x1]
        %v2646 = vlaneseq
        %v2647 = vshrl.u32 %v2646, 7
        %v2648 = vsub.s32 0, %v2647
        %v2649 = vrot.slane %v2638, %v2648
        %v2651 = vsel %vm493, %v473, 0
        %2653 = vmatprep.subr.mxu0 0.0
        %2654 = vmatpush1.msra.mxu0 %v2634
        %2655 = vmatprep.subr.mxu0 0.0
        %2656 = vmatpush1.msra.mxu0 %v2635
        %2657 = vmatprep.subr.mxu0 0.0
        %2658 = vmatpush1.msra.mxu0 %v2636
        %2659 = vmatprep.subr.mxu0 0.0
        %2660 = vmatpush1.msra.mxu0 %v2637
        %2661 = vmatprep.subr.mxu0 0.0
        %2662 = vmatpush1.msra.mxu0 0.0
        %2663 = vmatprep.subr.mxu0 0.0
        %2664 = vmatpush1.msra.mxu0 0.0
        %2665 = vmatprep.subr.mxu0 0.0
        %2666 = vmatpush1.msra.mxu0 0.0
        %2667 = vmatprep.subr.mxu0 0.0
        %2668 = vmatpush1.msra.mxu0 0.0
        %2669 = vmatprep.subr.mxu0 0.0
        %2670 = vmatpush1.msra.mxu0 0.0
        %2671 = vmatprep.subr.mxu0 0.0
        %2672 = vmatpush1.msra.mxu0 0.0
        %2673 = vmatprep.subr.mxu0 0.0
        %2674 = vmatpush1.msra.mxu0 0.0
        %2675 = vmatprep.subr.mxu0 0.0
        %2676 = vmatpush1.msra.mxu0 0.0
        %2677 = vmatprep.subr.mxu0 0.0
        %2678 = vmatpush1.msra.mxu0 0.0
        %2679 = vmatprep.subr.mxu0 0.0
        %2680 = vmatpush1.msra.mxu0 0.0
        %2681 = vmatprep.subr.mxu0 0.0
        %2682 = vmatpush1.msra.mxu0 0.0
        %2683 = vmatprep.subr.mxu0 0.0
        %2684 = vmatpush1.msra.mxu0 0.0
        %2685 = vmatprep.subr.mxu0 0.0
        %2686 = vmatpush1.msra.mxu0 0.0
        %2687 = vmatprep.subr.mxu0 0.0
        %2688 = vmatpush1.msra.mxu0 0.0
        %2689 = vmatprep.subr.mxu0 0.0
        %2690 = vmatpush1.msra.mxu0 0.0
        %2691 = vmatprep.subr.mxu0 0.0
        %2692 = vmatpush1.msra.mxu0 0.0
        %2693 = vmatprep.subr.mxu0 0.0
        %2694 = vmatpush1.msra.mxu0 0.0
        %2695 = vmatprep.subr.mxu0 0.0
        %2696 = vmatpush1.msra.mxu0 0.0
        %2697 = vmatprep.subr.mxu0 0.0
        %2698 = vmatpush1.msra.mxu0 0.0
        %2699 = vmatprep.subr.mxu0 0.0
        %2700 = vmatpush1.msra.mxu0 0.0
        %2701 = vmatprep.subr.mxu0 0.0
        %2702 = vmatpush1.msra.mxu0 0.0
        %2703 = vmatprep.subr.mxu0 0.0
        %2704 = vmatpush1.msra.mxu0 0.0
        %2705 = vmatprep.subr.mxu0 0.0
        %2706 = vmatpush1.msra.mxu0 0.0
        %2707 = vmatprep.subr.mxu0 0.0
        %2708 = vmatpush1.msra.mxu0 0.0
        %2709 = vmatprep.subr.mxu0 0.0
        %2710 = vmatpush1.msra.mxu0 0.0
        %2711 = vmatprep.subr.mxu0 0.0
        %2712 = vmatpush1.msra.mxu0 0.0
        %2713 = vmatprep.subr.mxu0 0.0
        %2714 = vmatpush1.msra.mxu0 0.0
        %2715 = vmatprep.subr.mxu0 0.0
        %2716 = vmatpush1.msra.mxu0 0.0
        %2717 = vmatprep.mubr.f32.mxu0 0.0
        %2718 = vmatmul.mubr.f32.gmra.mrb[0].mxu0 %v2651
        %v2719 = vpop.f32.mrb[0].mxu0
        %v2720 = vadd.f32 %v2649, %v2719
        %v2721 = vpop.f32.mrb[0].mxu0
        %2722 = vdwg.mxu0
        %2724 = vrot.lane.b32.xlu0 %v2720, 96
        %v2725 = vpop.permute.xlu0 %2724
        %v2726 = vsel %vm570, %v2720, 0
        %v2728 = vsel %vm570, %v2725, 0
        %2730 = vmatprep.subr.mxu0 0.0
        %2731 = vmatpush1.xpose.msra.mxu0 %v2728
        %2732 = vmatprep.subr.mxu0 0.0
        %2733 = vmatpush1.xpose.msra.mxu0 0.0
        %2734 = vmatprep.subr.mxu0 0.0
        %2735 = vmatpush1.xpose.msra.mxu0 0.0
        %2736 = vmatprep.subr.mxu0 0.0
        %2737 = vmatpush1.xpose.msra.mxu0 0.0
        %2738 = vmatprep.subr.mxu0 0.0
        %2739 = vmatpush1.xpose.msra.mxu0 0.0
        %2740 = vmatprep.subr.mxu0 0.0
        %2741 = vmatpush1.xpose.msra.mxu0 0.0
        %2742 = vmatprep.subr.mxu0 0.0
        %2743 = vmatpush1.xpose.msra.mxu0 0.0
        %2744 = vmatprep.subr.mxu0 0.0
        %2745 = vmatpush1.xpose.msra.mxu0 0.0
        %2746 = vmatprep.subr.mxu0 0.0
        %2747 = vmatpush1.xpose.msra.mxu0 0.0
        %2748 = vmatprep.subr.mxu0 0.0
        %2749 = vmatpush1.xpose.msra.mxu0 0.0
        %2750 = vmatprep.subr.mxu0 0.0
        %2751 = vmatpush1.xpose.msra.mxu0 0.0
        %2752 = vmatprep.subr.mxu0 0.0
        %2753 = vmatpush1.xpose.msra.mxu0 0.0
        %2754 = vmatprep.subr.mxu0 0.0
        %2755 = vmatpush1.xpose.msra.mxu0 0.0
        %2756 = vmatprep.subr.mxu0 0.0
        %2757 = vmatpush1.xpose.msra.mxu0 0.0
        %2758 = vmatprep.subr.mxu0 0.0
        %2759 = vmatpush1.xpose.msra.mxu0 0.0
        %2760 = vmatprep.subr.mxu0 0.0
        %2761 = vmatpush1.xpose.msra.mxu0 0.0
        %2762 = vmatprep.subr.mxu0 0.0
        %2763 = vmatpush1.xpose.msra.mxu0 0.0
        %2764 = vmatprep.subr.mxu0 0.0
        %2765 = vmatpush1.xpose.msra.mxu0 0.0
        %2766 = vmatprep.subr.mxu0 0.0
        %2767 = vmatpush1.xpose.msra.mxu0 0.0
        %2768 = vmatprep.subr.mxu0 0.0
        %2769 = vmatpush1.xpose.msra.mxu0 0.0
        %2770 = vmatprep.subr.mxu0 0.0
        %2771 = vmatpush1.xpose.msra.mxu0 0.0
        %2772 = vmatprep.subr.mxu0 0.0
        %2773 = vmatpush1.xpose.msra.mxu0 0.0
        %2774 = vmatprep.subr.mxu0 0.0
        %2775 = vmatpush1.xpose.msra.mxu0 0.0
        %2776 = vmatprep.subr.mxu0 0.0
        %2777 = vmatpush1.xpose.msra.mxu0 0.0
        %2778 = vmatprep.subr.mxu0 0.0
        %2779 = vmatpush1.xpose.msra.mxu0 0.0
        %2780 = vmatprep.subr.mxu0 0.0
        %2781 = vmatpush1.xpose.msra.mxu0 0.0
        %2782 = vmatprep.subr.mxu0 0.0
        %2783 = vmatpush1.xpose.msra.mxu0 0.0
        %2784 = vmatprep.subr.mxu0 0.0
        %2785 = vmatpush1.xpose.msra.mxu0 0.0
        %2786 = vmatprep.subr.mxu0 0.0
        %2787 = vmatpush1.xpose.msra.mxu0 0.0
        %2788 = vmatprep.subr.mxu0 0.0
        %2789 = vmatpush1.xpose.msra.mxu0 0.0
        %2790 = vmatprep.subr.mxu0 0.0
        %2791 = vmatpush1.xpose.msra.mxu0 0.0
        %2792 = vmatprep.subr.mxu0 0.0
        %2793 = vmatpush1.xpose.msra.mxu0 0.0
        %2794 = vmatprep.mubr.f32.mxu0 0.0
        %2795 = vmatmul.mubr.f32.gmra.mrb[0].mxu0 %v2726
        %v2796 = vpop.f32.mrb[0].mxu0
        %v2797 = vadd.f32 %v475, %v2796
        %v2798 = vpop.f32.mrb[0].mxu0
        %2799 = vdwg.mxu0
        %v2800 = vsel %vm645, %v2797, -inf
        %2801 = vmax.xlane.f32.xlu0 %v2800
        %v2802 = vpop.xlane.xlu0 %2801
        %v2803 = vsub.f32 %v2797, %v2802
        %v2804 = vmul.f32 %v2803, 1.442695
        %v2805 = vpow.pop %v2804
        %v2806 = vsel %vm645, %v2805, 0.0
        %2807 = vadd.xlane.f32.xlu0 %v2806
        %v2808 = vpop.xlane.xlu0 %2807
        %v2809 = vrcp.pop %v2808
        %v2810 = vmul.f32 %v2805, %v2809
        %2811 = vst.msk [vmem:[%s442] sm:$0x1f] %vm645, %v2810
        %2812 = vrot.lane.b32.xlu0 %v2720, 64
        %v2813 = vpop.permute.xlu0 %2812
        %v2815 = vsel %vm660, %v2810, 0
        %v2817 = vsel %vm664, %v2813, 0
        %2819 = vmatprep.subr.mxu0 0.0
        %2820 = vmatpush1.msra.mxu0 %v2817
        %2821 = vmatprep.subr.mxu0 0.0
        %2822 = vmatpush1.msra.mxu0 0.0
        %2823 = vmatprep.subr.mxu0 0.0
        %2824 = vmatpush1.msra.mxu0 0.0
        %2825 = vmatprep.subr.mxu0 0.0
        %2826 = vmatpush1.msra.mxu0 0.0
        %2827 = vmatprep.subr.mxu0 0.0
        %2828 = vmatpush1.msra.mxu0 0.0
        %2829 = vmatprep.subr.mxu0 0.0
        %2830 = vmatpush1.msra.mxu0 0.0
        %2831 = vmatprep.subr.mxu0 0.0
        %2832 = vmatpush1.msra.mxu0 0.0
        %2833 = vmatprep.subr.mxu0 0.0
        %2834 = vmatpush1.msra.mxu0 0.0
        %2835 = vmatprep.subr.mxu0 0.0
        %2836 = vmatpush1.msra.mxu0 0.0
        %2837 = vmatprep.subr.mxu0 0.0
        %2838 = vmatpush1.msra.mxu0 0.0
        %2839 = vmatprep.subr.mxu0 0.0
        %2840 = vmatpush1.msra.mxu0 0.0
        %2841 = vmatprep.subr.mxu0 0.0
        %2842 = vmatpush1.msra.mxu0 0.0
        %2843 = vmatprep.subr.mxu0 0.0
        %2844 = vmatpush1.msra.mxu0 0.0
        %2845 = vmatprep.subr.mxu0 0.0
        %2846 = vmatpush1.msra.mxu0 0.0
        %2847 = vmatprep.subr.mxu0 0.0
        %2848 = vmatpush1.msra.mxu0 0.0
        %2849 = vmatprep.subr.mxu0 0.0
        %2850 = vmatpush1.msra.mxu0 0.0
        %2851 = vmatprep.subr.mxu0 0.0
        %2852 = vmatpush1.msra.mxu0 0.0
        %2853 = vmatprep.subr.mxu0 0.0
        %2854 = vmatpush1.msra.mxu0 0.0
        %2855 = vmatprep.subr.mxu0 0.0
        %2856 = vmatpush1.msra.mxu0 0.0
        %2857 = vmatprep.subr.mxu0 0.0
        %2858 = vmatpush1.msra.mxu0 0.0
        %2859 = vmatprep.subr.mxu0 0.0
        %2860 = vmatpush1.msra.mxu0 0.0
        %2861 = vmatprep.subr.mxu0 0.0
        %2862 = vmatpush1.msra.mxu0 0.0
        %2863 = vmatprep.subr.mxu0 0.0
        %2864 = vmatpush1.msra.mxu0 0.0
        %2865 = vmatprep.subr.mxu0 0.0
        %2866 = vmatpush1.msra.mxu0 0.0
        %2867 = vmatprep.subr.mxu0 0.0
        %2868 = vmatpush1.msra.mxu0 0.0
        %2869 = vmatprep.subr.mxu0 0.0
        %2870 = vmatpush1.msra.mxu0 0.0
        %2871 = vmatprep.subr.mxu0 0.0
        %2872 = vmatpush1.msra.mxu0 0.0
        %2873 = vmatprep.subr.mxu0 0.0
        %2874 = vmatpush1.msra.mxu0 0.0
        %2875 = vmatprep.subr.mxu0 0.0
        %2876 = vmatpush1.msra.mxu0 0.0
        %2877 = vmatprep.subr.mxu0 0.0
        %2878 = vmatpush1.msra.mxu0 0.0
        %2879 = vmatprep.subr.mxu0 0.0
        %2880 = vmatpush1.msra.mxu0 0.0
        %2881 = vmatprep.subr.mxu0 0.0
        %2882 = vmatpush1.msra.mxu0 0.0
        %2883 = vmatprep.mubr.f32.mxu0 0.0
        %2884 = vmatmul.mubr.f32.gmra.mrb[0].mxu0 %v2815
        %v2885 = vpop.f32.mrb[0].mxu0
        %v2886 = vadd.f32 0.0, %v2885
        %v2887 = vpop.f32.mrb[0].mxu0
        %2888 = vdwg.mxu0
        %2889 = vst.msk [vmem:[#allocation2] sm:$0x1f] %vm737, %v2886
        %2890 = vrot.lane.b32.xlu0 %v2720, 120
        %v2891 = vpop.permute.xlu0 %2890
        %2892 = vrot.lane.b32.xlu0 %v2720, 88
        %v2893 = vpop.permute.xlu0 %2892
        %v2894 = vsel %vm570, %v2891, 0
        %v2896 = vsel %vm570, %v2893, 0
        %2898 = vmatprep.subr.mxu0 0.0
        %2899 = vmatpush1.xpose.msra.mxu0 %v2896
        %2900 = vmatprep.subr.mxu0 0.0
        %2901 = vmatpush1.xpose.msra.mxu0 0.0
        %2902 = vmatprep.subr.mxu0 0.0
        %2903 = vmatpush1.xpose.msra.mxu0 0.0
        %2904 = vmatprep.subr.mxu0 0.0
        %2905 = vmatpush1.xpose.msra.mxu0 0.0
        %2906 = vmatprep.subr.mxu0 0.0
        %2907 = vmatpush1.xpose.msra.mxu0 0.0
        %2908 = vmatprep.subr.mxu0 0.0
        %2909 = vmatpush1.xpose.msra.mxu0 0.0
        %2910 = vmatprep.subr.mxu0 0.0
        %2911 = vmatpush1.xpose.msra.mxu0 0.0
        %2912 = vmatprep.subr.mxu0 0.0
        %2913 = vmatpush1.xpose.msra.mxu0 0.0
        %2914 = vmatprep.subr.mxu0 0.0
        %2915 = vmatpush1.xpose.msra.mxu0 0.0
        %2916 = vmatprep.subr.mxu0 0.0
        %2917 = vmatpush1.xpose.msra.mxu0 0.0
        %2918 = vmatprep.subr.mxu0 0.0
        %2919 = vmatpush1.xpose.msra.mxu0 0.0
        %2920 = vmatprep.subr.mxu0 0.0
        %2921 = vmatpush1.xpose.msra.mxu0 0.0
        %2922 = vmatprep.subr.mxu0 0.0
        %2923 = vmatpush1.xpose.msra.mxu0 0.0
        %2924 = vmatprep.subr.mxu0 0.0
        %2925 = vmatpush1.xpose.msra.mxu0 0.0
        %2926 = vmatprep.subr.mxu0 0.0
        %2927 = vmatpush1.xpose.msra.mxu0 0.0
        %2928 = vmatprep.subr.mxu0 0.0
        %2929 = vmatpush1.xpose.msra.mxu0 0.0
        %2930 = vmatprep.subr.mxu0 0.0
        %2931 = vmatpush1.xpose.msra.mxu0 0.0
        %2932 = vmatprep.subr.mxu0 0.0
        %2933 = vmatpush1.xpose.msra.mxu0 0.0
        %2934 = vmatprep.subr.mxu0 0.0
        %2935 = vmatpush1.xpose.msra.mxu0 0.0
        %2936 = vmatprep.subr.mxu0 0.0
        %2937 = vmatpush1.xpose.msra.mxu0 0.0
        %2938 = vmatprep.subr.mxu0 0.0
        %2939 = vmatpush1.xpose.msra.mxu0 0.0
        %2940 = vmatprep.subr.mxu0 0.0
        %2941 = vmatpush1.xpose.msra.mxu0 0.0
        %2942 = vmatprep.subr.mxu0 0.0
        %2943 = vmatpush1.xpose.msra.mxu0 0.0
        %2944 = vmatprep.subr.mxu0 0.0
        %2945 = vmatpush1.xpose.msra.mxu0 0.0
        %2946 = vmatprep.subr.mxu0 0.0
        %2947 = vmatpush1.xpose.msra.mxu0 0.0
        %2948 = vmatprep.subr.mxu0 0.0
        %2949 = vmatpush1.xpose.msra.mxu0 0.0
        %2950 = vmatprep.subr.mxu0 0.0
        %2951 = vmatpush1.xpose.msra.mxu0 0.0
        %2952 = vmatprep.subr.mxu0 0.0
        %2953 = vmatpush1.xpose.msra.mxu0 0.0
        %2954 = vmatprep.subr.mxu0 0.0
        %2955 = vmatpush1.xpose.msra.mxu0 0.0
        %2956 = vmatprep.subr.mxu0 0.0
        %2957 = vmatpush1.xpose.msra.mxu0 0.0
        %2958 = vmatprep.subr.mxu0 0.0
        %2959 = vmatpush1.xpose.msra.mxu0 0.0
        %2960 = vmatprep.subr.mxu0 0.0
        %2961 = vmatpush1.xpose.msra.mxu0 0.0
        %2962 = vmatprep.mubr.f32.mxu0 0.0
        %2963 = vmatmul.mubr.f32.gmra.mrb[0].mxu0 %v2894
        %v2964 = vpop.f32.mrb[0].mxu0
        %v2965 = vadd.f32 %v475, %v2964
        %v2966 = vpop.f32.mrb[0].mxu0
        %2967 = vdwg.mxu0
        %v2968 = vsel %vm645, %v2965, -inf
        %2969 = vmax.xlane.f32.xlu0 %v2968
        %v2970 = vpop.xlane.xlu0 %2969
        %v2971 = vsub.f32 %v2965, %v2970
        %v2972 = vmul.f32 %v2971, 1.442695
        %v2973 = vpow.pop %v2972
        %v2974 = vsel %vm645, %v2973, 0.0
        %2975 = vadd.xlane.f32.xlu0 %v2974
        %v2976 = vpop.xlane.xlu0 %2975
        %v2977 = vrcp.pop %v2976
        %v2978 = vmul.f32 %v2973, %v2977
        %s2979 = scalar_lea.vmem %s442, 8
        %2980 = vst.msk [vmem:[%s2979] sm:$0x1f] %vm645, %v2978
        %2981 = vrot.lane.b32.xlu0 %v2720, 56
        %v2982 = vpop.permute.xlu0 %2981
        %v2984 = vsel %vm660, %v2978, 0
        %v2986 = vsel %vm664, %v2982, 0
        %2988 = vmatprep.subr.mxu0 0.0
        %2989 = vmatpush1.msra.mxu0 %v2986
        %2990 = vmatprep.subr.mxu0 0.0
        %2991 = vmatpush1.msra.mxu0 0.0
        %2992 = vmatprep.subr.mxu0 0.0
        %2993 = vmatpush1.msra.mxu0 0.0
        %2994 = vmatprep.subr.mxu0 0.0
        %2995 = vmatpush1.msra.mxu0 0.0
        %2996 = vmatprep.subr.mxu0 0.0
        %2997 = vmatpush1.msra.mxu0 0.0
        %2998 = vmatprep.subr.mxu0 0.0
        %2999 = vmatpush1.msra.mxu0 0.0
        %3000 = vmatprep.subr.mxu0 0.0
        %3001 = vmatpush1.msra.mxu0 0.0
        %3002 = vmatprep.subr.mxu0 0.0
        %3003 = vmatpush1.msra.mxu0 0.0
        %3004 = vmatprep.subr.mxu0 0.0
        %3005 = vmatpush1.msra.mxu0 0.0
        %3006 = vmatprep.subr.mxu0 0.0
        %3007 = vmatpush1.msra.mxu0 0.0
        %3008 = vmatprep.subr.mxu0 0.0
        %3009 = vmatpush1.msra.mxu0 0.0
        %3010 = vmatprep.subr.mxu0 0.0
        %3011 = vmatpush1.msra.mxu0 0.0
        %3012 = vmatprep.subr.mxu0 0.0
        %3013 = vmatpush1.msra.mxu0 0.0
        %3014 = vmatprep.subr.mxu0 0.0
        %3015 = vmatpush1.msra.mxu0 0.0
        %3016 = vmatprep.subr.mxu0 0.0
        %3017 = vmatpush1.msra.mxu0 0.0
        %3018 = vmatprep.subr.mxu0 0.0
        %3019 = vmatpush1.msra.mxu0 0.0
        %3020 = vmatprep.subr.mxu0 0.0
        %3021 = vmatpush1.msra.mxu0 0.0
        %3022 = vmatprep.subr.mxu0 0.0
        %3023 = vmatpush1.msra.mxu0 0.0
        %3024 = vmatprep.subr.mxu0 0.0
        %3025 = vmatpush1.msra.mxu0 0.0
        %3026 = vmatprep.subr.mxu0 0.0
        %3027 = vmatpush1.msra.mxu0 0.0
        %3028 = vmatprep.subr.mxu0 0.0
        %3029 = vmatpush1.msra.mxu0 0.0
        %3030 = vmatprep.subr.mxu0 0.0
        %3031 = vmatpush1.msra.mxu0 0.0
        %3032 = vmatprep.subr.mxu0 0.0
        %3033 = vmatpush1.msra.mxu0 0.0
        %3034 = vmatprep.subr.mxu0 0.0
        %3035 = vmatpush1.msra.mxu0 0.0
        %3036 = vmatprep.subr.mxu0 0.0
        %3037 = vmatpush1.msra.mxu0 0.0
        %3038 = vmatprep.subr.mxu0 0.0
        %3039 = vmatpush1.msra.mxu0 0.0
        %3040 = vmatprep.subr.mxu0 0.0
        %3041 = vmatpush1.msra.mxu0 0.0
        %3042 = vmatprep.subr.mxu0 0.0
        %3043 = vmatpush1.msra.mxu0 0.0
        %3044 = vmatprep.subr.mxu0 0.0
        %3045 = vmatpush1.msra.mxu0 0.0
        %3046 = vmatprep.subr.mxu0 0.0
        %3047 = vmatpush1.msra.mxu0 0.0
        %3048 = vmatprep.subr.mxu0 0.0
        %3049 = vmatpush1.msra.mxu0 0.0
        %3050 = vmatprep.subr.mxu0 0.0
        %3051 = vmatpush1.msra.mxu0 0.0
        %3052 = vmatprep.mubr.f32.mxu0 0.0
        %3053 = vmatmul.mubr.f32.gmra.mrb[0].mxu0 %v2984
        %v3054 = vpop.f32.mrb[0].mxu0
        %v3055 = vadd.f32 0.0, %v3054
        %v3056 = vpop.f32.mrb[0].mxu0
        %3057 = vdwg.mxu0
        %3059 = vrot.lane.b32.xlu0 %v3055, 8
        %v3060 = vpop.permute.xlu0 %3059
        %3062 = vst.msk [vmem:[#allocation2] sm:$0x1f] %vm911, %v3060
        %3063 = vrot.lane.b32.xlu0 %v2720, 112
        %v3064 = vpop.permute.xlu0 %3063
        %3065 = vrot.lane.b32.xlu0 %v2720, 80
        %v3066 = vpop.permute.xlu0 %3065
        %v3067 = vsel %vm570, %v3064, 0
        %v3069 = vsel %vm570, %v3066, 0
        %3071 = vmatprep.subr.mxu0 0.0
        %3072 = vmatpush1.xpose.msra.mxu0 %v3069
        %3073 = vmatprep.subr.mxu0 0.0
        %3074 = vmatpush1.xpose.msra.mxu0 0.0
        %3075 = vmatprep.subr.mxu0 0.0
        %3076 = vmatpush1.xpose.msra.mxu0 0.0
        %3077 = vmatprep.subr.mxu0 0.0
        %3078 = vmatpush1.xpose.msra.mxu0 0.0
        %3079 = vmatprep.subr.mxu0 0.0
        %3080 = vmatpush1.xpose.msra.mxu0 0.0
        %3081 = vmatprep.subr.mxu0 0.0
        %3082 = vmatpush1.xpose.msra.mxu0 0.0
        %3083 = vmatprep.subr.mxu0 0.0
        %3084 = vmatpush1.xpose.msra.mxu0 0.0
        %3085 = vmatprep.subr.mxu0 0.0
        %3086 = vmatpush1.xpose.msra.mxu0 0.0
        %3087 = vmatprep.subr.mxu0 0.0
        %3088 = vmatpush1.xpose.msra.mxu0 0.0
        %3089 = vmatprep.subr.mxu0 0.0
        %3090 = vmatpush1.xpose.msra.mxu0 0.0
        %3091 = vmatprep.subr.mxu0 0.0
        %3092 = vmatpush1.xpose.msra.mxu0 0.0
        %3093 = vmatprep.subr.mxu0 0.0
        %3094 = vmatpush1.xpose.msra.mxu0 0.0
        %3095 = vmatprep.subr.mxu0 0.0
        %3096 = vmatpush1.xpose.msra.mxu0 0.0
        %3097 = vmatprep.subr.mxu0 0.0
        %3098 = vmatpush1.xpose.msra.mxu0 0.0
        %3099 = vmatprep.subr.mxu0 0.0
        %3100 = vmatpush1.xpose.msra.mxu0 0.0
        %3101 = vmatprep.subr.mxu0 0.0
        %3102 = vmatpush1.xpose.msra.mxu0 0.0
        %3103 = vmatprep.subr.mxu0 0.0
        %3104 = vmatpush1.xpose.msra.mxu0 0.0
        %3105 = vmatprep.subr.mxu0 0.0
        %3106 = vmatpush1.xpose.msra.mxu0 0.0
        %3107 = vmatprep.subr.mxu0 0.0
        %3108 = vmatpush1.xpose.msra.mxu0 0.0
        %3109 = vmatprep.subr.mxu0 0.0
        %3110 = vmatpush1.xpose.msra.mxu0 0.0
        %3111 = vmatprep.subr.mxu0 0.0
        %3112 = vmatpush1.xpose.msra.mxu0 0.0
        %3113 = vmatprep.subr.mxu0 0.0
        %3114 = vmatpush1.xpose.msra.mxu0 0.0
        %3115 = vmatprep.subr.mxu0 0.0
        %3116 = vmatpush1.xpose.msra.mxu0 0.0
        %3117 = vmatprep.subr.mxu0 0.0
        %3118 = vmatpush1.xpose.msra.mxu0 0.0
        %3119 = vmatprep.subr.mxu0 0.0
        %3120 = vmatpush1.xpose.msra.mxu0 0.0
        %3121 = vmatprep.subr.mxu0 0.0
        %3122 = vmatpush1.xpose.msra.mxu0 0.0
        %3123 = vmatprep.subr.mxu0 0.0
        %3124 = vmatpush1.xpose.msra.mxu0 0.0
        %3125 = vmatprep.subr.mxu0 0.0
        %3126 = vmatpush1.xpose.msra.mxu0 0.0
        %3127 = vmatprep.subr.mxu0 0.0
        %3128 = vmatpush1.xpose.msra.mxu0 0.0
        %3129 = vmatprep.subr.mxu0 0.0
        %3130 = vmatpush1.xpose.msra.mxu0 0.0
        %3131 = vmatprep.subr.mxu0 0.0
        %3132 = vmatpush1.xpose.msra.mxu0 0.0
        %3133 = vmatprep.subr.mxu0 0.0
        %3134 = vmatpush1.xpose.msra.mxu0 0.0
        %3135 = vmatprep.mubr.f32.mxu0 0.0
        %3136 = vmatmul.mubr.f32.gmra.mrb[0].mxu0 %v3067
        %v3137 = vpop.f32.mrb[0].mxu0
        %v3138 = vadd.f32 %v475, %v3137
        %v3139 = vpop.f32.mrb[0].mxu0
        %3140 = vdwg.mxu0
        %v3141 = vsel %vm645, %v3138, -inf
        %3142 = vmax.xlane.f32.xlu0 %v3141
        %v3143 = vpop.xlane.xlu0 %3142
        %v3144 = vsub.f32 %v3138, %v3143
        %v3145 = vmul.f32 %v3144, 1.442695
        %v3146 = vpow.pop %v3145
        %v3147 = vsel %vm645, %v3146, 0.0
        %3148 = vadd.xlane.f32.xlu0 %v3147
        %v3149 = vpop.xlane.xlu0 %3148
        %v3150 = vrcp.pop %v3149
        %v3151 = vmul.f32 %v3146, %v3150
        %s3152 = scalar_lea.vmem %s442, 16
        %3153 = vst.msk [vmem:[%s3152] sm:$0x1f] %vm645, %v3151
        %3154 = vrot.lane.b32.xlu0 %v2720, 48
        %v3155 = vpop.permute.xlu0 %3154
        %v3157 = vsel %vm660, %v3151, 0
        %v3159 = vsel %vm664, %v3155, 0
        %3161 = vmatprep.subr.mxu0 0.0
        %3162 = vmatpush1.msra.mxu0 %v3159
        %3163 = vmatprep.subr.mxu0 0.0
        %3164 = vmatpush1.msra.mxu0 0.0
        %3165 = vmatprep.subr.mxu0 0.0
        %3166 = vmatpush1.msra.mxu0 0.0
        %3167 = vmatprep.subr.mxu0 0.0
        %3168 = vmatpush1.msra.mxu0 0.0
        %3169 = vmatprep.subr.mxu0 0.0
        %3170 = vmatpush1.msra.mxu0 0.0
        %3171 = vmatprep.subr.mxu0 0.0
        %3172 = vmatpush1.msra.mxu0 0.0
        %3173 = vmatprep.subr.mxu0 0.0
        %3174 = vmatpush1.msra.mxu0 0.0
        %3175 = vmatprep.subr.mxu0 0.0
        %3176 = vmatpush1.msra.mxu0 0.0
        %3177 = vmatprep.subr.mxu0 0.0
        %3178 = vmatpush1.msra.mxu0 0.0
        %3179 = vmatprep.subr.mxu0 0.0
        %3180 = vmatpush1.msra.mxu0 0.0
        %3181 = vmatprep.subr.mxu0 0.0
        %3182 = vmatpush1.msra.mxu0 0.0
        %3183 = vmatprep.subr.mxu0 0.0
        %3184 = vmatpush1.msra.mxu0 0.0
        %3185 = vmatprep.subr.mxu0 0.0
        %3186 = vmatpush1.msra.mxu0 0.0
        %3187 = vmatprep.subr.mxu0 0.0
        %3188 = vmatpush1.msra.mxu0 0.0
        %3189 = vmatprep.subr.mxu0 0.0
        %3190 = vmatpush1.msra.mxu0 0.0
        %3191 = vmatprep.subr.mxu0 0.0
        %3192 = vmatpush1.msra.mxu0 0.0
        %3193 = vmatprep.subr.mxu0 0.0
        %3194 = vmatpush1.msra.mxu0 0.0
        %3195 = vmatprep.subr.mxu0 0.0
        %3196 = vmatpush1.msra.mxu0 0.0
        %3197 = vmatprep.subr.mxu0 0.0
        %3198 = vmatpush1.msra.mxu0 0.0
        %3199 = vmatprep.subr.mxu0 0.0
        %3200 = vmatpush1.msra.mxu0 0.0
        %3201 = vmatprep.subr.mxu0 0.0
        %3202 = vmatpush1.msra.mxu0 0.0
        %3203 = vmatprep.subr.mxu0 0.0
        %3204 = vmatpush1.msra.mxu0 0.0
        %3205 = vmatprep.subr.mxu0 0.0
        %3206 = vmatpush1.msra.mxu0 0.0
        %3207 = vmatprep.subr.mxu0 0.0
        %3208 = vmatpush1.msra.mxu0 0.0
        %3209 = vmatprep.subr.mxu0 0.0
        %3210 = vmatpush1.msra.mxu0 0.0
        %3211 = vmatprep.subr.mxu0 0.0
        %3212 = vmatpush1.msra.mxu0 0.0
        %3213 = vmatprep.subr.mxu0 0.0
        %3214 = vmatpush1.msra.mxu0 0.0
        %3215 = vmatprep.subr.mxu0 0.0
        %3216 = vmatpush1.msra.mxu0 0.0
        %3217 = vmatprep.subr.mxu0 0.0
        %3218 = vmatpush1.msra.mxu0 0.0
        %3219 = vmatprep.subr.mxu0 0.0
        %3220 = vmatpush1.msra.mxu0 0.0
        %3221 = vmatprep.subr.mxu0 0.0
        %3222 = vmatpush1.msra.mxu0 0.0
        %3223 = vmatprep.subr.mxu0 0.0
        %3224 = vmatpush1.msra.mxu0 0.0
        %3225 = vmatprep.mubr.f32.mxu0 0.0
        %3226 = vmatmul.mubr.f32.gmra.mrb[0].mxu0 %v3157
        %v3227 = vpop.f32.mrb[0].mxu0
        %v3228 = vadd.f32 0.0, %v3227
        %v3229 = vpop.f32.mrb[0].mxu0
        %3230 = vdwg.mxu0
        %3232 = vrot.lane.b32.xlu0 %v3228, 16
        %v3233 = vpop.permute.xlu0 %3232
        %3235 = vst.msk [vmem:[#allocation2] sm:$0x1f] %vm1085, %v3233
        %3236 = vrot.lane.b32.xlu0 %v2720, 104
        %v3237 = vpop.permute.xlu0 %3236
        %3238 = vrot.lane.b32.xlu0 %v2720, 72
        %v3239 = vpop.permute.xlu0 %3238
        %v3240 = vsel %vm570, %v3237, 0
        %v3242 = vsel %vm570, %v3239, 0
        %3244 = vmatprep.subr.mxu0 0.0
        %3245 = vmatpush1.xpose.msra.mxu0 %v3242
        %3246 = vmatprep.subr.mxu0 0.0
        %3247 = vmatpush1.xpose.msra.mxu0 0.0
        %3248 = vmatprep.subr.mxu0 0.0
        %3249 = vmatpush1.xpose.msra.mxu0 0.0
        %3250 = vmatprep.subr.mxu0 0.0
        %3251 = vmatpush1.xpose.msra.mxu0 0.0
        %3252 = vmatprep.subr.mxu0 0.0
        %3253 = vmatpush1.xpose.msra.mxu0 0.0
        %3254 = vmatprep.subr.mxu0 0.0
        %3255 = vmatpush1.xpose.msra.mxu0 0.0
        %3256 = vmatprep.subr.mxu0 0.0
        %3257 = vmatpush1.xpose.msra.mxu0 0.0
        %3258 = vmatprep.subr.mxu0 0.0
        %3259 = vmatpush1.xpose.msra.mxu0 0.0
        %3260 = vmatprep.subr.mxu0 0.0
        %3261 = vmatpush1.xpose.msra.mxu0 0.0
        %3262 = vmatprep.subr.mxu0 0.0
        %3263 = vmatpush1.xpose.msra.mxu0 0.0
        %3264 = vmatprep.subr.mxu0 0.0
        %3265 = vmatpush1.xpose.msra.mxu0 0.0
        %3266 = vmatprep.subr.mxu0 0.0
        %3267 = vmatpush1.xpose.msra.mxu0 0.0
        %3268 = vmatprep.subr.mxu0 0.0
        %3269 = vmatpush1.xpose.msra.mxu0 0.0
        %3270 = vmatprep.subr.mxu0 0.0
        %3271 = vmatpush1.xpose.msra.mxu0 0.0
        %3272 = vmatprep.subr.mxu0 0.0
        %3273 = vmatpush1.xpose.msra.mxu0 0.0
        %3274 = vmatprep.subr.mxu0 0.0
        %3275 = vmatpush1.xpose.msra.mxu0 0.0
        %3276 = vmatprep.subr.mxu0 0.0
        %3277 = vmatpush1.xpose.msra.mxu0 0.0
        %3278 = vmatprep.subr.mxu0 0.0
        %3279 = vmatpush1.xpose.msra.mxu0 0.0
        %3280 = vmatprep.subr.mxu0 0.0
        %3281 = vmatpush1.xpose.msra.mxu0 0.0
        %3282 = vmatprep.subr.mxu0 0.0
        %3283 = vmatpush1.xpose.msra.mxu0 0.0
        %3284 = vmatprep.subr.mxu0 0.0
        %3285 = vmatpush1.xpose.msra.mxu0 0.0
        %3286 = vmatprep.subr.mxu0 0.0
        %3287 = vmatpush1.xpose.msra.mxu0 0.0
        %3288 = vmatprep.subr.mxu0 0.0
        %3289 = vmatpush1.xpose.msra.mxu0 0.0
        %3290 = vmatprep.subr.mxu0 0.0
        %3291 = vmatpush1.xpose.msra.mxu0 0.0
        %3292 = vmatprep.subr.mxu0 0.0
        %3293 = vmatpush1.xpose.msra.mxu0 0.0
        %3294 = vmatprep.subr.mxu0 0.0
        %3295 = vmatpush1.xpose.msra.mxu0 0.0
        %3296 = vmatprep.subr.mxu0 0.0
        %3297 = vmatpush1.xpose.msra.mxu0 0.0
        %3298 = vmatprep.subr.mxu0 0.0
        %3299 = vmatpush1.xpose.msra.mxu0 0.0
        %3300 = vmatprep.subr.mxu0 0.0
        %3301 = vmatpush1.xpose.msra.mxu0 0.0
        %3302 = vmatprep.subr.mxu0 0.0
        %3303 = vmatpush1.xpose.msra.mxu0 0.0
        %3304 = vmatprep.subr.mxu0 0.0
        %3305 = vmatpush1.xpose.msra.mxu0 0.0
        %3306 = vmatprep.subr.mxu0 0.0
        %3307 = vmatpush1.xpose.msra.mxu0 0.0
        %3308 = vmatprep.mubr.f32.mxu0 0.0
        %3309 = vmatmul.mubr.f32.gmra.mrb[0].mxu0 %v3240
        %v3310 = vpop.f32.mrb[0].mxu0
        %v3311 = vadd.f32 %v475, %v3310
        %v3312 = vpop.f32.mrb[0].mxu0
        %3313 = vdwg.mxu0
        %v3314 = vsel %vm645, %v3311, -inf
        %3315 = vmax.xlane.f32.xlu0 %v3314
        %v3316 = vpop.xlane.xlu0 %3315
        %v3317 = vsub.f32 %v3311, %v3316
        %v3318 = vmul.f32 %v3317, 1.442695
        %v3319 = vpow.pop %v3318
        %v3320 = vsel %vm645, %v3319, 0.0
        %3321 = vadd.xlane.f32.xlu0 %v3320
        %v3322 = vpop.xlane.xlu0 %3321
        %v3323 = vrcp.pop %v3322
        %v3324 = vmul.f32 %v3319, %v3323
        %s3325 = scalar_lea.vmem %s442, 24
        %3326 = vst.msk [vmem:[%s3325] sm:$0x1f] %vm645, %v3324
        %3327 = vrot.lane.b32.xlu0 %v2720, 40
        %v3328 = vpop.permute.xlu0 %3327
        %v3330 = vsel %vm660, %v3324, 0
        %v3332 = vsel %vm664, %v3328, 0
        %3334 = vmatprep.subr.mxu0 0.0
        %3335 = vmatpush1.msra.mxu0 %v3332
        %3336 = vmatprep.subr.mxu0 0.0
        %3337 = vmatpush1.msra.mxu0 0.0
        %3338 = vmatprep.subr.mxu0 0.0
        %3339 = vmatpush1.msra.mxu0 0.0
        %3340 = vmatprep.subr.mxu0 0.0
        %3341 = vmatpush1.msra.mxu0 0.0
        %3342 = vmatprep.subr.mxu0 0.0
        %3343 = vmatpush1.msra.mxu0 0.0
        %3344 = vmatprep.subr.mxu0 0.0
        %3345 = vmatpush1.msra.mxu0 0.0
        %3346 = vmatprep.subr.mxu0 0.0
        %3347 = vmatpush1.msra.mxu0 0.0
        %3348 = vmatprep.subr.mxu0 0.0
        %3349 = vmatpush1.msra.mxu0 0.0
        %3350 = vmatprep.subr.mxu0 0.0
        %3351 = vmatpush1.msra.mxu0 0.0
        %3352 = vmatprep.subr.mxu0 0.0
        %3353 = vmatpush1.msra.mxu0 0.0
        %3354 = vmatprep.subr.mxu0 0.0
        %3355 = vmatpush1.msra.mxu0 0.0
        %3356 = vmatprep.subr.mxu0 0.0
        %3357 = vmatpush1.msra.mxu0 0.0
        %3358 = vmatprep.subr.mxu0 0.0
        %3359 = vmatpush1.msra.mxu0 0.0
        %3360 = vmatprep.subr.mxu0 0.0
        %3361 = vmatpush1.msra.mxu0 0.0
        %3362 = vmatprep.subr.mxu0 0.0
        %3363 = vmatpush1.msra.mxu0 0.0
        %3364 = vmatprep.subr.mxu0 0.0
        %3365 = vmatpush1.msra.mxu0 0.0
        %3366 = vmatprep.subr.mxu0 0.0
        %3367 = vmatpush1.msra.mxu0 0.0
        %3368 = vmatprep.subr.mxu0 0.0
        %3369 = vmatpush1.msra.mxu0 0.0
        %3370 = vmatprep.subr.mxu0 0.0
        %3371 = vmatpush1.msra.mxu0 0.0
        %3372 = vmatprep.subr.mxu0 0.0
        %3373 = vmatpush1.msra.mxu0 0.0
        %3374 = vmatprep.subr.mxu0 0.0
        %3375 = vmatpush1.msra.mxu0 0.0
        %3376 = vmatprep.subr.mxu0 0.0
        %3377 = vmatpush1.msra.mxu0 0.0
        %3378 = vmatprep.subr.mxu0 0.0
        %3379 = vmatpush1.msra.mxu0 0.0
        %3380 = vmatprep.subr.mxu0 0.0
        %3381 = vmatpush1.msra.mxu0 0.0
        %3382 = vmatprep.subr.mxu0 0.0
        %3383 = vmatpush1.msra.mxu0 0.0
        %3384 = vmatprep.subr.mxu0 0.0
        %3385 = vmatpush1.msra.mxu0 0.0
        %3386 = vmatprep.subr.mxu0 0.0
        %3387 = vmatpush1.msra.mxu0 0.0
        %3388 = vmatprep.subr.mxu0 0.0
        %3389 = vmatpush1.msra.mxu0 0.0
        %3390 = vmatprep.subr.mxu0 0.0
        %3391 = vmatpush1.msra.mxu0 0.0
        %3392 = vmatprep.subr.mxu0 0.0
        %3393 = vmatpush1.msra.mxu0 0.0
        %3394 = vmatprep.subr.mxu0 0.0
        %3395 = vmatpush1.msra.mxu0 0.0
        %3396 = vmatprep.subr.mxu0 0.0
        %3397 = vmatpush1.msra.mxu0 0.0
        %3398 = vmatprep.mubr.f32.mxu0 0.0
        %3399 = vmatmul.mubr.f32.gmra.mrb[0].mxu0 %v3330
        %v3400 = vpop.f32.mrb[0].mxu0
        %v3401 = vadd.f32 0.0, %v3400
        %v3402 = vpop.f32.mrb[0].mxu0
        %3403 = vdwg.mxu0
        %3405 = vrot.lane.b32.xlu0 %v3401, 24
        %v3406 = vpop.permute.xlu0 %3405
        %3408 = vst.msk [vmem:[#allocation2] sm:$0x1f] %vm1259, %v3406
        %v3409 = vld [vmem:[#allocation2] sm:$0x1f]
        %v3410 = vlaneseq
        %v3411 = vshrl.u32 %v3410, 7
        %v3412 = vsub.s32 0, %v3411
        %v3413 = vrot.slane %v2643, %v3412
        %v3415 = vsel %vm493, %v3409, 0
        %3417 = vmatprep.subr.mxu0 0.0
        %3418 = vmatpush1.msra.mxu0 %v2639
        %3419 = vmatprep.subr.mxu0 0.0
        %3420 = vmatpush1.msra.mxu0 %v2640
        %3421 = vmatprep.subr.mxu0 0.0
        %3422 = vmatpush1.msra.mxu0 %v2641
        %3423 = vmatprep.subr.mxu0 0.0
        %3424 = vmatpush1.msra.mxu0 %v2642
        %3425 = vmatprep.subr.mxu0 0.0
        %3426 = vmatpush1.msra.mxu0 0.0
        %3427 = vmatprep.subr.mxu0 0.0
        %3428 = vmatpush1.msra.mxu0 0.0
        %3429 = vmatprep.subr.mxu0 0.0
        %3430 = vmatpush1.msra.mxu0 0.0
        %3431 = vmatprep.subr.mxu0 0.0
        %3432 = vmatpush1.msra.mxu0 0.0
        %3433 = vmatprep.subr.mxu0 0.0
        %3434 = vmatpush1.msra.mxu0 0.0
        %3435 = vmatprep.subr.mxu0 0.0
        %3436 = vmatpush1.msra.mxu0 0.0
        %3437 = vmatprep.subr.mxu0 0.0
        %3438 = vmatpush1.msra.mxu0 0.0
        %3439 = vmatprep.subr.mxu0 0.0
        %3440 = vmatpush1.msra.mxu0 0.0
        %3441 = vmatprep.subr.mxu0 0.0
        %3442 = vmatpush1.msra.mxu0 0.0
        %3443 = vmatprep.subr.mxu0 0.0
        %3444 = vmatpush1.msra.mxu0 0.0
        %3445 = vmatprep.subr.mxu0 0.0
        %3446 = vmatpush1.msra.mxu0 0.0
        %3447 = vmatprep.subr.mxu0 0.0
        %3448 = vmatpush1.msra.mxu0 0.0
        %3449 = vmatprep.subr.mxu0 0.0
        %3450 = vmatpush1.msra.mxu0 0.0
        %3451 = vmatprep.subr.mxu0 0.0
        %3452 = vmatpush1.msra.mxu0 0.0
        %3453 = vmatprep.subr.mxu0 0.0
        %3454 = vmatpush1.msra.mxu0 0.0
        %3455 = vmatprep.subr.mxu0 0.0
        %3456 = vmatpush1.msra.mxu0 0.0
        %3457 = vmatprep.subr.mxu0 0.0
        %3458 = vmatpush1.msra.mxu0 0.0
        %3459 = vmatprep.subr.mxu0 0.0
        %3460 = vmatpush1.msra.mxu0 0.0
        %3461 = vmatprep.subr.mxu0 0.0
        %3462 = vmatpush1.msra.mxu0 0.0
        %3463 = vmatprep.subr.mxu0 0.0
        %3464 = vmatpush1.msra.mxu0 0.0
        %3465 = vmatprep.subr.mxu0 0.0
        %3466 = vmatpush1.msra.mxu0 0.0
        %3467 = vmatprep.subr.mxu0 0.0
        %3468 = vmatpush1.msra.mxu0 0.0
        %3469 = vmatprep.subr.mxu0 0.0
        %3470 = vmatpush1.msra.mxu0 0.0
        %3471 = vmatprep.subr.mxu0 0.0
        %3472 = vmatpush1.msra.mxu0 0.0
        %3473 = vmatprep.subr.mxu0 0.0
        %3474 = vmatpush1.msra.mxu0 0.0
        %3475 = vmatprep.subr.mxu0 0.0
        %3476 = vmatpush1.msra.mxu0 0.0
        %3477 = vmatprep.subr.mxu0 0.0
        %3478 = vmatpush1.msra.mxu0 0.0
        %3479 = vmatprep.subr.mxu0 0.0
        %3480 = vmatpush1.msra.mxu0 0.0
        %3481 = vmatprep.mubr.f32.mxu0 0.0
        %3482 = vmatmul.mubr.f32.gmra.mrb[0].mxu0 %v3415
        %v3483 = vpop.f32.mrb[0].mxu0
        %v3484 = vadd.f32 %v3413, %v3483
        %v3485 = vpop.f32.mrb[0].mxu0
        %3486 = vdwg.mxu0
        %v3487 = vadd.f32 %v3484, %v473
        %v3488 = vsel %vm1340, %v3487, 0.0
        %3489 = vadd.xlane.f32.xlu0 %v3488
        %v3490 = vpop.xlane.xlu0 %3489
        %v3491 = vmul.f32 %v3490, %v1344
        %v3492 = vsub.f32 %v3487, %v3491
        %v3493 = vmul.f32 %v3492, %v3492
        %v3494 = vsel %vm1340, %v3493, 0.0
        %3495 = vadd.xlane.f32.xlu0 %v3494
        %v3496 = vpop.xlane.xlu0 %3495
        %v3497 = vmul.f32 %v3496, %v1344
        %v3498 = vadd.f32 %v3497, 1e-05
        %v3499 = vrsqrt.pop %v3498
        %v3500 = vmul.f32 %v3492, %v3499
        %v3501 = vlaneseq
        %v3502 = vshrl.u32 %v3501, 7
        %v3503 = vsub.s32 0, %v3502
        %v3504 = vrot.slane %v2644, %v3503
        %v3505 = vmul.f32 %v3500, %v3504
        %v3506 = vlaneseq
        %v3507 = vshrl.u32 %v3506, 7
        %v3508 = vsub.s32 0, %v3507
        %v3509 = vrot.slane %v2645, %v3508
        %v3510 = vadd.f32 %v3505, %v3509
        %v3511 = vld [vmem:[#allocation3 + $0x220] sm:$0xff]
        %v3512 = vld [vmem:[#allocation3 + $0x228] sm:$0xff]
        %v3513 = vld [vmem:[#allocation3 + $0x230] sm:$0xff]
        %v3514 = vld [vmem:[#allocation3 + $0x238] sm:$0xff]
        %v3515 = vld [vmem:[#allocation3 + $0x240] sm:$0x1]
        %v3516 = vld [vmem:[#allocation3 + $0x248] sm:$0xff]
        %v3517 = vld [vmem:[#allocation3 + $0x250] sm:$0xff]
        %v3518 = vld [vmem:[#allocation3 + $0x258] sm:$0xff]
        %v3519 = vld [vmem:[#allocation3 + $0x260] sm:$0xff]
        %v3520 = vld [vmem:[#allocation3 + $0x268] sm:$0x1]
        %v3521 = vld [vmem:[#allocation3 + $0x270] sm:$0x1]
        %v3522 = vld [vmem:[#allocation3 + $0x278] sm:$0x1]
        %v3523 = vlaneseq
        %v3524 = vshrl.u32 %v3523, 7
        %v3525 = vsub.s32 0, %v3524
        %v3526 = vrot.slane %v3515, %v3525
        %v3528 = vsel %vm493, %v3510, 0
        %3530 = vmatprep.subr.mxu0 0.0
        %3531 = vmatpush1.msra.mxu0 %v3511
        %3532 = vmatprep.subr.mxu0 0.0
        %3533 = vmatpush1.msra.mxu0 %v3512
        %3534 = vmatprep.subr.mxu0 0.0
        %3535 = vmatpush1.msra.mxu0 %v3513
        %3536 = vmatprep.subr.mxu0 0.0
        %3537 = vmatpush1.msra.mxu0 %v3514
        %3538 = vmatprep.subr.mxu0 0.0
        %3539 = vmatpush1.msra.mxu0 0.0
        %3540 = vmatprep.subr.mxu0 0.0
        %3541 = vmatpush1.msra.mxu0 0.0
        %3542 = vmatprep.subr.mxu0 0.0
        %3543 = vmatpush1.msra.mxu0 0.0
        %3544 = vmatprep.subr.mxu0 0.0
        %3545 = vmatpush1.msra.mxu0 0.0
        %3546 = vmatprep.subr.mxu0 0.0
        %3547 = vmatpush1.msra.mxu0 0.0
        %3548 = vmatprep.subr.mxu0 0.0
        %3549 = vmatpush1.msra.mxu0 0.0
        %3550 = vmatprep.subr.mxu0 0.0
        %3551 = vmatpush1.msra.mxu0 0.0
        %3552 = vmatprep.subr.mxu0 0.0
        %3553 = vmatpush1.msra.mxu0 0.0
        %3554 = vmatprep.subr.mxu0 0.0
        %3555 = vmatpush1.msra.mxu0 0.0
        %3556 = vmatprep.subr.mxu0 0.0
        %3557 = vmatpush1.msra.mxu0 0.0
        %3558 = vmatprep.subr.mxu0 0.0
        %3559 = vmatpush1.msra.mxu0 0.0
        %3560 = vmatprep.subr.mxu0 0.0
        %3561 = vmatpush1.msra.mxu0 0.0
        %3562 = vmatprep.subr.mxu0 0.0
        %3563 = vmatpush1.msra.mxu0 0.0
        %3564 = vmatprep.subr.mxu0 0.0
        %3565 = vmatpush1.msra.mxu0 0.0
        %3566 = vmatprep.subr.mxu0 0.0
        %3567 = vmatpush1.msra.mxu0 0.0
        %3568 = vmatprep.subr.mxu0 0.0
        %3569 = vmatpush1.msra.mxu0 0.0
        %3570 = vmatprep.subr.mxu0 0.0
        %3571 = vmatpush1.msra.mxu0 0.0
        %3572 = vmatprep.subr.mxu0 0.0
        %3573 = vmatpush1.msra.mxu0 0.0
        %3574 = vmatprep.subr.mxu0 0.0
        %3575 = vmatpush1.msra.mxu0 0.0
        %3576 = vmatprep.subr.mxu0 0.0
        %3577 = vmatpush1.msra.mxu0 0.0
        %3578 = vmatprep.subr.mxu0 0.0
        %3579 = vmatpush1.msra.mxu0 0.0
        %3580 = vmatprep.subr.mxu0 0.0
        %3581 = vmatpush1.msra.mxu0 0.0
        %3582 = vmatprep.subr.mxu0 0.0
        %3583 = vmatpush1.msra.mxu0 0.0
        %3584 = vmatprep.subr.mxu0 0.0
        %3585 = vmatpush1.msra.mxu0 0.0
        %3586 = vmatprep.subr.mxu0 0.0
        %3587 = vmatpush1.msra.mxu0 0.0
        %3588 = vmatprep.subr.mxu0 0.0
        %3589 = vmatpush1.msra.mxu0 0.0
        %3590 = vmatprep.subr.mxu0 0.0
        %3591 = vmatpush1.msra.mxu0 0.0
        %3592 = vmatprep.subr.mxu0 0.0
        %3593 = vmatpush1.msra.mxu0 0.0
        %3594 = vmatprep.mubr.f32.mxu0 0.0
        %3595 = vmatmul.mubr.f32.gmra.mrb[0].mxu0 %v3528
        %v3596 = vpop.f32.mrb[0].mxu0
        %v3597 = vadd.f32 %v3526, %v3596
        %v3598 = vpop.f32.mrb[0].mxu0
        %3599 = vdwg.mxu0
        %v3601 = vsel %vm493, %v2633, 0
        %3603 = vmatprep.subr.mxu0 0.0
        %3604 = vmatpush1.msra.mxu0 %v3511
        %3605 = vmatprep.subr.mxu0 0.0
        %3606 = vmatpush1.msra.mxu0 %v3512
        %3607 = vmatprep.subr.mxu0 0.0
        %3608 = vmatpush1.msra.mxu0 %v3513
        %3609 = vmatprep.subr.mxu0 0.0
        %3610 = vmatpush1.msra.mxu0 %v3514
        %3611 = vmatprep.subr.mxu0 0.0
        %3612 = vmatpush1.msra.mxu0 0.0
        %3613 = vmatprep.subr.mxu0 0.0
        %3614 = vmatpush1.msra.mxu0 0.0
        %3615 = vmatprep.subr.mxu0 0.0
        %3616 = vmatpush1.msra.mxu0 0.0
        %3617 = vmatprep.subr.mxu0 0.0
        %3618 = vmatpush1.msra.mxu0 0.0
        %3619 = vmatprep.subr.mxu0 0.0
        %3620 = vmatpush1.msra.mxu0 0.0
        %3621 = vmatprep.subr.mxu0 0.0
        %3622 = vmatpush1.msra.mxu0 0.0
        %3623 = vmatprep.subr.mxu0 0.0
        %3624 = vmatpush1.msra.mxu0 0.0
        %3625 = vmatprep.subr.mxu0 0.0
        %3626 = vmatpush1.msra.mxu0 0.0
        %3627 = vmatprep.subr.mxu0 0.0
        %3628 = vmatpush1.msra.mxu0 0.0
        %3629 = vmatprep.subr.mxu0 0.0
        %3630 = vmatpush1.msra.mxu0 0.0
        %3631 = vmatprep.subr.mxu0 0.0
        %3632 = vmatpush1.msra.mxu0 0.0
        %3633 = vmatprep.subr.mxu0 0.0
        %3634 = vmatpush1.msra.mxu0 0.0
        %3635 = vmatprep.subr.mxu0 0.0
        %3636 = vmatpush1.msra.mxu0 0.0
        %3637 = vmatprep.subr.mxu0 0.0
        %3638 = vmatpush1.msra.mxu0 0.0
        %3639 = vmatprep.subr.mxu0 0.0
        %3640 = vmatpush1.msra.mxu0 0.0
        %3641 = vmatprep.subr.mxu0 0.0
        %3642 = vmatpush1.msra.mxu0 0.0
        %3643 = vmatprep.subr.mxu0 0.0
        %3644 = vmatpush1.msra.mxu0 0.0
        %3645 = vmatprep.subr.mxu0 0.0
        %3646 = vmatpush1.msra.mxu0 0.0
        %3647 = vmatprep.subr.mxu0 0.0
        %3648 = vmatpush1.msra.mxu0 0.0
        %3649 = vmatprep.subr.mxu0 0.0
        %3650 = vmatpush1.msra.mxu0 0.0
        %3651 = vmatprep.subr.mxu0 0.0
        %3652 = vmatpush1.msra.mxu0 0.0
        %3653 = vmatprep.subr.mxu0 0.0
        %3654 = vmatpush1.msra.mxu0 0.0
        %3655 = vmatprep.subr.mxu0 0.0
        %3656 = vmatpush1.msra.mxu0 0.0
        %3657 = vmatprep.subr.mxu0 0.0
        %3658 = vmatpush1.msra.mxu0 0.0
        %3659 = vmatprep.subr.mxu0 0.0
        %3660 = vmatpush1.msra.mxu0 0.0
        %3661 = vmatprep.subr.mxu0 0.0
        %3662 = vmatpush1.msra.mxu0 0.0
        %3663 = vmatprep.subr.mxu0 0.0
        %3664 = vmatpush1.msra.mxu0 0.0
        %3665 = vmatprep.subr.mxu0 0.0
        %3666 = vmatpush1.msra.mxu0 0.0
        %3667 = vmatprep.mubr.f32.mxu0 0.0
        %3668 = vmatmul.mubr.f32.gmra.mrb[0].mxu0 %v3601
        %v3669 = vpop.f32.mrb[0].mxu0
        %v3670 = vadd.f32 %v3526, %v3669
        %v3671 = vpop.f32.mrb[0].mxu0
        %3672 = vdwg.mxu0
        %3674 = vrot.lane.b32.xlu0 %v3670, 96
        %v3675 = vpop.permute.xlu0 %3674
        %v3677 = vsel %vm570, %v3597, 0
        %v3679 = vsel %vm570, %v3675, 0
        %3681 = vmatprep.subr.mxu0 0.0
        %3682 = vmatpush1.xpose.msra.mxu0 %v3679
        %3683 = vmatprep.subr.mxu0 0.0
        %3684 = vmatpush1.xpose.msra.mxu0 0.0
        %3685 = vmatprep.subr.mxu0 0.0
        %3686 = vmatpush1.xpose.msra.mxu0 0.0
        %3687 = vmatprep.subr.mxu0 0.0
        %3688 = vmatpush1.xpose.msra.mxu0 0.0
        %3689 = vmatprep.subr.mxu0 0.0
        %3690 = vmatpush1.xpose.msra.mxu0 0.0
        %3691 = vmatprep.subr.mxu0 0.0
        %3692 = vmatpush1.xpose.msra.mxu0 0.0
        %3693 = vmatprep.subr.mxu0 0.0
        %3694 = vmatpush1.xpose.msra.mxu0 0.0
        %3695 = vmatprep.subr.mxu0 0.0
        %3696 = vmatpush1.xpose.msra.mxu0 0.0
        %3697 = vmatprep.subr.mxu0 0.0
        %3698 = vmatpush1.xpose.msra.mxu0 0.0
        %3699 = vmatprep.subr.mxu0 0.0
        %3700 = vmatpush1.xpose.msra.mxu0 0.0
        %3701 = vmatprep.subr.mxu0 0.0
        %3702 = vmatpush1.xpose.msra.mxu0 0.0
        %3703 = vmatprep.subr.mxu0 0.0
        %3704 = vmatpush1.xpose.msra.mxu0 0.0
        %3705 = vmatprep.subr.mxu0 0.0
        %3706 = vmatpush1.xpose.msra.mxu0 0.0
        %3707 = vmatprep.subr.mxu0 0.0
        %3708 = vmatpush1.xpose.msra.mxu0 0.0
        %3709 = vmatprep.subr.mxu0 0.0
        %3710 = vmatpush1.xpose.msra.mxu0 0.0
        %3711 = vmatprep.subr.mxu0 0.0
        %3712 = vmatpush1.xpose.msra.mxu0 0.0
        %3713 = vmatprep.subr.mxu0 0.0
        %3714 = vmatpush1.xpose.msra.mxu0 0.0
        %3715 = vmatprep.subr.mxu0 0.0
        %3716 = vmatpush1.xpose.msra.mxu0 0.0
        %3717 = vmatprep.subr.mxu0 0.0
        %3718 = vmatpush1.xpose.msra.mxu0 0.0
        %3719 = vmatprep.subr.mxu0 0.0
        %3720 = vmatpush1.xpose.msra.mxu0 0.0
        %3721 = vmatprep.subr.mxu0 0.0
        %3722 = vmatpush1.xpose.msra.mxu0 0.0
        %3723 = vmatprep.subr.mxu0 0.0
        %3724 = vmatpush1.xpose.msra.mxu0 0.0
        %3725 = vmatprep.subr.mxu0 0.0
        %3726 = vmatpush1.xpose.msra.mxu0 0.0
        %3727 = vmatprep.subr.mxu0 0.0
        %3728 = vmatpush1.xpose.msra.mxu0 0.0
        %3729 = vmatprep.subr.mxu0 0.0
        %3730 = vmatpush1.xpose.msra.mxu0 0.0
        %3731 = vmatprep.subr.mxu0 0.0
        %3732 = vmatpush1.xpose.msra.mxu0 0.0
        %3733 = vmatprep.subr.mxu0 0.0
        %3734 = vmatpush1.xpose.msra.mxu0 0.0
        %3735 = vmatprep.subr.mxu0 0.0
        %3736 = vmatpush1.xpose.msra.mxu0 0.0
        %3737 = vmatprep.subr.mxu0 0.0
        %3738 = vmatpush1.xpose.msra.mxu0 0.0
        %3739 = vmatprep.subr.mxu0 0.0
        %3740 = vmatpush1.xpose.msra.mxu0 0.0
        %3741 = vmatprep.subr.mxu0 0.0
        %3742 = vmatpush1.xpose.msra.mxu0 0.0
        %3743 = vmatprep.subr.mxu0 0.0
        %3744 = vmatpush1.xpose.msra.mxu0 0.0
        %3745 = vmatprep.mubr.f32.mxu0 0.0
        %3746 = vmatmul.mubr.f32.gmra.mrb[0].mxu0 %v3677
        %v3747 = vpop.f32.mrb[0].mxu0
        %v3748 = vadd.f32 %v476, %v3747
        %v3749 = vpop.f32.mrb[0].mxu0
        %3750 = vdwg.mxu0
        %v3751 = vsel %vm645, %v3748, -inf
        %3752 = vmax.xlane.f32.xlu0 %v3751
        %v3753 = vpop.xlane.xlu0 %3752
        %v3754 = vsub.f32 %v3748, %v3753
        %v3755 = vmul.f32 %v3754, 1.442695
        %v3756 = vpow.pop %v3755
        %v3757 = vsel %vm645, %v3756, 0.0
        %3758 = vadd.xlane.f32.xlu0 %v3757
        %v3759 = vpop.xlane.xlu0 %3758
        %v3760 = vrcp.pop %v3759
        %v3761 = vmul.f32 %v3756, %v3760
        %3762 = vst.msk [vmem:[%s447] sm:$0x1f] %vm645, %v3761
        %3763 = vrot.lane.b32.xlu0 %v3670, 64
        %v3764 = vpop.permute.xlu0 %3763
        %v3766 = vsel %vm660, %v3761, 0
        %v3768 = vsel %vm664, %v3764, 0
        %3770 = vmatprep.subr.mxu0 0.0
        %3771 = vmatpush1.msra.mxu0 %v3768
        %3772 = vmatprep.subr.mxu0 0.0
        %3773 = vmatpush1.msra.mxu0 0.0
        %3774 = vmatprep.subr.mxu0 0.0
        %3775 = vmatpush1.msra.mxu0 0.0
        %3776 = vmatprep.subr.mxu0 0.0
        %3777 = vmatpush1.msra.mxu0 0.0
        %3778 = vmatprep.subr.mxu0 0.0
        %3779 = vmatpush1.msra.mxu0 0.0
        %3780 = vmatprep.subr.mxu0 0.0
        %3781 = vmatpush1.msra.mxu0 0.0
        %3782 = vmatprep.subr.mxu0 0.0
        %3783 = vmatpush1.msra.mxu0 0.0
        %3784 = vmatprep.subr.mxu0 0.0
        %3785 = vmatpush1.msra.mxu0 0.0
        %3786 = vmatprep.subr.mxu0 0.0
        %3787 = vmatpush1.msra.mxu0 0.0
        %3788 = vmatprep.subr.mxu0 0.0
        %3789 = vmatpush1.msra.mxu0 0.0
        %3790 = vmatprep.subr.mxu0 0.0
        %3791 = vmatpush1.msra.mxu0 0.0
        %3792 = vmatprep.subr.mxu0 0.0
        %3793 = vmatpush1.msra.mxu0 0.0
        %3794 = vmatprep.subr.mxu0 0.0
        %3795 = vmatpush1.msra.mxu0 0.0
        %3796 = vmatprep.subr.mxu0 0.0
        %3797 = vmatpush1.msra.mxu0 0.0
        %3798 = vmatprep.subr.mxu0 0.0
        %3799 = vmatpush1.msra.mxu0 0.0
        %3800 = vmatprep.subr.mxu0 0.0
        %3801 = vmatpush1.msra.mxu0 0.0
        %3802 = vmatprep.subr.mxu0 0.0
        %3803 = vmatpush1.msra.mxu0 0.0
        %3804 = vmatprep.subr.mxu0 0.0
        %3805 = vmatpush1.msra.mxu0 0.0
        %3806 = vmatprep.subr.mxu0 0.0
        %3807 = vmatpush1.msra.mxu0 0.0
        %3808 = vmatprep.subr.mxu0 0.0
        %3809 = vmatpush1.msra.mxu0 0.0
        %3810 = vmatprep.subr.mxu0 0.0
        %3811 = vmatpush1.msra.mxu0 0.0
        %3812 = vmatprep.subr.mxu0 0.0
        %3813 = vmatpush1.msra.mxu0 0.0
        %3814 = vmatprep.subr.mxu0 0.0
        %3815 = vmatpush1.msra.mxu0 0.0
        %3816 = vmatprep.subr.mxu0 0.0
        %3817 = vmatpush1.msra.mxu0 0.0
        %3818 = vmatprep.subr.mxu0 0.0
        %3819 = vmatpush1.msra.mxu0 0.0
        %3820 = vmatprep.subr.mxu0 0.0
        %3821 = vmatpush1.msra.mxu0 0.0
        %3822 = vmatprep.subr.mxu0 0.0
        %3823 = vmatpush1.msra.mxu0 0.0
        %3824 = vmatprep.subr.mxu0 0.0
        %3825 = vmatpush1.msra.mxu0 0.0
        %3826 = vmatprep.subr.mxu0 0.0
        %3827 = vmatpush1.msra.mxu0 0.0
        %3828 = vmatprep.subr.mxu0 0.0
        %3829 = vmatpush1.msra.mxu0 0.0
        %3830 = vmatprep.subr.mxu0 0.0
        %3831 = vmatpush1.msra.mxu0 0.0
        %3832 = vmatprep.subr.mxu0 0.0
        %3833 = vmatpush1.msra.mxu0 0.0
        %3834 = vmatprep.mubr.f32.mxu0 0.0
        %3835 = vmatmul.mubr.f32.gmra.mrb[0].mxu0 %v3766
        %v3836 = vpop.f32.mrb[0].mxu0
        %v3837 = vadd.f32 0.0, %v3836
        %v3838 = vpop.f32.mrb[0].mxu0
        %3839 = vdwg.mxu0
        %3840 = vst.msk [vmem:[#allocation2] sm:$0x1f] %vm737, %v3837
        %3841 = vrot.lane.b32.xlu0 %v3597, 120
        %v3842 = vpop.permute.xlu0 %3841
        %3843 = vrot.lane.b32.xlu0 %v3670, 88
        %v3844 = vpop.permute.xlu0 %3843
        %v3845 = vsel %vm570, %v3842, 0
        %v3847 = vsel %vm570, %v3844, 0
        %3849 = vmatprep.subr.mxu0 0.0
        %3850 = vmatpush1.xpose.msra.mxu0 %v3847
        %3851 = vmatprep.subr.mxu0 0.0
        %3852 = vmatpush1.xpose.msra.mxu0 0.0
        %3853 = vmatprep.subr.mxu0 0.0
        %3854 = vmatpush1.xpose.msra.mxu0 0.0
        %3855 = vmatprep.subr.mxu0 0.0
        %3856 = vmatpush1.xpose.msra.mxu0 0.0
        %3857 = vmatprep.subr.mxu0 0.0
        %3858 = vmatpush1.xpose.msra.mxu0 0.0
        %3859 = vmatprep.subr.mxu0 0.0
        %3860 = vmatpush1.xpose.msra.mxu0 0.0
        %3861 = vmatprep.subr.mxu0 0.0
        %3862 = vmatpush1.xpose.msra.mxu0 0.0
        %3863 = vmatprep.subr.mxu0 0.0
        %3864 = vmatpush1.xpose.msra.mxu0 0.0
        %3865 = vmatprep.subr.mxu0 0.0
        %3866 = vmatpush1.xpose.msra.mxu0 0.0
        %3867 = vmatprep.subr.mxu0 0.0
        %3868 = vmatpush1.xpose.msra.mxu0 0.0
        %3869 = vmatprep.subr.mxu0 0.0
        %3870 = vmatpush1.xpose.msra.mxu0 0.0
        %3871 = vmatprep.subr.mxu0 0.0
        %3872 = vmatpush1.xpose.msra.mxu0 0.0
        %3873 = vmatprep.subr.mxu0 0.0
        %3874 = vmatpush1.xpose.msra.mxu0 0.0
        %3875 = vmatprep.subr.mxu0 0.0
        %3876 = vmatpush1.xpose.msra.mxu0 0.0
        %3877 = vmatprep.subr.mxu0 0.0
        %3878 = vmatpush1.xpose.msra.mxu0 0.0
        %3879 = vmatprep.subr.mxu0 0.0
        %3880 = vmatpush1.xpose.msra.mxu0 0.0
        %3881 = vmatprep.subr.mxu0 0.0
        %3882 = vmatpush1.xpose.msra.mxu0 0.0
        %3883 = vmatprep.subr.mxu0 0.0
        %3884 = vmatpush1.xpose.msra.mxu0 0.0
        %3885 = vmatprep.subr.mxu0 0.0
        %3886 = vmatpush1.xpose.msra.mxu0 0.0
        %3887 = vmatprep.subr.mxu0 0.0
        %3888 = vmatpush1.xpose.msra.mxu0 0.0
        %3889 = vmatprep.subr.mxu0 0.0
        %3890 = vmatpush1.xpose.msra.mxu0 0.0
        %3891 = vmatprep.subr.mxu0 0.0
        %3892 = vmatpush1.xpose.msra.mxu0 0.0
        %3893 = vmatprep.subr.mxu0 0.0
        %3894 = vmatpush1.xpose.msra.mxu0 0.0
        %3895 = vmatprep.subr.mxu0 0.0
        %3896 = vmatpush1.xpose.msra.mxu0 0.0
        %3897 = vmatprep.subr.mxu0 0.0
        %3898 = vmatpush1.xpose.msra.mxu0 0.0
        %3899 = vmatprep.subr.mxu0 0.0
        %3900 = vmatpush1.xpose.msra.mxu0 0.0
        %3901 = vmatprep.subr.mxu0 0.0
        %3902 = vmatpush1.xpose.msra.mxu0 0.0
        %3903 = vmatprep.subr.mxu0 0.0
        %3904 = vmatpush1.xpose.msra.mxu0 0.0
        %3905 = vmatprep.subr.mxu0 0.0
        %3906 = vmatpush1.xpose.msra.mxu0 0.0
        %3907 = vmatprep.subr.mxu0 0.0
        %3908 = vmatpush1.xpose.msra.mxu0 0.0
        %3909 = vmatprep.subr.mxu0 0.0
        %3910 = vmatpush1.xpose.msra.mxu0 0.0
        %3911 = vmatprep.subr.mxu0 0.0
        %3912 = vmatpush1.xpose.msra.mxu0 0.0
        %3913 = vmatprep.mubr.f32.mxu0 0.0
        %3914 = vmatmul.mubr.f32.gmra.mrb[0].mxu0 %v3845
        %v3915 = vpop.f32.mrb[0].mxu0
        %v3916 = vadd.f32 %v476, %v3915
        %v3917 = vpop.f32.mrb[0].mxu0
        %3918 = vdwg.mxu0
        %v3919 = vsel %vm645, %v3916, -inf
        %3920 = vmax.xlane.f32.xlu0 %v3919
        %v3921 = vpop.xlane.xlu0 %3920
        %v3922 = vsub.f32 %v3916, %v3921
        %v3923 = vmul.f32 %v3922, 1.442695
        %v3924 = vpow.pop %v3923
        %v3925 = vsel %vm645, %v3924, 0.0
        %3926 = vadd.xlane.f32.xlu0 %v3925
        %v3927 = vpop.xlane.xlu0 %3926
        %v3928 = vrcp.pop %v3927
        %v3929 = vmul.f32 %v3924, %v3928
        %s3930 = scalar_lea.vmem %s447, 8
        %3931 = vst.msk [vmem:[%s3930] sm:$0x1f] %vm645, %v3929
        %3932 = vrot.lane.b32.xlu0 %v3670, 56
        %v3933 = vpop.permute.xlu0 %3932
        %v3935 = vsel %vm660, %v3929, 0
        %v3937 = vsel %vm664, %v3933, 0
        %3939 = vmatprep.subr.mxu0 0.0
        %3940 = vmatpush1.msra.mxu0 %v3937
        %3941 = vmatprep.subr.mxu0 0.0
        %3942 = vmatpush1.msra.mxu0 0.0
        %3943 = vmatprep.subr.mxu0 0.0
        %3944 = vmatpush1.msra.mxu0 0.0
        %3945 = vmatprep.subr.mxu0 0.0
        %3946 = vmatpush1.msra.mxu0 0.0
        %3947 = vmatprep.subr.mxu0 0.0
        %3948 = vmatpush1.msra.mxu0 0.0
        %3949 = vmatprep.subr.mxu0 0.0
        %3950 = vmatpush1.msra.mxu0 0.0
        %3951 = vmatprep.subr.mxu0 0.0
        %3952 = vmatpush1.msra.mxu0 0.0
        %3953 = vmatprep.subr.mxu0 0.0
        %3954 = vmatpush1.msra.mxu0 0.0
        %3955 = vmatprep.subr.mxu0 0.0
        %3956 = vmatpush1.msra.mxu0 0.0
        %3957 = vmatprep.subr.mxu0 0.0
        %3958 = vmatpush1.msra.mxu0 0.0
        %3959 = vmatprep.subr.mxu0 0.0
        %3960 = vmatpush1.msra.mxu0 0.0
        %3961 = vmatprep.subr.mxu0 0.0
        %3962 = vmatpush1.msra.mxu0 0.0
        %3963 = vmatprep.subr.mxu0 0.0
        %3964 = vmatpush1.msra.mxu0 0.0
        %3965 = vmatprep.subr.mxu0 0.0
        %3966 = vmatpush1.msra.mxu0 0.0
        %3967 = vmatprep.subr.mxu0 0.0
        %3968 = vmatpush1.msra.mxu0 0.0
        %3969 = vmatprep.subr.mxu0 0.0
        %3970 = vmatpush1.msra.mxu0 0.0
        %3971 = vmatprep.subr.mxu0 0.0
        %3972 = vmatpush1.msra.mxu0 0.0
        %3973 = vmatprep.subr.mxu0 0.0
        %3974 = vmatpush1.msra.mxu0 0.0
        %3975 = vmatprep.subr.mxu0 0.0
        %3976 = vmatpush1.msra.mxu0 0.0
        %3977 = vmatprep.subr.mxu0 0.0
        %3978 = vmatpush1.msra.mxu0 0.0
        %3979 = vmatprep.subr.mxu0 0.0
        %3980 = vmatpush1.msra.mxu0 0.0
        %3981 = vmatprep.subr.mxu0 0.0
        %3982 = vmatpush1.msra.mxu0 0.0
        %3983 = vmatprep.subr.mxu0 0.0
        %3984 = vmatpush1.msra.mxu0 0.0
        %3985 = vmatprep.subr.mxu0 0.0
        %3986 = vmatpush1.msra.mxu0 0.0
        %3987 = vmatprep.subr.mxu0 0.0
        %3988 = vmatpush1.msra.mxu0 0.0
        %3989 = vmatprep.subr.mxu0 0.0
        %3990 = vmatpush1.msra.mxu0 0.0
        %3991 = vmatprep.subr.mxu0 0.0
        %3992 = vmatpush1.msra.mxu0 0.0
        %3993 = vmatprep.subr.mxu0 0.0
        %3994 = vmatpush1.msra.mxu0 0.0
        %3995 = vmatprep.subr.mxu0 0.0
        %3996 = vmatpush1.msra.mxu0 0.0
        %3997 = vmatprep.subr.mxu0 0.0
        %3998 = vmatpush1.msra.mxu0 0.0
        %3999 = vmatprep.subr.mxu0 0.0
        %4000 = vmatpush1.msra.mxu0 0.0
        %4001 = vmatprep.subr.mxu0 0.0
        %4002 = vmatpush1.msra.mxu0 0.0
        %4003 = vmatprep.mubr.f32.mxu0 0.0
        %4004 = vmatmul.mubr.f32.gmra.mrb[0].mxu0 %v3935
        %v4005 = vpop.f32.mrb[0].mxu0
        %v4006 = vadd.f32 0.0, %v4005
        %v4007 = vpop.f32.mrb[0].mxu0
        %4008 = vdwg.mxu0
        %4010 = vrot.lane.b32.xlu0 %v4006, 8
        %v4011 = vpop.permute.xlu0 %4010
        %4013 = vst.msk [vmem:[#allocation2] sm:$0x1f] %vm911, %v4011
        %4014 = vrot.lane.b32.xlu0 %v3597, 112
        %v4015 = vpop.permute.xlu0 %4014
        %4016 = vrot.lane.b32.xlu0 %v3670, 80
        %v4017 = vpop.permute.xlu0 %4016
        %v4018 = vsel %vm570, %v4015, 0
        %v4020 = vsel %vm570, %v4017, 0
        %4022 = vmatprep.subr.mxu0 0.0
        %4023 = vmatpush1.xpose.msra.mxu0 %v4020
        %4024 = vmatprep.subr.mxu0 0.0
        %4025 = vmatpush1.xpose.msra.mxu0 0.0
        %4026 = vmatprep.subr.mxu0 0.0
        %4027 = vmatpush1.xpose.msra.mxu0 0.0
        %4028 = vmatprep.subr.mxu0 0.0
        %4029 = vmatpush1.xpose.msra.mxu0 0.0
        %4030 = vmatprep.subr.mxu0 0.0
        %4031 = vmatpush1.xpose.msra.mxu0 0.0
        %4032 = vmatprep.subr.mxu0 0.0
        %4033 = vmatpush1.xpose.msra.mxu0 0.0
        %4034 = vmatprep.subr.mxu0 0.0
        %4035 = vmatpush1.xpose.msra.mxu0 0.0
        %4036 = vmatprep.subr.mxu0 0.0
        %4037 = vmatpush1.xpose.msra.mxu0 0.0
        %4038 = vmatprep.subr.mxu0 0.0
        %4039 = vmatpush1.xpose.msra.mxu0 0.0
        %4040 = vmatprep.subr.mxu0 0.0
        %4041 = vmatpush1.xpose.msra.mxu0 0.0
        %4042 = vmatprep.subr.mxu0 0.0
        %4043 = vmatpush1.xpose.msra.mxu0 0.0
        %4044 = vmatprep.subr.mxu0 0.0
        %4045 = vmatpush1.xpose.msra.mxu0 0.0
        %4046 = vmatprep.subr.mxu0 0.0
        %4047 = vmatpush1.xpose.msra.mxu0 0.0
        %4048 = vmatprep.subr.mxu0 0.0
        %4049 = vmatpush1.xpose.msra.mxu0 0.0
        %4050 = vmatprep.subr.mxu0 0.0
        %4051 = vmatpush1.xpose.msra.mxu0 0.0
        %4052 = vmatprep.subr.mxu0 0.0
        %4053 = vmatpush1.xpose.msra.mxu0 0.0
        %4054 = vmatprep.subr.mxu0 0.0
        %4055 = vmatpush1.xpose.msra.mxu0 0.0
        %4056 = vmatprep.subr.mxu0 0.0
        %4057 = vmatpush1.xpose.msra.mxu0 0.0
        %4058 = vmatprep.subr.mxu0 0.0
        %4059 = vmatpush1.xpose.msra.mxu0 0.0
        %4060 = vmatprep.subr.mxu0 0.0
        %4061 = vmatpush1.xpose.msra.mxu0 0.0
        %4062 = vmatprep.subr.mxu0 0.0
        %4063 = vmatpush1.xpose.msra.mxu0 0.0
        %4064 = vmatprep.subr.mxu0 0.0
        %4065 = vmatpush1.xpose.msra.mxu0 0.0
        %4066 = vmatprep.subr.mxu0 0.0
        %4067 = vmatpush1.xpose.msra.mxu0 0.0
        %4068 = vmatprep.subr.mxu0 0.0
        %4069 = vmatpush1.xpose.msra.mxu0 0.0
        %4070 = vmatprep.subr.mxu0 0.0
        %4071 = vmatpush1.xpose.msra.mxu0 0.0
        %4072 = vmatprep.subr.mxu0 0.0
        %4073 = vmatpush1.xpose.msra.mxu0 0.0
        %4074 = vmatprep.subr.mxu0 0.0
        %4075 = vmatpush1.xpose.msra.mxu0 0.0
        %4076 = vmatprep.subr.mxu0 0.0
        %4077 = vmatpush1.xpose.msra.mxu0 0.0
        %4078 = vmatprep.subr.mxu0 0.0
        %4079 = vmatpush1.xpose.msra.mxu0 0.0
        %4080 = vmatprep.subr.mxu0 0.0
        %4081 = vmatpush1.xpose.msra.mxu0 0.0
        %4082 = vmatprep.subr.mxu0 0.0
        %4083 = vmatpush1.xpose.msra.mxu0 0.0
        %4084 = vmatprep.subr.mxu0 0.0
        %4085 = vmatpush1.xpose.msra.mxu0 0.0
        %4086 = vmatprep.mubr.f32.mxu0 0.0
        %4087 = vmatmul.mubr.f32.gmra.mrb[0].mxu0 %v4018
        %v4088 = vpop.f32.mrb[0].mxu0
        %v4089 = vadd.f32 %v476, %v4088
        %v4090 = vpop.f32.mrb[0].mxu0
        %4091 = vdwg.mxu0
        %v4092 = vsel %vm645, %v4089, -inf
        %4093 = vmax.xlane.f32.xlu0 %v4092
        %v4094 = vpop.xlane.xlu0 %4093
        %v4095 = vsub.f32 %v4089, %v4094
        %v4096 = vmul.f32 %v4095, 1.442695
        %v4097 = vpow.pop %v4096
        %v4098 = vsel %vm645, %v4097, 0.0
        %4099 = vadd.xlane.f32.xlu0 %v4098
        %v4100 = vpop.xlane.xlu0 %4099
        %v4101 = vrcp.pop %v4100
        %v4102 = vmul.f32 %v4097, %v4101
        %s4103 = scalar_lea.vmem %s447, 16
        %4104 = vst.msk [vmem:[%s4103] sm:$0x1f] %vm645, %v4102
        %4105 = vrot.lane.b32.xlu0 %v3670, 48
        %v4106 = vpop.permute.xlu0 %4105
        %v4108 = vsel %vm660, %v4102, 0
        %v4110 = vsel %vm664, %v4106, 0
        %4112 = vmatprep.subr.mxu0 0.0
        %4113 = vmatpush1.msra.mxu0 %v4110
        %4114 = vmatprep.subr.mxu0 0.0
        %4115 = vmatpush1.msra.mxu0 0.0
        %4116 = vmatprep.subr.mxu0 0.0
        %4117 = vmatpush1.msra.mxu0 0.0
        %4118 = vmatprep.subr.mxu0 0.0
        %4119 = vmatpush1.msra.mxu0 0.0
        %4120 = vmatprep.subr.mxu0 0.0
        %4121 = vmatpush1.msra.mxu0 0.0
        %4122 = vmatprep.subr.mxu0 0.0
        %4123 = vmatpush1.msra.mxu0 0.0
        %4124 = vmatprep.subr.mxu0 0.0
        %4125 = vmatpush1.msra.mxu0 0.0
        %4126 = vmatprep.subr.mxu0 0.0
        %4127 = vmatpush1.msra.mxu0 0.0
        %4128 = vmatprep.subr.mxu0 0.0
        %4129 = vmatpush1.msra.mxu0 0.0
        %4130 = vmatprep.subr.mxu0 0.0
        %4131 = vmatpush1.msra.mxu0 0.0
        %4132 = vmatprep.subr.mxu0 0.0
        %4133 = vmatpush1.msra.mxu0 0.0
        %4134 = vmatprep.subr.mxu0 0.0
        %4135 = vmatpush1.msra.mxu0 0.0
        %4136 = vmatprep.subr.mxu0 0.0
        %4137 = vmatpush1.msra.mxu0 0.0
        %4138 = vmatprep.subr.mxu0 0.0
        %4139 = vmatpush1.msra.mxu0 0.0
        %4140 = vmatprep.subr.mxu0 0.0
        %4141 = vmatpush1.msra.mxu0 0.0
        %4142 = vmatprep.subr.mxu0 0.0
        %4143 = vmatpush1.msra.mxu0 0.0
        %4144 = vmatprep.subr.mxu0 0.0
        %4145 = vmatpush1.msra.mxu0 0.0
        %4146 = vmatprep.subr.mxu0 0.0
        %4147 = vmatpush1.msra.mxu0 0.0
        %4148 = vmatprep.subr.mxu0 0.0
        %4149 = vmatpush1.msra.mxu0 0.0
        %4150 = vmatprep.subr.mxu0 0.0
        %4151 = vmatpush1.msra.mxu0 0.0
        %4152 = vmatprep.subr.mxu0 0.0
        %4153 = vmatpush1.msra.mxu0 0.0
        %4154 = vmatprep.subr.mxu0 0.0
        %4155 = vmatpush1.msra.mxu0 0.0
        %4156 = vmatprep.subr.mxu0 0.0
        %4157 = vmatpush1.msra.mxu0 0.0
        %4158 = vmatprep.subr.mxu0 0.0
        %4159 = vmatpush1.msra.mxu0 0.0
        %4160 = vmatprep.subr.mxu0 0.0
        %4161 = vmatpush1.msra.mxu0 0.0
        %4162 = vmatprep.subr.mxu0 0.0
        %4163 = vmatpush1.msra.mxu0 0.0
        %4164 = vmatprep.subr.mxu0 0.0
        %4165 = vmatpush1.msra.mxu0 0.0
        %4166 = vmatprep.subr.mxu0 0.0
        %4167 = vmatpush1.msra.mxu0 0.0
        %4168 = vmatprep.subr.mxu0 0.0
        %4169 = vmatpush1.msra.mxu0 0.0
        %4170 = vmatprep.subr.mxu0 0.0
        %4171 = vmatpush1.msra.mxu0 0.0
        %4172 = vmatprep.subr.mxu0 0.0
        %4173 = vmatpush1.msra.mxu0 0.0
        %4174 = vmatprep.subr.mxu0 0.0
        %4175 = vmatpush1.msra.mxu0 0.0
        %4176 = vmatprep.mubr.f32.mxu0 0.0
        %4177 = vmatmul.mubr.f32.gmra.mrb[0].mxu0 %v4108
        %v4178 = vpop.f32.mrb[0].mxu0
        %v4179 = vadd.f32 0.0, %v4178
        %v4180 = vpop.f32.mrb[0].mxu0
        %4181 = vdwg.mxu0
        %4183 = vrot.lane.b32.xlu0 %v4179, 16
        %v4184 = vpop.permute.xlu0 %4183
        %4186 = vst.msk [vmem:[#allocation2] sm:$0x1f] %vm1085, %v4184
        %4187 = vrot.lane.b32.xlu0 %v3597, 104
        %v4188 = vpop.permute.xlu0 %4187
        %4189 = vrot.lane.b32.xlu0 %v3670, 72
        %v4190 = vpop.permute.xlu0 %4189
        %v4191 = vsel %vm570, %v4188, 0
        %v4193 = vsel %vm570, %v4190, 0
        %4195 = vmatprep.subr.mxu0 0.0
        %4196 = vmatpush1.xpose.msra.mxu0 %v4193
        %4197 = vmatprep.subr.mxu0 0.0
        %4198 = vmatpush1.xpose.msra.mxu0 0.0
        %4199 = vmatprep.subr.mxu0 0.0
        %4200 = vmatpush1.xpose.msra.mxu0 0.0
        %4201 = vmatprep.subr.mxu0 0.0
        %4202 = vmatpush1.xpose.msra.mxu0 0.0
        %4203 = vmatprep.subr.mxu0 0.0
        %4204 = vmatpush1.xpose.msra.mxu0 0.0
        %4205 = vmatprep.subr.mxu0 0.0
        %4206 = vmatpush1.xpose.msra.mxu0 0.0
        %4207 = vmatprep.subr.mxu0 0.0
        %4208 = vmatpush1.xpose.msra.mxu0 0.0
        %4209 = vmatprep.subr.mxu0 0.0
        %4210 = vmatpush1.xpose.msra.mxu0 0.0
        %4211 = vmatprep.subr.mxu0 0.0
        %4212 = vmatpush1.xpose.msra.mxu0 0.0
        %4213 = vmatprep.subr.mxu0 0.0
        %4214 = vmatpush1.xpose.msra.mxu0 0.0
        %4215 = vmatprep.subr.mxu0 0.0
        %4216 = vmatpush1.xpose.msra.mxu0 0.0
        %4217 = vmatprep.subr.mxu0 0.0
        %4218 = vmatpush1.xpose.msra.mxu0 0.0
        %4219 = vmatprep.subr.mxu0 0.0
        %4220 = vmatpush1.xpose.msra.mxu0 0.0
        %4221 = vmatprep.subr.mxu0 0.0
        %4222 = vmatpush1.xpose.msra.mxu0 0.0
        %4223 = vmatprep.subr.mxu0 0.0
        %4224 = vmatpush1.xpose.msra.mxu0 0.0
        %4225 = vmatprep.subr.mxu0 0.0
        %4226 = vmatpush1.xpose.msra.mxu0 0.0
        %4227 = vmatprep.subr.mxu0 0.0
        %4228 = vmatpush1.xpose.msra.mxu0 0.0
        %4229 = vmatprep.subr.mxu0 0.0
        %4230 = vmatpush1.xpose.msra.mxu0 0.0
        %4231 = vmatprep.subr.mxu0 0.0
        %4232 = vmatpush1.xpose.msra.mxu0 0.0
        %4233 = vmatprep.subr.mxu0 0.0
        %4234 = vmatpush1.xpose.msra.mxu0 0.0
        %4235 = vmatprep.subr.mxu0 0.0
        %4236 = vmatpush1.xpose.msra.mxu0 0.0
        %4237 = vmatprep.subr.mxu0 0.0
        %4238 = vmatpush1.xpose.msra.mxu0 0.0
        %4239 = vmatprep.subr.mxu0 0.0
        %4240 = vmatpush1.xpose.msra.mxu0 0.0
        %4241 = vmatprep.subr.mxu0 0.0
        %4242 = vmatpush1.xpose.msra.mxu0 0.0
        %4243 = vmatprep.subr.mxu0 0.0
        %4244 = vmatpush1.xpose.msra.mxu0 0.0
        %4245 = vmatprep.subr.mxu0 0.0
        %4246 = vmatpush1.xpose.msra.mxu0 0.0
        %4247 = vmatprep.subr.mxu0 0.0
        %4248 = vmatpush1.xpose.msra.mxu0 0.0
        %4249 = vmatprep.subr.mxu0 0.0
        %4250 = vmatpush1.xpose.msra.mxu0 0.0
        %4251 = vmatprep.subr.mxu0 0.0
        %4252 = vmatpush1.xpose.msra.mxu0 0.0
        %4253 = vmatprep.subr.mxu0 0.0
        %4254 = vmatpush1.xpose.msra.mxu0 0.0
        %4255 = vmatprep.subr.mxu0 0.0
        %4256 = vmatpush1.xpose.msra.mxu0 0.0
        %4257 = vmatprep.subr.mxu0 0.0
        %4258 = vmatpush1.xpose.msra.mxu0 0.0
        %4259 = vmatprep.mubr.f32.mxu0 0.0
        %4260 = vmatmul.mubr.f32.gmra.mrb[0].mxu0 %v4191
        %v4261 = vpop.f32.mrb[0].mxu0
        %v4262 = vadd.f32 %v476, %v4261
        %v4263 = vpop.f32.mrb[0].mxu0
        %4264 = vdwg.mxu0
        %v4265 = vsel %vm645, %v4262, -inf
        %4266 = vmax.xlane.f32.xlu0 %v4265
        %v4267 = vpop.xlane.xlu0 %4266
        %v4268 = vsub.f32 %v4262, %v4267
        %v4269 = vmul.f32 %v4268, 1.442695
        %v4270 = vpow.pop %v4269
        %v4271 = vsel %vm645, %v4270, 0.0
        %4272 = vadd.xlane.f32.xlu0 %v4271
        %v4273 = vpop.xlane.xlu0 %4272
        %v4274 = vrcp.pop %v4273
        %v4275 = vmul.f32 %v4270, %v4274
        %s4276 = scalar_lea.vmem %s447, 24
        %4277 = vst.msk [vmem:[%s4276] sm:$0x1f] %vm645, %v4275
        %4278 = vrot.lane.b32.xlu0 %v3670, 40
        %v4279 = vpop.permute.xlu0 %4278
        %v4281 = vsel %vm660, %v4275, 0
        %v4283 = vsel %vm664, %v4279, 0
        %4285 = vmatprep.subr.mxu0 0.0
        %4286 = vmatpush1.msra.mxu0 %v4283
        %4287 = vmatprep.subr.mxu0 0.0
        %4288 = vmatpush1.msra.mxu0 0.0
        %4289 = vmatprep.subr.mxu0 0.0
        %4290 = vmatpush1.msra.mxu0 0.0
        %4291 = vmatprep.subr.mxu0 0.0
        %4292 = vmatpush1.msra.mxu0 0.0
        %4293 = vmatprep.subr.mxu0 0.0
        %4294 = vmatpush1.msra.mxu0 0.0
        %4295 = vmatprep.subr.mxu0 0.0
        %4296 = vmatpush1.msra.mxu0 0.0
        %4297 = vmatprep.subr.mxu0 0.0
        %4298 = vmatpush1.msra.mxu0 0.0
        %4299 = vmatprep.subr.mxu0 0.0
        %4300 = vmatpush1.msra.mxu0 0.0
        %4301 = vmatprep.subr.mxu0 0.0
        %4302 = vmatpush1.msra.mxu0 0.0
        %4303 = vmatprep.subr.mxu0 0.0
        %4304 = vmatpush1.msra.mxu0 0.0
        %4305 = vmatprep.subr.mxu0 0.0
        %4306 = vmatpush1.msra.mxu0 0.0
        %4307 = vmatprep.subr.mxu0 0.0
        %4308 = vmatpush1.msra.mxu0 0.0
        %4309 = vmatprep.subr.mxu0 0.0
        %4310 = vmatpush1.msra.mxu0 0.0
        %4311 = vmatprep.subr.mxu0 0.0
        %4312 = vmatpush1.msra.mxu0 0.0
        %4313 = vmatprep.subr.mxu0 0.0
        %4314 = vmatpush1.msra.mxu0 0.0
        %4315 = vmatprep.subr.mxu0 0.0
        %4316 = vmatpush1.msra.mxu0 0.0
        %4317 = vmatprep.subr.mxu0 0.0
        %4318 = vmatpush1.msra.mxu0 0.0
        %4319 = vmatprep.subr.mxu0 0.0
        %4320 = vmatpush1.msra.mxu0 0.0
        %4321 = vmatprep.subr.mxu0 0.0
        %4322 = vmatpush1.msra.mxu0 0.0
        %4323 = vmatprep.subr.mxu0 0.0
        %4324 = vmatpush1.msra.mxu0 0.0
        %4325 = vmatprep.subr.mxu0 0.0
        %4326 = vmatpush1.msra.mxu0 0.0
        %4327 = vmatprep.subr.mxu0 0.0
        %4328 = vmatpush1.msra.mxu0 0.0
        %4329 = vmatprep.subr.mxu0 0.0
        %4330 = vmatpush1.msra.mxu0 0.0
        %4331 = vmatprep.subr.mxu0 0.0
        %4332 = vmatpush1.msra.mxu0 0.0
        %4333 = vmatprep.subr.mxu0 0.0
        %4334 = vmatpush1.msra.mxu0 0.0
        %4335 = vmatprep.subr.mxu0 0.0
        %4336 = vmatpush1.msra.mxu0 0.0
        %4337 = vmatprep.subr.mxu0 0.0
        %4338 = vmatpush1.msra.mxu0 0.0
        %4339 = vmatprep.subr.mxu0 0.0
        %4340 = vmatpush1.msra.mxu0 0.0
        %4341 = vmatprep.subr.mxu0 0.0
        %4342 = vmatpush1.msra.mxu0 0.0
        %4343 = vmatprep.subr.mxu0 0.0
        %4344 = vmatpush1.msra.mxu0 0.0
        %4345 = vmatprep.subr.mxu0 0.0
        %4346 = vmatpush1.msra.mxu0 0.0
        %4347 = vmatprep.subr.mxu0 0.0
        %4348 = vmatpush1.msra.mxu0 0.0
        %4349 = vmatprep.mubr.f32.mxu0 0.0
        %4350 = vmatmul.mubr.f32.gmra.mrb[0].mxu0 %v4281
        %v4351 = vpop.f32.mrb[0].mxu0
        %v4352 = vadd.f32 0.0, %v4351
        %v4353 = vpop.f32.mrb[0].mxu0
        %4354 = vdwg.mxu0
        %4356 = vrot.lane.b32.xlu0 %v4352, 24
        %v4357 = vpop.permute.xlu0 %4356
        %4359 = vst.msk [vmem:[#allocation2] sm:$0x1f] %vm1259, %v4357
        %v4360 = vld [vmem:[#allocation2] sm:$0x1f]
        %v4361 = vlaneseq
        %v4362 = vshrl.u32 %v4361, 7
        %v4363 = vsub.s32 0, %v4362
        %v4364 = vrot.slane %v3520, %v4363
        %v4366 = vsel %vm493, %v4360, 0
        %4368 = vmatprep.subr.mxu0 0.0
        %4369 = vmatpush1.msra.mxu0 %v3516
        %4370 = vmatprep.subr.mxu0 0.0
        %4371 = vmatpush1.msra.mxu0 %v3517
        %4372 = vmatprep.subr.mxu0 0.0
        %4373 = vmatpush1.msra.mxu0 %v3518
        %4374 = vmatprep.subr.mxu0 0.0
        %4375 = vmatpush1.msra.mxu0 %v3519
        %4376 = vmatprep.subr.mxu0 0.0
        %4377 = vmatpush1.msra.mxu0 0.0
        %4378 = vmatprep.subr.mxu0 0.0
        %4379 = vmatpush1.msra.mxu0 0.0
        %4380 = vmatprep.subr.mxu0 0.0
        %4381 = vmatpush1.msra.mxu0 0.0
        %4382 = vmatprep.subr.mxu0 0.0
        %4383 = vmatpush1.msra.mxu0 0.0
        %4384 = vmatprep.subr.mxu0 0.0
        %4385 = vmatpush1.msra.mxu0 0.0
        %4386 = vmatprep.subr.mxu0 0.0
        %4387 = vmatpush1.msra.mxu0 0.0
        %4388 = vmatprep.subr.mxu0 0.0
        %4389 = vmatpush1.msra.mxu0 0.0
        %4390 = vmatprep.subr.mxu0 0.0
        %4391 = vmatpush1.msra.mxu0 0.0
        %4392 = vmatprep.subr.mxu0 0.0
        %4393 = vmatpush1.msra.mxu0 0.0
        %4394 = vmatprep.subr.mxu0 0.0
        %4395 = vmatpush1.msra.mxu0 0.0
        %4396 = vmatprep.subr.mxu0 0.0
        %4397 = vmatpush1.msra.mxu0 0.0
        %4398 = vmatprep.subr.mxu0 0.0
        %4399 = vmatpush1.msra.mxu0 0.0
        %4400 = vmatprep.subr.mxu0 0.0
        %4401 = vmatpush1.msra.mxu0 0.0
        %4402 = vmatprep.subr.mxu0 0.0
        %4403 = vmatpush1.msra.mxu0 0.0
        %4404 = vmatprep.subr.mxu0 0.0
        %4405 = vmatpush1.msra.mxu0 0.0
        %4406 = vmatprep.subr.mxu0 0.0
        %4407 = vmatpush1.msra.mxu0 0.0
        %4408 = vmatprep.subr.mxu0 0.0
        %4409 = vmatpush1.msra.mxu0 0.0
        %4410 = vmatprep.subr.mxu0 0.0
        %4411 = vmatpush1.msra.mxu0 0.0
        %4412 = vmatprep.subr.mxu0 0.0
        %4413 = vmatpush1.msra.mxu0 0.0
        %4414 = vmatprep.subr.mxu0 0.0
        %4415 = vmatpush1.msra.mxu0 0.0
        %4416 = vmatprep.subr.mxu0 0.0
        %4417 = vmatpush1.msra.mxu0 0.0
        %4418 = vmatprep.subr.mxu0 0.0
        %4419 = vmatpush1.msra.mxu0 0.0
        %4420 = vmatprep.subr.mxu0 0.0
        %4421 = vmatpush1.msra.mxu0 0.0
        %4422 = vmatprep.subr.mxu0 0.0
        %4423 = vmatpush1.msra.mxu0 0.0
        %4424 = vmatprep.subr.mxu0 0.0
        %4425 = vmatpush1.msra.mxu0 0.0
        %4426 = vmatprep.subr.mxu0 0.0
        %4427 = vmatpush1.msra.mxu0 0.0
        %4428 = vmatprep.subr.mxu0 0.0
        %4429 = vmatpush1.msra.mxu0 0.0
        %4430 = vmatprep.subr.mxu0 0.0
        %4431 = vmatpush1.msra.mxu0 0.0
        %4432 = vmatprep.mubr.f32.mxu0 0.0
        %4433 = vmatmul.mubr.f32.gmra.mrb[0].mxu0 %v4366
        %v4434 = vpop.f32.mrb[0].mxu0
        %v4435 = vadd.f32 %v4364, %v4434
        %v4436 = vpop.f32.mrb[0].mxu0
        %4437 = vdwg.mxu0
        %v4438 = vadd.f32 %v4435, %v3510
        %v4439 = vsel %vm1340, %v4438, 0.0
        %4440 = vadd.xlane.f32.xlu0 %v4439
        %v4441 = vpop.xlane.xlu0 %4440
        %v4442 = vmul.f32 %v4441, %v1344
        %v4443 = vsub.f32 %v4438, %v4442
        %v4444 = vmul.f32 %v4443, %v4443
        %v4445 = vsel %vm1340, %v4444, 0.0
        %4446 = vadd.xlane.f32.xlu0 %v4445
        %v4447 = vpop.xlane.xlu0 %4446
        %v4448 = vmul.f32 %v4447, %v1344
        %v4449 = vadd.f32 %v4448, 1e-05
        %v4450 = vrsqrt.pop %v4449
        %v4451 = vmul.f32 %v4443, %v4450
        %v4452 = vlaneseq
        %v4453 = vshrl.u32 %v4452, 7
        %v4454 = vsub.s32 0, %v4453
        %v4455 = vrot.slane %v3521, %v4454
        %v4456 = vmul.f32 %v4451, %v4455
        %v4457 = vlaneseq
        %v4458 = vshrl.u32 %v4457, 7
        %v4459 = vsub.s32 0, %v4458
        %v4460 = vrot.slane %v3522, %v4459
        %v4461 = vadd.f32 %v4456, %v4460
        %v4462 = vld [vmem:[#allocation3 + $0x280] sm:$0xff]
        %v4463 = vld [vmem:[#allocation3 + $0x288] sm:$0xff]
        %v4464 = vld [vmem:[#allocation3 + $0x290] sm:$0xff]
        %v4465 = vld [vmem:[#allocation3 + $0x298] sm:$0xff]
        %v4466 = vld [vmem:[#allocation3 + $0x2a0] sm:$0x1]
        %v4467 = vld [vmem:[#allocation3 + $0x2a8] sm:$0xff]
        %v4468 = vld [vmem:[#allocation3 + $0x2b0] sm:$0xff]
        %v4469 = vld [vmem:[#allocation3 + $0x2b8] sm:$0xff]
        %v4470 = vld [vmem:[#allocation3 + $0x2c0] sm:$0xff]
        %v4471 = vld [vmem:[#allocation3 + $0x2c8] sm:$0xff]
        %v4472 = vld [vmem:[#allocation3 + $0x2d0] sm:$0xff]
        %v4473 = vld [vmem:[#allocation3 + $0x2d8] sm:$0xff]
        %v4474 = vld [vmem:[#allocation3 + $0x2e0] sm:$0xff]
        %v4475 = vld [vmem:[#allocation3 + $0x2e8] sm:$0x1]
        %v4476 = vld [vmem:[#allocation3 + $0x2f0] sm:$0x1]
        %v4477 = vld [vmem:[#allocation3 + $0x2f8] sm:$0x1]
        %v4478 = vlaneseq
        %v4479 = vshrl.u32 %v4478, 7
        %v4480 = vsub.s32 0, %v4479
        %v4481 = vrot.slane %v4466, %v4480
        %v4483 = vsel %vm493, %v4461, 0
        %4485 = vmatprep.subr.mxu0 0.0
        %4486 = vmatpush1.msra.mxu0 %v4462
        %4487 = vmatprep.subr.mxu0 0.0
        %4488 = vmatpush1.msra.mxu0 %v4463
        %4489 = vmatprep.subr.mxu0 0.0
        %4490 = vmatpush1.msra.mxu0 %v4464
        %4491 = vmatprep.subr.mxu0 0.0
        %4492 = vmatpush1.msra.mxu0 %v4465
        %4493 = vmatprep.subr.mxu0 0.0
        %4494 = vmatpush1.msra.mxu0 0.0
        %4495 = vmatprep.subr.mxu0 0.0
        %4496 = vmatpush1.msra.mxu0 0.0
        %4497 = vmatprep.subr.mxu0 0.0
        %4498 = vmatpush1.msra.mxu0 0.0
        %4499 = vmatprep.subr.mxu0 0.0
        %4500 = vmatpush1.msra.mxu0 0.0
        %4501 = vmatprep.subr.mxu0 0.0
        %4502 = vmatpush1.msra.mxu0 0.0
        %4503 = vmatprep.subr.mxu0 0.0
        %4504 = vmatpush1.msra.mxu0 0.0
        %4505 = vmatprep.subr.mxu0 0.0
        %4506 = vmatpush1.msra.mxu0 0.0
        %4507 = vmatprep.subr.mxu0 0.0
        %4508 = vmatpush1.msra.mxu0 0.0
        %4509 = vmatprep.subr.mxu0 0.0
        %4510 = vmatpush1.msra.mxu0 0.0
        %4511 = vmatprep.subr.mxu0 0.0
        %4512 = vmatpush1.msra.mxu0 0.0
        %4513 = vmatprep.subr.mxu0 0.0
        %4514 = vmatpush1.msra.mxu0 0.0
        %4515 = vmatprep.subr.mxu0 0.0
        %4516 = vmatpush1.msra.mxu0 0.0
        %4517 = vmatprep.subr.mxu0 0.0
        %4518 = vmatpush1.msra.mxu0 0.0
        %4519 = vmatprep.subr.mxu0 0.0
        %4520 = vmatpush1.msra.mxu0 0.0
        %4521 = vmatprep.subr.mxu0 0.0
        %4522 = vmatpush1.msra.mxu0 0.0
        %4523 = vmatprep.subr.mxu0 0.0
        %4524 = vmatpush1.msra.mxu0 0.0
        %4525 = vmatprep.subr.mxu0 0.0
        %4526 = vmatpush1.msra.mxu0 0.0
        %4527 = vmatprep.subr.mxu0 0.0
        %4528 = vmatpush1.msra.mxu0 0.0
        %4529 = vmatprep.subr.mxu0 0.0
        %4530 = vmatpush1.msra.mxu0 0.0
        %4531 = vmatprep.subr.mxu0 0.0
        %4532 = vmatpush1.msra.mxu0 0.0
        %4533 = vmatprep.subr.mxu0 0.0
        %4534 = vmatpush1.msra.mxu0 0.0
        %4535 = vmatprep.subr.mxu0 0.0
        %4536 = vmatpush1.msra.mxu0 0.0
        %4537 = vmatprep.subr.mxu0 0.0
        %4538 = vmatpush1.msra.mxu0 0.0
        %4539 = vmatprep.subr.mxu0 0.0
        %4540 = vmatpush1.msra.mxu0 0.0
        %4541 = vmatprep.subr.mxu0 0.0
        %4542 = vmatpush1.msra.mxu0 0.0
        %4543 = vmatprep.subr.mxu0 0.0
        %4544 = vmatpush1.msra.mxu0 0.0
        %4545 = vmatprep.subr.mxu0 0.0
        %4546 = vmatpush1.msra.mxu0 0.0
        %4547 = vmatprep.subr.mxu0 0.0
        %4548 = vmatpush1.msra.mxu0 0.0
        %4549 = vmatprep.mubr.f32.mxu0 0.0
        %4550 = vmatmul.mubr.f32.gmra.mrb[0].mxu0 %v4483
        %v4551 = vpop.f32.mrb[0].mxu0
        %v4552 = vadd.f32 %v4481, %v4551
        %v4553 = vpop.f32.mrb[0].mxu0
        %4554 = vdwg.mxu0
        %v4555 = vmax.f32 %v4552, 0.0
        %v4556 = vlaneseq
        %v4557 = vshrl.u32 %v4556, 7
        %v4558 = vsub.s32 0, %v4557
        %v4559 = vrot.slane %v4475, %v4558
        %v4561 = vsel %vm1463, %v4555, 0
        %4563 = vmatprep.subr.mxu0 0.0
        %4564 = vmatpush1.msra.mxu0 %v4467
        %4565 = vmatprep.subr.mxu0 0.0
        %4566 = vmatpush1.msra.mxu0 %v4468
        %4567 = vmatprep.subr.mxu0 0.0
        %4568 = vmatpush1.msra.mxu0 %v4469
        %4569 = vmatprep.subr.mxu0 0.0
        %4570 = vmatpush1.msra.mxu0 %v4470
        %4571 = vmatprep.subr.mxu0 0.0
        %4572 = vmatpush1.msra.mxu0 %v4471
        %4573 = vmatprep.subr.mxu0 0.0
        %4574 = vmatpush1.msra.mxu0 %v4472
        %4575 = vmatprep.subr.mxu0 0.0
        %4576 = vmatpush1.msra.mxu0 %v4473
        %4577 = vmatprep.subr.mxu0 0.0
        %4578 = vmatpush1.msra.mxu0 %v4474
        %4579 = vmatprep.subr.mxu0 0.0
        %4580 = vmatpush1.msra.mxu0 0.0
        %4581 = vmatprep.subr.mxu0 0.0
        %4582 = vmatpush1.msra.mxu0 0.0
        %4583 = vmatprep.subr.mxu0 0.0
        %4584 = vmatpush1.msra.mxu0 0.0
        %4585 = vmatprep.subr.mxu0 0.0
        %4586 = vmatpush1.msra.mxu0 0.0
        %4587 = vmatprep.subr.mxu0 0.0
        %4588 = vmatpush1.msra.mxu0 0.0
        %4589 = vmatprep.subr.mxu0 0.0
        %4590 = vmatpush1.msra.mxu0 0.0
        %4591 = vmatprep.subr.mxu0 0.0
        %4592 = vmatpush1.msra.mxu0 0.0
        %4593 = vmatprep.subr.mxu0 0.0
        %4594 = vmatpush1.msra.mxu0 0.0
        %4595 = vmatprep.subr.mxu0 0.0
        %4596 = vmatpush1.msra.mxu0 0.0
        %4597 = vmatprep.subr.mxu0 0.0
        %4598 = vmatpush1.msra.mxu0 0.0
        %4599 = vmatprep.subr.mxu0 0.0
        %4600 = vmatpush1.msra.mxu0 0.0
        %4601 = vmatprep.subr.mxu0 0.0
        %4602 = vmatpush1.msra.mxu0 0.0
        %4603 = vmatprep.subr.mxu0 0.0
        %4604 = vmatpush1.msra.mxu0 0.0
        %4605 = vmatprep.subr.mxu0 0.0
        %4606 = vmatpush1.msra.mxu0 0.0
        %4607 = vmatprep.subr.mxu0 0.0
        %4608 = vmatpush1.msra.mxu0 0.0
        %4609 = vmatprep.subr.mxu0 0.0
        %4610 = vmatpush1.msra.mxu0 0.0
        %4611 = vmatprep.subr.mxu0 0.0
        %4612 = vmatpush1.msra.mxu0 0.0
        %4613 = vmatprep.subr.mxu0 0.0
        %4614 = vmatpush1.msra.mxu0 0.0
        %4615 = vmatprep.subr.mxu0 0.0
        %4616 = vmatpush1.msra.mxu0 0.0
        %4617 = vmatprep.subr.mxu0 0.0
        %4618 = vmatpush1.msra.mxu0 0.0
        %4619 = vmatprep.subr.mxu0 0.0
        %4620 = vmatpush1.msra.mxu0 0.0
        %4621 = vmatprep.subr.mxu0 0.0
        %4622 = vmatpush1.msra.mxu0 0.0
        %4623 = vmatprep.subr.mxu0 0.0
        %4624 = vmatpush1.msra.mxu0 0.0
        %4625 = vmatprep.subr.mxu0 0.0
        %4626 = vmatpush1.msra.mxu0 0.0
        %4627 = vmatprep.mubr.f32.mxu0 0.0
        %4628 = vmatmul.mubr.f32.gmra.mrb[0].mxu0 %v4561
        %v4629 = vpop.f32.mrb[0].mxu0
        %v4630 = vadd.f32 %v4559, %v4629
        %v4631 = vpop.f32.mrb[0].mxu0
        %4632 = vdwg.mxu0
        %v4633 = vadd.f32 %v4630, %v4461
        %v4634 = vsel %vm1340, %v4633, 0.0
        %4635 = vadd.xlane.f32.xlu0 %v4634
        %v4636 = vpop.xlane.xlu0 %4635
        %v4637 = vmul.f32 %v4636, %v1344
        %v4638 = vsub.f32 %v4633, %v4637
        %v4639 = vmul.f32 %v4638, %v4638
        %v4640 = vsel %vm1340, %v4639, 0.0
        %4641 = vadd.xlane.f32.xlu0 %v4640
        %v4642 = vpop.xlane.xlu0 %4641
        %v4643 = vmul.f32 %v4642, %v1344
        %v4644 = vadd.f32 %v4643, 1e-05
        %v4645 = vrsqrt.pop %v4644
        %v4646 = vmul.f32 %v4638, %v4645
        %v4647 = vlaneseq
        %v4648 = vshrl.u32 %v4647, 7
        %v4649 = vsub.s32 0, %v4648
        %v4650 = vrot.slane %v4476, %v4649
        %v4651 = vmul.f32 %v4646, %v4650
        %v4652 = vlaneseq
        %v4653 = vshrl.u32 %v4652, 7
        %v4654 = vsub.s32 0, %v4653
        %v4655 = vrot.slane %v4477, %v4654
        %v4656 = vadd.f32 %v4651, %v4655
        %v4657 = vld [vmem:[#allocation3 + $0x300] sm:$0xff]
        %v4658 = vld [vmem:[#allocation3 + $0x308] sm:$0xff]
        %v4659 = vld [vmem:[#allocation3 + $0x310] sm:$0xff]
        %v4660 = vld [vmem:[#allocation3 + $0x318] sm:$0xff]
        %v4661 = vld [vmem:[#allocation3 + $0x320] sm:$0x1]
        %v4662 = vld [vmem:[#allocation3 + $0x328] sm:$0xff]
        %v4663 = vld [vmem:[#allocation3 + $0x330] sm:$0xff]
        %v4664 = vld [vmem:[#allocation3 + $0x338] sm:$0xff]
        %v4665 = vld [vmem:[#allocation3 + $0x340] sm:$0xff]
        %v4666 = vld [vmem:[#allocation3 + $0x348] sm:$0x1]
        %v4667 = vld [vmem:[#allocation3 + $0x350] sm:$0x1]
        %v4668 = vld [vmem:[#allocation3 + $0x358] sm:$0x1]
        %v4669 = vlaneseq
        %v4670 = vshrl.u32 %v4669, 7
        %v4671 = vsub.s32 0, %v4670
        %v4672 = vrot.slane %v4661, %v4671
        %v4674 = vsel %vm493, %v4656, 0
        %4676 = vmatprep.subr.mxu0 0.0
        %4677 = vmatpush1.msra.mxu0 %v4657
        %4678 = vmatprep.subr.mxu0 0.0
        %4679 = vmatpush1.msra.mxu0 %v4658
        %4680 = vmatprep.subr.mxu0 0.0
        %4681 = vmatpush1.msra.mxu0 %v4659
        %4682 = vmatprep.subr.mxu0 0.0
        %4683 = vmatpush1.msra.mxu0 %v4660
        %4684 = vmatprep.subr.mxu0 0.0
        %4685 = vmatpush1.msra.mxu0 0.0
        %4686 = vmatprep.subr.mxu0 0.0
        %4687 = vmatpush1.msra.mxu0 0.0
        %4688 = vmatprep.subr.mxu0 0.0
        %4689 = vmatpush1.msra.mxu0 0.0
        %4690 = vmatprep.subr.mxu0 0.0
        %4691 = vmatpush1.msra.mxu0 0.0
        %4692 = vmatprep.subr.mxu0 0.0
        %4693 = vmatpush1.msra.mxu0 0.0
        %4694 = vmatprep.subr.mxu0 0.0
        %4695 = vmatpush1.msra.mxu0 0.0
        %4696 = vmatprep.subr.mxu0 0.0
        %4697 = vmatpush1.msra.mxu0 0.0
        %4698 = vmatprep.subr.mxu0 0.0
        %4699 = vmatpush1.msra.mxu0 0.0
        %4700 = vmatprep.subr.mxu0 0.0
        %4701 = vmatpush1.msra.mxu0 0.0
        %4702 = vmatprep.subr.mxu0 0.0
        %4703 = vmatpush1.msra.mxu0 0.0
        %4704 = vmatprep.subr.mxu0 0.0
        %4705 = vmatpush1.msra.mxu0 0.0
        %4706 = vmatprep.subr.mxu0 0.0
        %4707 = vmatpush1.msra.mxu0 0.0
        %4708 = vmatprep.subr.mxu0 0.0
        %4709 = vmatpush1.msra.mxu0 0.0
        %4710 = vmatprep.subr.mxu0 0.0
        %4711 = vmatpush1.msra.mxu0 0.0
        %4712 = vmatprep.subr.mxu0 0.0
        %4713 = vmatpush1.msra.mxu0 0.0
        %4714 = vmatprep.subr.mxu0 0.0
        %4715 = vmatpush1.msra.mxu0 0.0
        %4716 = vmatprep.subr.mxu0 0.0
        %4717 = vmatpush1.msra.mxu0 0.0
        %4718 = vmatprep.subr.mxu0 0.0
        %4719 = vmatpush1.msra.mxu0 0.0
        %4720 = vmatprep.subr.mxu0 0.0
        %4721 = vmatpush1.msra.mxu0 0.0
        %4722 = vmatprep.subr.mxu0 0.0
        %4723 = vmatpush1.msra.mxu0 0.0
        %4724 = vmatprep.subr.mxu0 0.0
        %4725 = vmatpush1.msra.mxu0 0.0
        %4726 = vmatprep.subr.mxu0 0.0
        %4727 = vmatpush1.msra.mxu0 0.0
        %4728 = vmatprep.subr.mxu0 0.0
        %4729 = vmatpush1.msra.mxu0 0.0
        %4730 = vmatprep.subr.mxu0 0.0
        %4731 = vmatpush1.msra.mxu0 0.0
        %4732 = vmatprep.subr.mxu0 0.0
        %4733 = vmatpush1.msra.mxu0 0.0
        %4734 = vmatprep.subr.mxu0 0.0
        %4735 = vmatpush1.msra.mxu0 0.0
        %4736 = vmatprep.subr.mxu0 0.0
        %4737 = vmatpush1.msra.mxu0 0.0
        %4738 = vmatprep.subr.mxu0 0.0
        %4739 = vmatpush1.msra.mxu0 0.0
        %4740 = vmatprep.mubr.f32.mxu0 0.0
        %4741 = vmatmul.mubr.f32.gmra.mrb[0].mxu0 %v4674
        %v4742 = vpop.f32.mrb[0].mxu0
        %v4743 = vadd.f32 %v4672, %v4742
        %v4744 = vpop.f32.mrb[0].mxu0
        %4745 = vdwg.mxu0
        %4747 = vrot.lane.b32.xlu0 %v4743, 96
        %v4748 = vpop.permute.xlu0 %4747
        %v4749 = vsel %vm570, %v4743, 0
        %v4751 = vsel %vm570, %v4748, 0
        %4753 = vmatprep.subr.mxu0 0.0
        %4754 = vmatpush1.xpose.msra.mxu0 %v4751
        %4755 = vmatprep.subr.mxu0 0.0
        %4756 = vmatpush1.xpose.msra.mxu0 0.0
        %4757 = vmatprep.subr.mxu0 0.0
        %4758 = vmatpush1.xpose.msra.mxu0 0.0
        %4759 = vmatprep.subr.mxu0 0.0
        %4760 = vmatpush1.xpose.msra.mxu0 0.0
        %4761 = vmatprep.subr.mxu0 0.0
        %4762 = vmatpush1.xpose.msra.mxu0 0.0
        %4763 = vmatprep.subr.mxu0 0.0
        %4764 = vmatpush1.xpose.msra.mxu0 0.0
        %4765 = vmatprep.subr.mxu0 0.0
        %4766 = vmatpush1.xpose.msra.mxu0 0.0
        %4767 = vmatprep.subr.mxu0 0.0
        %4768 = vmatpush1.xpose.msra.mxu0 0.0
        %4769 = vmatprep.subr.mxu0 0.0
        %4770 = vmatpush1.xpose.msra.mxu0 0.0
        %4771 = vmatprep.subr.mxu0 0.0
        %4772 = vmatpush1.xpose.msra.mxu0 0.0
        %4773 = vmatprep.subr.mxu0 0.0
        %4774 = vmatpush1.xpose.msra.mxu0 0.0
        %4775 = vmatprep.subr.mxu0 0.0
        %4776 = vmatpush1.xpose.msra.mxu0 0.0
        %4777 = vmatprep.subr.mxu0 0.0
        %4778 = vmatpush1.xpose.msra.mxu0 0.0
        %4779 = vmatprep.subr.mxu0 0.0
        %4780 = vmatpush1.xpose.msra.mxu0 0.0
        %4781 = vmatprep.subr.mxu0 0.0
        %4782 = vmatpush1.xpose.msra.mxu0 0.0
        %4783 = vmatprep.subr.mxu0 0.0
        %4784 = vmatpush1.xpose.msra.mxu0 0.0
        %4785 = vmatprep.subr.mxu0 0.0
        %4786 = vmatpush1.xpose.msra.mxu0 0.0
        %4787 = vmatprep.subr.mxu0 0.0
        %4788 = vmatpush1.xpose.msra.mxu0 0.0
        %4789 = vmatprep.subr.mxu0 0.0
        %4790 = vmatpush1.xpose.msra.mxu0 0.0
        %4791 = vmatprep.subr.mxu0 0.0
        %4792 = vmatpush1.xpose.msra.mxu0 0.0
        %4793 = vmatprep.subr.mxu0 0.0
        %4794 = vmatpush1.xpose.msra.mxu0 0.0
        %4795 = vmatprep.subr.mxu0 0.0
        %4796 = vmatpush1.xpose.msra.mxu0 0.0
        %4797 = vmatprep.subr.mxu0 0.0
        %4798 = vmatpush1.xpose.msra.mxu0 0.0
        %4799 = vmatprep.subr.mxu0 0.0
        %4800 = vmatpush1.xpose.msra.mxu0 0.0
        %4801 = vmatprep.subr.mxu0 0.0
        %4802 = vmatpush1.xpose.msra.mxu0 0.0
        %4803 = vmatprep.subr.mxu0 0.0
        %4804 = vmatpush1.xpose.msra.mxu0 0.0
        %4805 = vmatprep.subr.mxu0 0.0
        %4806 = vmatpush1.xpose.msra.mxu0 0.0
        %4807 = vmatprep.subr.mxu0 0.0
        %4808 = vmatpush1.xpose.msra.mxu0 0.0
        %4809 = vmatprep.subr.mxu0 0.0
        %4810 = vmatpush1.xpose.msra.mxu0 0.0
        %4811 = vmatprep.subr.mxu0 0.0
        %4812 = vmatpush1.xpose.msra.mxu0 0.0
        %4813 = vmatprep.subr.mxu0 0.0
        %4814 = vmatpush1.xpose.msra.mxu0 0.0
        %4815 = vmatprep.subr.mxu0 0.0
        %4816 = vmatpush1.xpose.msra.mxu0 0.0
        %4817 = vmatprep.mubr.f32.mxu0 0.0
        %4818 = vmatmul.mubr.f32.gmra.mrb[0].mxu0 %v4749
        %v4819 = vpop.f32.mrb[0].mxu0
        %v4820 = vadd.f32 %v475, %v4819
        %v4821 = vpop.f32.mrb[0].mxu0
        %4822 = vdwg.mxu0
        %v4823 = vsel %vm645, %v4820, -inf
        %4824 = vmax.xlane.f32.xlu0 %v4823
        %v4825 = vpop.xlane.xlu0 %4824
        %v4826 = vsub.f32 %v4820, %v4825
        %v4827 = vmul.f32 %v4826, 1.442695
        %v4828 = vpow.pop %v4827
        %v4829 = vsel %vm645, %v4828, 0.0
        %4830 = vadd.xlane.f32.xlu0 %v4829
        %v4831 = vpop.xlane.xlu0 %4830
        %v4832 = vrcp.pop %v4831
        %v4833 = vmul.f32 %v4828, %v4832
        %s4834 = scalar_lea.vmem %s442, 32
        %4835 = vst.msk [vmem:[%s4834] sm:$0x1f] %vm645, %v4833
        %4836 = vrot.lane.b32.xlu0 %v4743, 64
        %v4837 = vpop.permute.xlu0 %4836
        %v4839 = vsel %vm660, %v4833, 0
        %v4841 = vsel %vm664, %v4837, 0
        %4843 = vmatprep.subr.mxu0 0.0
        %4844 = vmatpush1.msra.mxu0 %v4841
        %4845 = vmatprep.subr.mxu0 0.0
        %4846 = vmatpush1.msra.mxu0 0.0
        %4847 = vmatprep.subr.mxu0 0.0
        %4848 = vmatpush1.msra.mxu0 0.0
        %4849 = vmatprep.subr.mxu0 0.0
        %4850 = vmatpush1.msra.mxu0 0.0
        %4851 = vmatprep.subr.mxu0 0.0
        %4852 = vmatpush1.msra.mxu0 0.0
        %4853 = vmatprep.subr.mxu0 0.0
        %4854 = vmatpush1.msra.mxu0 0.0
        %4855 = vmatprep.subr.mxu0 0.0
        %4856 = vmatpush1.msra.mxu0 0.0
        %4857 = vmatprep.subr.mxu0 0.0
        %4858 = vmatpush1.msra.mxu0 0.0
        %4859 = vmatprep.subr.mxu0 0.0
        %4860 = vmatpush1.msra.mxu0 0.0
        %4861 = vmatprep.subr.mxu0 0.0
        %4862 = vmatpush1.msra.mxu0 0.0
        %4863 = vmatprep.subr.mxu0 0.0
        %4864 = vmatpush1.msra.mxu0 0.0
        %4865 = vmatprep.subr.mxu0 0.0
        %4866 = vmatpush1.msra.mxu0 0.0
        %4867 = vmatprep.subr.mxu0 0.0
        %4868 = vmatpush1.msra.mxu0 0.0
        %4869 = vmatprep.subr.mxu0 0.0
        %4870 = vmatpush1.msra.mxu0 0.0
        %4871 = vmatprep.subr.mxu0 0.0
        %4872 = vmatpush1.msra.mxu0 0.0
        %4873 = vmatprep.subr.mxu0 0.0
        %4874 = vmatpush1.msra.mxu0 0.0
        %4875 = vmatprep.subr.mxu0 0.0
        %4876 = vmatpush1.msra.mxu0 0.0
        %4877 = vmatprep.subr.mxu0 0.0
        %4878 = vmatpush1.msra.mxu0 0.0
        %4879 = vmatprep.subr.mxu0 0.0
        %4880 = vmatpush1.msra.mxu0 0.0
        %4881 = vmatprep.subr.mxu0 0.0
        %4882 = vmatpush1.msra.mxu0 0.0
        %4883 = vmatprep.subr.mxu0 0.0
        %4884 = vmatpush1.msra.mxu0 0.0
        %4885 = vmatprep.subr.mxu0 0.0
        %4886 = vmatpush1.msra.mxu0 0.0
        %4887 = vmatprep.subr.mxu0 0.0
        %4888 = vmatpush1.msra.mxu0 0.0
        %4889 = vmatprep.subr.mxu0 0.0
        %4890 = vmatpush1.msra.mxu0 0.0
        %4891 = vmatprep.subr.mxu0 0.0
        %4892 = vmatpush1.msra.mxu0 0.0
        %4893 = vmatprep.subr.mxu0 0.0
        %4894 = vmatpush1.msra.mxu0 0.0
        %4895 = vmatprep.subr.mxu0 0.0
        %4896 = vmatpush1.msra.mxu0 0.0
        %4897 = vmatprep.subr.mxu0 0.0
        %4898 = vmatpush1.msra.mxu0 0.0
        %4899 = vmatprep.subr.mxu0 0.0
        %4900 = vmatpush1.msra.mxu0 0.0
        %4901 = vmatprep.subr.mxu0 0.0
        %4902 = vmatpush1.msra.mxu0 0.0
        %4903 = vmatprep.subr.mxu0 0.0
        %4904 = vmatpush1.msra.mxu0 0.0
        %4905 = vmatprep.subr.mxu0 0.0
        %4906 = vmatpush1.msra.mxu0 0.0
        %4907 = vmatprep.mubr.f32.mxu0 0.0
        %4908 = vmatmul.mubr.f32.gmra.mrb[0].mxu0 %v4839
        %v4909 = vpop.f32.mrb[0].mxu0
        %v4910 = vadd.f32 0.0, %v4909
        %v4911 = vpop.f32.mrb[0].mxu0
        %4912 = vdwg.mxu0
        %4913 = vst.msk [vmem:[#allocation2] sm:$0x1f] %vm737, %v4910
        %4914 = vrot.lane.b32.xlu0 %v4743, 120
        %v4915 = vpop.permute.xlu0 %4914
        %4916 = vrot.lane.b32.xlu0 %v4743, 88
        %v4917 = vpop.permute.xlu0 %4916
        %v4918 = vsel %vm570, %v4915, 0
        %v4920 = vsel %vm570, %v4917, 0
        %4922 = vmatprep.subr.mxu0 0.0
        %4923 = vmatpush1.xpose.msra.mxu0 %v4920
        %4924 = vmatprep.subr.mxu0 0.0
        %4925 = vmatpush1.xpose.msra.mxu0 0.0
        %4926 = vmatprep.subr.mxu0 0.0
        %4927 = vmatpush1.xpose.msra.mxu0 0.0
        %4928 = vmatprep.subr.mxu0 0.0
        %4929 = vmatpush1.xpose.msra.mxu0 0.0
        %4930 = vmatprep.subr.mxu0 0.0
        %4931 = vmatpush1.xpose.msra.mxu0 0.0
        %4932 = vmatprep.subr.mxu0 0.0
        %4933 = vmatpush1.xpose.msra.mxu0 0.0
        %4934 = vmatprep.subr.mxu0 0.0
        %4935 = vmatpush1.xpose.msra.mxu0 0.0
        %4936 = vmatprep.subr.mxu0 0.0
        %4937 = vmatpush1.xpose.msra.mxu0 0.0
        %4938 = vmatprep.subr.mxu0 0.0
        %4939 = vmatpush1.xpose.msra.mxu0 0.0
        %4940 = vmatprep.subr.mxu0 0.0
        %4941 = vmatpush1.xpose.msra.mxu0 0.0
        %4942 = vmatprep.subr.mxu0 0.0
        %4943 = vmatpush1.xpose.msra.mxu0 0.0
        %4944 = vmatprep.subr.mxu0 0.0
        %4945 = vmatpush1.xpose.msra.mxu0 0.0
        %4946 = vmatprep.subr.mxu0 0.0
        %4947 = vmatpush1.xpose.msra.mxu0 0.0
        %4948 = vmatprep.subr.mxu0 0.0
        %4949 = vmatpush1.xpose.msra.mxu0 0.0
        %4950 = vmatprep.subr.mxu0 0.0
        %4951 = vmatpush1.xpose.msra.mxu0 0.0
        %4952 = vmatprep.subr.mxu0 0.0
        %4953 = vmatpush1.xpose.msra.mxu0 0.0
        %4954 = vmatprep.subr.mxu0 0.0
        %4955 = vmatpush1.xpose.msra.mxu0 0.0
        %4956 = vmatprep.subr.mxu0 0.0
        %4957 = vmatpush1.xpose.msra.mxu0 0.0
        %4958 = vmatprep.subr.mxu0 0.0
        %4959 = vmatpush1.xpose.msra.mxu0 0.0
        %4960 = vmatprep.subr.mxu0 0.0
        %4961 = vmatpush1.xpose.msra.mxu0 0.0
        %4962 = vmatprep.subr.mxu0 0.0
        %4963 = vmatpush1.xpose.msra.mxu0 0.0
        %4964 = vmatprep.subr.mxu0 0.0
        %4965 = vmatpush1.xpose.msra.mxu0 0.0
        %4966 = vmatprep.subr.mxu0 0.0
        %4967 = vmatpush1.xpose.msra.mxu0 0.0
        %4968 = vmatprep.subr.mxu0 0.0
        %4969 = vmatpush1.xpose.msra.mxu0 0.0
        %4970 = vmatprep.subr.mxu0 0.0
        %4971 = vmatpush1.xpose.msra.mxu0 0.0
        %4972 = vmatprep.subr.mxu0 0.0
        %4973 = vmatpush1.xpose.msra.mxu0 0.0
        %4974 = vmatprep.subr.mxu0 0.0
        %4975 = vmatpush1.xpose.msra.mxu0 0.0
        %4976 = vmatprep.subr.mxu0 0.0
        %4977 = vmatpush1.xpose.msra.mxu0 0.0
        %4978 = vmatprep.subr.mxu0 0.0
        %4979 = vmatpush1.xpose.msra.mxu0 0.0
        %4980 = vmatprep.subr.mxu0 0.0
        %4981 = vmatpush1.xpose.msra.mxu0 0.0
        %4982 = vmatprep.subr.mxu0 0.0
        %4983 = vmatpush1.xpose.msra.mxu0 0.0
        %4984 = vmatprep.subr.mxu0 0.0
        %4985 = vmatpush1.xpose.msra.mxu0 0.0
        %4986 = vmatprep.mubr.f32.mxu0 0.0
        %4987 = vmatmul.mubr.f32.gmra.mrb[0].mxu0 %v4918
        %v4988 = vpop.f32.mrb[0].mxu0
        %v4989 = vadd.f32 %v475, %v4988
        %v4990 = vpop.f32.mrb[0].mxu0
        %4991 = vdwg.mxu0
        %v4992 = vsel %vm645, %v4989, -inf
        %4993 = vmax.xlane.f32.xlu0 %v4992
        %v4994 = vpop.xlane.xlu0 %4993
        %v4995 = vsub.f32 %v4989, %v4994
        %v4996 = vmul.f32 %v4995, 1.442695
        %v4997 = vpow.pop %v4996
        %v4998 = vsel %vm645, %v4997, 0.0
        %4999 = vadd.xlane.f32.xlu0 %v4998
        %v5000 = vpop.xlane.xlu0 %4999
        %v5001 = vrcp.pop %v5000
        %v5002 = vmul.f32 %v4997, %v5001
        %s5003 = scalar_lea.vmem %s442, 40
        %5004 = vst.msk [vmem:[%s5003] sm:$0x1f] %vm645, %v5002
        %5005 = vrot.lane.b32.xlu0 %v4743, 56
        %v5006 = vpop.permute.xlu0 %5005
        %v5008 = vsel %vm660, %v5002, 0
        %v5010 = vsel %vm664, %v5006, 0
        %5012 = vmatprep.subr.mxu0 0.0
        %5013 = vmatpush1.msra.mxu0 %v5010
        %5014 = vmatprep.subr.mxu0 0.0
        %5015 = vmatpush1.msra.mxu0 0.0
        %5016 = vmatprep.subr.mxu0 0.0
        %5017 = vmatpush1.msra.mxu0 0.0
        %5018 = vmatprep.subr.mxu0 0.0
        %5019 = vmatpush1.msra.mxu0 0.0
        %5020 = vmatprep.subr.mxu0 0.0
        %5021 = vmatpush1.msra.mxu0 0.0
        %5022 = vmatprep.subr.mxu0 0.0
        %5023 = vmatpush1.msra.mxu0 0.0
        %5024 = vmatprep.subr.mxu0 0.0
        %5025 = vmatpush1.msra.mxu0 0.0
        %5026 = vmatprep.subr.mxu0 0.0
        %5027 = vmatpush1.msra.mxu0 0.0
        %5028 = vmatprep.subr.mxu0 0.0
        %5029 = vmatpush1.msra.mxu0 0.0
        %5030 = vmatprep.subr.mxu0 0.0
        %5031 = vmatpush1.msra.mxu0 0.0
        %5032 = vmatprep.subr.mxu0 0.0
        %5033 = vmatpush1.msra.mxu0 0.0
        %5034 = vmatprep.subr.mxu0 0.0
        %5035 = vmatpush1.msra.mxu0 0.0
        %5036 = vmatprep.subr.mxu0 0.0
        %5037 = vmatpush1.msra.mxu0 0.0
        %5038 = vmatprep.subr.mxu0 0.0
        %5039 = vmatpush1.msra.mxu0 0.0
        %5040 = vmatprep.subr.mxu0 0.0
        %5041 = vmatpush1.msra.mxu0 0.0
        %5042 = vmatprep.subr.mxu0 0.0
        %5043 = vmatpush1.msra.mxu0 0.0
        %5044 = vmatprep.subr.mxu0 0.0
        %5045 = vmatpush1.msra.mxu0 0.0
        %5046 = vmatprep.subr.mxu0 0.0
        %5047 = vmatpush1.msra.mxu0 0.0
        %5048 = vmatprep.subr.mxu0 0.0
        %5049 = vmatpush1.msra.mxu0 0.0
        %5050 = vmatprep.subr.mxu0 0.0
        %5051 = vmatpush1.msra.mxu0 0.0
        %5052 = vmatprep.subr.mxu0 0.0
        %5053 = vmatpush1.msra.mxu0 0.0
        %5054 = vmatprep.subr.mxu0 0.0
        %5055 = vmatpush1.msra.mxu0 0.0
        %5056 = vmatprep.subr.mxu0 0.0
        %5057 = vmatpush1.msra.mxu0 0.0
        %5058 = vmatprep.subr.mxu0 0.0
        %5059 = vmatpush1.msra.mxu0 0.0
        %5060 = vmatprep.subr.mxu0 0.0
        %5061 = vmatpush1.msra.mxu0 0.0
        %5062 = vmatprep.subr.mxu0 0.0
        %5063 = vmatpush1.msra.mxu0 0.0
        %5064 = vmatprep.subr.mxu0 0.0
        %5065 = vmatpush1.msra.mxu0 0.0
        %5066 = vmatprep.subr.mxu0 0.0
        %5067 = vmatpush1.msra.mxu0 0.0
        %5068 = vmatprep.subr.mxu0 0.0
        %5069 = vmatpush1.msra.mxu0 0.0
        %5070 = vmatprep.subr.mxu0 0.0
        %5071 = vmatpush1.msra.mxu0 0.0
        %5072 = vmatprep.subr.mxu0 0.0
        %5073 = vmatpush1.msra.mxu0 0.0
        %5074 = vmatprep.subr.mxu0 0.0
        %5075 = vmatpush1.msra.mxu0 0.0
        %5076 = vmatprep.mubr.f32.mxu0 0.0
        %5077 = vmatmul.mubr.f32.gmra.mrb[0].mxu0 %v5008
        %v5078 = vpop.f32.mrb[0].mxu0
        %v5079 = vadd.f32 0.0, %v5078
        %v5080 = vpop.f32.mrb[0].mxu0
        %5081 = vdwg.mxu0
        %5083 = vrot.lane.b32.xlu0 %v5079, 8
        %v5084 = vpop.permute.xlu0 %5083
        %5086 = vst.msk [vmem:[#allocation2] sm:$0x1f] %vm911, %v5084
        %5087 = vrot.lane.b32.xlu0 %v4743, 112
        %v5088 = vpop.permute.xlu0 %5087
        %5089 = vrot.lane.b32.xlu0 %v4743, 80
        %v5090 = vpop.permute.xlu0 %5089
        %v5091 = vsel %vm570, %v5088, 0
        %v5093 = vsel %vm570, %v5090, 0
        %5095 = vmatprep.subr.mxu0 0.0
        %5096 = vmatpush1.xpose.msra.mxu0 %v5093
        %5097 = vmatprep.subr.mxu0 0.0
        %5098 = vmatpush1.xpose.msra.mxu0 0.0
        %5099 = vmatprep.subr.mxu0 0.0
        %5100 = vmatpush1.xpose.msra.mxu0 0.0
        %5101 = vmatprep.subr.mxu0 0.0
        %5102 = vmatpush1.xpose.msra.mxu0 0.0
        %5103 = vmatprep.subr.mxu0 0.0
        %5104 = vmatpush1.xpose.msra.mxu0 0.0
        %5105 = vmatprep.subr.mxu0 0.0
        %5106 = vmatpush1.xpose.msra.mxu0 0.0
        %5107 = vmatprep.subr.mxu0 0.0
        %5108 = vmatpush1.xpose.msra.mxu0 0.0
        %5109 = vmatprep.subr.mxu0 0.0
        %5110 = vmatpush1.xpose.msra.mxu0 0.0
        %5111 = vmatprep.subr.mxu0 0.0
        %5112 = vmatpush1.xpose.msra.mxu0 0.0
        %5113 = vmatprep.subr.mxu0 0.0
        %5114 = vmatpush1.xpose.msra.mxu0 0.0
        %5115 = vmatprep.subr.mxu0 0.0
        %5116 = vmatpush1.xpose.msra.mxu0 0.0
        %5117 = vmatprep.subr.mxu0 0.0
        %5118 = vmatpush1.xpose.msra.mxu0 0.0
        %5119 = vmatprep.subr.mxu0 0.0
        %5120 = vmatpush1.xpose.msra.mxu0 0.0
        %5121 = vmatprep.subr.mxu0 0.0
        %5122 = vmatpush1.xpose.msra.mxu0 0.0
        %5123 = vmatprep.subr.mxu0 0.0
        %5124 = vmatpush1.xpose.msra.mxu0 0.0
        %5125 = vmatprep.subr.mxu0 0.0
        %5126 = vmatpush1.xpose.msra.mxu0 0.0
        %5127 = vmatprep.subr.mxu0 0.0
        %5128 = vmatpush1.xpose.msra.mxu0 0.0
        %5129 = vmatprep.subr.mxu0 0.0
        %5130 = vmatpush1.xpose.msra.mxu0 0.0
        %5131 = vmatprep.subr.mxu0 0.0
        %5132 = vmatpush1.xpose.msra.mxu0 0.0
        %5133 = vmatprep.subr.mxu0 0.0
        %5134 = vmatpush1.xpose.msra.mxu0 0.0
        %5135 = vmatprep.subr.mxu0 0.0
        %5136 = vmatpush1.xpose.msra.mxu0 0.0
        %5137 = vmatprep.subr.mxu0 0.0
        %5138 = vmatpush1.xpose.msra.mxu0 0.0
        %5139 = vmatprep.subr.mxu0 0.0
        %5140 = vmatpush1.xpose.msra.mxu0 0.0
        %5141 = vmatprep.subr.mxu0 0.0
        %5142 = vmatpush1.xpose.msra.mxu0 0.0
        %5143 = vmatprep.subr.mxu0 0.0
        %5144 = vmatpush1.xpose.msra.mxu0 0.0
        %5145 = vmatprep.subr.mxu0 0.0
        %5146 = vmatpush1.xpose.msra.mxu0 0.0
        %5147 = vmatprep.subr.mxu0 0.0
        %5148 = vmatpush1.xpose.msra.mxu0 0.0
        %5149 = vmatprep.subr.mxu0 0.0
        %5150 = vmatpush1.xpose.msra.mxu0 0.0
        %5151 = vmatprep.subr.mxu0 0.0
        %5152 = vmatpush1.xpose.msra.mxu0 0.0
        %5153 = vmatprep.subr.mxu0 0.0
        %5154 = vmatpush1.xpose.msra.mxu0 0.0
        %5155 = vmatprep.subr.mxu0 0.0
        %5156 = vmatpush1.xpose.msra.mxu0 0.0
        %5157 = vmatprep.subr.mxu0 0.0
        %5158 = vmatpush1.xpose.msra.mxu0 0.0
        %5159 = vmatprep.mubr.f32.mxu0 0.0
        %5160 = vmatmul.mubr.f32.gmra.mrb[0].mxu0 %v5091
        %v5161 = vpop.f32.mrb[0].mxu0
        %v5162 = vadd.f32 %v475, %v5161
        %v5163 = vpop.f32.mrb[0].mxu0
        %5164 = vdwg.mxu0
        %v5165 = vsel %vm645, %v5162, -inf
        %5166 = vmax.xlane.f32.xlu0 %v5165
        %v5167 = vpop.xlane.xlu0 %5166
        %v5168 = vsub.f32 %v5162, %v5167
        %v5169 = vmul.f32 %v5168, 1.442695
        %v5170 = vpow.pop %v5169
        %v5171 = vsel %vm645, %v5170, 0.0
        %5172 = vadd.xlane.f32.xlu0 %v5171
        %v5173 = vpop.xlane.xlu0 %5172
        %v5174 = vrcp.pop %v5173
        %v5175 = vmul.f32 %v5170, %v5174
        %s5176 = scalar_lea.vmem %s442, 48
        %5177 = vst.msk [vmem:[%s5176] sm:$0x1f] %vm645, %v5175
        %5178 = vrot.lane.b32.xlu0 %v4743, 48
        %v5179 = vpop.permute.xlu0 %5178
        %v5181 = vsel %vm660, %v5175, 0
        %v5183 = vsel %vm664, %v5179, 0
        %5185 = vmatprep.subr.mxu0 0.0
        %5186 = vmatpush1.msra.mxu0 %v5183
        %5187 = vmatprep.subr.mxu0 0.0
        %5188 = vmatpush1.msra.mxu0 0.0
        %5189 = vmatprep.subr.mxu0 0.0
        %5190 = vmatpush1.msra.mxu0 0.0
        %5191 = vmatprep.subr.mxu0 0.0
        %5192 = vmatpush1.msra.mxu0 0.0
        %5193 = vmatprep.subr.mxu0 0.0
        %5194 = vmatpush1.msra.mxu0 0.0
        %5195 = vmatprep.subr.mxu0 0.0
        %5196 = vmatpush1.msra.mxu0 0.0
        %5197 = vmatprep.subr.mxu0 0.0
        %5198 = vmatpush1.msra.mxu0 0.0
        %5199 = vmatprep.subr.mxu0 0.0
        %5200 = vmatpush1.msra.mxu0 0.0
        %5201 = vmatprep.subr.mxu0 0.0
        %5202 = vmatpush1.msra.mxu0 0.0
        %5203 = vmatprep.subr.mxu0 0.0
        %5204 = vmatpush1.msra.mxu0 0.0
        %5205 = vmatprep.subr.mxu0 0.0
        %5206 = vmatpush1.msra.mxu0 0.0
        %5207 = vmatprep.subr.mxu0 0.0
        %5208 = vmatpush1.msra.mxu0 0.0
        %5209 = vmatprep.subr.mxu0 0.0
        %5210 = vmatpush1.msra.mxu0 0.0
        %5211 = vmatprep.subr.mxu0 0.0
        %5212 = vmatpush1.msra.mxu0 0.0
        %5213 = vmatprep.subr.mxu0 0.0
        %5214 = vmatpush1.msra.mxu0 0.0
        %5215 = vmatprep.subr.mxu0 0.0
        %5216 = vmatpush1.msra.mxu0 0.0
        %5217 = vmatprep.subr.mxu0 0.0
        %5218 = vmatpush1.msra.mxu0 0.0
        %5219 = vmatprep.subr.mxu0 0.0
        %5220 = vmatpush1.msra.mxu0 0.0
        %5221 = vmatprep.subr.mxu0 0.0
        %5222 = vmatpush1.msra.mxu0 0.0
        %5223 = vmatprep.subr.mxu0 0.0
        %5224 = vmatpush1.msra.mxu0 0.0
        %5225 = vmatprep.subr.mxu0 0.0
        %5226 = vmatpush1.msra.mxu0 0.0
        %5227 = vmatprep.subr.mxu0 0.0
        %5228 = vmatpush1.msra.mxu0 0.0
        %5229 = vmatprep.subr.mxu0 0.0
        %5230 = vmatpush1.msra.mxu0 0.0
        %5231 = vmatprep.subr.mxu0 0.0
        %5232 = vmatpush1.msra.mxu0 0.0
        %5233 = vmatprep.subr.mxu0 0.0
        %5234 = vmatpush1.msra.mxu0 0.0
        %5235 = vmatprep.subr.mxu0 0.0
        %5236 = vmatpush1.msra.mxu0 0.0
        %5237 = vmatprep.subr.mxu0 0.0
        %5238 = vmatpush1.msra.mxu0 0.0
        %5239 = vmatprep.subr.mxu0 0.0
        %5240 = vmatpush1.msra.mxu0 0.0
        %5241 = vmatprep.subr.mxu0 0.0
        %5242 = vmatpush1.msra.mxu0 0.0
        %5243 = vmatprep.subr.mxu0 0.0
        %5244 = vmatpush1.msra.mxu0 0.0
        %5245 = vmatprep.subr.mxu0 0.0
        %5246 = vmatpush1.msra.mxu0 0.0
        %5247 = vmatprep.subr.mxu0 0.0
        %5248 = vmatpush1.msra.mxu0 0.0
        %5249 = vmatprep.mubr.f32.mxu0 0.0
        %5250 = vmatmul.mubr.f32.gmra.mrb[0].mxu0 %v5181
        %v5251 = vpop.f32.mrb[0].mxu0
        %v5252 = vadd.f32 0.0, %v5251
        %v5253 = vpop.f32.mrb[0].mxu0
        %5254 = vdwg.mxu0
        %5256 = vrot.lane.b32.xlu0 %v5252, 16
        %v5257 = vpop.permute.xlu0 %5256
        %5259 = vst.msk [vmem:[#allocation2] sm:$0x1f] %vm1085, %v5257
        %5260 = vrot.lane.b32.xlu0 %v4743, 104
        %v5261 = vpop.permute.xlu0 %5260
        %5262 = vrot.lane.b32.xlu0 %v4743, 72
        %v5263 = vpop.permute.xlu0 %5262
        %v5264 = vsel %vm570, %v5261, 0
        %v5266 = vsel %vm570, %v5263, 0
        %5268 = vmatprep.subr.mxu0 0.0
        %5269 = vmatpush1.xpose.msra.mxu0 %v5266
        %5270 = vmatprep.subr.mxu0 0.0
        %5271 = vmatpush1.xpose.msra.mxu0 0.0
        %5272 = vmatprep.subr.mxu0 0.0
        %5273 = vmatpush1.xpose.msra.mxu0 0.0
        %5274 = vmatprep.subr.mxu0 0.0
        %5275 = vmatpush1.xpose.msra.mxu0 0.0
        %5276 = vmatprep.subr.mxu0 0.0
        %5277 = vmatpush1.xpose.msra.mxu0 0.0
        %5278 = vmatprep.subr.mxu0 0.0
        %5279 = vmatpush1.xpose.msra.mxu0 0.0
        %5280 = vmatprep.subr.mxu0 0.0
        %5281 = vmatpush1.xpose.msra.mxu0 0.0
        %5282 = vmatprep.subr.mxu0 0.0
        %5283 = vmatpush1.xpose.msra.mxu0 0.0
        %5284 = vmatprep.subr.mxu0 0.0
        %5285 = vmatpush1.xpose.msra.mxu0 0.0
        %5286 = vmatprep.subr.mxu0 0.0
        %5287 = vmatpush1.xpose.msra.mxu0 0.0
        %5288 = vmatprep.subr.mxu0 0.0
        %5289 = vmatpush1.xpose.msra.mxu0 0.0
        %5290 = vmatprep.subr.mxu0 0.0
        %5291 = vmatpush1.xpose.msra.mxu0 0.0
        %5292 = vmatprep.subr.mxu0 0.0
        %5293 = vmatpush1.xpose.msra.mxu0 0.0
        %5294 = vmatprep.subr.mxu0 0.0
        %5295 = vmatpush1.xpose.msra.mxu0 0.0
        %5296 = vmatprep.subr.mxu0 0.0
        %5297 = vmatpush1.xpose.msra.mxu0 0.0
        %5298 = vmatprep.subr.mxu0 0.0
        %5299 = vmatpush1.xpose.msra.mxu0 0.0
        %5300 = vmatprep.subr.mxu0 0.0
        %5301 = vmatpush1.xpose.msra.mxu0 0.0
        %5302 = vmatprep.subr.mxu0 0.0
        %5303 = vmatpush1.xpose.msra.mxu0 0.0
        %5304 = vmatprep.subr.mxu0 0.0
        %5305 = vmatpush1.xpose.msra.mxu0 0.0
        %5306 = vmatprep.subr.mxu0 0.0
        %5307 = vmatpush1.xpose.msra.mxu0 0.0
        %5308 = vmatprep.subr.mxu0 0.0
        %5309 = vmatpush1.xpose.msra.mxu0 0.0
        %5310 = vmatprep.subr.mxu0 0.0
        %5311 = vmatpush1.xpose.msra.mxu0 0.0
        %5312 = vmatprep.subr.mxu0 0.0
        %5313 = vmatpush1.xpose.msra.mxu0 0.0
        %5314 = vmatprep.subr.mxu0 0.0
        %5315 = vmatpush1.xpose.msra.mxu0 0.0
        %5316 = vmatprep.subr.mxu0 0.0
        %5317 = vmatpush1.xpose.msra.mxu0 0.0
        %5318 = vmatprep.subr.mxu0 0.0
        %5319 = vmatpush1.xpose.msra.mxu0 0.0
        %5320 = vmatprep.subr.mxu0 0.0
        %5321 = vmatpush1.xpose.msra.mxu0 0.0
        %5322 = vmatprep.subr.mxu0 0.0
        %5323 = vmatpush1.xpose.msra.mxu0 0.0
        %5324 = vmatprep.subr.mxu0 0.0
        %5325 = vmatpush1.xpose.msra.mxu0 0.0
        %5326 = vmatprep.subr.mxu0 0.0
        %5327 = vmatpush1.xpose.msra.mxu0 0.0
        %5328 = vmatprep.subr.mxu0 0.0
        %5329 = vmatpush1.xpose.msra.mxu0 0.0
        %5330 = vmatprep.subr.mxu0 0.0
        %5331 = vmatpush1.xpose.msra.mxu0 0.0
        %5332 = vmatprep.mubr.f32.mxu0 0.0
        %5333 = vmatmul.mubr.f32.gmra.mrb[0].mxu0 %v5264
        %v5334 = vpop.f32.mrb[0].mxu0
        %v5335 = vadd.f32 %v475, %v5334
        %v5336 = vpop.f32.mrb[0].mxu0
        %5337 = vdwg.mxu0
        %v5338 = vsel %vm645, %v5335, -inf
        %5339 = vmax.xlane.f32.xlu0 %v5338
        %v5340 = vpop.xlane.xlu0 %5339
        %v5341 = vsub.f32 %v5335, %v5340
        %v5342 = vmul.f32 %v5341, 1.442695
        %v5343 = vpow.pop %v5342
        %v5344 = vsel %vm645, %v5343, 0.0
        %5345 = vadd.xlane.f32.xlu0 %v5344
        %v5346 = vpop.xlane.xlu0 %5345
        %v5347 = vrcp.pop %v5346
        %v5348 = vmul.f32 %v5343, %v5347
        %s5349 = scalar_lea.vmem %s442, 56
        %5350 = vst.msk [vmem:[%s5349] sm:$0x1f] %vm645, %v5348
        %5351 = vrot.lane.b32.xlu0 %v4743, 40
        %v5352 = vpop.permute.xlu0 %5351
        %v5354 = vsel %vm660, %v5348, 0
        %v5356 = vsel %vm664, %v5352, 0
        %5358 = vmatprep.subr.mxu0 0.0
        %5359 = vmatpush1.msra.mxu0 %v5356
        %5360 = vmatprep.subr.mxu0 0.0
        %5361 = vmatpush1.msra.mxu0 0.0
        %5362 = vmatprep.subr.mxu0 0.0
        %5363 = vmatpush1.msra.mxu0 0.0
        %5364 = vmatprep.subr.mxu0 0.0
        %5365 = vmatpush1.msra.mxu0 0.0
        %5366 = vmatprep.subr.mxu0 0.0
        %5367 = vmatpush1.msra.mxu0 0.0
        %5368 = vmatprep.subr.mxu0 0.0
        %5369 = vmatpush1.msra.mxu0 0.0
        %5370 = vmatprep.subr.mxu0 0.0
        %5371 = vmatpush1.msra.mxu0 0.0
        %5372 = vmatprep.subr.mxu0 0.0
        %5373 = vmatpush1.msra.mxu0 0.0
        %5374 = vmatprep.subr.mxu0 0.0
        %5375 = vmatpush1.msra.mxu0 0.0
        %5376 = vmatprep.subr.mxu0 0.0
        %5377 = vmatpush1.msra.mxu0 0.0
        %5378 = vmatprep.subr.mxu0 0.0
        %5379 = vmatpush1.msra.mxu0 0.0
        %5380 = vmatprep.subr.mxu0 0.0
        %5381 = vmatpush1.msra.mxu0 0.0
        %5382 = vmatprep.subr.mxu0 0.0
        %5383 = vmatpush1.msra.mxu0 0.0
        %5384 = vmatprep.subr.mxu0 0.0
        %5385 = vmatpush1.msra.mxu0 0.0
        %5386 = vmatprep.subr.mxu0 0.0
        %5387 = vmatpush1.msra.mxu0 0.0
        %5388 = vmatprep.subr.mxu0 0.0
        %5389 = vmatpush1.msra.mxu0 0.0
        %5390 = vmatprep.subr.mxu0 0.0
        %5391 = vmatpush1.msra.mxu0 0.0
        %5392 = vmatprep.subr.mxu0 0.0
        %5393 = vmatpush1.msra.mxu0 0.0
        %5394 = vmatprep.subr.mxu0 0.0
        %5395 = vmatpush1.msra.mxu0 0.0
        %5396 = vmatprep.subr.mxu0 0.0
        %5397 = vmatpush1.msra.mxu0 0.0
        %5398 = vmatprep.subr.mxu0 0.0
        %5399 = vmatpush1.msra.mxu0 0.0
        %5400 = vmatprep.subr.mxu0 0.0
        %5401 = vmatpush1.msra.mxu0 0.0
        %5402 = vmatprep.subr.mxu0 0.0
        %5403 = vmatpush1.msra.mxu0 0.0
        %5404 = vmatprep.subr.mxu0 0.0
        %5405 = vmatpush1.msra.mxu0 0.0
        %5406 = vmatprep.subr.mxu0 0.0
        %5407 = vmatpush1.msra.mxu0 0.0
        %5408 = vmatprep.subr.mxu0 0.0
        %5409 = vmatpush1.msra.mxu0 0.0
        %5410 = vmatprep.subr.mxu0 0.0
        %5411 = vmatpush1.msra.mxu0 0.0
        %5412 = vmatprep.subr.mxu0 0.0
        %5413 = vmatpush1.msra.mxu0 0.0
        %5414 = vmatprep.subr.mxu0 0.0
        %5415 = vmatpush1.msra.mxu0 0.0
        %5416 = vmatprep.subr.mxu0 0.0
        %5417 = vmatpush1.msra.mxu0 0.0
        %5418 = vmatprep.subr.mxu0 0.0
        %5419 = vmatpush1.msra.mxu0 0.0
        %5420 = vmatprep.subr.mxu0 0.0
        %5421 = vmatpush1.msra.mxu0 0.0
        %5422 = vmatprep.mubr.f32.mxu0 0.0
        %5423 = vmatmul.mubr.f32.gmra.mrb[0].mxu0 %v5354
        %v5424 = vpop.f32.mrb[0].mxu0
        %v5425 = vadd.f32 0.0, %v5424
        %v5426 = vpop.f32.mrb[0].mxu0
        %5427 = vdwg.mxu0
        %5429 = vrot.lane.b32.xlu0 %v5425, 24
        %v5430 = vpop.permute.xlu0 %5429
        %5432 = vst.msk [vmem:[#allocation2] sm:$0x1f] %vm1259, %v5430
        %v5433 = vld [vmem:[#allocation2] sm:$0x1f]
        %v5434 = vlaneseq
        %v5435 = vshrl.u32 %v5434, 7
        %v5436 = vsub.s32 0, %v5435
        %v5437 = vrot.slane %v4666, %v5436
        %v5439 = vsel %vm493, %v5433, 0
        %5441 = vmatprep.subr.mxu0 0.0
        %5442 = vmatpush1.msra.mxu0 %v4662
        %5443 = vmatprep.subr.mxu0 0.0
        %5444 = vmatpush1.msra.mxu0 %v4663
        %5445 = vmatprep.subr.mxu0 0.0
        %5446 = vmatpush1.msra.mxu0 %v4664
        %5447 = vmatprep.subr.mxu0 0.0
        %5448 = vmatpush1.msra.mxu0 %v4665
        %5449 = vmatprep.subr.mxu0 0.0
        %5450 = vmatpush1.msra.mxu0 0.0
        %5451 = vmatprep.subr.mxu0 0.0
        %5452 = vmatpush1.msra.mxu0 0.0
        %5453 = vmatprep.subr.mxu0 0.0
        %5454 = vmatpush1.msra.mxu0 0.0
        %5455 = vmatprep.subr.mxu0 0.0
        %5456 = vmatpush1.msra.mxu0 0.0
        %5457 = vmatprep.subr.mxu0 0.0
        %5458 = vmatpush1.msra.mxu0 0.0
        %5459 = vmatprep.subr.mxu0 0.0
        %5460 = vmatpush1.msra.mxu0 0.0
        %5461 = vmatprep.subr.mxu0 0.0
        %5462 = vmatpush1.msra.mxu0 0.0
        %5463 = vmatprep.subr.mxu0 0.0
        %5464 = vmatpush1.msra.mxu0 0.0
        %5465 = vmatprep.subr.mxu0 0.0
        %5466 = vmatpush1.msra.mxu0 0.0
        %5467 = vmatprep.subr.mxu0 0.0
        %5468 = vmatpush1.msra.mxu0 0.0
        %5469 = vmatprep.subr.mxu0 0.0
        %5470 = vmatpush1.msra.mxu0 0.0
        %5471 = vmatprep.subr.mxu0 0.0
        %5472 = vmatpush1.msra.mxu0 0.0
        %5473 = vmatprep.subr.mxu0 0.0
        %5474 = vmatpush1.msra.mxu0 0.0
        %5475 = vmatprep.subr.mxu0 0.0
        %5476 = vmatpush1.msra.mxu0 0.0
        %5477 = vmatprep.subr.mxu0 0.0
        %5478 = vmatpush1.msra.mxu0 0.0
        %5479 = vmatprep.subr.mxu0 0.0
        %5480 = vmatpush1.msra.mxu0 0.0
        %5481 = vmatprep.subr.mxu0 0.0
        %5482 = vmatpush1.msra.mxu0 0.0
        %5483 = vmatprep.subr.mxu0 0.0
        %5484 = vmatpush1.msra.mxu0 0.0
        %5485 = vmatprep.subr.mxu0 0.0
        %5486 = vmatpush1.msra.mxu0 0.0
        %5487 = vmatprep.subr.mxu0 0.0
        %5488 = vmatpush1.msra.mxu0 0.0
        %5489 = vmatprep.subr.mxu0 0.0
        %5490 = vmatpush1.msra.mxu0 0.0
        %5491 = vmatprep.subr.mxu0 0.0
        %5492 = vmatpush1.msra.mxu0 0.0
        %5493 = vmatprep.subr.mxu0 0.0
        %5494 = vmatpush1.msra.mxu0 0.0
        %5495 = vmatprep.subr.mxu0 0.0
        %5496 = vmatpush1.msra.mxu0 0.0
        %5497 = vmatprep.subr.mxu0 0.0
        %5498 = vmatpush1.msra.mxu0 0.0
        %5499 = vmatprep.subr.mxu0 0.0
        %5500 = vmatpush1.msra.mxu0 0.0
        %5501 = vmatprep.subr.mxu0 0.0
        %5502 = vmatpush1.msra.mxu0 0.0
        %5503 = vmatprep.subr.mxu0 0.0
        %5504 = vmatpush1.msra.mxu0 0.0
        %5505 = vmatprep.mubr.f32.mxu0 0.0
        %5506 = vmatmul.mubr.f32.gmra.mrb[0].mxu0 %v5439
        %v5507 = vpop.f32.mrb[0].mxu0
        %v5508 = vadd.f32 %v5437, %v5507
        %v5509 = vpop.f32.mrb[0].mxu0
        %5510 = vdwg.mxu0
        %v5511 = vadd.f32 %v5508, %v4656
        %v5512 = vsel %vm1340, %v5511, 0.0
        %5513 = vadd.xlane.f32.xlu0 %v5512
        %v5514 = vpop.xlane.xlu0 %5513
        %v5515 = vmul.f32 %v5514, %v1344
        %v5516 = vsub.f32 %v5511, %v5515
        %v5517 = vmul.f32 %v5516, %v5516
        %v5518 = vsel %vm1340, %v5517, 0.0
        %5519 = vadd.xlane.f32.xlu0 %v5518
        %v5520 = vpop.xlane.xlu0 %5519
        %v5521 = vmul.f32 %v5520, %v1344
        %v5522 = vadd.f32 %v5521, 1e-05
        %v5523 = vrsqrt.pop %v5522
        %v5524 = vmul.f32 %v5516, %v5523
        %v5525 = vlaneseq
        %v5526 = vshrl.u32 %v5525, 7
        %v5527 = vsub.s32 0, %v5526
        %v5528 = vrot.slane %v4667, %v5527
        %v5529 = vmul.f32 %v5524, %v5528
        %v5530 = vlaneseq
        %v5531 = vshrl.u32 %v5530, 7
        %v5532 = vsub.s32 0, %v5531
        %v5533 = vrot.slane %v4668, %v5532
        %v5534 = vadd.f32 %v5529, %v5533
        %v5535 = vld [vmem:[#allocation3 + $0x360] sm:$0xff]
        %v5536 = vld [vmem:[#allocation3 + $0x368] sm:$0xff]
        %v5537 = vld [vmem:[#allocation3 + $0x370] sm:$0xff]
        %v5538 = vld [vmem:[#allocation3 + $0x378] sm:$0xff]
        %v5539 = vld [vmem:[#allocation3 + $0x380] sm:$0x1]
        %v5540 = vld [vmem:[#allocation3 + $0x388] sm:$0xff]
        %v5541 = vld [vmem:[#allocation3 + $0x390] sm:$0xff]
        %v5542 = vld [vmem:[#allocation3 + $0x398] sm:$0xff]
        %v5543 = vld [vmem:[#allocation3 + $0x3a0] sm:$0xff]
        %v5544 = vld [vmem:[#allocation3 + $0x3a8] sm:$0x1]
        %v5545 = vld [vmem:[#allocation3 + $0x3b0] sm:$0x1]
        %v5546 = vld [vmem:[#allocation3 + $0x3b8] sm:$0x1]
        %v5547 = vlaneseq
        %v5548 = vshrl.u32 %v5547, 7
        %v5549 = vsub.s32 0, %v5548
        %v5550 = vrot.slane %v5539, %v5549
        %v5552 = vsel %vm493, %v5534, 0
        %5554 = vmatprep.subr.mxu0 0.0
        %5555 = vmatpush1.msra.mxu0 %v5535
        %5556 = vmatprep.subr.mxu0 0.0
        %5557 = vmatpush1.msra.mxu0 %v5536
        %5558 = vmatprep.subr.mxu0 0.0
        %5559 = vmatpush1.msra.mxu0 %v5537
        %5560 = vmatprep.subr.mxu0 0.0
        %5561 = vmatpush1.msra.mxu0 %v5538
        %5562 = vmatprep.subr.mxu0 0.0
        %5563 = vmatpush1.msra.mxu0 0.0
        %5564 = vmatprep.subr.mxu0 0.0
        %5565 = vmatpush1.msra.mxu0 0.0
        %5566 = vmatprep.subr.mxu0 0.0
        %5567 = vmatpush1.msra.mxu0 0.0
        %5568 = vmatprep.subr.mxu0 0.0
        %5569 = vmatpush1.msra.mxu0 0.0
        %5570 = vmatprep.subr.mxu0 0.0
        %5571 = vmatpush1.msra.mxu0 0.0
        %5572 = vmatprep.subr.mxu0 0.0
        %5573 = vmatpush1.msra.mxu0 0.0
        %5574 = vmatprep.subr.mxu0 0.0
        %5575 = vmatpush1.msra.mxu0 0.0
        %5576 = vmatprep.subr.mxu0 0.0
        %5577 = vmatpush1.msra.mxu0 0.0
        %5578 = vmatprep.subr.mxu0 0.0
        %5579 = vmatpush1.msra.mxu0 0.0
        %5580 = vmatprep.subr.mxu0 0.0
        %5581 = vmatpush1.msra.mxu0 0.0
        %5582 = vmatprep.subr.mxu0 0.0
        %5583 = vmatpush1.msra.mxu0 0.0
        %5584 = vmatprep.subr.mxu0 0.0
        %5585 = vmatpush1.msra.mxu0 0.0
        %5586 = vmatprep.subr.mxu0 0.0
        %5587 = vmatpush1.msra.mxu0 0.0
        %5588 = vmatprep.subr.mxu0 0.0
        %5589 = vmatpush1.msra.mxu0 0.0
        %5590 = vmatprep.subr.mxu0 0.0
        %5591 = vmatpush1.msra.mxu0 0.0
        %5592 = vmatprep.subr.mxu0 0.0
        %5593 = vmatpush1.msra.mxu0 0.0
        %5594 = vmatprep.subr.mxu0 0.0
        %5595 = vmatpush1.msra.mxu0 0.0
        %5596 = vmatprep.subr.mxu0 0.0
        %5597 = vmatpush1.msra.mxu0 0.0
        %5598 = vmatprep.subr.mxu0 0.0
        %5599 = vmatpush1.msra.mxu0 0.0
        %5600 = vmatprep.subr.mxu0 0.0
        %5601 = vmatpush1.msra.mxu0 0.0
        %5602 = vmatprep.subr.mxu0 0.0
        %5603 = vmatpush1.msra.mxu0 0.0
        %5604 = vmatprep.subr.mxu0 0.0
        %5605 = vmatpush1.msra.mxu0 0.0
        %5606 = vmatprep.subr.mxu0 0.0
        %5607 = vmatpush1.msra.mxu0 0.0
        %5608 = vmatprep.subr.mxu0 0.0
        %5609 = vmatpush1.msra.mxu0 0.0
        %5610 = vmatprep.subr.mxu0 0.0
        %5611 = vmatpush1.msra.mxu0 0.0
        %5612 = vmatprep.subr.mxu0 0.0
        %5613 = vmatpush1.msra.mxu0 0.0
        %5614 = vmatprep.subr.mxu0 0.0
        %5615 = vmatpush1.msra.mxu0 0.0
        %5616 = vmatprep.subr.mxu0 0.0
        %5617 = vmatpush1.msra.mxu0 0.0
        %5618 = vmatprep.mubr.f32.mxu0 0.0
        %5619 = vmatmul.mubr.f32.gmra.mrb[0].mxu0 %v5552
        %v5620 = vpop.f32.mrb[0].mxu0
        %v5621 = vadd.f32 %v5550, %v5620
        %v5622 = vpop.f32.mrb[0].mxu0
        %5623 = vdwg.mxu0
        %5624 = vmatprep.subr.mxu0 0.0
        %5625 = vmatpush1.msra.mxu0 %v5535
        %5626 = vmatprep.subr.mxu0 0.0
        %5627 = vmatpush1.msra.mxu0 %v5536
        %5628 = vmatprep.subr.mxu0 0.0
        %5629 = vmatpush1.msra.mxu0 %v5537
        %5630 = vmatprep.subr.mxu0 0.0
        %5631 = vmatpush1.msra.mxu0 %v5538
        %5632 = vmatprep.subr.mxu0 0.0
        %5633 = vmatpush1.msra.mxu0 0.0
        %5634 = vmatprep.subr.mxu0 0.0
        %5635 = vmatpush1.msra.mxu0 0.0
        %5636 = vmatprep.subr.mxu0 0.0
        %5637 = vmatpush1.msra.mxu0 0.0
        %5638 = vmatprep.subr.mxu0 0.0
        %5639 = vmatpush1.msra.mxu0 0.0
        %5640 = vmatprep.subr.mxu0 0.0
        %5641 = vmatpush1.msra.mxu0 0.0
        %5642 = vmatprep.subr.mxu0 0.0
        %5643 = vmatpush1.msra.mxu0 0.0
        %5644 = vmatprep.subr.mxu0 0.0
        %5645 = vmatpush1.msra.mxu0 0.0
        %5646 = vmatprep.subr.mxu0 0.0
        %5647 = vmatpush1.msra.mxu0 0.0
        %5648 = vmatprep.subr.mxu0 0.0
        %5649 = vmatpush1.msra.mxu0 0.0
        %5650 = vmatprep.subr.mxu0 0.0
        %5651 = vmatpush1.msra.mxu0 0.0
        %5652 = vmatprep.subr.mxu0 0.0
        %5653 = vmatpush1.msra.mxu0 0.0
        %5654 = vmatprep.subr.mxu0 0.0
        %5655 = vmatpush1.msra.mxu0 0.0
        %5656 = vmatprep.subr.mxu0 0.0
        %5657 = vmatpush1.msra.mxu0 0.0
        %5658 = vmatprep.subr.mxu0 0.0
        %5659 = vmatpush1.msra.mxu0 0.0
        %5660 = vmatprep.subr.mxu0 0.0
        %5661 = vmatpush1.msra.mxu0 0.0
        %5662 = vmatprep.subr.mxu0 0.0
        %5663 = vmatpush1.msra.mxu0 0.0
        %5664 = vmatprep.subr.mxu0 0.0
        %5665 = vmatpush1.msra.mxu0 0.0
        %5666 = vmatprep.subr.mxu0 0.0
        %5667 = vmatpush1.msra.mxu0 0.0
        %5668 = vmatprep.subr.mxu0 0.0
        %5669 = vmatpush1.msra.mxu0 0.0
        %5670 = vmatprep.subr.mxu0 0.0
        %5671 = vmatpush1.msra.mxu0 0.0
        %5672 = vmatprep.subr.mxu0 0.0
        %5673 = vmatpush1.msra.mxu0 0.0
        %5674 = vmatprep.subr.mxu0 0.0
        %5675 = vmatpush1.msra.mxu0 0.0
        %5676 = vmatprep.subr.mxu0 0.0
        %5677 = vmatpush1.msra.mxu0 0.0
        %5678 = vmatprep.subr.mxu0 0.0
        %5679 = vmatpush1.msra.mxu0 0.0
        %5680 = vmatprep.subr.mxu0 0.0
        %5681 = vmatpush1.msra.mxu0 0.0
        %5682 = vmatprep.subr.mxu0 0.0
        %5683 = vmatpush1.msra.mxu0 0.0
        %5684 = vmatprep.subr.mxu0 0.0
        %5685 = vmatpush1.msra.mxu0 0.0
        %5686 = vmatprep.subr.mxu0 0.0
        %5687 = vmatpush1.msra.mxu0 0.0
        %5688 = vmatprep.mubr.f32.mxu0 0.0
        %5689 = vmatmul.mubr.f32.gmra.mrb[0].mxu0 %v3601
        %v5690 = vpop.f32.mrb[0].mxu0
        %v5691 = vadd.f32 %v5550, %v5690
        %v5692 = vpop.f32.mrb[0].mxu0
        %5693 = vdwg.mxu0
        %5695 = vrot.lane.b32.xlu0 %v5691, 96
        %v5696 = vpop.permute.xlu0 %5695
        %v5698 = vsel %vm570, %v5621, 0
        %v5700 = vsel %vm570, %v5696, 0
        %5702 = vmatprep.subr.mxu0 0.0
        %5703 = vmatpush1.xpose.msra.mxu0 %v5700
        %5704 = vmatprep.subr.mxu0 0.0
        %5705 = vmatpush1.xpose.msra.mxu0 0.0
        %5706 = vmatprep.subr.mxu0 0.0
        %5707 = vmatpush1.xpose.msra.mxu0 0.0
        %5708 = vmatprep.subr.mxu0 0.0
        %5709 = vmatpush1.xpose.msra.mxu0 0.0
        %5710 = vmatprep.subr.mxu0 0.0
        %5711 = vmatpush1.xpose.msra.mxu0 0.0
        %5712 = vmatprep.subr.mxu0 0.0
        %5713 = vmatpush1.xpose.msra.mxu0 0.0
        %5714 = vmatprep.subr.mxu0 0.0
        %5715 = vmatpush1.xpose.msra.mxu0 0.0
        %5716 = vmatprep.subr.mxu0 0.0
        %5717 = vmatpush1.xpose.msra.mxu0 0.0
        %5718 = vmatprep.subr.mxu0 0.0
        %5719 = vmatpush1.xpose.msra.mxu0 0.0
        %5720 = vmatprep.subr.mxu0 0.0
        %5721 = vmatpush1.xpose.msra.mxu0 0.0
        %5722 = vmatprep.subr.mxu0 0.0
        %5723 = vmatpush1.xpose.msra.mxu0 0.0
        %5724 = vmatprep.subr.mxu0 0.0
        %5725 = vmatpush1.xpose.msra.mxu0 0.0
        %5726 = vmatprep.subr.mxu0 0.0
        %5727 = vmatpush1.xpose.msra.mxu0 0.0
        %5728 = vmatprep.subr.mxu0 0.0
        %5729 = vmatpush1.xpose.msra.mxu0 0.0
        %5730 = vmatprep.subr.mxu0 0.0
        %5731 = vmatpush1.xpose.msra.mxu0 0.0
        %5732 = vmatprep.subr.mxu0 0.0
        %5733 = vmatpush1.xpose.msra.mxu0 0.0
        %5734 = vmatprep.subr.mxu0 0.0
        %5735 = vmatpush1.xpose.msra.mxu0 0.0
        %5736 = vmatprep.subr.mxu0 0.0
        %5737 = vmatpush1.xpose.msra.mxu0 0.0
        %5738 = vmatprep.subr.mxu0 0.0
        %5739 = vmatpush1.xpose.msra.mxu0 0.0
        %5740 = vmatprep.subr.mxu0 0.0
        %5741 = vmatpush1.xpose.msra.mxu0 0.0
        %5742 = vmatprep.subr.mxu0 0.0
        %5743 = vmatpush1.xpose.msra.mxu0 0.0
        %5744 = vmatprep.subr.mxu0 0.0
        %5745 = vmatpush1.xpose.msra.mxu0 0.0
        %5746 = vmatprep.subr.mxu0 0.0
        %5747 = vmatpush1.xpose.msra.mxu0 0.0
        %5748 = vmatprep.subr.mxu0 0.0
        %5749 = vmatpush1.xpose.msra.mxu0 0.0
        %5750 = vmatprep.subr.mxu0 0.0
        %5751 = vmatpush1.xpose.msra.mxu0 0.0
        %5752 = vmatprep.subr.mxu0 0.0
        %5753 = vmatpush1.xpose.msra.mxu0 0.0
        %5754 = vmatprep.subr.mxu0 0.0
        %5755 = vmatpush1.xpose.msra.mxu0 0.0
        %5756 = vmatprep.subr.mxu0 0.0
        %5757 = vmatpush1.xpose.msra.mxu0 0.0
        %5758 = vmatprep.subr.mxu0 0.0
        %5759 = vmatpush1.xpose.msra.mxu0 0.0
        %5760 = vmatprep.subr.mxu0 0.0
        %5761 = vmatpush1.xpose.msra.mxu0 0.0
        %5762 = vmatprep.subr.mxu0 0.0
        %5763 = vmatpush1.xpose.msra.mxu0 0.0
        %5764 = vmatprep.subr.mxu0 0.0
        %5765 = vmatpush1.xpose.msra.mxu0 0.0
        %5766 = vmatprep.mubr.f32.mxu0 0.0
        %5767 = vmatmul.mubr.f32.gmra.mrb[0].mxu0 %v5698
        %v5768 = vpop.f32.mrb[0].mxu0
        %v5769 = vadd.f32 %v476, %v5768
        %v5770 = vpop.f32.mrb[0].mxu0
        %5771 = vdwg.mxu0
        %v5772 = vsel %vm645, %v5769, -inf
        %5773 = vmax.xlane.f32.xlu0 %v5772
        %v5774 = vpop.xlane.xlu0 %5773
        %v5775 = vsub.f32 %v5769, %v5774
        %v5776 = vmul.f32 %v5775, 1.442695
        %v5777 = vpow.pop %v5776
        %v5778 = vsel %vm645, %v5777, 0.0
        %5779 = vadd.xlane.f32.xlu0 %v5778
        %v5780 = vpop.xlane.xlu0 %5779
        %v5781 = vrcp.pop %v5780
        %v5782 = vmul.f32 %v5777, %v5781
        %s5783 = scalar_lea.vmem %s447, 32
        %5784 = vst.msk [vmem:[%s5783] sm:$0x1f] %vm645, %v5782
        %5785 = vrot.lane.b32.xlu0 %v5691, 64
        %v5786 = vpop.permute.xlu0 %5785
        %v5788 = vsel %vm660, %v5782, 0
        %v5790 = vsel %vm664, %v5786, 0
        %5792 = vmatprep.subr.mxu0 0.0
        %5793 = vmatpush1.msra.mxu0 %v5790
        %5794 = vmatprep.subr.mxu0 0.0
        %5795 = vmatpush1.msra.mxu0 0.0
        %5796 = vmatprep.subr.mxu0 0.0
        %5797 = vmatpush1.msra.mxu0 0.0
        %5798 = vmatprep.subr.mxu0 0.0
        %5799 = vmatpush1.msra.mxu0 0.0
        %5800 = vmatprep.subr.mxu0 0.0
        %5801 = vmatpush1.msra.mxu0 0.0
        %5802 = vmatprep.subr.mxu0 0.0
        %5803 = vmatpush1.msra.mxu0 0.0
        %5804 = vmatprep.subr.mxu0 0.0
        %5805 = vmatpush1.msra.mxu0 0.0
        %5806 = vmatprep.subr.mxu0 0.0
        %5807 = vmatpush1.msra.mxu0 0.0
        %5808 = vmatprep.subr.mxu0 0.0
        %5809 = vmatpush1.msra.mxu0 0.0
        %5810 = vmatprep.subr.mxu0 0.0
        %5811 = vmatpush1.msra.mxu0 0.0
        %5812 = vmatprep.subr.mxu0 0.0
        %5813 = vmatpush1.msra.mxu0 0.0
        %5814 = vmatprep.subr.mxu0 0.0
        %5815 = vmatpush1.msra.mxu0 0.0
        %5816 = vmatprep.subr.mxu0 0.0
        %5817 = vmatpush1.msra.mxu0 0.0
        %5818 = vmatprep.subr.mxu0 0.0
        %5819 = vmatpush1.msra.mxu0 0.0
        %5820 = vmatprep.subr.mxu0 0.0
        %5821 = vmatpush1.msra.mxu0 0.0
        %5822 = vmatprep.subr.mxu0 0.0
        %5823 = vmatpush1.msra.mxu0 0.0
        %5824 = vmatprep.subr.mxu0 0.0
        %5825 = vmatpush1.msra.mxu0 0.0
        %5826 = vmatprep.subr.mxu0 0.0
        %5827 = vmatpush1.msra.mxu0 0.0
        %5828 = vmatprep.subr.mxu0 0.0
        %5829 = vmatpush1.msra.mxu0 0.0
        %5830 = vmatprep.subr.mxu0 0.0
        %5831 = vmatpush1.msra.mxu0 0.0
        %5832 = vmatprep.subr.mxu0 0.0
        %5833 = vmatpush1.msra.mxu0 0.0
        %5834 = vmatprep.subr.mxu0 0.0
        %5835 = vmatpush1.msra.mxu0 0.0
        %5836 = vmatprep.subr.mxu0 0.0
        %5837 = vmatpush1.msra.mxu0 0.0
        %5838 = vmatprep.subr.mxu0 0.0
        %5839 = vmatpush1.msra.mxu0 0.0
        %5840 = vmatprep.subr.mxu0 0.0
        %5841 = vmatpush1.msra.mxu0 0.0
        %5842 = vmatprep.subr.mxu0 0.0
        %5843 = vmatpush1.msra.mxu0 0.0
        %5844 = vmatprep.subr.mxu0 0.0
        %5845 = vmatpush1.msra.mxu0 0.0
        %5846 = vmatprep.subr.mxu0 0.0
        %5847 = vmatpush1.msra.mxu0 0.0
        %5848 = vmatprep.subr.mxu0 0.0
        %5849 = vmatpush1.msra.mxu0 0.0
        %5850 = vmatprep.subr.mxu0 0.0
        %5851 = vmatpush1.msra.mxu0 0.0
        %5852 = vmatprep.subr.mxu0 0.0
        %5853 = vmatpush1.msra.mxu0 0.0
        %5854 = vmatprep.subr.mxu0 0.0
        %5855 = vmatpush1.msra.mxu0 0.0
        %5856 = vmatprep.mubr.f32.mxu0 0.0
        %5857 = vmatmul.mubr.f32.gmra.mrb[0].mxu0 %v5788
        %v5858 = vpop.f32.mrb[0].mxu0
        %v5859 = vadd.f32 0.0, %v5858
        %v5860 = vpop.f32.mrb[0].mxu0
        %5861 = vdwg.mxu0
        %5862 = vst.msk [vmem:[#allocation2] sm:$0x1f] %vm737, %v5859
        %5863 = vrot.lane.b32.xlu0 %v5621, 120
        %v5864 = vpop.permute.xlu0 %5863
        %5865 = vrot.lane.b32.xlu0 %v5691, 88
        %v5866 = vpop.permute.xlu0 %5865
        %v5867 = vsel %vm570, %v5864, 0
        %v5869 = vsel %vm570, %v5866, 0
        %5871 = vmatprep.subr.mxu0 0.0
        %5872 = vmatpush1.xpose.msra.mxu0 %v5869
        %5873 = vmatprep.subr.mxu0 0.0
        %5874 = vmatpush1.xpose.msra.mxu0 0.0
        %5875 = vmatprep.subr.mxu0 0.0
        %5876 = vmatpush1.xpose.msra.mxu0 0.0
        %5877 = vmatprep.subr.mxu0 0.0
        %5878 = vmatpush1.xpose.msra.mxu0 0.0
        %5879 = vmatprep.subr.mxu0 0.0
        %5880 = vmatpush1.xpose.msra.mxu0 0.0
        %5881 = vmatprep.subr.mxu0 0.0
        %5882 = vmatpush1.xpose.msra.mxu0 0.0
        %5883 = vmatprep.subr.mxu0 0.0
        %5884 = vmatpush1.xpose.msra.mxu0 0.0
        %5885 = vmatprep.subr.mxu0 0.0
        %5886 = vmatpush1.xpose.msra.mxu0 0.0
        %5887 = vmatprep.subr.mxu0 0.0
        %5888 = vmatpush1.xpose.msra.mxu0 0.0
        %5889 = vmatprep.subr.mxu0 0.0
        %5890 = vmatpush1.xpose.msra.mxu0 0.0
        %5891 = vmatprep.subr.mxu0 0.0
        %5892 = vmatpush1.xpose.msra.mxu0 0.0
        %5893 = vmatprep.subr.mxu0 0.0
        %5894 = vmatpush1.xpose.msra.mxu0 0.0
        %5895 = vmatprep.subr.mxu0 0.0
        %5896 = vmatpush1.xpose.msra.mxu0 0.0
        %5897 = vmatprep.subr.mxu0 0.0
        %5898 = vmatpush1.xpose.msra.mxu0 0.0
        %5899 = vmatprep.subr.mxu0 0.0
        %5900 = vmatpush1.xpose.msra.mxu0 0.0
        %5901 = vmatprep.subr.mxu0 0.0
        %5902 = vmatpush1.xpose.msra.mxu0 0.0
        %5903 = vmatprep.subr.mxu0 0.0
        %5904 = vmatpush1.xpose.msra.mxu0 0.0
        %5905 = vmatprep.subr.mxu0 0.0
        %5906 = vmatpush1.xpose.msra.mxu0 0.0
        %5907 = vmatprep.subr.mxu0 0.0
        %5908 = vmatpush1.xpose.msra.mxu0 0.0
        %5909 = vmatprep.subr.mxu0 0.0
        %5910 = vmatpush1.xpose.msra.mxu0 0.0
        %5911 = vmatprep.subr.mxu0 0.0
        %5912 = vmatpush1.xpose.msra.mxu0 0.0
        %5913 = vmatprep.subr.mxu0 0.0
        %5914 = vmatpush1.xpose.msra.mxu0 0.0
        %5915 = vmatprep.subr.mxu0 0.0
        %5916 = vmatpush1.xpose.msra.mxu0 0.0
        %5917 = vmatprep.subr.mxu0 0.0
        %5918 = vmatpush1.xpose.msra.mxu0 0.0
        %5919 = vmatprep.subr.mxu0 0.0
        %5920 = vmatpush1.xpose.msra.mxu0 0.0
        %5921 = vmatprep.subr.mxu0 0.0
        %5922 = vmatpush1.xpose.msra.mxu0 0.0
        %5923 = vmatprep.subr.mxu0 0.0
        %5924 = vmatpush1.xpose.msra.mxu0 0.0
        %5925 = vmatprep.subr.mxu0 0.0
        %5926 = vmatpush1.xpose.msra.mxu0 0.0
        %5927 = vmatprep.subr.mxu0 0.0
        %5928 = vmatpush1.xpose.msra.mxu0 0.0
        %5929 = vmatprep.subr.mxu0 0.0
        %5930 = vmatpush1.xpose.msra.mxu0 0.0
        %5931 = vmatprep.subr.mxu0 0.0
        %5932 = vmatpush1.xpose.msra.mxu0 0.0
        %5933 = vmatprep.subr.mxu0 0.0
        %5934 = vmatpush1.xpose.msra.mxu0 0.0
        %5935 = vmatprep.mubr.f32.mxu0 0.0
        %5936 = vmatmul.mubr.f32.gmra.mrb[0].mxu0 %v5867
        %v5937 = vpop.f32.mrb[0].mxu0
        %v5938 = vadd.f32 %v476, %v5937
        %v5939 = vpop.f32.mrb[0].mxu0
        %5940 = vdwg.mxu0
        %v5941 = vsel %vm645, %v5938, -inf
        %5942 = vmax.xlane.f32.xlu0 %v5941
        %v5943 = vpop.xlane.xlu0 %5942
        %v5944 = vsub.f32 %v5938, %v5943
        %v5945 = vmul.f32 %v5944, 1.442695
        %v5946 = vpow.pop %v5945
        %v5947 = vsel %vm645, %v5946, 0.0
        %5948 = vadd.xlane.f32.xlu0 %v5947
        %v5949 = vpop.xlane.xlu0 %5948
        %v5950 = vrcp.pop %v5949
        %v5951 = vmul.f32 %v5946, %v5950
        %s5952 = scalar_lea.vmem %s447, 40
        %5953 = vst.msk [vmem:[%s5952] sm:$0x1f] %vm645, %v5951
        %5954 = vrot.lane.b32.xlu0 %v5691, 56
        %v5955 = vpop.permute.xlu0 %5954
        %v5957 = vsel %vm660, %v5951, 0
        %v5959 = vsel %vm664, %v5955, 0
        %5961 = vmatprep.subr.mxu0 0.0
        %5962 = vmatpush1.msra.mxu0 %v5959
        %5963 = vmatprep.subr.mxu0 0.0
        %5964 = vmatpush1.msra.mxu0 0.0
        %5965 = vmatprep.subr.mxu0 0.0
        %5966 = vmatpush1.msra.mxu0 0.0
        %5967 = vmatprep.subr.mxu0 0.0
        %5968 = vmatpush1.msra.mxu0 0.0
        %5969 = vmatprep.subr.mxu0 0.0
        %5970 = vmatpush1.msra.mxu0 0.0
        %5971 = vmatprep.subr.mxu0 0.0
        %5972 = vmatpush1.msra.mxu0 0.0
        %5973 = vmatprep.subr.mxu0 0.0
        %5974 = vmatpush1.msra.mxu0 0.0
        %5975 = vmatprep.subr.mxu0 0.0
        %5976 = vmatpush1.msra.mxu0 0.0
        %5977 = vmatprep.subr.mxu0 0.0
        %5978 = vmatpush1.msra.mxu0 0.0
        %5979 = vmatprep.subr.mxu0 0.0
        %5980 = vmatpush1.msra.mxu0 0.0
        %5981 = vmatprep.subr.mxu0 0.0
        %5982 = vmatpush1.msra.mxu0 0.0
        %5983 = vmatprep.subr.mxu0 0.0
        %5984 = vmatpush1.msra.mxu0 0.0
        %5985 = vmatprep.subr.mxu0 0.0
        %5986 = vmatpush1.msra.mxu0 0.0
        %5987 = vmatprep.subr.mxu0 0.0
        %5988 = vmatpush1.msra.mxu0 0.0
        %5989 = vmatprep.subr.mxu0 0.0
        %5990 = vmatpush1.msra.mxu0 0.0
        %5991 = vmatprep.subr.mxu0 0.0
        %5992 = vmatpush1.msra.mxu0 0.0
        %5993 = vmatprep.subr.mxu0 0.0
        %5994 = vmatpush1.msra.mxu0 0.0
        %5995 = vmatprep.subr.mxu0 0.0
        %5996 = vmatpush1.msra.mxu0 0.0
        %5997 = vmatprep.subr.mxu0 0.0
        %5998 = vmatpush1.msra.mxu0 0.0
        %5999 = vmatprep.subr.mxu0 0.0
        %6000 = vmatpush1.msra.mxu0 0.0
        %6001 = vmatprep.subr.mxu0 0.0
        %6002 = vmatpush1.msra.mxu0 0.0
        %6003 = vmatprep.subr.mxu0 0.0
        %6004 = vmatpush1.msra.mxu0 0.0
        %6005 = vmatprep.subr.mxu0 0.0
        %6006 = vmatpush1.msra.mxu0 0.0
        %6007 = vmatprep.subr.mxu0 0.0
        %6008 = vmatpush1.msra.mxu0 0.0
        %6009 = vmatprep.subr.mxu0 0.0
        %6010 = vmatpush1.msra.mxu0 0.0
        %6011 = vmatprep.subr.mxu0 0.0
        %6012 = vmatpush1.msra.mxu0 0.0
        %6013 = vmatprep.subr.mxu0 0.0
        %6014 = vmatpush1.msra.mxu0 0.0
        %6015 = vmatprep.subr.mxu0 0.0
        %6016 = vmatpush1.msra.mxu0 0.0
        %6017 = vmatprep.subr.mxu0 0.0
        %6018 = vmatpush1.msra.mxu0 0.0
        %6019 = vmatprep.subr.mxu0 0.0
        %6020 = vmatpush1.msra.mxu0 0.0
        %6021 = vmatprep.subr.mxu0 0.0
        %6022 = vmatpush1.msra.mxu0 0.0
        %6023 = vmatprep.subr.mxu0 0.0
        %6024 = vmatpush1.msra.mxu0 0.0
        %6025 = vmatprep.mubr.f32.mxu0 0.0
        %6026 = vmatmul.mubr.f32.gmra.mrb[0].mxu0 %v5957
        %v6027 = vpop.f32.mrb[0].mxu0
        %v6028 = vadd.f32 0.0, %v6027
        %v6029 = vpop.f32.mrb[0].mxu0
        %6030 = vdwg.mxu0
        %6032 = vrot.lane.b32.xlu0 %v6028, 8
        %v6033 = vpop.permute.xlu0 %6032
        %6035 = vst.msk [vmem:[#allocation2] sm:$0x1f] %vm911, %v6033
        %6036 = vrot.lane.b32.xlu0 %v5621, 112
        %v6037 = vpop.permute.xlu0 %6036
        %6038 = vrot.lane.b32.xlu0 %v5691, 80
        %v6039 = vpop.permute.xlu0 %6038
        %v6040 = vsel %vm570, %v6037, 0
        %v6042 = vsel %vm570, %v6039, 0
        %6044 = vmatprep.subr.mxu0 0.0
        %6045 = vmatpush1.xpose.msra.mxu0 %v6042
        %6046 = vmatprep.subr.mxu0 0.0
        %6047 = vmatpush1.xpose.msra.mxu0 0.0
        %6048 = vmatprep.subr.mxu0 0.0
        %6049 = vmatpush1.xpose.msra.mxu0 0.0
        %6050 = vmatprep.subr.mxu0 0.0
        %6051 = vmatpush1.xpose.msra.mxu0 0.0
        %6052 = vmatprep.subr.mxu0 0.0
        %6053 = vmatpush1.xpose.msra.mxu0 0.0
        %6054 = vmatprep.subr.mxu0 0.0
        %6055 = vmatpush1.xpose.msra.mxu0 0.0
        %6056 = vmatprep.subr.mxu0 0.0
        %6057 = vmatpush1.xpose.msra.mxu0 0.0
        %6058 = vmatprep.subr.mxu0 0.0
        %6059 = vmatpush1.xpose.msra.mxu0 0.0
        %6060 = vmatprep.subr.mxu0 0.0
        %6061 = vmatpush1.xpose.msra.mxu0 0.0
        %6062 = vmatprep.subr.mxu0 0.0
        %6063 = vmatpush1.xpose.msra.mxu0 0.0
        %6064 = vmatprep.subr.mxu0 0.0
        %6065 = vmatpush1.xpose.msra.mxu0 0.0
        %6066 = vmatprep.subr.mxu0 0.0
        %6067 = vmatpush1.xpose.msra.mxu0 0.0
        %6068 = vmatprep.subr.mxu0 0.0
        %6069 = vmatpush1.xpose.msra.mxu0 0.0
        %6070 = vmatprep.subr.mxu0 0.0
        %6071 = vmatpush1.xpose.msra.mxu0 0.0
        %6072 = vmatprep.subr.mxu0 0.0
        %6073 = vmatpush1.xpose.msra.mxu0 0.0
        %6074 = vmatprep.subr.mxu0 0.0
        %6075 = vmatpush1.xpose.msra.mxu0 0.0
        %6076 = vmatprep.subr.mxu0 0.0
        %6077 = vmatpush1.xpose.msra.mxu0 0.0
        %6078 = vmatprep.subr.mxu0 0.0
        %6079 = vmatpush1.xpose.msra.mxu0 0.0
        %6080 = vmatprep.subr.mxu0 0.0
        %6081 = vmatpush1.xpose.msra.mxu0 0.0
        %6082 = vmatprep.subr.mxu0 0.0
        %6083 = vmatpush1.xpose.msra.mxu0 0.0
        %6084 = vmatprep.subr.mxu0 0.0
        %6085 = vmatpush1.xpose.msra.mxu0 0.0
        %6086 = vmatprep.subr.mxu0 0.0
        %6087 = vmatpush1.xpose.msra.mxu0 0.0
        %6088 = vmatprep.subr.mxu0 0.0
        %6089 = vmatpush1.xpose.msra.mxu0 0.0
        %6090 = vmatprep.subr.mxu0 0.0
        %6091 = vmatpush1.xpose.msra.mxu0 0.0
        %6092 = vmatprep.subr.mxu0 0.0
        %6093 = vmatpush1.xpose.msra.mxu0 0.0
        %6094 = vmatprep.subr.mxu0 0.0
        %6095 = vmatpush1.xpose.msra.mxu0 0.0
        %6096 = vmatprep.subr.mxu0 0.0
        %6097 = vmatpush1.xpose.msra.mxu0 0.0
        %6098 = vmatprep.subr.mxu0 0.0
        %6099 = vmatpush1.xpose.msra.mxu0 0.0
        %6100 = vmatprep.subr.mxu0 0.0
        %6101 = vmatpush1.xpose.msra.mxu0 0.0
        %6102 = vmatprep.subr.mxu0 0.0
        %6103 = vmatpush1.xpose.msra.mxu0 0.0
        %6104 = vmatprep.subr.mxu0 0.0
        %6105 = vmatpush1.xpose.msra.mxu0 0.0
        %6106 = vmatprep.subr.mxu0 0.0
        %6107 = vmatpush1.xpose.msra.mxu0 0.0
        %6108 = vmatprep.mubr.f32.mxu0 0.0
        %6109 = vmatmul.mubr.f32.gmra.mrb[0].mxu0 %v6040
        %v6110 = vpop.f32.mrb[0].mxu0
        %v6111 = vadd.f32 %v476, %v6110
        %v6112 = vpop.f32.mrb[0].mxu0
        %6113 = vdwg.mxu0
        %v6114 = vsel %vm645, %v6111, -inf
        %6115 = vmax.xlane.f32.xlu0 %v6114
        %v6116 = vpop.xlane.xlu0 %6115
        %v6117 = vsub.f32 %v6111, %v6116
        %v6118 = vmul.f32 %v6117, 1.442695
        %v6119 = vpow.pop %v6118
        %v6120 = vsel %vm645, %v6119, 0.0
        %6121 = vadd.xlane.f32.xlu0 %v6120
        %v6122 = vpop.xlane.xlu0 %6121
        %v6123 = vrcp.pop %v6122
        %v6124 = vmul.f32 %v6119, %v6123
        %s6125 = scalar_lea.vmem %s447, 48
        %6126 = vst.msk [vmem:[%s6125] sm:$0x1f] %vm645, %v6124
        %6127 = vrot.lane.b32.xlu0 %v5691, 48
        %v6128 = vpop.permute.xlu0 %6127
        %v6130 = vsel %vm660, %v6124, 0
        %v6132 = vsel %vm664, %v6128, 0
        %6134 = vmatprep.subr.mxu0 0.0
        %6135 = vmatpush1.msra.mxu0 %v6132
        %6136 = vmatprep.subr.mxu0 0.0
        %6137 = vmatpush1.msra.mxu0 0.0
        %6138 = vmatprep.subr.mxu0 0.0
        %6139 = vmatpush1.msra.mxu0 0.0
        %6140 = vmatprep.subr.mxu0 0.0
        %6141 = vmatpush1.msra.mxu0 0.0
        %6142 = vmatprep.subr.mxu0 0.0
        %6143 = vmatpush1.msra.mxu0 0.0
        %6144 = vmatprep.subr.mxu0 0.0
        %6145 = vmatpush1.msra.mxu0 0.0
        %6146 = vmatprep.subr.mxu0 0.0
        %6147 = vmatpush1.msra.mxu0 0.0
        %6148 = vmatprep.subr.mxu0 0.0
        %6149 = vmatpush1.msra.mxu0 0.0
        %6150 = vmatprep.subr.mxu0 0.0
        %6151 = vmatpush1.msra.mxu0 0.0
        %6152 = vmatprep.subr.mxu0 0.0
        %6153 = vmatpush1.msra.mxu0 0.0
        %6154 = vmatprep.subr.mxu0 0.0
        %6155 = vmatpush1.msra.mxu0 0.0
        %6156 = vmatprep.subr.mxu0 0.0
        %6157 = vmatpush1.msra.mxu0 0.0
        %6158 = vmatprep.subr.mxu0 0.0
        %6159 = vmatpush1.msra.mxu0 0.0
        %6160 = vmatprep.subr.mxu0 0.0
        %6161 = vmatpush1.msra.mxu0 0.0
        %6162 = vmatprep.subr.mxu0 0.0
        %6163 = vmatpush1.msra.mxu0 0.0
        %6164 = vmatprep.subr.mxu0 0.0
        %6165 = vmatpush1.msra.mxu0 0.0
        %6166 = vmatprep.subr.mxu0 0.0
        %6167 = vmatpush1.msra.mxu0 0.0
        %6168 = vmatprep.subr.mxu0 0.0
        %6169 = vmatpush1.msra.mxu0 0.0
        %6170 = vmatprep.subr.mxu0 0.0
        %6171 = vmatpush1.msra.mxu0 0.0
        %6172 = vmatprep.subr.mxu0 0.0
        %6173 = vmatpush1.msra.mxu0 0.0
        %6174 = vmatprep.subr.mxu0 0.0
        %6175 = vmatpush1.msra.mxu0 0.0
        %6176 = vmatprep.subr.mxu0 0.0
        %6177 = vmatpush1.msra.mxu0 0.0
        %6178 = vmatprep.subr.mxu0 0.0
        %6179 = vmatpush1.msra.mxu0 0.0
        %6180 = vmatprep.subr.mxu0 0.0
        %6181 = vmatpush1.msra.mxu0 0.0
        %6182 = vmatprep.subr.mxu0 0.0
        %6183 = vmatpush1.msra.mxu0 0.0
        %6184 = vmatprep.subr.mxu0 0.0
        %6185 = vmatpush1.msra.mxu0 0.0
        %6186 = vmatprep.subr.mxu0 0.0
        %6187 = vmatpush1.msra.mxu0 0.0
        %6188 = vmatprep.subr.mxu0 0.0
        %6189 = vmatpush1.msra.mxu0 0.0
        %6190 = vmatprep.subr.mxu0 0.0
        %6191 = vmatpush1.msra.mxu0 0.0
        %6192 = vmatprep.subr.mxu0 0.0
        %6193 = vmatpush1.msra.mxu0 0.0
        %6194 = vmatprep.subr.mxu0 0.0
        %6195 = vmatpush1.msra.mxu0 0.0
        %6196 = vmatprep.subr.mxu0 0.0
        %6197 = vmatpush1.msra.mxu0 0.0
        %6198 = vmatprep.mubr.f32.mxu0 0.0
        %6199 = vmatmul.mubr.f32.gmra.mrb[0].mxu0 %v6130
        %v6200 = vpop.f32.mrb[0].mxu0
        %v6201 = vadd.f32 0.0, %v6200
        %v6202 = vpop.f32.mrb[0].mxu0
        %6203 = vdwg.mxu0
        %6205 = vrot.lane.b32.xlu0 %v6201, 16
        %v6206 = vpop.permute.xlu0 %6205
        %6208 = vst.msk [vmem:[#allocation2] sm:$0x1f] %vm1085, %v6206
        %6209 = vrot.lane.b32.xlu0 %v5621, 104
        %v6210 = vpop.permute.xlu0 %6209
        %6211 = vrot.lane.b32.xlu0 %v5691, 72
        %v6212 = vpop.permute.xlu0 %6211
        %v6213 = vsel %vm570, %v6210, 0
        %v6215 = vsel %vm570, %v6212, 0
        %6217 = vmatprep.subr.mxu0 0.0
        %6218 = vmatpush1.xpose.msra.mxu0 %v6215
        %6219 = vmatprep.subr.mxu0 0.0
        %6220 = vmatpush1.xpose.msra.mxu0 0.0
        %6221 = vmatprep.subr.mxu0 0.0
        %6222 = vmatpush1.xpose.msra.mxu0 0.0
        %6223 = vmatprep.subr.mxu0 0.0
        %6224 = vmatpush1.xpose.msra.mxu0 0.0
        %6225 = vmatprep.subr.mxu0 0.0
        %6226 = vmatpush1.xpose.msra.mxu0 0.0
        %6227 = vmatprep.subr.mxu0 0.0
        %6228 = vmatpush1.xpose.msra.mxu0 0.0
        %6229 = vmatprep.subr.mxu0 0.0
        %6230 = vmatpush1.xpose.msra.mxu0 0.0
        %6231 = vmatprep.subr.mxu0 0.0
        %6232 = vmatpush1.xpose.msra.mxu0 0.0
        %6233 = vmatprep.subr.mxu0 0.0
        %6234 = vmatpush1.xpose.msra.mxu0 0.0
        %6235 = vmatprep.subr.mxu0 0.0
        %6236 = vmatpush1.xpose.msra.mxu0 0.0
        %6237 = vmatprep.subr.mxu0 0.0
        %6238 = vmatpush1.xpose.msra.mxu0 0.0
        %6239 = vmatprep.subr.mxu0 0.0
        %6240 = vmatpush1.xpose.msra.mxu0 0.0
        %6241 = vmatprep.subr.mxu0 0.0
        %6242 = vmatpush1.xpose.msra.mxu0 0.0
        %6243 = vmatprep.subr.mxu0 0.0
        %6244 = vmatpush1.xpose.msra.mxu0 0.0
        %6245 = vmatprep.subr.mxu0 0.0
        %6246 = vmatpush1.xpose.msra.mxu0 0.0
        %6247 = vmatprep.subr.mxu0 0.0
        %6248 = vmatpush1.xpose.msra.mxu0 0.0
        %6249 = vmatprep.subr.mxu0 0.0
        %6250 = vmatpush1.xpose.msra.mxu0 0.0
        %6251 = vmatprep.subr.mxu0 0.0
        %6252 = vmatpush1.xpose.msra.mxu0 0.0
        %6253 = vmatprep.subr.mxu0 0.0
        %6254 = vmatpush1.xpose.msra.mxu0 0.0
        %6255 = vmatprep.subr.mxu0 0.0
        %6256 = vmatpush1.xpose.msra.mxu0 0.0
        %6257 = vmatprep.subr.mxu0 0.0
        %6258 = vmatpush1.xpose.msra.mxu0 0.0
        %6259 = vmatprep.subr.mxu0 0.0
        %6260 = vmatpush1.xpose.msra.mxu0 0.0
        %6261 = vmatprep.subr.mxu0 0.0
        %6262 = vmatpush1.xpose.msra.mxu0 0.0
        %6263 = vmatprep.subr.mxu0 0.0
        %6264 = vmatpush1.xpose.msra.mxu0 0.0
        %6265 = vmatprep.subr.mxu0 0.0
        %6266 = vmatpush1.xpose.msra.mxu0 0.0
        %6267 = vmatprep.subr.mxu0 0.0
        %6268 = vmatpush1.xpose.msra.mxu0 0.0
        %6269 = vmatprep.subr.mxu0 0.0
        %6270 = vmatpush1.xpose.msra.mxu0 0.0
        %6271 = vmatprep.subr.mxu0 0.0
        %6272 = vmatpush1.xpose.msra.mxu0 0.0
        %6273 = vmatprep.subr.mxu0 0.0
        %6274 = vmatpush1.xpose.msra.mxu0 0.0
        %6275 = vmatprep.subr.mxu0 0.0
        %6276 = vmatpush1.xpose.msra.mxu0 0.0
        %6277 = vmatprep.subr.mxu0 0.0
        %6278 = vmatpush1.xpose.msra.mxu0 0.0
        %6279 = vmatprep.subr.mxu0 0.0
        %6280 = vmatpush1.xpose.msra.mxu0 0.0
        %6281 = vmatprep.mubr.f32.mxu0 0.0
        %6282 = vmatmul.mubr.f32.gmra.mrb[0].mxu0 %v6213
        %v6283 = vpop.f32.mrb[0].mxu0
        %v6284 = vadd.f32 %v476, %v6283
        %v6285 = vpop.f32.mrb[0].mxu0
        %6286 = vdwg.mxu0
        %v6287 = vsel %vm645, %v6284, -inf
        %6288 = vmax.xlane.f32.xlu0 %v6287
        %v6289 = vpop.xlane.xlu0 %6288
        %v6290 = vsub.f32 %v6284, %v6289
        %v6291 = vmul.f32 %v6290, 1.442695
        %v6292 = vpow.pop %v6291
        %v6293 = vsel %vm645, %v6292, 0.0
        %6294 = vadd.xlane.f32.xlu0 %v6293
        %v6295 = vpop.xlane.xlu0 %6294
        %v6296 = vrcp.pop %v6295
        %v6297 = vmul.f32 %v6292, %v6296
        %s6298 = scalar_lea.vmem %s447, 56
        %6299 = vst.msk [vmem:[%s6298] sm:$0x1f] %vm645, %v6297
        %6300 = vrot.lane.b32.xlu0 %v5691, 40
        %v6301 = vpop.permute.xlu0 %6300
        %v6303 = vsel %vm660, %v6297, 0
        %v6305 = vsel %vm664, %v6301, 0
        %6307 = vmatprep.subr.mxu0 0.0
        %6308 = vmatpush1.msra.mxu0 %v6305
        %6309 = vmatprep.subr.mxu0 0.0
        %6310 = vmatpush1.msra.mxu0 0.0
        %6311 = vmatprep.subr.mxu0 0.0
        %6312 = vmatpush1.msra.mxu0 0.0
        %6313 = vmatprep.subr.mxu0 0.0
        %6314 = vmatpush1.msra.mxu0 0.0
        %6315 = vmatprep.subr.mxu0 0.0
        %6316 = vmatpush1.msra.mxu0 0.0
        %6317 = vmatprep.subr.mxu0 0.0
        %6318 = vmatpush1.msra.mxu0 0.0
        %6319 = vmatprep.subr.mxu0 0.0
        %6320 = vmatpush1.msra.mxu0 0.0
        %6321 = vmatprep.subr.mxu0 0.0
        %6322 = vmatpush1.msra.mxu0 0.0
        %6323 = vmatprep.subr.mxu0 0.0
        %6324 = vmatpush1.msra.mxu0 0.0
        %6325 = vmatprep.subr.mxu0 0.0
        %6326 = vmatpush1.msra.mxu0 0.0
        %6327 = vmatprep.subr.mxu0 0.0
        %6328 = vmatpush1.msra.mxu0 0.0
        %6329 = vmatprep.subr.mxu0 0.0
        %6330 = vmatpush1.msra.mxu0 0.0
        %6331 = vmatprep.subr.mxu0 0.0
        %6332 = vmatpush1.msra.mxu0 0.0
        %6333 = vmatprep.subr.mxu0 0.0
        %6334 = vmatpush1.msra.mxu0 0.0
        %6335 = vmatprep.subr.mxu0 0.0
        %6336 = vmatpush1.msra.mxu0 0.0
        %6337 = vmatprep.subr.mxu0 0.0
        %6338 = vmatpush1.msra.mxu0 0.0
        %6339 = vmatprep.subr.mxu0 0.0
        %6340 = vmatpush1.msra.mxu0 0.0
        %6341 = vmatprep.subr.mxu0 0.0
        %6342 = vmatpush1.msra.mxu0 0.0
        %6343 = vmatprep.subr.mxu0 0.0
        %6344 = vmatpush1.msra.mxu0 0.0
        %6345 = vmatprep.subr.mxu0 0.0
        %6346 = vmatpush1.msra.mxu0 0.0
        %6347 = vmatprep.subr.mxu0 0.0
        %6348 = vmatpush1.msra.mxu0 0.0
        %6349 = vmatprep.subr.mxu0 0.0
        %6350 = vmatpush1.msra.mxu0 0.0
        %6351 = vmatprep.subr.mxu0 0.0
        %6352 = vmatpush1.msra.mxu0 0.0
        %6353 = vmatprep.subr.mxu0 0.0
        %6354 = vmatpush1.msra.mxu0 0.0
        %6355 = vmatprep.subr.mxu0 0.0
        %6356 = vmatpush1.msra.mxu0 0.0
        %6357 = vmatprep.subr.mxu0 0.0
        %6358 = vmatpush1.msra.mxu0 0.0
        %6359 = vmatprep.subr.mxu0 0.0
        %6360 = vmatpush1.msra.mxu0 0.0
        %6361 = vmatprep.subr.mxu0 0.0
        %6362 = vmatpush1.msra.mxu0 0.0
        %6363 = vmatprep.subr.mxu0 0.0
        %6364 = vmatpush1.msra.mxu0 0.0
        %6365 = vmatprep.subr.mxu0 0.0
        %6366 = vmatpush1.msra.mxu0 0.0
        %6367 = vmatprep.subr.mxu0 0.0
        %6368 = vmatpush1.msra.mxu0 0.0
        %6369 = vmatprep.subr.mxu0 0.0
        %6370 = vmatpush1.msra.mxu0 0.0
        %6371 = vmatprep.mubr.f32.mxu0 0.0
        %6372 = vmatmul.mubr.f32.gmra.mrb[0].mxu0 %v6303
        %v6373 = vpop.f32.mrb[0].mxu0
        %v6374 = vadd.f32 0.0, %v6373
        %v6375 = vpop.f32.mrb[0].mxu0
        %6376 = vdwg.mxu0
        %6378 = vrot.lane.b32.xlu0 %v6374, 24
        %v6379 = vpop.permute.xlu0 %6378
        %6381 = vst.msk [vmem:[#allocation2] sm:$0x1f] %vm1259, %v6379
        %v6382 = vld [vmem:[#allocation2] sm:$0x1f]
        %v6383 = vlaneseq
        %v6384 = vshrl.u32 %v6383, 7
        %v6385 = vsub.s32 0, %v6384
        %v6386 = vrot.slane %v5544, %v6385
        %v6388 = vsel %vm493, %v6382, 0
        %6390 = vmatprep.subr.mxu0 0.0
        %6391 = vmatpush1.msra.mxu0 %v5540
        %6392 = vmatprep.subr.mxu0 0.0
        %6393 = vmatpush1.msra.mxu0 %v5541
        %6394 = vmatprep.subr.mxu0 0.0
        %6395 = vmatpush1.msra.mxu0 %v5542
        %6396 = vmatprep.subr.mxu0 0.0
        %6397 = vmatpush1.msra.mxu0 %v5543
        %6398 = vmatprep.subr.mxu0 0.0
        %6399 = vmatpush1.msra.mxu0 0.0
        %6400 = vmatprep.subr.mxu0 0.0
        %6401 = vmatpush1.msra.mxu0 0.0
        %6402 = vmatprep.subr.mxu0 0.0
        %6403 = vmatpush1.msra.mxu0 0.0
        %6404 = vmatprep.subr.mxu0 0.0
        %6405 = vmatpush1.msra.mxu0 0.0
        %6406 = vmatprep.subr.mxu0 0.0
        %6407 = vmatpush1.msra.mxu0 0.0
        %6408 = vmatprep.subr.mxu0 0.0
        %6409 = vmatpush1.msra.mxu0 0.0
        %6410 = vmatprep.subr.mxu0 0.0
        %6411 = vmatpush1.msra.mxu0 0.0
        %6412 = vmatprep.subr.mxu0 0.0
        %6413 = vmatpush1.msra.mxu0 0.0
        %6414 = vmatprep.subr.mxu0 0.0
        %6415 = vmatpush1.msra.mxu0 0.0
        %6416 = vmatprep.subr.mxu0 0.0
        %6417 = vmatpush1.msra.mxu0 0.0
        %6418 = vmatprep.subr.mxu0 0.0
        %6419 = vmatpush1.msra.mxu0 0.0
        %6420 = vmatprep.subr.mxu0 0.0
        %6421 = vmatpush1.msra.mxu0 0.0
        %6422 = vmatprep.subr.mxu0 0.0
        %6423 = vmatpush1.msra.mxu0 0.0
        %6424 = vmatprep.subr.mxu0 0.0
        %6425 = vmatpush1.msra.mxu0 0.0
        %6426 = vmatprep.subr.mxu0 0.0
        %6427 = vmatpush1.msra.mxu0 0.0
        %6428 = vmatprep.subr.mxu0 0.0
        %6429 = vmatpush1.msra.mxu0 0.0
        %6430 = vmatprep.subr.mxu0 0.0
        %6431 = vmatpush1.msra.mxu0 0.0
        %6432 = vmatprep.subr.mxu0 0.0
        %6433 = vmatpush1.msra.mxu0 0.0
        %6434 = vmatprep.subr.mxu0 0.0
        %6435 = vmatpush1.msra.mxu0 0.0
        %6436 = vmatprep.subr.mxu0 0.0
        %6437 = vmatpush1.msra.mxu0 0.0
        %6438 = vmatprep.subr.mxu0 0.0
        %6439 = vmatpush1.msra.mxu0 0.0
        %6440 = vmatprep.subr.mxu0 0.0
        %6441 = vmatpush1.msra.mxu0 0.0
        %6442 = vmatprep.subr.mxu0 0.0
        %6443 = vmatpush1.msra.mxu0 0.0
        %6444 = vmatprep.subr.mxu0 0.0
        %6445 = vmatpush1.msra.mxu0 0.0
        %6446 = vmatprep.subr.mxu0 0.0
        %6447 = vmatpush1.msra.mxu0 0.0
        %6448 = vmatprep.subr.mxu0 0.0
        %6449 = vmatpush1.msra.mxu0 0.0
        %6450 = vmatprep.subr.mxu0 0.0
        %6451 = vmatpush1.msra.mxu0 0.0
        %6452 = vmatprep.subr.mxu0 0.0
        %6453 = vmatpush1.msra.mxu0 0.0
        %6454 = vmatprep.mubr.f32.mxu0 0.0
        %6455 = vmatmul.mubr.f32.gmra.mrb[0].mxu0 %v6388
        %v6456 = vpop.f32.mrb[0].mxu0
        %v6457 = vadd.f32 %v6386, %v6456
        %v6458 = vpop.f32.mrb[0].mxu0
        %6459 = vdwg.mxu0
        %v6460 = vadd.f32 %v6457, %v5534
        %v6461 = vsel %vm1340, %v6460, 0.0
        %6462 = vadd.xlane.f32.xlu0 %v6461
        %v6463 = vpop.xlane.xlu0 %6462
        %v6464 = vmul.f32 %v6463, %v1344
        %v6465 = vsub.f32 %v6460, %v6464
        %v6466 = vmul.f32 %v6465, %v6465
        %v6467 = vsel %vm1340, %v6466, 0.0
        %6468 = vadd.xlane.f32.xlu0 %v6467
        %v6469 = vpop.xlane.xlu0 %6468
        %v6470 = vmul.f32 %v6469, %v1344
        %v6471 = vadd.f32 %v6470, 1e-05
        %v6472 = vrsqrt.pop %v6471
        %v6473 = vmul.f32 %v6465, %v6472
        %v6474 = vlaneseq
        %v6475 = vshrl.u32 %v6474, 7
        %v6476 = vsub.s32 0, %v6475
        %v6477 = vrot.slane %v5545, %v6476
        %v6478 = vmul.f32 %v6473, %v6477
        %v6479 = vlaneseq
        %v6480 = vshrl.u32 %v6479, 7
        %v6481 = vsub.s32 0, %v6480
        %v6482 = vrot.slane %v5546, %v6481
        %v6483 = vadd.f32 %v6478, %v6482
        %v6484 = vld [vmem:[#allocation3 + $0x3c0] sm:$0xff]
        %v6485 = vld [vmem:[#allocation3 + $0x3c8] sm:$0xff]
        %v6486 = vld [vmem:[#allocation3 + $0x3d0] sm:$0xff]
        %v6487 = vld [vmem:[#allocation3 + $0x3d8] sm:$0xff]
        %v6488 = vld [vmem:[#allocation3 + $0x3e0] sm:$0x1]
        %v6489 = vld [vmem:[#allocation3 + $0x3e8] sm:$0xff]
        %v6490 = vld [vmem:[#allocation3 + $0x3f0] sm:$0xff]
        %v6491 = vld [vmem:[#allocation3 + $0x3f8] sm:$0xff]
        %v6492 = vld [vmem:[#allocation3 + $0x400] sm:$0xff]
        %v6493 = vld [vmem:[#allocation3 + $0x408] sm:$0xff]
        %v6494 = vld [vmem:[#allocation3 + $0x410] sm:$0xff]
        %v6495 = vld [vmem:[#allocation3 + $0x418] sm:$0xff]
        %v6496 = vld [vmem:[#allocation3 + $0x420] sm:$0xff]
        %v6497 = vld [vmem:[#allocation3 + $0x428] sm:$0x1]
        %v6498 = vld [vmem:[#allocation3 + $0x430] sm:$0x1]
        %v6499 = vld [vmem:[#allocation3 + $0x438] sm:$0x1]
        %v6500 = vlaneseq
        %v6501 = vshrl.u32 %v6500, 7
        %v6502 = vsub.s32 0, %v6501
        %v6503 = vrot.slane %v6488, %v6502
        %v6505 = vsel %vm493, %v6483, 0
        %6507 = vmatprep.subr.mxu0 0.0
        %6508 = vmatpush1.msra.mxu0 %v6484
        %6509 = vmatprep.subr.mxu0 0.0
        %6510 = vmatpush1.msra.mxu0 %v6485
        %6511 = vmatprep.subr.mxu0 0.0
        %6512 = vmatpush1.msra.mxu0 %v6486
        %6513 = vmatprep.subr.mxu0 0.0
        %6514 = vmatpush1.msra.mxu0 %v6487
        %6515 = vmatprep.subr.mxu0 0.0
        %6516 = vmatpush1.msra.mxu0 0.0
        %6517 = vmatprep.subr.mxu0 0.0
        %6518 = vmatpush1.msra.mxu0 0.0
        %6519 = vmatprep.subr.mxu0 0.0
        %6520 = vmatpush1.msra.mxu0 0.0
        %6521 = vmatprep.subr.mxu0 0.0
        %6522 = vmatpush1.msra.mxu0 0.0
        %6523 = vmatprep.subr.mxu0 0.0
        %6524 = vmatpush1.msra.mxu0 0.0
        %6525 = vmatprep.subr.mxu0 0.0
        %6526 = vmatpush1.msra.mxu0 0.0
        %6527 = vmatprep.subr.mxu0 0.0
        %6528 = vmatpush1.msra.mxu0 0.0
        %6529 = vmatprep.subr.mxu0 0.0
        %6530 = vmatpush1.msra.mxu0 0.0
        %6531 = vmatprep.subr.mxu0 0.0
        %6532 = vmatpush1.msra.mxu0 0.0
        %6533 = vmatprep.subr.mxu0 0.0
        %6534 = vmatpush1.msra.mxu0 0.0
        %6535 = vmatprep.subr.mxu0 0.0
        %6536 = vmatpush1.msra.mxu0 0.0
        %6537 = vmatprep.subr.mxu0 0.0
        %6538 = vmatpush1.msra.mxu0 0.0
        %6539 = vmatprep.subr.mxu0 0.0
        %6540 = vmatpush1.msra.mxu0 0.0
        %6541 = vmatprep.subr.mxu0 0.0
        %6542 = vmatpush1.msra.mxu0 0.0
        %6543 = vmatprep.subr.mxu0 0.0
        %6544 = vmatpush1.msra.mxu0 0.0
        %6545 = vmatprep.subr.mxu0 0.0
        %6546 = vmatpush1.msra.mxu0 0.0
        %6547 = vmatprep.subr.mxu0 0.0
        %6548 = vmatpush1.msra.mxu0 0.0
        %6549 = vmatprep.subr.mxu0 0.0
        %6550 = vmatpush1.msra.mxu0 0.0
        %6551 = vmatprep.subr.mxu0 0.0
        %6552 = vmatpush1.msra.mxu0 0.0
        %6553 = vmatprep.subr.mxu0 0.0
        %6554 = vmatpush1.msra.mxu0 0.0
        %6555 = vmatprep.subr.mxu0 0.0
        %6556 = vmatpush1.msra.mxu0 0.0
        %6557 = vmatprep.subr.mxu0 0.0
        %6558 = vmatpush1.msra.mxu0 0.0
        %6559 = vmatprep.subr.mxu0 0.0
        %6560 = vmatpush1.msra.mxu0 0.0
        %6561 = vmatprep.subr.mxu0 0.0
        %6562 = vmatpush1.msra.mxu0 0.0
        %6563 = vmatprep.subr.mxu0 0.0
        %6564 = vmatpush1.msra.mxu0 0.0
        %6565 = vmatprep.subr.mxu0 0.0
        %6566 = vmatpush1.msra.mxu0 0.0
        %6567 = vmatprep.subr.mxu0 0.0
        %6568 = vmatpush1.msra.mxu0 0.0
        %6569 = vmatprep.subr.mxu0 0.0
        %6570 = vmatpush1.msra.mxu0 0.0
        %6571 = vmatprep.mubr.f32.mxu0 0.0
        %6572 = vmatmul.mubr.f32.gmra.mrb[0].mxu0 %v6505
        %v6573 = vpop.f32.mrb[0].mxu0
        %v6574 = vadd.f32 %v6503, %v6573
        %v6575 = vpop.f32.mrb[0].mxu0
        %6576 = vdwg.mxu0
        %v6577 = vmax.f32 %v6574, 0.0
        %v6578 = vlaneseq
        %v6579 = vshrl.u32 %v6578, 7
        %v6580 = vsub.s32 0, %v6579
        %v6581 = vrot.slane %v6497, %v6580
        %v6583 = vsel %vm1463, %v6577, 0
        %6585 = vmatprep.subr.mxu0 0.0
        %6586 = vmatpush1.msra.mxu0 %v6489
        %6587 = vmatprep.subr.mxu0 0.0
        %6588 = vmatpush1.msra.mxu0 %v6490
        %6589 = vmatprep.subr.mxu0 0.0
        %6590 = vmatpush1.msra.mxu0 %v6491
        %6591 = vmatprep.subr.mxu0 0.0
        %6592 = vmatpush1.msra.mxu0 %v6492
        %6593 = vmatprep.subr.mxu0 0.0
        %6594 = vmatpush1.msra.mxu0 %v6493
        %6595 = vmatprep.subr.mxu0 0.0
        %6596 = vmatpush1.msra.mxu0 %v6494
        %6597 = vmatprep.subr.mxu0 0.0
        %6598 = vmatpush1.msra.mxu0 %v6495
        %6599 = vmatprep.subr.mxu0 0.0
        %6600 = vmatpush1.msra.mxu0 %v6496
        %6601 = vmatprep.subr.mxu0 0.0
        %6602 = vmatpush1.msra.mxu0 0.0
        %6603 = vmatprep.subr.mxu0 0.0
        %6604 = vmatpush1.msra.mxu0 0.0
        %6605 = vmatprep.subr.mxu0 0.0
        %6606 = vmatpush1.msra.mxu0 0.0
        %6607 = vmatprep.subr.mxu0 0.0
        %6608 = vmatpush1.msra.mxu0 0.0
        %6609 = vmatprep.subr.mxu0 0.0
        %6610 = vmatpush1.msra.mxu0 0.0
        %6611 = vmatprep.subr.mxu0 0.0
        %6612 = vmatpush1.msra.mxu0 0.0
        %6613 = vmatprep.subr.mxu0 0.0
        %6614 = vmatpush1.msra.mxu0 0.0
        %6615 = vmatprep.subr.mxu0 0.0
        %6616 = vmatpush1.msra.mxu0 0.0
        %6617 = vmatprep.subr.mxu0 0.0
        %6618 = vmatpush1.msra.mxu0 0.0
        %6619 = vmatprep.subr.mxu0 0.0
        %6620 = vmatpush1.msra.mxu0 0.0
        %6621 = vmatprep.subr.mxu0 0.0
        %6622 = vmatpush1.msra.mxu0 0.0
        %6623 = vmatprep.subr.mxu0 0.0
        %6624 = vmatpush1.msra.mxu0 0.0
        %6625 = vmatprep.subr.mxu0 0.0
        %6626 = vmatpush1.msra.mxu0 0.0
        %6627 = vmatprep.subr.mxu0 0.0
        %6628 = vmatpush1.msra.mxu0 0.0
        %6629 = vmatprep.subr.mxu0 0.0
        %6630 = vmatpush1.msra.mxu0 0.0
        %6631 = vmatprep.subr.mxu0 0.0
        %6632 = vmatpush1.msra.mxu0 0.0
        %6633 = vmatprep.subr.mxu0 0.0
        %6634 = vmatpush1.msra.mxu0 0.0
        %6635 = vmatprep.subr.mxu0 0.0
        %6636 = vmatpush1.msra.mxu0 0.0
        %6637 = vmatprep.subr.mxu0 0.0
        %6638 = vmatpush1.msra.mxu0 0.0
        %6639 = vmatprep.subr.mxu0 0.0
        %6640 = vmatpush1.msra.mxu0 0.0
        %6641 = vmatprep.subr.mxu0 0.0
        %6642 = vmatpush1.msra.mxu0 0.0
        %6643 = vmatprep.subr.mxu0 0.0
        %6644 = vmatpush1.msra.mxu0 0.0
        %6645 = vmatprep.subr.mxu0 0.0
        %6646 = vmatpush1.msra.mxu0 0.0
        %6647 = vmatprep.subr.mxu0 0.0
        %6648 = vmatpush1.msra.mxu0 0.0
        %6649 = vmatprep.mubr.f32.mxu0 0.0
        %6650 = vmatmul.mubr.f32.gmra.mrb[0].mxu0 %v6583
        %v6651 = vpop.f32.mrb[0].mxu0
        %v6652 = vadd.f32 %v6581, %v6651
        %v6653 = vpop.f32.mrb[0].mxu0
        %6654 = vdwg.mxu0
        %v6655 = vadd.f32 %v6652, %v6483
        %v6656 = vsel %vm1340, %v6655, 0.0
        %6657 = vadd.xlane.f32.xlu0 %v6656
        %v6658 = vpop.xlane.xlu0 %6657
        %v6659 = vmul.f32 %v6658, %v1344
        %v6660 = vsub.f32 %v6655, %v6659
        %v6661 = vmul.f32 %v6660, %v6660
        %v6662 = vsel %vm1340, %v6661, 0.0
        %6663 = vadd.xlane.f32.xlu0 %v6662
        %v6664 = vpop.xlane.xlu0 %6663
        %v6665 = vmul.f32 %v6664, %v1344
        %v6666 = vadd.f32 %v6665, 1e-05
        %v6667 = vrsqrt.pop %v6666
        %v6668 = vmul.f32 %v6660, %v6667
        %v6669 = vlaneseq
        %v6670 = vshrl.u32 %v6669, 7
        %v6671 = vsub.s32 0, %v6670
        %v6672 = vrot.slane %v6498, %v6671
        %v6673 = vmul.f32 %v6668, %v6672
        %v6674 = vlaneseq
        %v6675 = vshrl.u32 %v6674, 7
        %v6676 = vsub.s32 0, %v6675
        %v6677 = vrot.slane %v6499, %v6676
        %v6678 = vadd.f32 %v6673, %v6677
        %v6679 = vld [vmem:[#allocation3 + $0x440] sm:$0xff]
        %v6680 = vld [vmem:[#allocation3 + $0x448] sm:$0xff]
        %v6681 = vld [vmem:[#allocation3 + $0x450] sm:$0xff]
        %v6682 = vld [vmem:[#allocation3 + $0x458] sm:$0xff]
        %v6684 = vsel %vm493, %v6678, 0
        %6686 = vmatprep.subr.mxu0 0.0
        %6687 = vmatpush1.msra.mxu0 %v6679
        %6688 = vmatprep.subr.mxu0 0.0
        %6689 = vmatpush1.msra.mxu0 %v6680
        %6690 = vmatprep.subr.mxu0 0.0
        %6691 = vmatpush1.msra.mxu0 %v6681
        %6692 = vmatprep.subr.mxu0 0.0
        %6693 = vmatpush1.msra.mxu0 %v6682
        %6694 = vmatprep.subr.mxu0 0.0
        %6695 = vmatpush1.msra.mxu0 0.0
        %6696 = vmatprep.subr.mxu0 0.0
        %6697 = vmatpush1.msra.mxu0 0.0
        %6698 = vmatprep.subr.mxu0 0.0
        %6699 = vmatpush1.msra.mxu0 0.0
        %6700 = vmatprep.subr.mxu0 0.0
        %6701 = vmatpush1.msra.mxu0 0.0
        %6702 = vmatprep.subr.mxu0 0.0
        %6703 = vmatpush1.msra.mxu0 0.0
        %6704 = vmatprep.subr.mxu0 0.0
        %6705 = vmatpush1.msra.mxu0 0.0
        %6706 = vmatprep.subr.mxu0 0.0
        %6707 = vmatpush1.msra.mxu0 0.0
        %6708 = vmatprep.subr.mxu0 0.0
        %6709 = vmatpush1.msra.mxu0 0.0
        %6710 = vmatprep.subr.mxu0 0.0
        %6711 = vmatpush1.msra.mxu0 0.0
        %6712 = vmatprep.subr.mxu0 0.0
        %6713 = vmatpush1.msra.mxu0 0.0
        %6714 = vmatprep.subr.mxu0 0.0
        %6715 = vmatpush1.msra.mxu0 0.0
        %6716 = vmatprep.subr.mxu0 0.0
        %6717 = vmatpush1.msra.mxu0 0.0
        %6718 = vmatprep.subr.mxu0 0.0
        %6719 = vmatpush1.msra.mxu0 0.0
        %6720 = vmatprep.subr.mxu0 0.0
        %6721 = vmatpush1.msra.mxu0 0.0
        %6722 = vmatprep.subr.mxu0 0.0
        %6723 = vmatpush1.msra.mxu0 0.0
        %6724 = vmatprep.subr.mxu0 0.0
        %6725 = vmatpush1.msra.mxu0 0.0
        %6726 = vmatprep.subr.mxu0 0.0
        %6727 = vmatpush1.msra.mxu0 0.0
        %6728 = vmatprep.subr.mxu0 0.0
        %6729 = vmatpush1.msra.mxu0 0.0
        %6730 = vmatprep.subr.mxu0 0.0
        %6731 = vmatpush1.msra.mxu0 0.0
        %6732 = vmatprep.subr.mxu0 0.0
        %6733 = vmatpush1.msra.mxu0 0.0
        %6734 = vmatprep.subr.mxu0 0.0
        %6735 = vmatpush1.msra.mxu0 0.0
        %6736 = vmatprep.subr.mxu0 0.0
        %6737 = vmatpush1.msra.mxu0 0.0
        %6738 = vmatprep.subr.mxu0 0.0
        %6739 = vmatpush1.msra.mxu0 0.0
        %6740 = vmatprep.subr.mxu0 0.0
        %6741 = vmatpush1.msra.mxu0 0.0
        %6742 = vmatprep.subr.mxu0 0.0
        %6743 = vmatpush1.msra.mxu0 0.0
        %6744 = vmatprep.subr.mxu0 0.0
        %6745 = vmatpush1.msra.mxu0 0.0
        %6746 = vmatprep.subr.mxu0 0.0
        %6747 = vmatpush1.msra.mxu0 0.0
        %6748 = vmatprep.subr.mxu0 0.0
        %6749 = vmatpush1.msra.mxu0 0.0
        %6750 = vmatprep.mubr.f32.mxu0 0.0
        %6751 = vmatmul.mubr.f32.gmra.mrb[0].mxu0 %v6684
        %v6752 = vpop.f32.mrb[0].mxu0
        %v6753 = vadd.f32 0.0, %v6752
        %v6754 = vpop.f32.mrb[0].mxu0
        %6755 = vdwg.mxu0
        %6756 = vst [vmem:[%s432] sm:$0x1f] %v6753
        %p6757 = scmp.lt.s32.totalorder %s22, 1
        %s6758 = scalar_select %p6757, %s22, 1
        %s6759 = smul.addr %s6758, 8
        %s6760 = scalar_lea.vmem %s6, %s6759
        %p6761 = scmp.lt.s32.totalorder %s22, 1
        %s6762 = scalar_select %p6761, %s22, 1
        %s6763 = smul.addr %s6762, 8
        %s6764 = smul.addr %s6763, 8
        %s6765 = scalar_lea.vmem %s7, %s6764
        %p6766 = scmp.lt.s32.totalorder %s22, 1
        %s6767 = scalar_select %p6766, %s22, 1
        %s6768 = smul.addr %s6767, 8
        %s6769 = smul.addr %s6768, 8
        %s6770 = scalar_lea.vmem %s8, %s6769
        %p6771 = scmp.lt.s32.totalorder %s22, 1
        %s6772 = scalar_select %p6771, %s22, 1
        %s6773 = smul.addr %s6772, 8
        %s6774 = smul.addr %s6773, 8
        %s6775 = scalar_lea.vmem %s9, %s6774
        // Predicated region
        $region49: #{tpu_custom_call.1} parent=43 // pred_check
          %p6776 = pneg %p191
        $region50: #{tpu_custom_call.1} parent=43 // pred_check_branch
          %6778 = sbr.rel (%p6776) target = $region52
        $region51: #{tpu_custom_call.1} parent=43 // pred_region
          _
        $region52: #{tpu_custom_call.1} parent=43 // pred_fallthru
          _
        // Predicated region
        $region53: #{tpu_custom_call.1} parent=43 // pred_check
          %p6779 = pneg %p217
        $region54: #{tpu_custom_call.1} parent=43 // pred_check_branch
          %6781 = sbr.rel (%p6779) target = $region56
        $region55: #{tpu_custom_call.1} parent=43 // pred_region
          _
        $region56: #{tpu_custom_call.1} parent=43 // pred_fallthru
          _
        // Predicated region
        $region57: #{tpu_custom_call.1} parent=43 // pred_check
          %p6782 = pneg %p243
        $region58: #{tpu_custom_call.1} parent=43 // pred_check_branch
          %6784 = sbr.rel (%p6782) target = $region60
        $region59: #{tpu_custom_call.1} parent=43 // pred_region
          _
        $region60: #{tpu_custom_call.1} parent=43 // pred_fallthru
          _
        // Predicated region
        $region61: #{tpu_custom_call.1} parent=43 // pred_check
          %p6785 = pneg %p269
        $region62: #{tpu_custom_call.1} parent=43 // pred_check_branch
          %6787 = sbr.rel (%p6785) target = $region64
        $region63: #{tpu_custom_call.1} parent=43 // pred_region
          _
        $region64: #{tpu_custom_call.1} parent=43 // pred_fallthru
          _
      $region44: #{tpu_custom_call.1} parent=5 // pred_fallthru
        _
      %p6788 = scmp.le.s32.totalorder 2, %s17
      // Predicated region
      $region65: #{tpu_custom_call.1} parent=5 // pred_check
        %p6789 = pneg %p6788
      $region66: #{tpu_custom_call.1} parent=5 // pred_check_branch
        %6791 = sbr.rel (%p6789) target = $region68
      $region67: #{tpu_custom_call.1} parent=5 // pred_region
        %s6792 = ssub.s32 %s17, 2
        // Predicated region
        $region69: #{tpu_custom_call.1} parent=67 // pred_check
          %p6793 = pneg %p197
        $region70: #{tpu_custom_call.1} parent=67 // pred_check_branch
          %6795 = sbr.rel (%p6793) target = $region72
        $region71: #{tpu_custom_call.1} parent=67 // pred_region
          %p6796 = scmp.lt.s32.totalorder %s23, 1
          %s6797 = scalar_select %p6796, %s23, 1
          %s6798 = smul.addr %s6797, 8
          %s6799 = scalar_lea.vmem %s6, %s6798
        $region72: #{tpu_custom_call.1} parent=67 // pred_fallthru
          _
        // Predicated region
        $region73: #{tpu_custom_call.1} parent=67 // pred_check
          %p6800 = pneg %p223
        $region74: #{tpu_custom_call.1} parent=67 // pred_check_branch
          %6802 = sbr.rel (%p6800) target = $region76
        $region75: #{tpu_custom_call.1} parent=67 // pred_region
          %p6803 = scmp.lt.s32.totalorder %s23, 1
          %s6804 = scalar_select %p6803, %s23, 1
          %s6805 = smul.addr %s6804, 8
          %s6806 = smul.addr %s6805, 8
          %s6807 = scalar_lea.vmem %s7, %s6806
        $region76: #{tpu_custom_call.1} parent=67 // pred_fallthru
          _
        // Predicated region
        $region77: #{tpu_custom_call.1} parent=67 // pred_check
          %p6808 = pneg %p249
        $region78: #{tpu_custom_call.1} parent=67 // pred_check_branch
          %6810 = sbr.rel (%p6808) target = $region80
        $region79: #{tpu_custom_call.1} parent=67 // pred_region
          %p6811 = scmp.lt.s32.totalorder %s23, 1
          %s6812 = scalar_select %p6811, %s23, 1
          %s6813 = smul.addr %s6812, 8
          %s6814 = smul.addr %s6813, 8
          %s6815 = scalar_lea.vmem %s8, %s6814
        $region80: #{tpu_custom_call.1} parent=67 // pred_fallthru
          _
        // Predicated region
        $region81: #{tpu_custom_call.1} parent=67 // pred_check
          %p6816 = pneg %p275
        $region82: #{tpu_custom_call.1} parent=67 // pred_check_branch
          %6818 = sbr.rel (%p6816) target = $region84
        $region83: #{tpu_custom_call.1} parent=67 // pred_region
          %p6819 = scmp.lt.s32.totalorder %s23, 1
          %s6820 = scalar_select %p6819, %s23, 1
          %s6821 = smul.addr %s6820, 8
          %s6822 = smul.addr %s6821, 8
          %s6823 = scalar_lea.vmem %s9, %s6822
        $region84: #{tpu_custom_call.1} parent=67 // pred_fallthru
          _
      $region68: #{tpu_custom_call.1} parent=5 // pred_fallthru
        _
    $region6: #{tpu_custom_call.1} parent=1 // loop_footer
      %s21 = sadd.s32 1, %s17
    $region7: #{tpu_custom_call.1} parent=1 // loop_footer_branch
      %16 = sbr.rel target = $region3
    $region8: #{tpu_custom_call.1} parent=1 // loop_exit
      _
    %6824 = vsyncpa [#allocation4], 1
    %s6825 = scalar_lea.sflag [#allocation4], 1
    %6826 = vsyncpa %s6825, 1

</llo_original>
